<compile_context>
chip_gen: v7x
topology: tpu7x:2x2x1
jax: 0.10.0
libtpu: 0.0.40
codegen_flags: <defaults>
</compile_context>

<pallas_src>
import functools

import jax
import jax.numpy as jnp
from jax.experimental import pallas as pl
from jax.experimental.pallas import tpu as pltpu


def _mm_bf16(a, w):
    """a @ w on the MXU: bf16 operands, f32 accumulation."""
    return jnp.dot(a.astype(jnp.bfloat16), w.astype(jnp.bfloat16),
                   preferred_element_type=jnp.float32)


# ----------------------------- Fully fused forward kernel ----------------------------- #
def _nli_bilstm_kernel(*refs, n_lstm_layers, n_fc_layers, seq_len, batch, hidden,
                       real_batch):
    H, B, T = hidden, batch, seq_len
    it = iter(refs)
    x_ref = next(it)                      # (T*B, E)  bf16   fused prem+hypo embeddings
    lens_ref = next(it)                   # (B, 1)    int32  per-row true lengths
    tw_ref = next(it)                     # (E, H)    bf16   translation weight
    tb_ref = next(it)                     # (1, H)    f32    translation bias
    lstm_refs = [(next(it), next(it), next(it)) for _ in range(n_lstm_layers)]
    fcw_ref = next(it)                    # (n_fc, 4H, 4H) bf16
    fcb_ref = next(it)                    # (n_fc, 1, 4H)  f32
    ow_ref = next(it)                     # (4H, P)   bf16  (P lane-padded)
    ob_ref = next(it)                     # (1, P)    f32
    out_ref = next(it)                    # (real_batch, P) f32
    gx_sc = next(it)                      # (T*B, 8H) f32   hoisted gates_x, both dirs
    hsf_sc = next(it)                     # (T*B, H)  f32   per-position fwd hidden
    hsr_sc = next(it)                     # (T*B, H)  f32   per-position rev hidden

    lens_v = lens_ref[...]                               # (B, 1) int32

    # Translation Linear + ReLU, computed ONCE for the fused prem+hypo batch.
    xt = jnp.maximum(_mm_bf16(x_ref[...], tw_ref[...]) + tb_ref[...], 0.0)  # (T*B, H)

    def cell(g, c_prev):
        # One EUP sigmoid pass over all four gate blocks; tanh only on the g slice.
        sig = jax.nn.sigmoid(g)
        i_g = sig[:, 0 * H:1 * H]
        f_g = sig[:, 1 * H:2 * H]
        o_g = sig[:, 3 * H:4 * H]
        g_g = jnp.tanh(g[:, 2 * H:3 * H])
        c_new = f_g * c_prev + i_g * g_g
        return o_g * jnp.tanh(c_new), c_new

    hfin_f = hfin_r = None
    for l in range(n_lstm_layers):
        wih_ref, whh_ref, b_ref = lstm_refs[l]

        # Hoisted input projection for BOTH directions (outside the serial chain):
        # one big MXU matmul over the whole flattened sequence, bias folded in.
        if l == 0:
            gx = _mm_bf16(xt, wih_ref[...])
        else:
            wih = wih_ref[...]                              # (2H, 8H) bf16
            gx = (_mm_bf16(hsf_sc[...], wih[0:H]) +
                  _mm_bf16(hsr_sc[...], wih[H:2 * H]))
        gx_sc[...] = gx + b_ref[...]

        whh = whh_ref[...]                                  # (H, 8H) f32 (recurrence in f32)
        whh_f = whh[:, 0:4 * H]
        whh_r = whh[:, 4 * H:8 * H]

        def step(t, carry, whh_f=whh_f, whh_r=whh_r):
            h_f, c_f, h_r, c_r = carry
            t_r = T - 1 - t
            row_f = pl.multiple_of(t * B, B)
            row_r = pl.multiple_of(t_r * B, B)
            valid_f = t < lens_v                            # (B, 1) per-row length mask
            valid_r = t_r < lens_v
            # Two independent dependency chains per step (fwd & rev interleaved).
            g_f = gx_sc[pl.ds(row_f, B), 0:4 * H] + jnp.dot(
                h_f, whh_f, preferred_element_type=jnp.float32)
            g_r = gx_sc[pl.ds(row_r, B), 4 * H:8 * H] + jnp.dot(
                h_r, whh_r, preferred_element_type=jnp.float32)
            hf_new, cf_new = cell(g_f, c_f)
            hr_new, cr_new = cell(g_r, c_r)
            # Freeze state on padded steps so each row sees its exact-length scan.
            h_f = jnp.where(valid_f, hf_new, h_f)
            c_f = jnp.where(valid_f, cf_new, c_f)
            h_r = jnp.where(valid_r, hr_new, h_r)
            c_r = jnp.where(valid_r, cr_new, c_r)
            hsf_sc[pl.ds(row_f, B)] = h_f
            hsr_sc[pl.ds(row_r, B)] = h_r
            return (h_f, c_f, h_r, c_r)

        zeros = jnp.zeros((B, H), jnp.float32)
        hfin_f, _, hfin_r, _ = jax.lax.fori_loop(
            0, T, step, (zeros, zeros, zeros, zeros), unroll=min(T, 8))
        # TODO(synk): inter-layer LSTM dropout omitted (eval-mode identity).

    # Final hidden, PyTorch order: cat(hidden[-1], hidden[-2]) per sequence, then
    # cat(prem, hypo) -> [prem_rev, prem_fwd, hypo_rev, hypo_fwd].  The row->lane
    # movement is done through the first head matmul (weight split by input block),
    # avoiding any in-kernel shuffles/concats.
    rb = real_batch
    pieces = (hfin_r[0:rb], hfin_f[0:rb],
              hfin_r[rb:2 * rb], hfin_f[rb:2 * rb])         # each (rb, H)

    def head_from_pieces(w, b):
        acc = b
        for idx, piece in enumerate(pieces):
            acc = acc + _mm_bf16(piece, w[idx * H:(idx + 1) * H])
        return acc                                           # (rb, F)

    if n_fc_layers > 0:
        h = jnp.maximum(head_from_pieces(fcw_ref[0], fcb_ref[0]), 0.0)
        for l in range(1, n_fc_layers):
            h = jnp.maximum(_mm_bf16(h, fcw_ref[l]) + fcb_ref[l], 0.0)
            # TODO(synk): dropout after each fc layer omitted (eval-mode identity).
        out_ref[...] = _mm_bf16(h, ow_ref[...]) + ob_ref[...]
    else:
        out_ref[...] = head_from_pieces(ow_ref[...], ob_ref[...])


def _full_block(a):
    zeros = (0,) * a.ndim
    return pl.BlockSpec(a.shape, lambda i, _z=zeros: _z)


# ----------------------------- Parameter init (deterministic, synthetic) ----------------------------- #
def init_params(key, input_dim, embedding_dim, hidden_dim, n_lstm_layers,
                n_fc_layers, output_dim, pad_idx, out_pad=128):
    keys = iter(jax.random.split(key, 128))

    def nrm(shape, scale=0.1):
        return scale * jax.random.normal(next(keys), shape, dtype=jnp.float32)

    H = hidden_dim
    params = {}
    params['embedding'] = nrm((input_dim, embedding_dim)).at[pad_idx].set(0.0)

    # nn.Linear(E, H): torch weight (H, E) -> stored transposed (E, H), bf16 MXU operand.
    params['trans_w'] = nrm((H, embedding_dim)).T.astype(jnp.bfloat16)
    params['trans_b'] = nrm((H,)).reshape(1, H)

    lstm = []
    for l in range(n_lstm_layers):
        din = H if l == 0 else 2 * H
        wih_dirs, whh_dirs, b_dirs = [], [], []
        for _ in range(2):                 # direction 0 = forward, 1 = reverse
            w_ih = nrm((4 * H, din))       # weight_ih_l{l}[_reverse], gate order i,f,g,o
            w_hh = nrm((4 * H, H))         # weight_hh_l{l}[_reverse]
            b_ih = nrm((4 * H,))
            b_hh = nrm((4 * H,))
            wih_dirs.append(w_ih.T)        # (din, 4H)
            whh_dirs.append(w_hh.T)        # (H, 4H)
            b_dirs.append((b_ih + b_hh).reshape(1, 4 * H))
        lstm.append({
            'wih': jnp.concatenate(wih_dirs, axis=1).astype(jnp.bfloat16),  # (din, 8H)
            'whh': jnp.concatenate(whh_dirs, axis=1),                       # (H, 8H) f32
            'b':   jnp.concatenate(b_dirs, axis=1),                         # (1, 8H) f32
        })
    params['lstm'] = lstm

    fdim = 4 * H                            # fc_dim * 2 == hidden_dim * 4
    params['fc_w'] = jnp.stack([nrm((fdim, fdim)).T for _ in range(n_fc_layers)]
                               ).astype(jnp.bfloat16)                       # (n_fc, 4H, 4H)
    params['fc_b'] = jnp.stack([nrm((fdim,)).reshape(1, fdim)
                                for _ in range(n_fc_layers)])               # (n_fc, 1, 4H)

    # fc_out: pad the output_dim column dim to 128 lanes for an unmasked final store.
    ow = nrm((output_dim, fdim)).T
    ob = nrm((output_dim,))
    params['fc_out_w'] = (jnp.zeros((fdim, out_pad), jnp.float32)
                          .at[:, :output_dim].set(ow)).astype(jnp.bfloat16)
    params['fc_out_b'] = jnp.zeros((1, out_pad), jnp.float32).at[0, :output_dim].set(ob)
    return params


# ----------------------------- Full forward pass (one pallas_call) ----------------------------- #
def nli_bilstm_forward(params, prem, hypo, *, hidden_dim, n_lstm_layers, n_fc_layers,
                       output_dim, pad_idx):
    Tp, batch = prem.shape
    Th, _ = hypo.shape
    T = max(Tp, Th)
    H = hidden_dim
    b_pad = max(8, ((2 * batch + 7) // 8) * 8)      # prem rows + hypo rows, padded to 8
    assert b_pad >= 2 * batch

    # Pack premise (cols 0..batch-1) and hypothesis (cols batch..2*batch-1) into one
    # time-major token block; remaining rows/steps are pad tokens.
    tokens = jnp.full((T, b_pad), pad_idx, dtype=prem.dtype)
    tokens = tokens.at[:Tp, :batch].set(prem)
    tokens = tokens.at[:Th, batch:2 * batch].set(hypo)
    lens = (jnp.zeros((b_pad, 1), jnp.int32)
            .at[:batch, 0].set(Tp)
            .at[batch:2 * batch, 0].set(Th))

    emb = jnp.take(params['embedding'], tokens, axis=0)          # (T, b_pad, E)
    x = emb.reshape(T * b_pad, -1).astype(jnp.bfloat16)          # (T*b_pad, E) bf16

    args = [x, lens, params['trans_w'], params['trans_b']]
    for p in params['lstm']:
        args += [p['wih'], p['whh'], p['b']]
    args += [params['fc_w'], params['fc_b'], params['fc_out_w'], params['fc_out_b']]

    P = params['fc_out_w'].shape[1]
    TB = T * b_pad
    kernel = functools.partial(
        _nli_bilstm_kernel,
        n_lstm_layers=n_lstm_layers, n_fc_layers=n_fc_layers,
        seq_len=T, batch=b_pad, hidden=H, real_batch=batch)

    out = pl.pallas_call(
        kernel,
        out_shape=jax.ShapeDtypeStruct((batch, P), jnp.float32),
        grid=(1,),
        in_specs=[_full_block(a) for a in args],
        out_specs=pl.BlockSpec((batch, P), lambda i: (0, 0)),
        scratch_shapes=[
            pltpu.VMEM((TB, 8 * H), jnp.float32),   # hoisted gates_x, both directions
            pltpu.VMEM((TB, H), jnp.float32),       # per-position forward hidden
            pltpu.VMEM((TB, H), jnp.float32),       # per-position reverse hidden
        ],
    )(*args)
    return out[:, :output_dim]


# ----------------------------- Main ----------------------------- #
if __name__ == "__main__":
    INPUT_DIM = 50        # vocab size
    EMB_DIM = 16
    HID_DIM = 32
    N_LSTM_LAYERS = 2
    N_FC_LAYERS = 2
    OUT_DIM = 3
    PAD_IDX = 0
    PREM_LEN, HYPO_LEN, BATCH = 8, 7, 2

    key = jax.random.PRNGKey(0)
    kp, kh, kparam = jax.random.split(key, 3)
    params = init_params(kparam, INPUT_DIM, EMB_DIM, HID_DIM, N_LSTM_LAYERS,
                         N_FC_LAYERS, OUT_DIM, PAD_IDX)

    prem = jax.random.randint(kp, (PREM_LEN, BATCH), 0, INPUT_DIM, dtype=jnp.int32)
    hypo = jax.random.randint(kh, (HYPO_LEN, BATCH), 0, INPUT_DIM, dtype=jnp.int32)

    forward = jax.jit(functools.partial(
        nli_bilstm_forward, hidden_dim=HID_DIM, n_lstm_layers=N_LSTM_LAYERS,
        n_fc_layers=N_FC_LAYERS, output_dim=OUT_DIM, pad_idx=PAD_IDX))

    pred = jax.block_until_ready(forward(params, prem, hypo))
    assert pred.shape == (BATCH, OUT_DIM), pred.shape
    assert pred.dtype == jnp.float32
    assert bool(jnp.all(jnp.isfinite(pred)))
    print("KERNEL_OK")
</pallas_src>

<mosaic_0001>
module attributes {stable_mosaic.version = 11 : i64} {
  func.func @_nli_bilstm_kernel(%arg0: i32, %arg1: memref<64x16xbf16, #tpu.memory_space<vmem>>, %arg2: memref<8x1xi32, #tpu.memory_space<vmem>>, %arg3: memref<16x32xbf16, #tpu.memory_space<vmem>>, %arg4: memref<1x32xf32, #tpu.memory_space<vmem>>, %arg5: memref<32x256xbf16, #tpu.memory_space<vmem>>, %arg6: memref<32x256xf32, #tpu.memory_space<vmem>>, %arg7: memref<1x256xf32, #tpu.memory_space<vmem>>, %arg8: memref<64x256xbf16, #tpu.memory_space<vmem>>, %arg9: memref<32x256xf32, #tpu.memory_space<vmem>>, %arg10: memref<1x256xf32, #tpu.memory_space<vmem>>, %arg11: memref<2x128x128xbf16, #tpu.memory_space<vmem>>, %arg12: memref<2x1x128xf32, #tpu.memory_space<vmem>>, %arg13: memref<128x128xbf16, #tpu.memory_space<vmem>>, %arg14: memref<1x128xf32, #tpu.memory_space<vmem>>, %arg15: memref<2x128xf32, #tpu.memory_space<vmem>>, %arg16: memref<64x256xf32, #tpu.memory_space<vmem>>, %arg17: memref<64x32xf32, #tpu.memory_space<vmem>>, %arg18: memref<64x32xf32, #tpu.memory_space<vmem>>) attributes {dimension_semantics = [#tpu.dimension_semantics<arbitrary>], iteration_bounds = array<i64: 1>, scalar_prefetch = 0 : i64, scratch_operands = 3 : i64, tpu.core_type = #tpu.core_type<tc>, window_params = [{pipeline_mode = #tpu.pipeline_mode<synchronous>, transform_indices = @transform_0, window_bounds = array<i64: 64, 16>}, {pipeline_mode = #tpu.pipeline_mode<synchronous>, transform_indices = @transform_1, window_bounds = array<i64: 8, 1>}, {pipeline_mode = #tpu.pipeline_mode<synchronous>, transform_indices = @transform_2, window_bounds = array<i64: 16, 32>}, {pipeline_mode = #tpu.pipeline_mode<synchronous>, transform_indices = @transform_3, window_bounds = array<i64: 1, 32>}, {pipeline_mode = #tpu.pipeline_mode<synchronous>, transform_indices = @transform_4, window_bounds = array<i64: 32, 256>}, {pipeline_mode = #tpu.pipeline_mode<synchronous>, transform_indices = @transform_5, window_bounds = array<i64: 32, 256>}, {pipeline_mode = #tpu.pipeline_mode<synchronous>, transform_indices = @transform_6, window_bounds = array<i64: 1, 256>}, {pipeline_mode = #tpu.pipeline_mode<synchronous>, transform_indices = @transform_7, window_bounds = array<i64: 64, 256>}, {pipeline_mode = #tpu.pipeline_mode<synchronous>, transform_indices = @transform_8, window_bounds = array<i64: 32, 256>}, {pipeline_mode = #tpu.pipeline_mode<synchronous>, transform_indices = @transform_9, window_bounds = array<i64: 1, 256>}, {pipeline_mode = #tpu.pipeline_mode<synchronous>, transform_indices = @transform_10, window_bounds = array<i64: 2, 128, 128>}, {pipeline_mode = #tpu.pipeline_mode<synchronous>, transform_indices = @transform_11, window_bounds = array<i64: 2, 1, 128>}, {pipeline_mode = #tpu.pipeline_mode<synchronous>, transform_indices = @transform_12, window_bounds = array<i64: 128, 128>}, {pipeline_mode = #tpu.pipeline_mode<synchronous>, transform_indices = @transform_13, window_bounds = array<i64: 1, 128>}, {pipeline_mode = #tpu.pipeline_mode<synchronous>, transform_indices = @transform_14, window_bounds = array<i64: 2, 128>}]} {
    %c0 = arith.constant 0 : index
    %c0_0 = arith.constant 0 : index
    %0 = vector.load %arg2[%c0, %c0_0] : memref<8x1xi32, #tpu.memory_space<vmem>>, vector<8x1xi32>
    %c0_1 = arith.constant 0 : index
    %c0_2 = arith.constant 0 : index
    %1 = vector.load %arg1[%c0_1, %c0_2] : memref<64x16xbf16, #tpu.memory_space<vmem>>, vector<64x16xbf16>
    %c0_3 = arith.constant 0 : index
    %c0_4 = arith.constant 0 : index
    %2 = vector.load %arg3[%c0_3, %c0_4] : memref<16x32xbf16, #tpu.memory_space<vmem>>, vector<16x32xbf16>
    %cst = arith.constant dense<0.000000e+00> : vector<64x32xf32>
    %3 = tpu.matmul %1, %2, %cst {dimension_numbers = #tpu.dot_dimension_numbers<[1], [0], [0], [1], [0, 0, 1, 1], [], []>} : vector<64x16xbf16>, vector<16x32xbf16>, vector<64x32xf32> -> vector<64x32xf32>
    %c0_5 = arith.constant 0 : index
    %c0_6 = arith.constant 0 : index
    %4 = vector.load %arg4[%c0_5, %c0_6] : memref<1x32xf32, #tpu.memory_space<vmem>>, vector<1x32xf32>
    %5 = vector.broadcast %4 : vector<1x32xf32> to vector<64x32xf32>
    %6 = arith.addf %3, %5 : vector<64x32xf32>
    %cst_7 = arith.constant 0.000000e+00 : f32
    %7 = vector.broadcast %cst_7 : f32 to vector<64x32xf32>
    %8 = arith.maximumf %6, %7 : vector<64x32xf32>
    %c0_8 = arith.constant 0 : index
    %c0_9 = arith.constant 0 : index
    %9 = vector.load %arg5[%c0_8, %c0_9] : memref<32x256xbf16, #tpu.memory_space<vmem>>, vector<32x256xbf16>
    %10 = arith.truncf %8 : vector<64x32xf32> to vector<64x32xbf16>
    %cst_10 = arith.constant dense<0.000000e+00> : vector<64x256xf32>
    %11 = tpu.matmul %10, %9, %cst_10 {dimension_numbers = #tpu.dot_dimension_numbers<[1], [0], [0], [1], [0, 0, 1, 1], [], []>} : vector<64x32xbf16>, vector<32x256xbf16>, vector<64x256xf32> -> vector<64x256xf32>
    %c0_11 = arith.constant 0 : index
    %c0_12 = arith.constant 0 : index
    %12 = vector.load %arg7[%c0_11, %c0_12] : memref<1x256xf32, #tpu.memory_space<vmem>>, vector<1x256xf32>
    %13 = vector.broadcast %12 : vector<1x256xf32> to vector<64x256xf32>
    %14 = arith.addf %11, %13 : vector<64x256xf32>
    %c0_13 = arith.constant 0 : index
    %c0_14 = arith.constant 0 : index
    %15 = vector.load %arg16[%c0_13, %c0_14] : memref<64x256xf32, #tpu.memory_space<vmem>>, vector<64x256xf32>
    tpu.vector_store %arg16[%c0_13, %c0_14], %14 {strides = array<i32>} : memref<64x256xf32, #tpu.memory_space<vmem>>, vector<64x256xf32>,
    %c0_15 = arith.constant 0 : index
    %c0_16 = arith.constant 0 : index
    %16 = vector.load %arg6[%c0_15, %c0_16] : memref<32x256xf32, #tpu.memory_space<vmem>>, vector<32x256xf32>
    %17 = vector.extract_strided_slice %16 {offsets = [0, 0], sizes = [32, 128], strides = [1, 1]} : vector<32x256xf32> to vector<32x128xf32>
    %18 = vector.extract_strided_slice %16 {offsets = [0, 128], sizes = [32, 128], strides = [1, 1]} : vector<32x256xf32> to vector<32x128xf32>
    %cst_17 = arith.constant 0.000000e+00 : f32
    %19 = vector.broadcast %cst_17 : f32 to vector<8x32xf32>
    %c0_i32 = arith.constant 0 : i32
    %c7_i32 = arith.constant 7 : i32
    %20 = arith.subi %c7_i32, %c0_i32 : i32
    %c8_i32 = arith.constant 8 : i32
    %21 = arith.muli %c0_i32, %c8_i32 : i32
    %22 = tpu.assume_multiple %21, 8 : i32
    %c8_i32_18 = arith.constant 8 : i32
    %23 = arith.muli %20, %c8_i32_18 : i32
    %24 = tpu.assume_multiple %23, 8 : i32
    %25 = vector.broadcast %c0_i32 : i32 to vector<8x1xi32>
    %26 = arith.cmpi slt, %25, %0 : vector<8x1xi32>
    %27 = vector.broadcast %20 : i32 to vector<8x1xi32>
    %28 = arith.cmpi slt, %27, %0 : vector<8x1xi32>
    %29 = arith.index_cast %22 : i32 to index
    %c0_19 = arith.constant 0 : index
    %30 = vector.load %arg16[%29, %c0_19] : memref<64x256xf32, #tpu.memory_space<vmem>>, vector<8x128xf32>
    %cst_20 = arith.constant dense<0.000000e+00> : vector<8x128xf32>
    %31 = tpu.matmul %19, %17, %cst_20 {dimension_numbers = #tpu.dot_dimension_numbers<[1], [0], [0], [1], [0, 0, 1, 1], [], []>} : vector<8x32xf32>, vector<32x128xf32>, vector<8x128xf32> -> vector<8x128xf32>
    %32 = arith.addf %30, %31 : vector<8x128xf32>
    %33 = arith.index_cast %24 : i32 to index
    %c128 = arith.constant 128 : index
    %34 = vector.load %arg16[%33, %c128] : memref<64x256xf32, #tpu.memory_space<vmem>>, vector<8x128xf32>
    %cst_21 = arith.constant dense<0.000000e+00> : vector<8x128xf32>
    %35 = tpu.matmul %19, %18, %cst_21 {dimension_numbers = #tpu.dot_dimension_numbers<[1], [0], [0], [1], [0, 0, 1, 1], [], []>} : vector<8x32xf32>, vector<32x128xf32>, vector<8x128xf32> -> vector<8x128xf32>
    %36 = arith.addf %34, %35 : vector<8x128xf32>
    %37 = arith.negf %32 : vector<8x128xf32>
    %38 = math.exp %37 : vector<8x128xf32>
    %cst_22 = arith.constant 1.000000e+00 : f32
    %39 = vector.broadcast %cst_22 : f32 to vector<8x128xf32>
    %40 = arith.addf %39, %38 : vector<8x128xf32>
    %41 = arith.divf %39, %40 : vector<8x128xf32>
    %42 = vector.extract_strided_slice %41 {offsets = [0, 0], sizes = [8, 32], strides = [1, 1]} : vector<8x128xf32> to vector<8x32xf32>
    %43 = vector.extract_strided_slice %41 {offsets = [0, 32], sizes = [8, 32], strides = [1, 1]} : vector<8x128xf32> to vector<8x32xf32>
    %44 = vector.extract_strided_slice %41 {offsets = [0, 96], sizes = [8, 32], strides = [1, 1]} : vector<8x128xf32> to vector<8x32xf32>
    %45 = vector.extract_strided_slice %32 {offsets = [0, 64], sizes = [8, 32], strides = [1, 1]} : vector<8x128xf32> to vector<8x32xf32>
    %46 = math.tanh %45 : vector<8x32xf32>
    %47 = arith.mulf %43, %19 : vector<8x32xf32>
    %48 = arith.mulf %42, %46 : vector<8x32xf32>
    %49 = arith.addf %47, %48 : vector<8x32xf32>
    %50 = math.tanh %49 : vector<8x32xf32>
    %51 = arith.mulf %44, %50 : vector<8x32xf32>
    %52 = arith.negf %36 : vector<8x128xf32>
    %53 = math.exp %52 : vector<8x128xf32>
    %cst_23 = arith.constant 1.000000e+00 : f32
    %54 = vector.broadcast %cst_23 : f32 to vector<8x128xf32>
    %55 = arith.addf %54, %53 : vector<8x128xf32>
    %56 = arith.divf %54, %55 : vector<8x128xf32>
    %57 = vector.extract_strided_slice %56 {offsets = [0, 0], sizes = [8, 32], strides = [1, 1]} : vector<8x128xf32> to vector<8x32xf32>
    %58 = vector.extract_strided_slice %56 {offsets = [0, 32], sizes = [8, 32], strides = [1, 1]} : vector<8x128xf32> to vector<8x32xf32>
    %59 = vector.extract_strided_slice %56 {offsets = [0, 96], sizes = [8, 32], strides = [1, 1]} : vector<8x128xf32> to vector<8x32xf32>
    %60 = vector.extract_strided_slice %36 {offsets = [0, 64], sizes = [8, 32], strides = [1, 1]} : vector<8x128xf32> to vector<8x32xf32>
    %61 = math.tanh %60 : vector<8x32xf32>
    %62 = arith.mulf %58, %19 : vector<8x32xf32>
    %63 = arith.mulf %57, %61 : vector<8x32xf32>
    %64 = arith.addf %62, %63 : vector<8x32xf32>
    %65 = math.tanh %64 : vector<8x32xf32>
    %66 = arith.mulf %59, %65 : vector<8x32xf32>
    %67 = vector.shape_cast %26 : vector<8x1xi1> to vector<8x1xi1>
    %68 = vector.broadcast %67 : vector<8x1xi1> to vector<8x32xi1>
    %69 = arith.select %68, %51, %19 : vector<8x32xi1>, vector<8x32xf32>
    %70 = vector.shape_cast %26 : vector<8x1xi1> to vector<8x1xi1>
    %71 = vector.broadcast %70 : vector<8x1xi1> to vector<8x32xi1>
    %72 = arith.select %71, %49, %19 : vector<8x32xi1>, vector<8x32xf32>
    %73 = vector.shape_cast %28 : vector<8x1xi1> to vector<8x1xi1>
    %74 = vector.broadcast %73 : vector<8x1xi1> to vector<8x32xi1>
    %75 = arith.select %74, %66, %19 : vector<8x32xi1>, vector<8x32xf32>
    %76 = vector.shape_cast %28 : vector<8x1xi1> to vector<8x1xi1>
    %77 = vector.broadcast %76 : vector<8x1xi1> to vector<8x32xi1>
    %78 = arith.select %77, %64, %19 : vector<8x32xi1>, vector<8x32xf32>
    %79 = arith.index_cast %22 : i32 to index
    %c0_24 = arith.constant 0 : index
    %80 = vector.load %arg17[%79, %c0_24] : memref<64x32xf32, #tpu.memory_space<vmem>>, vector<8x32xf32>
    tpu.vector_store %arg17[%79, %c0_24], %69 {strides = array<i32>} : memref<64x32xf32, #tpu.memory_space<vmem>>, vector<8x32xf32>,
    %81 = arith.index_cast %24 : i32 to index
    %c0_25 = arith.constant 0 : index
    %82 = vector.load %arg18[%81, %c0_25] : memref<64x32xf32, #tpu.memory_space<vmem>>, vector<8x32xf32>
    tpu.vector_store %arg18[%81, %c0_25], %75 {strides = array<i32>} : memref<64x32xf32, #tpu.memory_space<vmem>>, vector<8x32xf32>,
    %c1_i32 = arith.constant 1 : i32
    %c7_i32_26 = arith.constant 7 : i32
    %83 = arith.subi %c7_i32_26, %c1_i32 : i32
    %c8_i32_27 = arith.constant 8 : i32
    %84 = arith.muli %c1_i32, %c8_i32_27 : i32
    %85 = tpu.assume_multiple %84, 8 : i32
    %c8_i32_28 = arith.constant 8 : i32
    %86 = arith.muli %83, %c8_i32_28 : i32
    %87 = tpu.assume_multiple %86, 8 : i32
    %88 = vector.broadcast %c1_i32 : i32 to vector<8x1xi32>
    %89 = arith.cmpi slt, %88, %0 : vector<8x1xi32>
    %90 = vector.broadcast %83 : i32 to vector<8x1xi32>
    %91 = arith.cmpi slt, %90, %0 : vector<8x1xi32>
    %92 = arith.index_cast %85 : i32 to index
    %c0_29 = arith.constant 0 : index
    %93 = vector.load %arg16[%92, %c0_29] : memref<64x256xf32, #tpu.memory_space<vmem>>, vector<8x128xf32>
    %cst_30 = arith.constant dense<0.000000e+00> : vector<8x128xf32>
    %94 = tpu.matmul %69, %17, %cst_30 {dimension_numbers = #tpu.dot_dimension_numbers<[1], [0], [0], [1], [0, 0, 1, 1], [], []>} : vector<8x32xf32>, vector<32x128xf32>, vector<8x128xf32> -> vector<8x128xf32>
    %95 = arith.addf %93, %94 : vector<8x128xf32>
    %96 = arith.index_cast %87 : i32 to index
    %c128_31 = arith.constant 128 : index
    %97 = vector.load %arg16[%96, %c128_31] : memref<64x256xf32, #tpu.memory_space<vmem>>, vector<8x128xf32>
    %cst_32 = arith.constant dense<0.000000e+00> : vector<8x128xf32>
    %98 = tpu.matmul %75, %18, %cst_32 {dimension_numbers = #tpu.dot_dimension_numbers<[1], [0], [0], [1], [0, 0, 1, 1], [], []>} : vector<8x32xf32>, vector<32x128xf32>, vector<8x128xf32> -> vector<8x128xf32>
    %99 = arith.addf %97, %98 : vector<8x128xf32>
    %100 = arith.negf %95 : vector<8x128xf32>
    %101 = math.exp %100 : vector<8x128xf32>
    %cst_33 = arith.constant 1.000000e+00 : f32
    %102 = vector.broadcast %cst_33 : f32 to vector<8x128xf32>
    %103 = arith.addf %102, %101 : vector<8x128xf32>
    %104 = arith.divf %102, %103 : vector<8x128xf32>
    %105 = vector.extract_strided_slice %104 {offsets = [0, 0], sizes = [8, 32], strides = [1, 1]} : vector<8x128xf32> to vector<8x32xf32>
    %106 = vector.extract_strided_slice %104 {offsets = [0, 32], sizes = [8, 32], strides = [1, 1]} : vector<8x128xf32> to vector<8x32xf32>
    %107 = vector.extract_strided_slice %104 {offsets = [0, 96], sizes = [8, 32], strides = [1, 1]} : vector<8x128xf32> to vector<8x32xf32>
    %108 = vector.extract_strided_slice %95 {offsets = [0, 64], sizes = [8, 32], strides = [1, 1]} : vector<8x128xf32> to vector<8x32xf32>
    %109 = math.tanh %108 : vector<8x32xf32>
    %110 = arith.mulf %106, %72 : vector<8x32xf32>
    %111 = arith.mulf %105, %109 : vector<8x32xf32>
    %112 = arith.addf %110, %111 : vector<8x32xf32>
    %113 = math.tanh %112 : vector<8x32xf32>
    %114 = arith.mulf %107, %113 : vector<8x32xf32>
    %115 = arith.negf %99 : vector<8x128xf32>
    %116 = math.exp %115 : vector<8x128xf32>
    %cst_34 = arith.constant 1.000000e+00 : f32
    %117 = vector.broadcast %cst_34 : f32 to vector<8x128xf32>
    %118 = arith.addf %117, %116 : vector<8x128xf32>
    %119 = arith.divf %117, %118 : vector<8x128xf32>
    %120 = vector.extract_strided_slice %119 {offsets = [0, 0], sizes = [8, 32], strides = [1, 1]} : vector<8x128xf32> to vector<8x32xf32>
    %121 = vector.extract_strided_slice %119 {offsets = [0, 32], sizes = [8, 32], strides = [1, 1]} : vector<8x128xf32> to vector<8x32xf32>
    %122 = vector.extract_strided_slice %119 {offsets = [0, 96], sizes = [8, 32], strides = [1, 1]} : vector<8x128xf32> to vector<8x32xf32>
    %123 = vector.extract_strided_slice %99 {offsets = [0, 64], sizes = [8, 32], strides = [1, 1]} : vector<8x128xf32> to vector<8x32xf32>
    %124 = math.tanh %123 : vector<8x32xf32>
    %125 = arith.mulf %121, %78 : vector<8x32xf32>
    %126 = arith.mulf %120, %124 : vector<8x32xf32>
    %127 = arith.addf %125, %126 : vector<8x32xf32>
    %128 = math.tanh %127 : vector<8x32xf32>
    %129 = arith.mulf %122, %128 : vector<8x32xf32>
    %130 = vector.shape_cast %89 : vector<8x1xi1> to vector<8x1xi1>
    %131 = vector.broadcast %130 : vector<8x1xi1> to vector<8x32xi1>
    %132 = arith.select %131, %114, %69 : vector<8x32xi1>, vector<8x32xf32>
    %133 = vector.shape_cast %89 : vector<8x1xi1> to vector<8x1xi1>
    %134 = vector.broadcast %133 : vector<8x1xi1> to vector<8x32xi1>
    %135 = arith.select %134, %112, %72 : vector<8x32xi1>, vector<8x32xf32>
    %136 = vector.shape_cast %91 : vector<8x1xi1> to vector<8x1xi1>
    %137 = vector.broadcast %136 : vector<8x1xi1> to vector<8x32xi1>
    %138 = arith.select %137, %129, %75 : vector<8x32xi1>, vector<8x32xf32>
    %139 = vector.shape_cast %91 : vector<8x1xi1> to vector<8x1xi1>
    %140 = vector.broadcast %139 : vector<8x1xi1> to vector<8x32xi1>
    %141 = arith.select %140, %127, %78 : vector<8x32xi1>, vector<8x32xf32>
    %142 = arith.index_cast %85 : i32 to index
    %c0_35 = arith.constant 0 : index
    %143 = vector.load %arg17[%142, %c0_35] : memref<64x32xf32, #tpu.memory_space<vmem>>, vector<8x32xf32>
    tpu.vector_store %arg17[%142, %c0_35], %132 {strides = array<i32>} : memref<64x32xf32, #tpu.memory_space<vmem>>, vector<8x32xf32>,
    %144 = arith.index_cast %87 : i32 to index
    %c0_36 = arith.constant 0 : index
    %145 = vector.load %arg18[%144, %c0_36] : memref<64x32xf32, #tpu.memory_space<vmem>>, vector<8x32xf32>
    tpu.vector_store %arg18[%144, %c0_36], %138 {strides = array<i32>} : memref<64x32xf32, #tpu.memory_space<vmem>>, vector<8x32xf32>,
    %c2_i32 = arith.constant 2 : i32
    %c7_i32_37 = arith.constant 7 : i32
    %146 = arith.subi %c7_i32_37, %c2_i32 : i32
    %c8_i32_38 = arith.constant 8 : i32
    %147 = arith.muli %c2_i32, %c8_i32_38 : i32
    %148 = tpu.assume_multiple %147, 8 : i32
    %c8_i32_39 = arith.constant 8 : i32
    %149 = arith.muli %146, %c8_i32_39 : i32
    %150 = tpu.assume_multiple %149, 8 : i32
    %151 = vector.broadcast %c2_i32 : i32 to vector<8x1xi32>
    %152 = arith.cmpi slt, %151, %0 : vector<8x1xi32>
    %153 = vector.broadcast %146 : i32 to vector<8x1xi32>
    %154 = arith.cmpi slt, %153, %0 : vector<8x1xi32>
    %155 = arith.index_cast %148 : i32 to index
    %c0_40 = arith.constant 0 : index
    %156 = vector.load %arg16[%155, %c0_40] : memref<64x256xf32, #tpu.memory_space<vmem>>, vector<8x128xf32>
    %cst_41 = arith.constant dense<0.000000e+00> : vector<8x128xf32>
    %157 = tpu.matmul %132, %17, %cst_41 {dimension_numbers = #tpu.dot_dimension_numbers<[1], [0], [0], [1], [0, 0, 1, 1], [], []>} : vector<8x32xf32>, vector<32x128xf32>, vector<8x128xf32> -> vector<8x128xf32>
    %158 = arith.addf %156, %157 : vector<8x128xf32>
    %159 = arith.index_cast %150 : i32 to index
    %c128_42 = arith.constant 128 : index
    %160 = vector.load %arg16[%159, %c128_42] : memref<64x256xf32, #tpu.memory_space<vmem>>, vector<8x128xf32>
    %cst_43 = arith.constant dense<0.000000e+00> : vector<8x128xf32>
    %161 = tpu.matmul %138, %18, %cst_43 {dimension_numbers = #tpu.dot_dimension_numbers<[1], [0], [0], [1], [0, 0, 1, 1], [], []>} : vector<8x32xf32>, vector<32x128xf32>, vector<8x128xf32> -> vector<8x128xf32>
    %162 = arith.addf %160, %161 : vector<8x128xf32>
    %163 = arith.negf %158 : vector<8x128xf32>
    %164 = math.exp %163 : vector<8x128xf32>
    %cst_44 = arith.constant 1.000000e+00 : f32
    %165 = vector.broadcast %cst_44 : f32 to vector<8x128xf32>
    %166 = arith.addf %165, %164 : vector<8x128xf32>
    %167 = arith.divf %165, %166 : vector<8x128xf32>
    %168 = vector.extract_strided_slice %167 {offsets = [0, 0], sizes = [8, 32], strides = [1, 1]} : vector<8x128xf32> to vector<8x32xf32>
    %169 = vector.extract_strided_slice %167 {offsets = [0, 32], sizes = [8, 32], strides = [1, 1]} : vector<8x128xf32> to vector<8x32xf32>
    %170 = vector.extract_strided_slice %167 {offsets = [0, 96], sizes = [8, 32], strides = [1, 1]} : vector<8x128xf32> to vector<8x32xf32>
    %171 = vector.extract_strided_slice %158 {offsets = [0, 64], sizes = [8, 32], strides = [1, 1]} : vector<8x128xf32> to vector<8x32xf32>
    %172 = math.tanh %171 : vector<8x32xf32>
    %173 = arith.mulf %169, %135 : vector<8x32xf32>
    %174 = arith.mulf %168, %172 : vector<8x32xf32>
    %175 = arith.addf %173, %174 : vector<8x32xf32>
    %176 = math.tanh %175 : vector<8x32xf32>
    %177 = arith.mulf %170, %176 : vector<8x32xf32>
    %178 = arith.negf %162 : vector<8x128xf32>
    %179 = math.exp %178 : vector<8x128xf32>
    %cst_45 = arith.constant 1.000000e+00 : f32
    %180 = vector.broadcast %cst_45 : f32 to vector<8x128xf32>
    %181 = arith.addf %180, %179 : vector<8x128xf32>
    %182 = arith.divf %180, %181 : vector<8x128xf32>
    %183 = vector.extract_strided_slice %182 {offsets = [0, 0], sizes = [8, 32], strides = [1, 1]} : vector<8x128xf32> to vector<8x32xf32>
    %184 = vector.extract_strided_slice %182 {offsets = [0, 32], sizes = [8, 32], strides = [1, 1]} : vector<8x128xf32> to vector<8x32xf32>
    %185 = vector.extract_strided_slice %182 {offsets = [0, 96], sizes = [8, 32], strides = [1, 1]} : vector<8x128xf32> to vector<8x32xf32>
    %186 = vector.extract_strided_slice %162 {offsets = [0, 64], sizes = [8, 32], strides = [1, 1]} : vector<8x128xf32> to vector<8x32xf32>
    %187 = math.tanh %186 : vector<8x32xf32>
    %188 = arith.mulf %184, %141 : vector<8x32xf32>
    %189 = arith.mulf %183, %187 : vector<8x32xf32>
    %190 = arith.addf %188, %189 : vector<8x32xf32>
    %191 = math.tanh %190 : vector<8x32xf32>
    %192 = arith.mulf %185, %191 : vector<8x32xf32>
    %193 = vector.shape_cast %152 : vector<8x1xi1> to vector<8x1xi1>
    %194 = vector.broadcast %193 : vector<8x1xi1> to vector<8x32xi1>
    %195 = arith.select %194, %177, %132 : vector<8x32xi1>, vector<8x32xf32>
    %196 = vector.shape_cast %152 : vector<8x1xi1> to vector<8x1xi1>
    %197 = vector.broadcast %196 : vector<8x1xi1> to vector<8x32xi1>
    %198 = arith.select %197, %175, %135 : vector<8x32xi1>, vector<8x32xf32>
    %199 = vector.shape_cast %154 : vector<8x1xi1> to vector<8x1xi1>
    %200 = vector.broadcast %199 : vector<8x1xi1> to vector<8x32xi1>
    %201 = arith.select %200, %192, %138 : vector<8x32xi1>, vector<8x32xf32>
    %202 = vector.shape_cast %154 : vector<8x1xi1> to vector<8x1xi1>
    %203 = vector.broadcast %202 : vector<8x1xi1> to vector<8x32xi1>
    %204 = arith.select %203, %190, %141 : vector<8x32xi1>, vector<8x32xf32>
    %205 = arith.index_cast %148 : i32 to index
    %c0_46 = arith.constant 0 : index
    %206 = vector.load %arg17[%205, %c0_46] : memref<64x32xf32, #tpu.memory_space<vmem>>, vector<8x32xf32>
    tpu.vector_store %arg17[%205, %c0_46], %195 {strides = array<i32>} : memref<64x32xf32, #tpu.memory_space<vmem>>, vector<8x32xf32>,
    %207 = arith.index_cast %150 : i32 to index
    %c0_47 = arith.constant 0 : index
    %208 = vector.load %arg18[%207, %c0_47] : memref<64x32xf32, #tpu.memory_space<vmem>>, vector<8x32xf32>
    tpu.vector_store %arg18[%207, %c0_47], %201 {strides = array<i32>} : memref<64x32xf32, #tpu.memory_space<vmem>>, vector<8x32xf32>,
    %c3_i32 = arith.constant 3 : i32
    %c7_i32_48 = arith.constant 7 : i32
    %209 = arith.subi %c7_i32_48, %c3_i32 : i32
    %c8_i32_49 = arith.constant 8 : i32
    %210 = arith.muli %c3_i32, %c8_i32_49 : i32
    %211 = tpu.assume_multiple %210, 8 : i32
    %c8_i32_50 = arith.constant 8 : i32
    %212 = arith.muli %209, %c8_i32_50 : i32
    %213 = tpu.assume_multiple %212, 8 : i32
    %214 = vector.broadcast %c3_i32 : i32 to vector<8x1xi32>
    %215 = arith.cmpi slt, %214, %0 : vector<8x1xi32>
    %216 = vector.broadcast %209 : i32 to vector<8x1xi32>
    %217 = arith.cmpi slt, %216, %0 : vector<8x1xi32>
    %218 = arith.index_cast %211 : i32 to index
    %c0_51 = arith.constant 0 : index
    %219 = vector.load %arg16[%218, %c0_51] : memref<64x256xf32, #tpu.memory_space<vmem>>, vector<8x128xf32>
    %cst_52 = arith.constant dense<0.000000e+00> : vector<8x128xf32>
    %220 = tpu.matmul %195, %17, %cst_52 {dimension_numbers = #tpu.dot_dimension_numbers<[1], [0], [0], [1], [0, 0, 1, 1], [], []>} : vector<8x32xf32>, vector<32x128xf32>, vector<8x128xf32> -> vector<8x128xf32>
    %221 = arith.addf %219, %220 : vector<8x128xf32>
    %222 = arith.index_cast %213 : i32 to index
    %c128_53 = arith.constant 128 : index
    %223 = vector.load %arg16[%222, %c128_53] : memref<64x256xf32, #tpu.memory_space<vmem>>, vector<8x128xf32>
    %cst_54 = arith.constant dense<0.000000e+00> : vector<8x128xf32>
    %224 = tpu.matmul %201, %18, %cst_54 {dimension_numbers = #tpu.dot_dimension_numbers<[1], [0], [0], [1], [0, 0, 1, 1], [], []>} : vector<8x32xf32>, vector<32x128xf32>, vector<8x128xf32> -> vector<8x128xf32>
    %225 = arith.addf %223, %224 : vector<8x128xf32>
    %226 = arith.negf %221 : vector<8x128xf32>
    %227 = math.exp %226 : vector<8x128xf32>
    %cst_55 = arith.constant 1.000000e+00 : f32
    %228 = vector.broadcast %cst_55 : f32 to vector<8x128xf32>
    %229 = arith.addf %228, %227 : vector<8x128xf32>
    %230 = arith.divf %228, %229 : vector<8x128xf32>
    %231 = vector.extract_strided_slice %230 {offsets = [0, 0], sizes = [8, 32], strides = [1, 1]} : vector<8x128xf32> to vector<8x32xf32>
    %232 = vector.extract_strided_slice %230 {offsets = [0, 32], sizes = [8, 32], strides = [1, 1]} : vector<8x128xf32> to vector<8x32xf32>
    %233 = vector.extract_strided_slice %230 {offsets = [0, 96], sizes = [8, 32], strides = [1, 1]} : vector<8x128xf32> to vector<8x32xf32>
    %234 = vector.extract_strided_slice %221 {offsets = [0, 64], sizes = [8, 32], strides = [1, 1]} : vector<8x128xf32> to vector<8x32xf32>
    %235 = math.tanh %234 : vector<8x32xf32>
    %236 = arith.mulf %232, %198 : vector<8x32xf32>
    %237 = arith.mulf %231, %235 : vector<8x32xf32>
    %238 = arith.addf %236, %237 : vector<8x32xf32>
    %239 = math.tanh %238 : vector<8x32xf32>
    %240 = arith.mulf %233, %239 : vector<8x32xf32>
    %241 = arith.negf %225 : vector<8x128xf32>
    %242 = math.exp %241 : vector<8x128xf32>
    %cst_56 = arith.constant 1.000000e+00 : f32
    %243 = vector.broadcast %cst_56 : f32 to vector<8x128xf32>
    %244 = arith.addf %243, %242 : vector<8x128xf32>
    %245 = arith.divf %243, %244 : vector<8x128xf32>
    %246 = vector.extract_strided_slice %245 {offsets = [0, 0], sizes = [8, 32], strides = [1, 1]} : vector<8x128xf32> to vector<8x32xf32>
    %247 = vector.extract_strided_slice %245 {offsets = [0, 32], sizes = [8, 32], strides = [1, 1]} : vector<8x128xf32> to vector<8x32xf32>
    %248 = vector.extract_strided_slice %245 {offsets = [0, 96], sizes = [8, 32], strides = [1, 1]} : vector<8x128xf32> to vector<8x32xf32>
    %249 = vector.extract_strided_slice %225 {offsets = [0, 64], sizes = [8, 32], strides = [1, 1]} : vector<8x128xf32> to vector<8x32xf32>
    %250 = math.tanh %249 : vector<8x32xf32>
    %251 = arith.mulf %247, %204 : vector<8x32xf32>
    %252 = arith.mulf %246, %250 : vector<8x32xf32>
    %253 = arith.addf %251, %252 : vector<8x32xf32>
    %254 = math.tanh %253 : vector<8x32xf32>
    %255 = arith.mulf %248, %254 : vector<8x32xf32>
    %256 = vector.shape_cast %215 : vector<8x1xi1> to vector<8x1xi1>
    %257 = vector.broadcast %256 : vector<8x1xi1> to vector<8x32xi1>
    %258 = arith.select %257, %240, %195 : vector<8x32xi1>, vector<8x32xf32>
    %259 = vector.shape_cast %215 : vector<8x1xi1> to vector<8x1xi1>
    %260 = vector.broadcast %259 : vector<8x1xi1> to vector<8x32xi1>
    %261 = arith.select %260, %238, %198 : vector<8x32xi1>, vector<8x32xf32>
    %262 = vector.shape_cast %217 : vector<8x1xi1> to vector<8x1xi1>
    %263 = vector.broadcast %262 : vector<8x1xi1> to vector<8x32xi1>
    %264 = arith.select %263, %255, %201 : vector<8x32xi1>, vector<8x32xf32>
    %265 = vector.shape_cast %217 : vector<8x1xi1> to vector<8x1xi1>
    %266 = vector.broadcast %265 : vector<8x1xi1> to vector<8x32xi1>
    %267 = arith.select %266, %253, %204 : vector<8x32xi1>, vector<8x32xf32>
    %268 = arith.index_cast %211 : i32 to index
    %c0_57 = arith.constant 0 : index
    %269 = vector.load %arg17[%268, %c0_57] : memref<64x32xf32, #tpu.memory_space<vmem>>, vector<8x32xf32>
    tpu.vector_store %arg17[%268, %c0_57], %258 {strides = array<i32>} : memref<64x32xf32, #tpu.memory_space<vmem>>, vector<8x32xf32>,
    %270 = arith.index_cast %213 : i32 to index
    %c0_58 = arith.constant 0 : index
    %271 = vector.load %arg18[%270, %c0_58] : memref<64x32xf32, #tpu.memory_space<vmem>>, vector<8x32xf32>
    tpu.vector_store %arg18[%270, %c0_58], %264 {strides = array<i32>} : memref<64x32xf32, #tpu.memory_space<vmem>>, vector<8x32xf32>,
    %c4_i32 = arith.constant 4 : i32
    %c7_i32_59 = arith.constant 7 : i32
    %272 = arith.subi %c7_i32_59, %c4_i32 : i32
    %c8_i32_60 = arith.constant 8 : i32
    %273 = arith.muli %c4_i32, %c8_i32_60 : i32
    %274 = tpu.assume_multiple %273, 8 : i32
    %c8_i32_61 = arith.constant 8 : i32
    %275 = arith.muli %272, %c8_i32_61 : i32
    %276 = tpu.assume_multiple %275, 8 : i32
    %277 = vector.broadcast %c4_i32 : i32 to vector<8x1xi32>
    %278 = arith.cmpi slt, %277, %0 : vector<8x1xi32>
    %279 = vector.broadcast %272 : i32 to vector<8x1xi32>
    %280 = arith.cmpi slt, %279, %0 : vector<8x1xi32>
    %281 = arith.index_cast %274 : i32 to index
    %c0_62 = arith.constant 0 : index
    %282 = vector.load %arg16[%281, %c0_62] : memref<64x256xf32, #tpu.memory_space<vmem>>, vector<8x128xf32>
    %cst_63 = arith.constant dense<0.000000e+00> : vector<8x128xf32>
    %283 = tpu.matmul %258, %17, %cst_63 {dimension_numbers = #tpu.dot_dimension_numbers<[1], [0], [0], [1], [0, 0, 1, 1], [], []>} : vector<8x32xf32>, vector<32x128xf32>, vector<8x128xf32> -> vector<8x128xf32>
    %284 = arith.addf %282, %283 : vector<8x128xf32>
    %285 = arith.index_cast %276 : i32 to index
    %c128_64 = arith.constant 128 : index
    %286 = vector.load %arg16[%285, %c128_64] : memref<64x256xf32, #tpu.memory_space<vmem>>, vector<8x128xf32>
    %cst_65 = arith.constant dense<0.000000e+00> : vector<8x128xf32>
    %287 = tpu.matmul %264, %18, %cst_65 {dimension_numbers = #tpu.dot_dimension_numbers<[1], [0], [0], [1], [0, 0, 1, 1], [], []>} : vector<8x32xf32>, vector<32x128xf32>, vector<8x128xf32> -> vector<8x128xf32>
    %288 = arith.addf %286, %287 : vector<8x128xf32>
    %289 = arith.negf %284 : vector<8x128xf32>
    %290 = math.exp %289 : vector<8x128xf32>
    %cst_66 = arith.constant 1.000000e+00 : f32
    %291 = vector.broadcast %cst_66 : f32 to vector<8x128xf32>
    %292 = arith.addf %291, %290 : vector<8x128xf32>
    %293 = arith.divf %291, %292 : vector<8x128xf32>
    %294 = vector.extract_strided_slice %293 {offsets = [0, 0], sizes = [8, 32], strides = [1, 1]} : vector<8x128xf32> to vector<8x32xf32>
    %295 = vector.extract_strided_slice %293 {offsets = [0, 32], sizes = [8, 32], strides = [1, 1]} : vector<8x128xf32> to vector<8x32xf32>
    %296 = vector.extract_strided_slice %293 {offsets = [0, 96], sizes = [8, 32], strides = [1, 1]} : vector<8x128xf32> to vector<8x32xf32>
    %297 = vector.extract_strided_slice %284 {offsets = [0, 64], sizes = [8, 32], strides = [1, 1]} : vector<8x128xf32> to vector<8x32xf32>
    %298 = math.tanh %297 : vector<8x32xf32>
    %299 = arith.mulf %295, %261 : vector<8x32xf32>
    %300 = arith.mulf %294, %298 : vector<8x32xf32>
    %301 = arith.addf %299, %300 : vector<8x32xf32>
    %302 = math.tanh %301 : vector<8x32xf32>
    %303 = arith.mulf %296, %302 : vector<8x32xf32>
    %304 = arith.negf %288 : vector<8x128xf32>
    %305 = math.exp %304 : vector<8x128xf32>
    %cst_67 = arith.constant 1.000000e+00 : f32
    %306 = vector.broadcast %cst_67 : f32 to vector<8x128xf32>
    %307 = arith.addf %306, %305 : vector<8x128xf32>
    %308 = arith.divf %306, %307 : vector<8x128xf32>
    %309 = vector.extract_strided_slice %308 {offsets = [0, 0], sizes = [8, 32], strides = [1, 1]} : vector<8x128xf32> to vector<8x32xf32>
    %310 = vector.extract_strided_slice %308 {offsets = [0, 32], sizes = [8, 32], strides = [1, 1]} : vector<8x128xf32> to vector<8x32xf32>
    %311 = vector.extract_strided_slice %308 {offsets = [0, 96], sizes = [8, 32], strides = [1, 1]} : vector<8x128xf32> to vector<8x32xf32>
    %312 = vector.extract_strided_slice %288 {offsets = [0, 64], sizes = [8, 32], strides = [1, 1]} : vector<8x128xf32> to vector<8x32xf32>
    %313 = math.tanh %312 : vector<8x32xf32>
    %314 = arith.mulf %310, %267 : vector<8x32xf32>
    %315 = arith.mulf %309, %313 : vector<8x32xf32>
    %316 = arith.addf %314, %315 : vector<8x32xf32>
    %317 = math.tanh %316 : vector<8x32xf32>
    %318 = arith.mulf %311, %317 : vector<8x32xf32>
    %319 = vector.shape_cast %278 : vector<8x1xi1> to vector<8x1xi1>
    %320 = vector.broadcast %319 : vector<8x1xi1> to vector<8x32xi1>
    %321 = arith.select %320, %303, %258 : vector<8x32xi1>, vector<8x32xf32>
    %322 = vector.shape_cast %278 : vector<8x1xi1> to vector<8x1xi1>
    %323 = vector.broadcast %322 : vector<8x1xi1> to vector<8x32xi1>
    %324 = arith.select %323, %301, %261 : vector<8x32xi1>, vector<8x32xf32>
    %325 = vector.shape_cast %280 : vector<8x1xi1> to vector<8x1xi1>
    %326 = vector.broadcast %325 : vector<8x1xi1> to vector<8x32xi1>
    %327 = arith.select %326, %318, %264 : vector<8x32xi1>, vector<8x32xf32>
    %328 = vector.shape_cast %280 : vector<8x1xi1> to vector<8x1xi1>
    %329 = vector.broadcast %328 : vector<8x1xi1> to vector<8x32xi1>
    %330 = arith.select %329, %316, %267 : vector<8x32xi1>, vector<8x32xf32>
    %331 = arith.index_cast %274 : i32 to index
    %c0_68 = arith.constant 0 : index
    %332 = vector.load %arg17[%331, %c0_68] : memref<64x32xf32, #tpu.memory_space<vmem>>, vector<8x32xf32>
    tpu.vector_store %arg17[%331, %c0_68], %321 {strides = array<i32>} : memref<64x32xf32, #tpu.memory_space<vmem>>, vector<8x32xf32>,
    %333 = arith.index_cast %276 : i32 to index
    %c0_69 = arith.constant 0 : index
    %334 = vector.load %arg18[%333, %c0_69] : memref<64x32xf32, #tpu.memory_space<vmem>>, vector<8x32xf32>
    tpu.vector_store %arg18[%333, %c0_69], %327 {strides = array<i32>} : memref<64x32xf32, #tpu.memory_space<vmem>>, vector<8x32xf32>,
    %c5_i32 = arith.constant 5 : i32
    %c7_i32_70 = arith.constant 7 : i32
    %335 = arith.subi %c7_i32_70, %c5_i32 : i32
    %c8_i32_71 = arith.constant 8 : i32
    %336 = arith.muli %c5_i32, %c8_i32_71 : i32
    %337 = tpu.assume_multiple %336, 8 : i32
    %c8_i32_72 = arith.constant 8 : i32
    %338 = arith.muli %335, %c8_i32_72 : i32
    %339 = tpu.assume_multiple %338, 8 : i32
    %340 = vector.broadcast %c5_i32 : i32 to vector<8x1xi32>
    %341 = arith.cmpi slt, %340, %0 : vector<8x1xi32>
    %342 = vector.broadcast %335 : i32 to vector<8x1xi32>
    %343 = arith.cmpi slt, %342, %0 : vector<8x1xi32>
    %344 = arith.index_cast %337 : i32 to index
    %c0_73 = arith.constant 0 : index
    %345 = vector.load %arg16[%344, %c0_73] : memref<64x256xf32, #tpu.memory_space<vmem>>, vector<8x128xf32>
    %cst_74 = arith.constant dense<0.000000e+00> : vector<8x128xf32>
    %346 = tpu.matmul %321, %17, %cst_74 {dimension_numbers = #tpu.dot_dimension_numbers<[1], [0], [0], [1], [0, 0, 1, 1], [], []>} : vector<8x32xf32>, vector<32x128xf32>, vector<8x128xf32> -> vector<8x128xf32>
    %347 = arith.addf %345, %346 : vector<8x128xf32>
    %348 = arith.index_cast %339 : i32 to index
    %c128_75 = arith.constant 128 : index
    %349 = vector.load %arg16[%348, %c128_75] : memref<64x256xf32, #tpu.memory_space<vmem>>, vector<8x128xf32>
    %cst_76 = arith.constant dense<0.000000e+00> : vector<8x128xf32>
    %350 = tpu.matmul %327, %18, %cst_76 {dimension_numbers = #tpu.dot_dimension_numbers<[1], [0], [0], [1], [0, 0, 1, 1], [], []>} : vector<8x32xf32>, vector<32x128xf32>, vector<8x128xf32> -> vector<8x128xf32>
    %351 = arith.addf %349, %350 : vector<8x128xf32>
    %352 = arith.negf %347 : vector<8x128xf32>
    %353 = math.exp %352 : vector<8x128xf32>
    %cst_77 = arith.constant 1.000000e+00 : f32
    %354 = vector.broadcast %cst_77 : f32 to vector<8x128xf32>
    %355 = arith.addf %354, %353 : vector<8x128xf32>
    %356 = arith.divf %354, %355 : vector<8x128xf32>
    %357 = vector.extract_strided_slice %356 {offsets = [0, 0], sizes = [8, 32], strides = [1, 1]} : vector<8x128xf32> to vector<8x32xf32>
    %358 = vector.extract_strided_slice %356 {offsets = [0, 32], sizes = [8, 32], strides = [1, 1]} : vector<8x128xf32> to vector<8x32xf32>
    %359 = vector.extract_strided_slice %356 {offsets = [0, 96], sizes = [8, 32], strides = [1, 1]} : vector<8x128xf32> to vector<8x32xf32>
    %360 = vector.extract_strided_slice %347 {offsets = [0, 64], sizes = [8, 32], strides = [1, 1]} : vector<8x128xf32> to vector<8x32xf32>
    %361 = math.tanh %360 : vector<8x32xf32>
    %362 = arith.mulf %358, %324 : vector<8x32xf32>
    %363 = arith.mulf %357, %361 : vector<8x32xf32>
    %364 = arith.addf %362, %363 : vector<8x32xf32>
    %365 = math.tanh %364 : vector<8x32xf32>
    %366 = arith.mulf %359, %365 : vector<8x32xf32>
    %367 = arith.negf %351 : vector<8x128xf32>
    %368 = math.exp %367 : vector<8x128xf32>
    %cst_78 = arith.constant 1.000000e+00 : f32
    %369 = vector.broadcast %cst_78 : f32 to vector<8x128xf32>
    %370 = arith.addf %369, %368 : vector<8x128xf32>
    %371 = arith.divf %369, %370 : vector<8x128xf32>
    %372 = vector.extract_strided_slice %371 {offsets = [0, 0], sizes = [8, 32], strides = [1, 1]} : vector<8x128xf32> to vector<8x32xf32>
    %373 = vector.extract_strided_slice %371 {offsets = [0, 32], sizes = [8, 32], strides = [1, 1]} : vector<8x128xf32> to vector<8x32xf32>
    %374 = vector.extract_strided_slice %371 {offsets = [0, 96], sizes = [8, 32], strides = [1, 1]} : vector<8x128xf32> to vector<8x32xf32>
    %375 = vector.extract_strided_slice %351 {offsets = [0, 64], sizes = [8, 32], strides = [1, 1]} : vector<8x128xf32> to vector<8x32xf32>
    %376 = math.tanh %375 : vector<8x32xf32>
    %377 = arith.mulf %373, %330 : vector<8x32xf32>
    %378 = arith.mulf %372, %376 : vector<8x32xf32>
    %379 = arith.addf %377, %378 : vector<8x32xf32>
    %380 = math.tanh %379 : vector<8x32xf32>
    %381 = arith.mulf %374, %380 : vector<8x32xf32>
    %382 = vector.shape_cast %341 : vector<8x1xi1> to vector<8x1xi1>
    %383 = vector.broadcast %382 : vector<8x1xi1> to vector<8x32xi1>
    %384 = arith.select %383, %366, %321 : vector<8x32xi1>, vector<8x32xf32>
    %385 = vector.shape_cast %341 : vector<8x1xi1> to vector<8x1xi1>
    %386 = vector.broadcast %385 : vector<8x1xi1> to vector<8x32xi1>
    %387 = arith.select %386, %364, %324 : vector<8x32xi1>, vector<8x32xf32>
    %388 = vector.shape_cast %343 : vector<8x1xi1> to vector<8x1xi1>
    %389 = vector.broadcast %388 : vector<8x1xi1> to vector<8x32xi1>
    %390 = arith.select %389, %381, %327 : vector<8x32xi1>, vector<8x32xf32>
    %391 = vector.shape_cast %343 : vector<8x1xi1> to vector<8x1xi1>
    %392 = vector.broadcast %391 : vector<8x1xi1> to vector<8x32xi1>
    %393 = arith.select %392, %379, %330 : vector<8x32xi1>, vector<8x32xf32>
    %394 = arith.index_cast %337 : i32 to index
    %c0_79 = arith.constant 0 : index
    %395 = vector.load %arg17[%394, %c0_79] : memref<64x32xf32, #tpu.memory_space<vmem>>, vector<8x32xf32>
    tpu.vector_store %arg17[%394, %c0_79], %384 {strides = array<i32>} : memref<64x32xf32, #tpu.memory_space<vmem>>, vector<8x32xf32>,
    %396 = arith.index_cast %339 : i32 to index
    %c0_80 = arith.constant 0 : index
    %397 = vector.load %arg18[%396, %c0_80] : memref<64x32xf32, #tpu.memory_space<vmem>>, vector<8x32xf32>
    tpu.vector_store %arg18[%396, %c0_80], %390 {strides = array<i32>} : memref<64x32xf32, #tpu.memory_space<vmem>>, vector<8x32xf32>,
    %c6_i32 = arith.constant 6 : i32
    %c7_i32_81 = arith.constant 7 : i32
    %398 = arith.subi %c7_i32_81, %c6_i32 : i32
    %c8_i32_82 = arith.constant 8 : i32
    %399 = arith.muli %c6_i32, %c8_i32_82 : i32
    %400 = tpu.assume_multiple %399, 8 : i32
    %c8_i32_83 = arith.constant 8 : i32
    %401 = arith.muli %398, %c8_i32_83 : i32
    %402 = tpu.assume_multiple %401, 8 : i32
    %403 = vector.broadcast %c6_i32 : i32 to vector<8x1xi32>
    %404 = arith.cmpi slt, %403, %0 : vector<8x1xi32>
    %405 = vector.broadcast %398 : i32 to vector<8x1xi32>
    %406 = arith.cmpi slt, %405, %0 : vector<8x1xi32>
    %407 = arith.index_cast %400 : i32 to index
    %c0_84 = arith.constant 0 : index
    %408 = vector.load %arg16[%407, %c0_84] : memref<64x256xf32, #tpu.memory_space<vmem>>, vector<8x128xf32>
    %cst_85 = arith.constant dense<0.000000e+00> : vector<8x128xf32>
    %409 = tpu.matmul %384, %17, %cst_85 {dimension_numbers = #tpu.dot_dimension_numbers<[1], [0], [0], [1], [0, 0, 1, 1], [], []>} : vector<8x32xf32>, vector<32x128xf32>, vector<8x128xf32> -> vector<8x128xf32>
    %410 = arith.addf %408, %409 : vector<8x128xf32>
    %411 = arith.index_cast %402 : i32 to index
    %c128_86 = arith.constant 128 : index
    %412 = vector.load %arg16[%411, %c128_86] : memref<64x256xf32, #tpu.memory_space<vmem>>, vector<8x128xf32>
    %cst_87 = arith.constant dense<0.000000e+00> : vector<8x128xf32>
    %413 = tpu.matmul %390, %18, %cst_87 {dimension_numbers = #tpu.dot_dimension_numbers<[1], [0], [0], [1], [0, 0, 1, 1], [], []>} : vector<8x32xf32>, vector<32x128xf32>, vector<8x128xf32> -> vector<8x128xf32>
    %414 = arith.addf %412, %413 : vector<8x128xf32>
    %415 = arith.negf %410 : vector<8x128xf32>
    %416 = math.exp %415 : vector<8x128xf32>
    %cst_88 = arith.constant 1.000000e+00 : f32
    %417 = vector.broadcast %cst_88 : f32 to vector<8x128xf32>
    %418 = arith.addf %417, %416 : vector<8x128xf32>
    %419 = arith.divf %417, %418 : vector<8x128xf32>
    %420 = vector.extract_strided_slice %419 {offsets = [0, 0], sizes = [8, 32], strides = [1, 1]} : vector<8x128xf32> to vector<8x32xf32>
    %421 = vector.extract_strided_slice %419 {offsets = [0, 32], sizes = [8, 32], strides = [1, 1]} : vector<8x128xf32> to vector<8x32xf32>
    %422 = vector.extract_strided_slice %419 {offsets = [0, 96], sizes = [8, 32], strides = [1, 1]} : vector<8x128xf32> to vector<8x32xf32>
    %423 = vector.extract_strided_slice %410 {offsets = [0, 64], sizes = [8, 32], strides = [1, 1]} : vector<8x128xf32> to vector<8x32xf32>
    %424 = math.tanh %423 : vector<8x32xf32>
    %425 = arith.mulf %421, %387 : vector<8x32xf32>
    %426 = arith.mulf %420, %424 : vector<8x32xf32>
    %427 = arith.addf %425, %426 : vector<8x32xf32>
    %428 = math.tanh %427 : vector<8x32xf32>
    %429 = arith.mulf %422, %428 : vector<8x32xf32>
    %430 = arith.negf %414 : vector<8x128xf32>
    %431 = math.exp %430 : vector<8x128xf32>
    %cst_89 = arith.constant 1.000000e+00 : f32
    %432 = vector.broadcast %cst_89 : f32 to vector<8x128xf32>
    %433 = arith.addf %432, %431 : vector<8x128xf32>
    %434 = arith.divf %432, %433 : vector<8x128xf32>
    %435 = vector.extract_strided_slice %434 {offsets = [0, 0], sizes = [8, 32], strides = [1, 1]} : vector<8x128xf32> to vector<8x32xf32>
    %436 = vector.extract_strided_slice %434 {offsets = [0, 32], sizes = [8, 32], strides = [1, 1]} : vector<8x128xf32> to vector<8x32xf32>
    %437 = vector.extract_strided_slice %434 {offsets = [0, 96], sizes = [8, 32], strides = [1, 1]} : vector<8x128xf32> to vector<8x32xf32>
    %438 = vector.extract_strided_slice %414 {offsets = [0, 64], sizes = [8, 32], strides = [1, 1]} : vector<8x128xf32> to vector<8x32xf32>
    %439 = math.tanh %438 : vector<8x32xf32>
    %440 = arith.mulf %436, %393 : vector<8x32xf32>
    %441 = arith.mulf %435, %439 : vector<8x32xf32>
    %442 = arith.addf %440, %441 : vector<8x32xf32>
    %443 = math.tanh %442 : vector<8x32xf32>
    %444 = arith.mulf %437, %443 : vector<8x32xf32>
    %445 = vector.shape_cast %404 : vector<8x1xi1> to vector<8x1xi1>
    %446 = vector.broadcast %445 : vector<8x1xi1> to vector<8x32xi1>
    %447 = arith.select %446, %429, %384 : vector<8x32xi1>, vector<8x32xf32>
    %448 = vector.shape_cast %404 : vector<8x1xi1> to vector<8x1xi1>
    %449 = vector.broadcast %448 : vector<8x1xi1> to vector<8x32xi1>
    %450 = arith.select %449, %427, %387 : vector<8x32xi1>, vector<8x32xf32>
    %451 = vector.shape_cast %406 : vector<8x1xi1> to vector<8x1xi1>
    %452 = vector.broadcast %451 : vector<8x1xi1> to vector<8x32xi1>
    %453 = arith.select %452, %444, %390 : vector<8x32xi1>, vector<8x32xf32>
    %454 = vector.shape_cast %406 : vector<8x1xi1> to vector<8x1xi1>
    %455 = vector.broadcast %454 : vector<8x1xi1> to vector<8x32xi1>
    %456 = arith.select %455, %442, %393 : vector<8x32xi1>, vector<8x32xf32>
    %457 = arith.index_cast %400 : i32 to index
    %c0_90 = arith.constant 0 : index
    %458 = vector.load %arg17[%457, %c0_90] : memref<64x32xf32, #tpu.memory_space<vmem>>, vector<8x32xf32>
    tpu.vector_store %arg17[%457, %c0_90], %447 {strides = array<i32>} : memref<64x32xf32, #tpu.memory_space<vmem>>, vector<8x32xf32>,
    %459 = arith.index_cast %402 : i32 to index
    %c0_91 = arith.constant 0 : index
    %460 = vector.load %arg18[%459, %c0_91] : memref<64x32xf32, #tpu.memory_space<vmem>>, vector<8x32xf32>
    tpu.vector_store %arg18[%459, %c0_91], %453 {strides = array<i32>} : memref<64x32xf32, #tpu.memory_space<vmem>>, vector<8x32xf32>,
    %c7_i32_92 = arith.constant 7 : i32
    %c7_i32_93 = arith.constant 7 : i32
    %461 = arith.subi %c7_i32_93, %c7_i32_92 : i32
    %c8_i32_94 = arith.constant 8 : i32
    %462 = arith.muli %c7_i32_92, %c8_i32_94 : i32
    %463 = tpu.assume_multiple %462, 8 : i32
    %c8_i32_95 = arith.constant 8 : i32
    %464 = arith.muli %461, %c8_i32_95 : i32
    %465 = tpu.assume_multiple %464, 8 : i32
    %466 = vector.broadcast %c7_i32_92 : i32 to vector<8x1xi32>
    %467 = arith.cmpi slt, %466, %0 : vector<8x1xi32>
    %468 = vector.broadcast %461 : i32 to vector<8x1xi32>
    %469 = arith.cmpi slt, %468, %0 : vector<8x1xi32>
    %470 = arith.index_cast %463 : i32 to index
    %c0_96 = arith.constant 0 : index
    %471 = vector.load %arg16[%470, %c0_96] : memref<64x256xf32, #tpu.memory_space<vmem>>, vector<8x128xf32>
    %cst_97 = arith.constant dense<0.000000e+00> : vector<8x128xf32>
    %472 = tpu.matmul %447, %17, %cst_97 {dimension_numbers = #tpu.dot_dimension_numbers<[1], [0], [0], [1], [0, 0, 1, 1], [], []>} : vector<8x32xf32>, vector<32x128xf32>, vector<8x128xf32> -> vector<8x128xf32>
    %473 = arith.addf %471, %472 : vector<8x128xf32>
    %474 = arith.index_cast %465 : i32 to index
    %c128_98 = arith.constant 128 : index
    %475 = vector.load %arg16[%474, %c128_98] : memref<64x256xf32, #tpu.memory_space<vmem>>, vector<8x128xf32>
    %cst_99 = arith.constant dense<0.000000e+00> : vector<8x128xf32>
    %476 = tpu.matmul %453, %18, %cst_99 {dimension_numbers = #tpu.dot_dimension_numbers<[1], [0], [0], [1], [0, 0, 1, 1], [], []>} : vector<8x32xf32>, vector<32x128xf32>, vector<8x128xf32> -> vector<8x128xf32>
    %477 = arith.addf %475, %476 : vector<8x128xf32>
    %478 = arith.negf %473 : vector<8x128xf32>
    %479 = math.exp %478 : vector<8x128xf32>
    %cst_100 = arith.constant 1.000000e+00 : f32
    %480 = vector.broadcast %cst_100 : f32 to vector<8x128xf32>
    %481 = arith.addf %480, %479 : vector<8x128xf32>
    %482 = arith.divf %480, %481 : vector<8x128xf32>
    %483 = vector.extract_strided_slice %482 {offsets = [0, 0], sizes = [8, 32], strides = [1, 1]} : vector<8x128xf32> to vector<8x32xf32>
    %484 = vector.extract_strided_slice %482 {offsets = [0, 32], sizes = [8, 32], strides = [1, 1]} : vector<8x128xf32> to vector<8x32xf32>
    %485 = vector.extract_strided_slice %482 {offsets = [0, 96], sizes = [8, 32], strides = [1, 1]} : vector<8x128xf32> to vector<8x32xf32>
    %486 = vector.extract_strided_slice %473 {offsets = [0, 64], sizes = [8, 32], strides = [1, 1]} : vector<8x128xf32> to vector<8x32xf32>
    %487 = math.tanh %486 : vector<8x32xf32>
    %488 = arith.mulf %484, %450 : vector<8x32xf32>
    %489 = arith.mulf %483, %487 : vector<8x32xf32>
    %490 = arith.addf %488, %489 : vector<8x32xf32>
    %491 = math.tanh %490 : vector<8x32xf32>
    %492 = arith.mulf %485, %491 : vector<8x32xf32>
    %493 = arith.negf %477 : vector<8x128xf32>
    %494 = math.exp %493 : vector<8x128xf32>
    %cst_101 = arith.constant 1.000000e+00 : f32
    %495 = vector.broadcast %cst_101 : f32 to vector<8x128xf32>
    %496 = arith.addf %495, %494 : vector<8x128xf32>
    %497 = arith.divf %495, %496 : vector<8x128xf32>
    %498 = vector.extract_strided_slice %497 {offsets = [0, 0], sizes = [8, 32], strides = [1, 1]} : vector<8x128xf32> to vector<8x32xf32>
    %499 = vector.extract_strided_slice %497 {offsets = [0, 32], sizes = [8, 32], strides = [1, 1]} : vector<8x128xf32> to vector<8x32xf32>
    %500 = vector.extract_strided_slice %497 {offsets = [0, 96], sizes = [8, 32], strides = [1, 1]} : vector<8x128xf32> to vector<8x32xf32>
    %501 = vector.extract_strided_slice %477 {offsets = [0, 64], sizes = [8, 32], strides = [1, 1]} : vector<8x128xf32> to vector<8x32xf32>
    %502 = math.tanh %501 : vector<8x32xf32>
    %503 = arith.mulf %499, %456 : vector<8x32xf32>
    %504 = arith.mulf %498, %502 : vector<8x32xf32>
    %505 = arith.addf %503, %504 : vector<8x32xf32>
    %506 = math.tanh %505 : vector<8x32xf32>
    %507 = arith.mulf %500, %506 : vector<8x32xf32>
    %508 = vector.shape_cast %467 : vector<8x1xi1> to vector<8x1xi1>
    %509 = vector.broadcast %508 : vector<8x1xi1> to vector<8x32xi1>
    %510 = arith.select %509, %492, %447 : vector<8x32xi1>, vector<8x32xf32>
    %511 = vector.shape_cast %467 : vector<8x1xi1> to vector<8x1xi1>
    %512 = vector.broadcast %511 : vector<8x1xi1> to vector<8x32xi1>
    %513 = arith.select %512, %490, %450 : vector<8x32xi1>, vector<8x32xf32>
    %514 = vector.shape_cast %469 : vector<8x1xi1> to vector<8x1xi1>
    %515 = vector.broadcast %514 : vector<8x1xi1> to vector<8x32xi1>
    %516 = arith.select %515, %507, %453 : vector<8x32xi1>, vector<8x32xf32>
    %517 = vector.shape_cast %469 : vector<8x1xi1> to vector<8x1xi1>
    %518 = vector.broadcast %517 : vector<8x1xi1> to vector<8x32xi1>
    %519 = arith.select %518, %505, %456 : vector<8x32xi1>, vector<8x32xf32>
    %520 = arith.index_cast %463 : i32 to index
    %c0_102 = arith.constant 0 : index
    %521 = vector.load %arg17[%520, %c0_102] : memref<64x32xf32, #tpu.memory_space<vmem>>, vector<8x32xf32>
    tpu.vector_store %arg17[%520, %c0_102], %510 {strides = array<i32>} : memref<64x32xf32, #tpu.memory_space<vmem>>, vector<8x32xf32>,
    %522 = arith.index_cast %465 : i32 to index
    %c0_103 = arith.constant 0 : index
    %523 = vector.load %arg18[%522, %c0_103] : memref<64x32xf32, #tpu.memory_space<vmem>>, vector<8x32xf32>
    tpu.vector_store %arg18[%522, %c0_103], %516 {strides = array<i32>} : memref<64x32xf32, #tpu.memory_space<vmem>>, vector<8x32xf32>,
    %c8_i32_104 = arith.constant 8 : i32
    %c0_105 = arith.constant 0 : index
    %c0_106 = arith.constant 0 : index
    %524 = vector.load %arg8[%c0_105, %c0_106] : memref<64x256xbf16, #tpu.memory_space<vmem>>, vector<64x256xbf16>
    %c0_107 = arith.constant 0 : index
    %c0_108 = arith.constant 0 : index
    %525 = vector.load %arg17[%c0_107, %c0_108] : memref<64x32xf32, #tpu.memory_space<vmem>>, vector<64x32xf32>
    %526 = vector.extract_strided_slice %524 {offsets = [0, 0], sizes = [32, 256], strides = [1, 1]} : vector<64x256xbf16> to vector<32x256xbf16>
    %527 = arith.truncf %525 : vector<64x32xf32> to vector<64x32xbf16>
    %cst_109 = arith.constant dense<0.000000e+00> : vector<64x256xf32>
    %528 = tpu.matmul %527, %526, %cst_109 {dimension_numbers = #tpu.dot_dimension_numbers<[1], [0], [0], [1], [0, 0, 1, 1], [], []>} : vector<64x32xbf16>, vector<32x256xbf16>, vector<64x256xf32> -> vector<64x256xf32>
    %c0_110 = arith.constant 0 : index
    %c0_111 = arith.constant 0 : index
    %529 = vector.load %arg18[%c0_110, %c0_111] : memref<64x32xf32, #tpu.memory_space<vmem>>, vector<64x32xf32>
    %530 = vector.extract_strided_slice %524 {offsets = [32, 0], sizes = [32, 256], strides = [1, 1]} : vector<64x256xbf16> to vector<32x256xbf16>
    %531 = arith.truncf %529 : vector<64x32xf32> to vector<64x32xbf16>
    %cst_112 = arith.constant dense<0.000000e+00> : vector<64x256xf32>
    %532 = tpu.matmul %531, %530, %cst_112 {dimension_numbers = #tpu.dot_dimension_numbers<[1], [0], [0], [1], [0, 0, 1, 1], [], []>} : vector<64x32xbf16>, vector<32x256xbf16>, vector<64x256xf32> -> vector<64x256xf32>
    %533 = arith.addf %528, %532 : vector<64x256xf32>
    %c0_113 = arith.constant 0 : index
    %c0_114 = arith.constant 0 : index
    %534 = vector.load %arg10[%c0_113, %c0_114] : memref<1x256xf32, #tpu.memory_space<vmem>>, vector<1x256xf32>
    %535 = vector.broadcast %534 : vector<1x256xf32> to vector<64x256xf32>
    %536 = arith.addf %533, %535 : vector<64x256xf32>
    %c0_115 = arith.constant 0 : index
    %c0_116 = arith.constant 0 : index
    %537 = vector.load %arg16[%c0_115, %c0_116] : memref<64x256xf32, #tpu.memory_space<vmem>>, vector<64x256xf32>
    tpu.vector_store %arg16[%c0_115, %c0_116], %536 {strides = array<i32>} : memref<64x256xf32, #tpu.memory_space<vmem>>, vector<64x256xf32>,
    %c0_117 = arith.constant 0 : index
    %c0_118 = arith.constant 0 : index
    %538 = vector.load %arg9[%c0_117, %c0_118] : memref<32x256xf32, #tpu.memory_space<vmem>>, vector<32x256xf32>
    %539 = vector.extract_strided_slice %538 {offsets = [0, 0], sizes = [32, 128], strides = [1, 1]} : vector<32x256xf32> to vector<32x128xf32>
    %540 = vector.extract_strided_slice %538 {offsets = [0, 128], sizes = [32, 128], strides = [1, 1]} : vector<32x256xf32> to vector<32x128xf32>
    %cst_119 = arith.constant 0.000000e+00 : f32
    %541 = vector.broadcast %cst_119 : f32 to vector<8x32xf32>
    %c0_i32_120 = arith.constant 0 : i32
    %c7_i32_121 = arith.constant 7 : i32
    %542 = arith.subi %c7_i32_121, %c0_i32_120 : i32
    %c8_i32_122 = arith.constant 8 : i32
    %543 = arith.muli %c0_i32_120, %c8_i32_122 : i32
    %544 = tpu.assume_multiple %543, 8 : i32
    %c8_i32_123 = arith.constant 8 : i32
    %545 = arith.muli %542, %c8_i32_123 : i32
    %546 = tpu.assume_multiple %545, 8 : i32
    %547 = vector.broadcast %c0_i32_120 : i32 to vector<8x1xi32>
    %548 = arith.cmpi slt, %547, %0 : vector<8x1xi32>
    %549 = vector.broadcast %542 : i32 to vector<8x1xi32>
    %550 = arith.cmpi slt, %549, %0 : vector<8x1xi32>
    %551 = arith.index_cast %544 : i32 to index
    %c0_124 = arith.constant 0 : index
    %552 = vector.load %arg16[%551, %c0_124] : memref<64x256xf32, #tpu.memory_space<vmem>>, vector<8x128xf32>
    %cst_125 = arith.constant dense<0.000000e+00> : vector<8x128xf32>
    %553 = tpu.matmul %541, %539, %cst_125 {dimension_numbers = #tpu.dot_dimension_numbers<[1], [0], [0], [1], [0, 0, 1, 1], [], []>} : vector<8x32xf32>, vector<32x128xf32>, vector<8x128xf32> -> vector<8x128xf32>
    %554 = arith.addf %552, %553 : vector<8x128xf32>
    %555 = arith.index_cast %546 : i32 to index
    %c128_126 = arith.constant 128 : index
    %556 = vector.load %arg16[%555, %c128_126] : memref<64x256xf32, #tpu.memory_space<vmem>>, vector<8x128xf32>
    %cst_127 = arith.constant dense<0.000000e+00> : vector<8x128xf32>
    %557 = tpu.matmul %541, %540, %cst_127 {dimension_numbers = #tpu.dot_dimension_numbers<[1], [0], [0], [1], [0, 0, 1, 1], [], []>} : vector<8x32xf32>, vector<32x128xf32>, vector<8x128xf32> -> vector<8x128xf32>
    %558 = arith.addf %556, %557 : vector<8x128xf32>
    %559 = arith.negf %554 : vector<8x128xf32>
    %560 = math.exp %559 : vector<8x128xf32>
    %cst_128 = arith.constant 1.000000e+00 : f32
    %561 = vector.broadcast %cst_128 : f32 to vector<8x128xf32>
    %562 = arith.addf %561, %560 : vector<8x128xf32>
    %563 = arith.divf %561, %562 : vector<8x128xf32>
    %564 = vector.extract_strided_slice %563 {offsets = [0, 0], sizes = [8, 32], strides = [1, 1]} : vector<8x128xf32> to vector<8x32xf32>
    %565 = vector.extract_strided_slice %563 {offsets = [0, 32], sizes = [8, 32], strides = [1, 1]} : vector<8x128xf32> to vector<8x32xf32>
    %566 = vector.extract_strided_slice %563 {offsets = [0, 96], sizes = [8, 32], strides = [1, 1]} : vector<8x128xf32> to vector<8x32xf32>
    %567 = vector.extract_strided_slice %554 {offsets = [0, 64], sizes = [8, 32], strides = [1, 1]} : vector<8x128xf32> to vector<8x32xf32>
    %568 = math.tanh %567 : vector<8x32xf32>
    %569 = arith.mulf %565, %541 : vector<8x32xf32>
    %570 = arith.mulf %564, %568 : vector<8x32xf32>
    %571 = arith.addf %569, %570 : vector<8x32xf32>
    %572 = math.tanh %571 : vector<8x32xf32>
    %573 = arith.mulf %566, %572 : vector<8x32xf32>
    %574 = arith.negf %558 : vector<8x128xf32>
    %575 = math.exp %574 : vector<8x128xf32>
    %cst_129 = arith.constant 1.000000e+00 : f32
    %576 = vector.broadcast %cst_129 : f32 to vector<8x128xf32>
    %577 = arith.addf %576, %575 : vector<8x128xf32>
    %578 = arith.divf %576, %577 : vector<8x128xf32>
    %579 = vector.extract_strided_slice %578 {offsets = [0, 0], sizes = [8, 32], strides = [1, 1]} : vector<8x128xf32> to vector<8x32xf32>
    %580 = vector.extract_strided_slice %578 {offsets = [0, 32], sizes = [8, 32], strides = [1, 1]} : vector<8x128xf32> to vector<8x32xf32>
    %581 = vector.extract_strided_slice %578 {offsets = [0, 96], sizes = [8, 32], strides = [1, 1]} : vector<8x128xf32> to vector<8x32xf32>
    %582 = vector.extract_strided_slice %558 {offsets = [0, 64], sizes = [8, 32], strides = [1, 1]} : vector<8x128xf32> to vector<8x32xf32>
    %583 = math.tanh %582 : vector<8x32xf32>
    %584 = arith.mulf %580, %541 : vector<8x32xf32>
    %585 = arith.mulf %579, %583 : vector<8x32xf32>
    %586 = arith.addf %584, %585 : vector<8x32xf32>
    %587 = math.tanh %586 : vector<8x32xf32>
    %588 = arith.mulf %581, %587 : vector<8x32xf32>
    %589 = vector.shape_cast %548 : vector<8x1xi1> to vector<8x1xi1>
    %590 = vector.broadcast %589 : vector<8x1xi1> to vector<8x32xi1>
    %591 = arith.select %590, %573, %541 : vector<8x32xi1>, vector<8x32xf32>
    %592 = vector.shape_cast %548 : vector<8x1xi1> to vector<8x1xi1>
    %593 = vector.broadcast %592 : vector<8x1xi1> to vector<8x32xi1>
    %594 = arith.select %593, %571, %541 : vector<8x32xi1>, vector<8x32xf32>
    %595 = vector.shape_cast %550 : vector<8x1xi1> to vector<8x1xi1>
    %596 = vector.broadcast %595 : vector<8x1xi1> to vector<8x32xi1>
    %597 = arith.select %596, %588, %541 : vector<8x32xi1>, vector<8x32xf32>
    %598 = vector.shape_cast %550 : vector<8x1xi1> to vector<8x1xi1>
    %599 = vector.broadcast %598 : vector<8x1xi1> to vector<8x32xi1>
    %600 = arith.select %599, %586, %541 : vector<8x32xi1>, vector<8x32xf32>
    %601 = arith.index_cast %544 : i32 to index
    %c0_130 = arith.constant 0 : index
    %602 = vector.load %arg17[%601, %c0_130] : memref<64x32xf32, #tpu.memory_space<vmem>>, vector<8x32xf32>
    tpu.vector_store %arg17[%601, %c0_130], %591 {strides = array<i32>} : memref<64x32xf32, #tpu.memory_space<vmem>>, vector<8x32xf32>,
    %603 = arith.index_cast %546 : i32 to index
    %c0_131 = arith.constant 0 : index
    %604 = vector.load %arg18[%603, %c0_131] : memref<64x32xf32, #tpu.memory_space<vmem>>, vector<8x32xf32>
    tpu.vector_store %arg18[%603, %c0_131], %597 {strides = array<i32>} : memref<64x32xf32, #tpu.memory_space<vmem>>, vector<8x32xf32>,
    %c1_i32_132 = arith.constant 1 : i32
    %c7_i32_133 = arith.constant 7 : i32
    %605 = arith.subi %c7_i32_133, %c1_i32_132 : i32
    %c8_i32_134 = arith.constant 8 : i32
    %606 = arith.muli %c1_i32_132, %c8_i32_134 : i32
    %607 = tpu.assume_multiple %606, 8 : i32
    %c8_i32_135 = arith.constant 8 : i32
    %608 = arith.muli %605, %c8_i32_135 : i32
    %609 = tpu.assume_multiple %608, 8 : i32
    %610 = vector.broadcast %c1_i32_132 : i32 to vector<8x1xi32>
    %611 = arith.cmpi slt, %610, %0 : vector<8x1xi32>
    %612 = vector.broadcast %605 : i32 to vector<8x1xi32>
    %613 = arith.cmpi slt, %612, %0 : vector<8x1xi32>
    %614 = arith.index_cast %607 : i32 to index
    %c0_136 = arith.constant 0 : index
    %615 = vector.load %arg16[%614, %c0_136] : memref<64x256xf32, #tpu.memory_space<vmem>>, vector<8x128xf32>
    %cst_137 = arith.constant dense<0.000000e+00> : vector<8x128xf32>
    %616 = tpu.matmul %591, %539, %cst_137 {dimension_numbers = #tpu.dot_dimension_numbers<[1], [0], [0], [1], [0, 0, 1, 1], [], []>} : vector<8x32xf32>, vector<32x128xf32>, vector<8x128xf32> -> vector<8x128xf32>
    %617 = arith.addf %615, %616 : vector<8x128xf32>
    %618 = arith.index_cast %609 : i32 to index
    %c128_138 = arith.constant 128 : index
    %619 = vector.load %arg16[%618, %c128_138] : memref<64x256xf32, #tpu.memory_space<vmem>>, vector<8x128xf32>
    %cst_139 = arith.constant dense<0.000000e+00> : vector<8x128xf32>
    %620 = tpu.matmul %597, %540, %cst_139 {dimension_numbers = #tpu.dot_dimension_numbers<[1], [0], [0], [1], [0, 0, 1, 1], [], []>} : vector<8x32xf32>, vector<32x128xf32>, vector<8x128xf32> -> vector<8x128xf32>
    %621 = arith.addf %619, %620 : vector<8x128xf32>
    %622 = arith.negf %617 : vector<8x128xf32>
    %623 = math.exp %622 : vector<8x128xf32>
    %cst_140 = arith.constant 1.000000e+00 : f32
    %624 = vector.broadcast %cst_140 : f32 to vector<8x128xf32>
    %625 = arith.addf %624, %623 : vector<8x128xf32>
    %626 = arith.divf %624, %625 : vector<8x128xf32>
    %627 = vector.extract_strided_slice %626 {offsets = [0, 0], sizes = [8, 32], strides = [1, 1]} : vector<8x128xf32> to vector<8x32xf32>
    %628 = vector.extract_strided_slice %626 {offsets = [0, 32], sizes = [8, 32], strides = [1, 1]} : vector<8x128xf32> to vector<8x32xf32>
    %629 = vector.extract_strided_slice %626 {offsets = [0, 96], sizes = [8, 32], strides = [1, 1]} : vector<8x128xf32> to vector<8x32xf32>
    %630 = vector.extract_strided_slice %617 {offsets = [0, 64], sizes = [8, 32], strides = [1, 1]} : vector<8x128xf32> to vector<8x32xf32>
    %631 = math.tanh %630 : vector<8x32xf32>
    %632 = arith.mulf %628, %594 : vector<8x32xf32>
    %633 = arith.mulf %627, %631 : vector<8x32xf32>
    %634 = arith.addf %632, %633 : vector<8x32xf32>
    %635 = math.tanh %634 : vector<8x32xf32>
    %636 = arith.mulf %629, %635 : vector<8x32xf32>
    %637 = arith.negf %621 : vector<8x128xf32>
    %638 = math.exp %637 : vector<8x128xf32>
    %cst_141 = arith.constant 1.000000e+00 : f32
    %639 = vector.broadcast %cst_141 : f32 to vector<8x128xf32>
    %640 = arith.addf %639, %638 : vector<8x128xf32>
    %641 = arith.divf %639, %640 : vector<8x128xf32>
    %642 = vector.extract_strided_slice %641 {offsets = [0, 0], sizes = [8, 32], strides = [1, 1]} : vector<8x128xf32> to vector<8x32xf32>
    %643 = vector.extract_strided_slice %641 {offsets = [0, 32], sizes = [8, 32], strides = [1, 1]} : vector<8x128xf32> to vector<8x32xf32>
    %644 = vector.extract_strided_slice %641 {offsets = [0, 96], sizes = [8, 32], strides = [1, 1]} : vector<8x128xf32> to vector<8x32xf32>
    %645 = vector.extract_strided_slice %621 {offsets = [0, 64], sizes = [8, 32], strides = [1, 1]} : vector<8x128xf32> to vector<8x32xf32>
    %646 = math.tanh %645 : vector<8x32xf32>
    %647 = arith.mulf %643, %600 : vector<8x32xf32>
    %648 = arith.mulf %642, %646 : vector<8x32xf32>
    %649 = arith.addf %647, %648 : vector<8x32xf32>
    %650 = math.tanh %649 : vector<8x32xf32>
    %651 = arith.mulf %644, %650 : vector<8x32xf32>
    %652 = vector.shape_cast %611 : vector<8x1xi1> to vector<8x1xi1>
    %653 = vector.broadcast %652 : vector<8x1xi1> to vector<8x32xi1>
    %654 = arith.select %653, %636, %591 : vector<8x32xi1>, vector<8x32xf32>
    %655 = vector.shape_cast %611 : vector<8x1xi1> to vector<8x1xi1>
    %656 = vector.broadcast %655 : vector<8x1xi1> to vector<8x32xi1>
    %657 = arith.select %656, %634, %594 : vector<8x32xi1>, vector<8x32xf32>
    %658 = vector.shape_cast %613 : vector<8x1xi1> to vector<8x1xi1>
    %659 = vector.broadcast %658 : vector<8x1xi1> to vector<8x32xi1>
    %660 = arith.select %659, %651, %597 : vector<8x32xi1>, vector<8x32xf32>
    %661 = vector.shape_cast %613 : vector<8x1xi1> to vector<8x1xi1>
    %662 = vector.broadcast %661 : vector<8x1xi1> to vector<8x32xi1>
    %663 = arith.select %662, %649, %600 : vector<8x32xi1>, vector<8x32xf32>
    %664 = arith.index_cast %607 : i32 to index
    %c0_142 = arith.constant 0 : index
    %665 = vector.load %arg17[%664, %c0_142] : memref<64x32xf32, #tpu.memory_space<vmem>>, vector<8x32xf32>
    tpu.vector_store %arg17[%664, %c0_142], %654 {strides = array<i32>} : memref<64x32xf32, #tpu.memory_space<vmem>>, vector<8x32xf32>,
    %666 = arith.index_cast %609 : i32 to index
    %c0_143 = arith.constant 0 : index
    %667 = vector.load %arg18[%666, %c0_143] : memref<64x32xf32, #tpu.memory_space<vmem>>, vector<8x32xf32>
    tpu.vector_store %arg18[%666, %c0_143], %660 {strides = array<i32>} : memref<64x32xf32, #tpu.memory_space<vmem>>, vector<8x32xf32>,
    %c2_i32_144 = arith.constant 2 : i32
    %c7_i32_145 = arith.constant 7 : i32
    %668 = arith.subi %c7_i32_145, %c2_i32_144 : i32
    %c8_i32_146 = arith.constant 8 : i32
    %669 = arith.muli %c2_i32_144, %c8_i32_146 : i32
    %670 = tpu.assume_multiple %669, 8 : i32
    %c8_i32_147 = arith.constant 8 : i32
    %671 = arith.muli %668, %c8_i32_147 : i32
    %672 = tpu.assume_multiple %671, 8 : i32
    %673 = vector.broadcast %c2_i32_144 : i32 to vector<8x1xi32>
    %674 = arith.cmpi slt, %673, %0 : vector<8x1xi32>
    %675 = vector.broadcast %668 : i32 to vector<8x1xi32>
    %676 = arith.cmpi slt, %675, %0 : vector<8x1xi32>
    %677 = arith.index_cast %670 : i32 to index
    %c0_148 = arith.constant 0 : index
    %678 = vector.load %arg16[%677, %c0_148] : memref<64x256xf32, #tpu.memory_space<vmem>>, vector<8x128xf32>
    %cst_149 = arith.constant dense<0.000000e+00> : vector<8x128xf32>
    %679 = tpu.matmul %654, %539, %cst_149 {dimension_numbers = #tpu.dot_dimension_numbers<[1], [0], [0], [1], [0, 0, 1, 1], [], []>} : vector<8x32xf32>, vector<32x128xf32>, vector<8x128xf32> -> vector<8x128xf32>
    %680 = arith.addf %678, %679 : vector<8x128xf32>
    %681 = arith.index_cast %672 : i32 to index
    %c128_150 = arith.constant 128 : index
    %682 = vector.load %arg16[%681, %c128_150] : memref<64x256xf32, #tpu.memory_space<vmem>>, vector<8x128xf32>
    %cst_151 = arith.constant dense<0.000000e+00> : vector<8x128xf32>
    %683 = tpu.matmul %660, %540, %cst_151 {dimension_numbers = #tpu.dot_dimension_numbers<[1], [0], [0], [1], [0, 0, 1, 1], [], []>} : vector<8x32xf32>, vector<32x128xf32>, vector<8x128xf32> -> vector<8x128xf32>
    %684 = arith.addf %682, %683 : vector<8x128xf32>
    %685 = arith.negf %680 : vector<8x128xf32>
    %686 = math.exp %685 : vector<8x128xf32>
    %cst_152 = arith.constant 1.000000e+00 : f32
    %687 = vector.broadcast %cst_152 : f32 to vector<8x128xf32>
    %688 = arith.addf %687, %686 : vector<8x128xf32>
    %689 = arith.divf %687, %688 : vector<8x128xf32>
    %690 = vector.extract_strided_slice %689 {offsets = [0, 0], sizes = [8, 32], strides = [1, 1]} : vector<8x128xf32> to vector<8x32xf32>
    %691 = vector.extract_strided_slice %689 {offsets = [0, 32], sizes = [8, 32], strides = [1, 1]} : vector<8x128xf32> to vector<8x32xf32>
    %692 = vector.extract_strided_slice %689 {offsets = [0, 96], sizes = [8, 32], strides = [1, 1]} : vector<8x128xf32> to vector<8x32xf32>
    %693 = vector.extract_strided_slice %680 {offsets = [0, 64], sizes = [8, 32], strides = [1, 1]} : vector<8x128xf32> to vector<8x32xf32>
    %694 = math.tanh %693 : vector<8x32xf32>
    %695 = arith.mulf %691, %657 : vector<8x32xf32>
    %696 = arith.mulf %690, %694 : vector<8x32xf32>
    %697 = arith.addf %695, %696 : vector<8x32xf32>
    %698 = math.tanh %697 : vector<8x32xf32>
    %699 = arith.mulf %692, %698 : vector<8x32xf32>
    %700 = arith.negf %684 : vector<8x128xf32>
    %701 = math.exp %700 : vector<8x128xf32>
    %cst_153 = arith.constant 1.000000e+00 : f32
    %702 = vector.broadcast %cst_153 : f32 to vector<8x128xf32>
    %703 = arith.addf %702, %701 : vector<8x128xf32>
    %704 = arith.divf %702, %703 : vector<8x128xf32>
    %705 = vector.extract_strided_slice %704 {offsets = [0, 0], sizes = [8, 32], strides = [1, 1]} : vector<8x128xf32> to vector<8x32xf32>
    %706 = vector.extract_strided_slice %704 {offsets = [0, 32], sizes = [8, 32], strides = [1, 1]} : vector<8x128xf32> to vector<8x32xf32>
    %707 = vector.extract_strided_slice %704 {offsets = [0, 96], sizes = [8, 32], strides = [1, 1]} : vector<8x128xf32> to vector<8x32xf32>
    %708 = vector.extract_strided_slice %684 {offsets = [0, 64], sizes = [8, 32], strides = [1, 1]} : vector<8x128xf32> to vector<8x32xf32>
    %709 = math.tanh %708 : vector<8x32xf32>
    %710 = arith.mulf %706, %663 : vector<8x32xf32>
    %711 = arith.mulf %705, %709 : vector<8x32xf32>
    %712 = arith.addf %710, %711 : vector<8x32xf32>
    %713 = math.tanh %712 : vector<8x32xf32>
    %714 = arith.mulf %707, %713 : vector<8x32xf32>
    %715 = vector.shape_cast %674 : vector<8x1xi1> to vector<8x1xi1>
    %716 = vector.broadcast %715 : vector<8x1xi1> to vector<8x32xi1>
    %717 = arith.select %716, %699, %654 : vector<8x32xi1>, vector<8x32xf32>
    %718 = vector.shape_cast %674 : vector<8x1xi1> to vector<8x1xi1>
    %719 = vector.broadcast %718 : vector<8x1xi1> to vector<8x32xi1>
    %720 = arith.select %719, %697, %657 : vector<8x32xi1>, vector<8x32xf32>
    %721 = vector.shape_cast %676 : vector<8x1xi1> to vector<8x1xi1>
    %722 = vector.broadcast %721 : vector<8x1xi1> to vector<8x32xi1>
    %723 = arith.select %722, %714, %660 : vector<8x32xi1>, vector<8x32xf32>
    %724 = vector.shape_cast %676 : vector<8x1xi1> to vector<8x1xi1>
    %725 = vector.broadcast %724 : vector<8x1xi1> to vector<8x32xi1>
    %726 = arith.select %725, %712, %663 : vector<8x32xi1>, vector<8x32xf32>
    %727 = arith.index_cast %670 : i32 to index
    %c0_154 = arith.constant 0 : index
    %728 = vector.load %arg17[%727, %c0_154] : memref<64x32xf32, #tpu.memory_space<vmem>>, vector<8x32xf32>
    tpu.vector_store %arg17[%727, %c0_154], %717 {strides = array<i32>} : memref<64x32xf32, #tpu.memory_space<vmem>>, vector<8x32xf32>,
    %729 = arith.index_cast %672 : i32 to index
    %c0_155 = arith.constant 0 : index
    %730 = vector.load %arg18[%729, %c0_155] : memref<64x32xf32, #tpu.memory_space<vmem>>, vector<8x32xf32>
    tpu.vector_store %arg18[%729, %c0_155], %723 {strides = array<i32>} : memref<64x32xf32, #tpu.memory_space<vmem>>, vector<8x32xf32>,
    %c3_i32_156 = arith.constant 3 : i32
    %c7_i32_157 = arith.constant 7 : i32
    %731 = arith.subi %c7_i32_157, %c3_i32_156 : i32
    %c8_i32_158 = arith.constant 8 : i32
    %732 = arith.muli %c3_i32_156, %c8_i32_158 : i32
    %733 = tpu.assume_multiple %732, 8 : i32
    %c8_i32_159 = arith.constant 8 : i32
    %734 = arith.muli %731, %c8_i32_159 : i32
    %735 = tpu.assume_multiple %734, 8 : i32
    %736 = vector.broadcast %c3_i32_156 : i32 to vector<8x1xi32>
    %737 = arith.cmpi slt, %736, %0 : vector<8x1xi32>
    %738 = vector.broadcast %731 : i32 to vector<8x1xi32>
    %739 = arith.cmpi slt, %738, %0 : vector<8x1xi32>
    %740 = arith.index_cast %733 : i32 to index
    %c0_160 = arith.constant 0 : index
    %741 = vector.load %arg16[%740, %c0_160] : memref<64x256xf32, #tpu.memory_space<vmem>>, vector<8x128xf32>
    %cst_161 = arith.constant dense<0.000000e+00> : vector<8x128xf32>
    %742 = tpu.matmul %717, %539, %cst_161 {dimension_numbers = #tpu.dot_dimension_numbers<[1], [0], [0], [1], [0, 0, 1, 1], [], []>} : vector<8x32xf32>, vector<32x128xf32>, vector<8x128xf32> -> vector<8x128xf32>
    %743 = arith.addf %741, %742 : vector<8x128xf32>
    %744 = arith.index_cast %735 : i32 to index
    %c128_162 = arith.constant 128 : index
    %745 = vector.load %arg16[%744, %c128_162] : memref<64x256xf32, #tpu.memory_space<vmem>>, vector<8x128xf32>
    %cst_163 = arith.constant dense<0.000000e+00> : vector<8x128xf32>
    %746 = tpu.matmul %723, %540, %cst_163 {dimension_numbers = #tpu.dot_dimension_numbers<[1], [0], [0], [1], [0, 0, 1, 1], [], []>} : vector<8x32xf32>, vector<32x128xf32>, vector<8x128xf32> -> vector<8x128xf32>
    %747 = arith.addf %745, %746 : vector<8x128xf32>
    %748 = arith.negf %743 : vector<8x128xf32>
    %749 = math.exp %748 : vector<8x128xf32>
    %cst_164 = arith.constant 1.000000e+00 : f32
    %750 = vector.broadcast %cst_164 : f32 to vector<8x128xf32>
    %751 = arith.addf %750, %749 : vector<8x128xf32>
    %752 = arith.divf %750, %751 : vector<8x128xf32>
    %753 = vector.extract_strided_slice %752 {offsets = [0, 0], sizes = [8, 32], strides = [1, 1]} : vector<8x128xf32> to vector<8x32xf32>
    %754 = vector.extract_strided_slice %752 {offsets = [0, 32], sizes = [8, 32], strides = [1, 1]} : vector<8x128xf32> to vector<8x32xf32>
    %755 = vector.extract_strided_slice %752 {offsets = [0, 96], sizes = [8, 32], strides = [1, 1]} : vector<8x128xf32> to vector<8x32xf32>
    %756 = vector.extract_strided_slice %743 {offsets = [0, 64], sizes = [8, 32], strides = [1, 1]} : vector<8x128xf32> to vector<8x32xf32>
    %757 = math.tanh %756 : vector<8x32xf32>
    %758 = arith.mulf %754, %720 : vector<8x32xf32>
    %759 = arith.mulf %753, %757 : vector<8x32xf32>
    %760 = arith.addf %758, %759 : vector<8x32xf32>
    %761 = math.tanh %760 : vector<8x32xf32>
    %762 = arith.mulf %755, %761 : vector<8x32xf32>
    %763 = arith.negf %747 : vector<8x128xf32>
    %764 = math.exp %763 : vector<8x128xf32>
    %cst_165 = arith.constant 1.000000e+00 : f32
    %765 = vector.broadcast %cst_165 : f32 to vector<8x128xf32>
    %766 = arith.addf %765, %764 : vector<8x128xf32>
    %767 = arith.divf %765, %766 : vector<8x128xf32>
    %768 = vector.extract_strided_slice %767 {offsets = [0, 0], sizes = [8, 32], strides = [1, 1]} : vector<8x128xf32> to vector<8x32xf32>
    %769 = vector.extract_strided_slice %767 {offsets = [0, 32], sizes = [8, 32], strides = [1, 1]} : vector<8x128xf32> to vector<8x32xf32>
    %770 = vector.extract_strided_slice %767 {offsets = [0, 96], sizes = [8, 32], strides = [1, 1]} : vector<8x128xf32> to vector<8x32xf32>
    %771 = vector.extract_strided_slice %747 {offsets = [0, 64], sizes = [8, 32], strides = [1, 1]} : vector<8x128xf32> to vector<8x32xf32>
    %772 = math.tanh %771 : vector<8x32xf32>
    %773 = arith.mulf %769, %726 : vector<8x32xf32>
    %774 = arith.mulf %768, %772 : vector<8x32xf32>
    %775 = arith.addf %773, %774 : vector<8x32xf32>
    %776 = math.tanh %775 : vector<8x32xf32>
    %777 = arith.mulf %770, %776 : vector<8x32xf32>
    %778 = vector.shape_cast %737 : vector<8x1xi1> to vector<8x1xi1>
    %779 = vector.broadcast %778 : vector<8x1xi1> to vector<8x32xi1>
    %780 = arith.select %779, %762, %717 : vector<8x32xi1>, vector<8x32xf32>
    %781 = vector.shape_cast %737 : vector<8x1xi1> to vector<8x1xi1>
    %782 = vector.broadcast %781 : vector<8x1xi1> to vector<8x32xi1>
    %783 = arith.select %782, %760, %720 : vector<8x32xi1>, vector<8x32xf32>
    %784 = vector.shape_cast %739 : vector<8x1xi1> to vector<8x1xi1>
    %785 = vector.broadcast %784 : vector<8x1xi1> to vector<8x32xi1>
    %786 = arith.select %785, %777, %723 : vector<8x32xi1>, vector<8x32xf32>
    %787 = vector.shape_cast %739 : vector<8x1xi1> to vector<8x1xi1>
    %788 = vector.broadcast %787 : vector<8x1xi1> to vector<8x32xi1>
    %789 = arith.select %788, %775, %726 : vector<8x32xi1>, vector<8x32xf32>
    %790 = arith.index_cast %733 : i32 to index
    %c0_166 = arith.constant 0 : index
    %791 = vector.load %arg17[%790, %c0_166] : memref<64x32xf32, #tpu.memory_space<vmem>>, vector<8x32xf32>
    tpu.vector_store %arg17[%790, %c0_166], %780 {strides = array<i32>} : memref<64x32xf32, #tpu.memory_space<vmem>>, vector<8x32xf32>,
    %792 = arith.index_cast %735 : i32 to index
    %c0_167 = arith.constant 0 : index
    %793 = vector.load %arg18[%792, %c0_167] : memref<64x32xf32, #tpu.memory_space<vmem>>, vector<8x32xf32>
    tpu.vector_store %arg18[%792, %c0_167], %786 {strides = array<i32>} : memref<64x32xf32, #tpu.memory_space<vmem>>, vector<8x32xf32>,
    %c4_i32_168 = arith.constant 4 : i32
    %c7_i32_169 = arith.constant 7 : i32
    %794 = arith.subi %c7_i32_169, %c4_i32_168 : i32
    %c8_i32_170 = arith.constant 8 : i32
    %795 = arith.muli %c4_i32_168, %c8_i32_170 : i32
    %796 = tpu.assume_multiple %795, 8 : i32
    %c8_i32_171 = arith.constant 8 : i32
    %797 = arith.muli %794, %c8_i32_171 : i32
    %798 = tpu.assume_multiple %797, 8 : i32
    %799 = vector.broadcast %c4_i32_168 : i32 to vector<8x1xi32>
    %800 = arith.cmpi slt, %799, %0 : vector<8x1xi32>
    %801 = vector.broadcast %794 : i32 to vector<8x1xi32>
    %802 = arith.cmpi slt, %801, %0 : vector<8x1xi32>
    %803 = arith.index_cast %796 : i32 to index
    %c0_172 = arith.constant 0 : index
    %804 = vector.load %arg16[%803, %c0_172] : memref<64x256xf32, #tpu.memory_space<vmem>>, vector<8x128xf32>
    %cst_173 = arith.constant dense<0.000000e+00> : vector<8x128xf32>
    %805 = tpu.matmul %780, %539, %cst_173 {dimension_numbers = #tpu.dot_dimension_numbers<[1], [0], [0], [1], [0, 0, 1, 1], [], []>} : vector<8x32xf32>, vector<32x128xf32>, vector<8x128xf32> -> vector<8x128xf32>
    %806 = arith.addf %804, %805 : vector<8x128xf32>
    %807 = arith.index_cast %798 : i32 to index
    %c128_174 = arith.constant 128 : index
    %808 = vector.load %arg16[%807, %c128_174] : memref<64x256xf32, #tpu.memory_space<vmem>>, vector<8x128xf32>
    %cst_175 = arith.constant dense<0.000000e+00> : vector<8x128xf32>
    %809 = tpu.matmul %786, %540, %cst_175 {dimension_numbers = #tpu.dot_dimension_numbers<[1], [0], [0], [1], [0, 0, 1, 1], [], []>} : vector<8x32xf32>, vector<32x128xf32>, vector<8x128xf32> -> vector<8x128xf32>
    %810 = arith.addf %808, %809 : vector<8x128xf32>
    %811 = arith.negf %806 : vector<8x128xf32>
    %812 = math.exp %811 : vector<8x128xf32>
    %cst_176 = arith.constant 1.000000e+00 : f32
    %813 = vector.broadcast %cst_176 : f32 to vector<8x128xf32>
    %814 = arith.addf %813, %812 : vector<8x128xf32>
    %815 = arith.divf %813, %814 : vector<8x128xf32>
    %816 = vector.extract_strided_slice %815 {offsets = [0, 0], sizes = [8, 32], strides = [1, 1]} : vector<8x128xf32> to vector<8x32xf32>
    %817 = vector.extract_strided_slice %815 {offsets = [0, 32], sizes = [8, 32], strides = [1, 1]} : vector<8x128xf32> to vector<8x32xf32>
    %818 = vector.extract_strided_slice %815 {offsets = [0, 96], sizes = [8, 32], strides = [1, 1]} : vector<8x128xf32> to vector<8x32xf32>
    %819 = vector.extract_strided_slice %806 {offsets = [0, 64], sizes = [8, 32], strides = [1, 1]} : vector<8x128xf32> to vector<8x32xf32>
    %820 = math.tanh %819 : vector<8x32xf32>
    %821 = arith.mulf %817, %783 : vector<8x32xf32>
    %822 = arith.mulf %816, %820 : vector<8x32xf32>
    %823 = arith.addf %821, %822 : vector<8x32xf32>
    %824 = math.tanh %823 : vector<8x32xf32>
    %825 = arith.mulf %818, %824 : vector<8x32xf32>
    %826 = arith.negf %810 : vector<8x128xf32>
    %827 = math.exp %826 : vector<8x128xf32>
    %cst_177 = arith.constant 1.000000e+00 : f32
    %828 = vector.broadcast %cst_177 : f32 to vector<8x128xf32>
    %829 = arith.addf %828, %827 : vector<8x128xf32>
    %830 = arith.divf %828, %829 : vector<8x128xf32>
    %831 = vector.extract_strided_slice %830 {offsets = [0, 0], sizes = [8, 32], strides = [1, 1]} : vector<8x128xf32> to vector<8x32xf32>
    %832 = vector.extract_strided_slice %830 {offsets = [0, 32], sizes = [8, 32], strides = [1, 1]} : vector<8x128xf32> to vector<8x32xf32>
    %833 = vector.extract_strided_slice %830 {offsets = [0, 96], sizes = [8, 32], strides = [1, 1]} : vector<8x128xf32> to vector<8x32xf32>
    %834 = vector.extract_strided_slice %810 {offsets = [0, 64], sizes = [8, 32], strides = [1, 1]} : vector<8x128xf32> to vector<8x32xf32>
    %835 = math.tanh %834 : vector<8x32xf32>
    %836 = arith.mulf %832, %789 : vector<8x32xf32>
    %837 = arith.mulf %831, %835 : vector<8x32xf32>
    %838 = arith.addf %836, %837 : vector<8x32xf32>
    %839 = math.tanh %838 : vector<8x32xf32>
    %840 = arith.mulf %833, %839 : vector<8x32xf32>
    %841 = vector.shape_cast %800 : vector<8x1xi1> to vector<8x1xi1>
    %842 = vector.broadcast %841 : vector<8x1xi1> to vector<8x32xi1>
    %843 = arith.select %842, %825, %780 : vector<8x32xi1>, vector<8x32xf32>
    %844 = vector.shape_cast %800 : vector<8x1xi1> to vector<8x1xi1>
    %845 = vector.broadcast %844 : vector<8x1xi1> to vector<8x32xi1>
    %846 = arith.select %845, %823, %783 : vector<8x32xi1>, vector<8x32xf32>
    %847 = vector.shape_cast %802 : vector<8x1xi1> to vector<8x1xi1>
    %848 = vector.broadcast %847 : vector<8x1xi1> to vector<8x32xi1>
    %849 = arith.select %848, %840, %786 : vector<8x32xi1>, vector<8x32xf32>
    %850 = vector.shape_cast %802 : vector<8x1xi1> to vector<8x1xi1>
    %851 = vector.broadcast %850 : vector<8x1xi1> to vector<8x32xi1>
    %852 = arith.select %851, %838, %789 : vector<8x32xi1>, vector<8x32xf32>
    %853 = arith.index_cast %796 : i32 to index
    %c0_178 = arith.constant 0 : index
    %854 = vector.load %arg17[%853, %c0_178] : memref<64x32xf32, #tpu.memory_space<vmem>>, vector<8x32xf32>
    tpu.vector_store %arg17[%853, %c0_178], %843 {strides = array<i32>} : memref<64x32xf32, #tpu.memory_space<vmem>>, vector<8x32xf32>,
    %855 = arith.index_cast %798 : i32 to index
    %c0_179 = arith.constant 0 : index
    %856 = vector.load %arg18[%855, %c0_179] : memref<64x32xf32, #tpu.memory_space<vmem>>, vector<8x32xf32>
    tpu.vector_store %arg18[%855, %c0_179], %849 {strides = array<i32>} : memref<64x32xf32, #tpu.memory_space<vmem>>, vector<8x32xf32>,
    %c5_i32_180 = arith.constant 5 : i32
    %c7_i32_181 = arith.constant 7 : i32
    %857 = arith.subi %c7_i32_181, %c5_i32_180 : i32
    %c8_i32_182 = arith.constant 8 : i32
    %858 = arith.muli %c5_i32_180, %c8_i32_182 : i32
    %859 = tpu.assume_multiple %858, 8 : i32
    %c8_i32_183 = arith.constant 8 : i32
    %860 = arith.muli %857, %c8_i32_183 : i32
    %861 = tpu.assume_multiple %860, 8 : i32
    %862 = vector.broadcast %c5_i32_180 : i32 to vector<8x1xi32>
    %863 = arith.cmpi slt, %862, %0 : vector<8x1xi32>
    %864 = vector.broadcast %857 : i32 to vector<8x1xi32>
    %865 = arith.cmpi slt, %864, %0 : vector<8x1xi32>
    %866 = arith.index_cast %859 : i32 to index
    %c0_184 = arith.constant 0 : index
    %867 = vector.load %arg16[%866, %c0_184] : memref<64x256xf32, #tpu.memory_space<vmem>>, vector<8x128xf32>
    %cst_185 = arith.constant dense<0.000000e+00> : vector<8x128xf32>
    %868 = tpu.matmul %843, %539, %cst_185 {dimension_numbers = #tpu.dot_dimension_numbers<[1], [0], [0], [1], [0, 0, 1, 1], [], []>} : vector<8x32xf32>, vector<32x128xf32>, vector<8x128xf32> -> vector<8x128xf32>
    %869 = arith.addf %867, %868 : vector<8x128xf32>
    %870 = arith.index_cast %861 : i32 to index
    %c128_186 = arith.constant 128 : index
    %871 = vector.load %arg16[%870, %c128_186] : memref<64x256xf32, #tpu.memory_space<vmem>>, vector<8x128xf32>
    %cst_187 = arith.constant dense<0.000000e+00> : vector<8x128xf32>
    %872 = tpu.matmul %849, %540, %cst_187 {dimension_numbers = #tpu.dot_dimension_numbers<[1], [0], [0], [1], [0, 0, 1, 1], [], []>} : vector<8x32xf32>, vector<32x128xf32>, vector<8x128xf32> -> vector<8x128xf32>
    %873 = arith.addf %871, %872 : vector<8x128xf32>
    %874 = arith.negf %869 : vector<8x128xf32>
    %875 = math.exp %874 : vector<8x128xf32>
    %cst_188 = arith.constant 1.000000e+00 : f32
    %876 = vector.broadcast %cst_188 : f32 to vector<8x128xf32>
    %877 = arith.addf %876, %875 : vector<8x128xf32>
    %878 = arith.divf %876, %877 : vector<8x128xf32>
    %879 = vector.extract_strided_slice %878 {offsets = [0, 0], sizes = [8, 32], strides = [1, 1]} : vector<8x128xf32> to vector<8x32xf32>
    %880 = vector.extract_strided_slice %878 {offsets = [0, 32], sizes = [8, 32], strides = [1, 1]} : vector<8x128xf32> to vector<8x32xf32>
    %881 = vector.extract_strided_slice %878 {offsets = [0, 96], sizes = [8, 32], strides = [1, 1]} : vector<8x128xf32> to vector<8x32xf32>
    %882 = vector.extract_strided_slice %869 {offsets = [0, 64], sizes = [8, 32], strides = [1, 1]} : vector<8x128xf32> to vector<8x32xf32>
    %883 = math.tanh %882 : vector<8x32xf32>
    %884 = arith.mulf %880, %846 : vector<8x32xf32>
    %885 = arith.mulf %879, %883 : vector<8x32xf32>
    %886 = arith.addf %884, %885 : vector<8x32xf32>
    %887 = math.tanh %886 : vector<8x32xf32>
    %888 = arith.mulf %881, %887 : vector<8x32xf32>
    %889 = arith.negf %873 : vector<8x128xf32>
    %890 = math.exp %889 : vector<8x128xf32>
    %cst_189 = arith.constant 1.000000e+00 : f32
    %891 = vector.broadcast %cst_189 : f32 to vector<8x128xf32>
    %892 = arith.addf %891, %890 : vector<8x128xf32>
    %893 = arith.divf %891, %892 : vector<8x128xf32>
    %894 = vector.extract_strided_slice %893 {offsets = [0, 0], sizes = [8, 32], strides = [1, 1]} : vector<8x128xf32> to vector<8x32xf32>
    %895 = vector.extract_strided_slice %893 {offsets = [0, 32], sizes = [8, 32], strides = [1, 1]} : vector<8x128xf32> to vector<8x32xf32>
    %896 = vector.extract_strided_slice %893 {offsets = [0, 96], sizes = [8, 32], strides = [1, 1]} : vector<8x128xf32> to vector<8x32xf32>
    %897 = vector.extract_strided_slice %873 {offsets = [0, 64], sizes = [8, 32], strides = [1, 1]} : vector<8x128xf32> to vector<8x32xf32>
    %898 = math.tanh %897 : vector<8x32xf32>
    %899 = arith.mulf %895, %852 : vector<8x32xf32>
    %900 = arith.mulf %894, %898 : vector<8x32xf32>
    %901 = arith.addf %899, %900 : vector<8x32xf32>
    %902 = math.tanh %901 : vector<8x32xf32>
    %903 = arith.mulf %896, %902 : vector<8x32xf32>
    %904 = vector.shape_cast %863 : vector<8x1xi1> to vector<8x1xi1>
    %905 = vector.broadcast %904 : vector<8x1xi1> to vector<8x32xi1>
    %906 = arith.select %905, %888, %843 : vector<8x32xi1>, vector<8x32xf32>
    %907 = vector.shape_cast %863 : vector<8x1xi1> to vector<8x1xi1>
    %908 = vector.broadcast %907 : vector<8x1xi1> to vector<8x32xi1>
    %909 = arith.select %908, %886, %846 : vector<8x32xi1>, vector<8x32xf32>
    %910 = vector.shape_cast %865 : vector<8x1xi1> to vector<8x1xi1>
    %911 = vector.broadcast %910 : vector<8x1xi1> to vector<8x32xi1>
    %912 = arith.select %911, %903, %849 : vector<8x32xi1>, vector<8x32xf32>
    %913 = vector.shape_cast %865 : vector<8x1xi1> to vector<8x1xi1>
    %914 = vector.broadcast %913 : vector<8x1xi1> to vector<8x32xi1>
    %915 = arith.select %914, %901, %852 : vector<8x32xi1>, vector<8x32xf32>
    %916 = arith.index_cast %859 : i32 to index
    %c0_190 = arith.constant 0 : index
    %917 = vector.load %arg17[%916, %c0_190] : memref<64x32xf32, #tpu.memory_space<vmem>>, vector<8x32xf32>
    tpu.vector_store %arg17[%916, %c0_190], %906 {strides = array<i32>} : memref<64x32xf32, #tpu.memory_space<vmem>>, vector<8x32xf32>,
    %918 = arith.index_cast %861 : i32 to index
    %c0_191 = arith.constant 0 : index
    %919 = vector.load %arg18[%918, %c0_191] : memref<64x32xf32, #tpu.memory_space<vmem>>, vector<8x32xf32>
    tpu.vector_store %arg18[%918, %c0_191], %912 {strides = array<i32>} : memref<64x32xf32, #tpu.memory_space<vmem>>, vector<8x32xf32>,
    %c6_i32_192 = arith.constant 6 : i32
    %c7_i32_193 = arith.constant 7 : i32
    %920 = arith.subi %c7_i32_193, %c6_i32_192 : i32
    %c8_i32_194 = arith.constant 8 : i32
    %921 = arith.muli %c6_i32_192, %c8_i32_194 : i32
    %922 = tpu.assume_multiple %921, 8 : i32
    %c8_i32_195 = arith.constant 8 : i32
    %923 = arith.muli %920, %c8_i32_195 : i32
    %924 = tpu.assume_multiple %923, 8 : i32
    %925 = vector.broadcast %c6_i32_192 : i32 to vector<8x1xi32>
    %926 = arith.cmpi slt, %925, %0 : vector<8x1xi32>
    %927 = vector.broadcast %920 : i32 to vector<8x1xi32>
    %928 = arith.cmpi slt, %927, %0 : vector<8x1xi32>
    %929 = arith.index_cast %922 : i32 to index
    %c0_196 = arith.constant 0 : index
    %930 = vector.load %arg16[%929, %c0_196] : memref<64x256xf32, #tpu.memory_space<vmem>>, vector<8x128xf32>
    %cst_197 = arith.constant dense<0.000000e+00> : vector<8x128xf32>
    %931 = tpu.matmul %906, %539, %cst_197 {dimension_numbers = #tpu.dot_dimension_numbers<[1], [0], [0], [1], [0, 0, 1, 1], [], []>} : vector<8x32xf32>, vector<32x128xf32>, vector<8x128xf32> -> vector<8x128xf32>
    %932 = arith.addf %930, %931 : vector<8x128xf32>
    %933 = arith.index_cast %924 : i32 to index
    %c128_198 = arith.constant 128 : index
    %934 = vector.load %arg16[%933, %c128_198] : memref<64x256xf32, #tpu.memory_space<vmem>>, vector<8x128xf32>
    %cst_199 = arith.constant dense<0.000000e+00> : vector<8x128xf32>
    %935 = tpu.matmul %912, %540, %cst_199 {dimension_numbers = #tpu.dot_dimension_numbers<[1], [0], [0], [1], [0, 0, 1, 1], [], []>} : vector<8x32xf32>, vector<32x128xf32>, vector<8x128xf32> -> vector<8x128xf32>
    %936 = arith.addf %934, %935 : vector<8x128xf32>
    %937 = arith.negf %932 : vector<8x128xf32>
    %938 = math.exp %937 : vector<8x128xf32>
    %cst_200 = arith.constant 1.000000e+00 : f32
    %939 = vector.broadcast %cst_200 : f32 to vector<8x128xf32>
    %940 = arith.addf %939, %938 : vector<8x128xf32>
    %941 = arith.divf %939, %940 : vector<8x128xf32>
    %942 = vector.extract_strided_slice %941 {offsets = [0, 0], sizes = [8, 32], strides = [1, 1]} : vector<8x128xf32> to vector<8x32xf32>
    %943 = vector.extract_strided_slice %941 {offsets = [0, 32], sizes = [8, 32], strides = [1, 1]} : vector<8x128xf32> to vector<8x32xf32>
    %944 = vector.extract_strided_slice %941 {offsets = [0, 96], sizes = [8, 32], strides = [1, 1]} : vector<8x128xf32> to vector<8x32xf32>
    %945 = vector.extract_strided_slice %932 {offsets = [0, 64], sizes = [8, 32], strides = [1, 1]} : vector<8x128xf32> to vector<8x32xf32>
    %946 = math.tanh %945 : vector<8x32xf32>
    %947 = arith.mulf %943, %909 : vector<8x32xf32>
    %948 = arith.mulf %942, %946 : vector<8x32xf32>
    %949 = arith.addf %947, %948 : vector<8x32xf32>
    %950 = math.tanh %949 : vector<8x32xf32>
    %951 = arith.mulf %944, %950 : vector<8x32xf32>
    %952 = arith.negf %936 : vector<8x128xf32>
    %953 = math.exp %952 : vector<8x128xf32>
    %cst_201 = arith.constant 1.000000e+00 : f32
    %954 = vector.broadcast %cst_201 : f32 to vector<8x128xf32>
    %955 = arith.addf %954, %953 : vector<8x128xf32>
    %956 = arith.divf %954, %955 : vector<8x128xf32>
    %957 = vector.extract_strided_slice %956 {offsets = [0, 0], sizes = [8, 32], strides = [1, 1]} : vector<8x128xf32> to vector<8x32xf32>
    %958 = vector.extract_strided_slice %956 {offsets = [0, 32], sizes = [8, 32], strides = [1, 1]} : vector<8x128xf32> to vector<8x32xf32>
    %959 = vector.extract_strided_slice %956 {offsets = [0, 96], sizes = [8, 32], strides = [1, 1]} : vector<8x128xf32> to vector<8x32xf32>
    %960 = vector.extract_strided_slice %936 {offsets = [0, 64], sizes = [8, 32], strides = [1, 1]} : vector<8x128xf32> to vector<8x32xf32>
    %961 = math.tanh %960 : vector<8x32xf32>
    %962 = arith.mulf %958, %915 : vector<8x32xf32>
    %963 = arith.mulf %957, %961 : vector<8x32xf32>
    %964 = arith.addf %962, %963 : vector<8x32xf32>
    %965 = math.tanh %964 : vector<8x32xf32>
    %966 = arith.mulf %959, %965 : vector<8x32xf32>
    %967 = vector.shape_cast %926 : vector<8x1xi1> to vector<8x1xi1>
    %968 = vector.broadcast %967 : vector<8x1xi1> to vector<8x32xi1>
    %969 = arith.select %968, %951, %906 : vector<8x32xi1>, vector<8x32xf32>
    %970 = vector.shape_cast %926 : vector<8x1xi1> to vector<8x1xi1>
    %971 = vector.broadcast %970 : vector<8x1xi1> to vector<8x32xi1>
    %972 = arith.select %971, %949, %909 : vector<8x32xi1>, vector<8x32xf32>
    %973 = vector.shape_cast %928 : vector<8x1xi1> to vector<8x1xi1>
    %974 = vector.broadcast %973 : vector<8x1xi1> to vector<8x32xi1>
    %975 = arith.select %974, %966, %912 : vector<8x32xi1>, vector<8x32xf32>
    %976 = vector.shape_cast %928 : vector<8x1xi1> to vector<8x1xi1>
    %977 = vector.broadcast %976 : vector<8x1xi1> to vector<8x32xi1>
    %978 = arith.select %977, %964, %915 : vector<8x32xi1>, vector<8x32xf32>
    %979 = arith.index_cast %922 : i32 to index
    %c0_202 = arith.constant 0 : index
    %980 = vector.load %arg17[%979, %c0_202] : memref<64x32xf32, #tpu.memory_space<vmem>>, vector<8x32xf32>
    tpu.vector_store %arg17[%979, %c0_202], %969 {strides = array<i32>} : memref<64x32xf32, #tpu.memory_space<vmem>>, vector<8x32xf32>,
    %981 = arith.index_cast %924 : i32 to index
    %c0_203 = arith.constant 0 : index
    %982 = vector.load %arg18[%981, %c0_203] : memref<64x32xf32, #tpu.memory_space<vmem>>, vector<8x32xf32>
    tpu.vector_store %arg18[%981, %c0_203], %975 {strides = array<i32>} : memref<64x32xf32, #tpu.memory_space<vmem>>, vector<8x32xf32>,
    %c7_i32_204 = arith.constant 7 : i32
    %c7_i32_205 = arith.constant 7 : i32
    %983 = arith.subi %c7_i32_205, %c7_i32_204 : i32
    %c8_i32_206 = arith.constant 8 : i32
    %984 = arith.muli %c7_i32_204, %c8_i32_206 : i32
    %985 = tpu.assume_multiple %984, 8 : i32
    %c8_i32_207 = arith.constant 8 : i32
    %986 = arith.muli %983, %c8_i32_207 : i32
    %987 = tpu.assume_multiple %986, 8 : i32
    %988 = vector.broadcast %c7_i32_204 : i32 to vector<8x1xi32>
    %989 = arith.cmpi slt, %988, %0 : vector<8x1xi32>
    %990 = vector.broadcast %983 : i32 to vector<8x1xi32>
    %991 = arith.cmpi slt, %990, %0 : vector<8x1xi32>
    %992 = arith.index_cast %985 : i32 to index
    %c0_208 = arith.constant 0 : index
    %993 = vector.load %arg16[%992, %c0_208] : memref<64x256xf32, #tpu.memory_space<vmem>>, vector<8x128xf32>
    %cst_209 = arith.constant dense<0.000000e+00> : vector<8x128xf32>
    %994 = tpu.matmul %969, %539, %cst_209 {dimension_numbers = #tpu.dot_dimension_numbers<[1], [0], [0], [1], [0, 0, 1, 1], [], []>} : vector<8x32xf32>, vector<32x128xf32>, vector<8x128xf32> -> vector<8x128xf32>
    %995 = arith.addf %993, %994 : vector<8x128xf32>
    %996 = arith.index_cast %987 : i32 to index
    %c128_210 = arith.constant 128 : index
    %997 = vector.load %arg16[%996, %c128_210] : memref<64x256xf32, #tpu.memory_space<vmem>>, vector<8x128xf32>
    %cst_211 = arith.constant dense<0.000000e+00> : vector<8x128xf32>
    %998 = tpu.matmul %975, %540, %cst_211 {dimension_numbers = #tpu.dot_dimension_numbers<[1], [0], [0], [1], [0, 0, 1, 1], [], []>} : vector<8x32xf32>, vector<32x128xf32>, vector<8x128xf32> -> vector<8x128xf32>
    %999 = arith.addf %997, %998 : vector<8x128xf32>
    %1000 = arith.negf %995 : vector<8x128xf32>
    %1001 = math.exp %1000 : vector<8x128xf32>
    %cst_212 = arith.constant 1.000000e+00 : f32
    %1002 = vector.broadcast %cst_212 : f32 to vector<8x128xf32>
    %1003 = arith.addf %1002, %1001 : vector<8x128xf32>
    %1004 = arith.divf %1002, %1003 : vector<8x128xf32>
    %1005 = vector.extract_strided_slice %1004 {offsets = [0, 0], sizes = [8, 32], strides = [1, 1]} : vector<8x128xf32> to vector<8x32xf32>
    %1006 = vector.extract_strided_slice %1004 {offsets = [0, 32], sizes = [8, 32], strides = [1, 1]} : vector<8x128xf32> to vector<8x32xf32>
    %1007 = vector.extract_strided_slice %1004 {offsets = [0, 96], sizes = [8, 32], strides = [1, 1]} : vector<8x128xf32> to vector<8x32xf32>
    %1008 = vector.extract_strided_slice %995 {offsets = [0, 64], sizes = [8, 32], strides = [1, 1]} : vector<8x128xf32> to vector<8x32xf32>
    %1009 = math.tanh %1008 : vector<8x32xf32>
    %1010 = arith.mulf %1006, %972 : vector<8x32xf32>
    %1011 = arith.mulf %1005, %1009 : vector<8x32xf32>
    %1012 = arith.addf %1010, %1011 : vector<8x32xf32>
    %1013 = math.tanh %1012 : vector<8x32xf32>
    %1014 = arith.mulf %1007, %1013 : vector<8x32xf32>
    %1015 = arith.negf %999 : vector<8x128xf32>
    %1016 = math.exp %1015 : vector<8x128xf32>
    %cst_213 = arith.constant 1.000000e+00 : f32
    %1017 = vector.broadcast %cst_213 : f32 to vector<8x128xf32>
    %1018 = arith.addf %1017, %1016 : vector<8x128xf32>
    %1019 = arith.divf %1017, %1018 : vector<8x128xf32>
    %1020 = vector.extract_strided_slice %1019 {offsets = [0, 0], sizes = [8, 32], strides = [1, 1]} : vector<8x128xf32> to vector<8x32xf32>
    %1021 = vector.extract_strided_slice %1019 {offsets = [0, 32], sizes = [8, 32], strides = [1, 1]} : vector<8x128xf32> to vector<8x32xf32>
    %1022 = vector.extract_strided_slice %1019 {offsets = [0, 96], sizes = [8, 32], strides = [1, 1]} : vector<8x128xf32> to vector<8x32xf32>
    %1023 = vector.extract_strided_slice %999 {offsets = [0, 64], sizes = [8, 32], strides = [1, 1]} : vector<8x128xf32> to vector<8x32xf32>
    %1024 = math.tanh %1023 : vector<8x32xf32>
    %1025 = arith.mulf %1021, %978 : vector<8x32xf32>
    %1026 = arith.mulf %1020, %1024 : vector<8x32xf32>
    %1027 = arith.addf %1025, %1026 : vector<8x32xf32>
    %1028 = math.tanh %1027 : vector<8x32xf32>
    %1029 = arith.mulf %1022, %1028 : vector<8x32xf32>
    %1030 = vector.shape_cast %989 : vector<8x1xi1> to vector<8x1xi1>
    %1031 = vector.broadcast %1030 : vector<8x1xi1> to vector<8x32xi1>
    %1032 = arith.select %1031, %1014, %969 : vector<8x32xi1>, vector<8x32xf32>
    %1033 = vector.shape_cast %989 : vector<8x1xi1> to vector<8x1xi1>
    %1034 = vector.broadcast %1033 : vector<8x1xi1> to vector<8x32xi1>
    %1035 = arith.select %1034, %1012, %972 : vector<8x32xi1>, vector<8x32xf32>
    %1036 = vector.shape_cast %991 : vector<8x1xi1> to vector<8x1xi1>
    %1037 = vector.broadcast %1036 : vector<8x1xi1> to vector<8x32xi1>
    %1038 = arith.select %1037, %1029, %975 : vector<8x32xi1>, vector<8x32xf32>
    %1039 = vector.shape_cast %991 : vector<8x1xi1> to vector<8x1xi1>
    %1040 = vector.broadcast %1039 : vector<8x1xi1> to vector<8x32xi1>
    %1041 = arith.select %1040, %1027, %978 : vector<8x32xi1>, vector<8x32xf32>
    %1042 = arith.index_cast %985 : i32 to index
    %c0_214 = arith.constant 0 : index
    %1043 = vector.load %arg17[%1042, %c0_214] : memref<64x32xf32, #tpu.memory_space<vmem>>, vector<8x32xf32>
    tpu.vector_store %arg17[%1042, %c0_214], %1032 {strides = array<i32>} : memref<64x32xf32, #tpu.memory_space<vmem>>, vector<8x32xf32>,
    %1044 = arith.index_cast %987 : i32 to index
    %c0_215 = arith.constant 0 : index
    %1045 = vector.load %arg18[%1044, %c0_215] : memref<64x32xf32, #tpu.memory_space<vmem>>, vector<8x32xf32>
    tpu.vector_store %arg18[%1044, %c0_215], %1038 {strides = array<i32>} : memref<64x32xf32, #tpu.memory_space<vmem>>, vector<8x32xf32>,
    %c8_i32_216 = arith.constant 8 : i32
    %1046 = vector.extract_strided_slice %1038 {offsets = [0, 0], sizes = [2, 32], strides = [1, 1]} : vector<8x32xf32> to vector<2x32xf32>
    %1047 = vector.extract_strided_slice %1032 {offsets = [0, 0], sizes = [2, 32], strides = [1, 1]} : vector<8x32xf32> to vector<2x32xf32>
    %1048 = vector.extract_strided_slice %1038 {offsets = [2, 0], sizes = [2, 32], strides = [1, 1]} : vector<8x32xf32> to vector<2x32xf32>
    %1049 = vector.extract_strided_slice %1032 {offsets = [2, 0], sizes = [2, 32], strides = [1, 1]} : vector<8x32xf32> to vector<2x32xf32>
    %c0_217 = arith.constant 0 : index
    %c0_218 = arith.constant 0 : index
    %c0_219 = arith.constant 0 : index
    %1050 = vector.load %arg11[%c0_217, %c0_218, %c0_219] : memref<2x128x128xbf16, #tpu.memory_space<vmem>>, vector<1x128x128xbf16>
    %1051 = vector.shape_cast %1050 : vector<1x128x128xbf16> to vector<128x128xbf16>
    %c0_220 = arith.constant 0 : index
    %c0_221 = arith.constant 0 : index
    %c0_222 = arith.constant 0 : index
    %1052 = vector.load %arg12[%c0_220, %c0_221, %c0_222] : memref<2x1x128xf32, #tpu.memory_space<vmem>>, vector<1x1x128xf32>
    %1053 = vector.shape_cast %1052 : vector<1x1x128xf32> to vector<1x128xf32>
    %1054 = vector.extract_strided_slice %1051 {offsets = [0, 0], sizes = [32, 128], strides = [1, 1]} : vector<128x128xbf16> to vector<32x128xbf16>
    %1055 = arith.truncf %1046 : vector<2x32xf32> to vector<2x32xbf16>
    %cst_223 = arith.constant dense<0.000000e+00> : vector<2x128xf32>
    %1056 = tpu.matmul %1055, %1054, %cst_223 {dimension_numbers = #tpu.dot_dimension_numbers<[1], [0], [0], [1], [0, 0, 1, 1], [], []>} : vector<2x32xbf16>, vector<32x128xbf16>, vector<2x128xf32> -> vector<2x128xf32>
    %1057 = vector.broadcast %1053 : vector<1x128xf32> to vector<2x128xf32>
    %1058 = arith.addf %1057, %1056 : vector<2x128xf32>
    %1059 = vector.extract_strided_slice %1051 {offsets = [32, 0], sizes = [32, 128], strides = [1, 1]} : vector<128x128xbf16> to vector<32x128xbf16>
    %1060 = arith.truncf %1047 : vector<2x32xf32> to vector<2x32xbf16>
    %cst_224 = arith.constant dense<0.000000e+00> : vector<2x128xf32>
    %1061 = tpu.matmul %1060, %1059, %cst_224 {dimension_numbers = #tpu.dot_dimension_numbers<[1], [0], [0], [1], [0, 0, 1, 1], [], []>} : vector<2x32xbf16>, vector<32x128xbf16>, vector<2x128xf32> -> vector<2x128xf32>
    %1062 = arith.addf %1058, %1061 : vector<2x128xf32>
    %1063 = vector.extract_strided_slice %1051 {offsets = [64, 0], sizes = [32, 128], strides = [1, 1]} : vector<128x128xbf16> to vector<32x128xbf16>
    %1064 = arith.truncf %1048 : vector<2x32xf32> to vector<2x32xbf16>
    %cst_225 = arith.constant dense<0.000000e+00> : vector<2x128xf32>
    %1065 = tpu.matmul %1064, %1063, %cst_225 {dimension_numbers = #tpu.dot_dimension_numbers<[1], [0], [0], [1], [0, 0, 1, 1], [], []>} : vector<2x32xbf16>, vector<32x128xbf16>, vector<2x128xf32> -> vector<2x128xf32>
    %1066 = arith.addf %1062, %1065 : vector<2x128xf32>
    %1067 = vector.extract_strided_slice %1051 {offsets = [96, 0], sizes = [32, 128], strides = [1, 1]} : vector<128x128xbf16> to vector<32x128xbf16>
    %1068 = arith.truncf %1049 : vector<2x32xf32> to vector<2x32xbf16>
    %cst_226 = arith.constant dense<0.000000e+00> : vector<2x128xf32>
    %1069 = tpu.matmul %1068, %1067, %cst_226 {dimension_numbers = #tpu.dot_dimension_numbers<[1], [0], [0], [1], [0, 0, 1, 1], [], []>} : vector<2x32xbf16>, vector<32x128xbf16>, vector<2x128xf32> -> vector<2x128xf32>
    %1070 = arith.addf %1066, %1069 : vector<2x128xf32>
    %cst_227 = arith.constant 0.000000e+00 : f32
    %1071 = vector.broadcast %cst_227 : f32 to vector<2x128xf32>
    %1072 = arith.maximumf %1070, %1071 : vector<2x128xf32>
    %c1 = arith.constant 1 : index
    %c0_228 = arith.constant 0 : index
    %c0_229 = arith.constant 0 : index
    %1073 = vector.load %arg11[%c1, %c0_228, %c0_229] : memref<2x128x128xbf16, #tpu.memory_space<vmem>>, vector<1x128x128xbf16>
    %1074 = vector.shape_cast %1073 : vector<1x128x128xbf16> to vector<128x128xbf16>
    %1075 = arith.truncf %1072 : vector<2x128xf32> to vector<2x128xbf16>
    %cst_230 = arith.constant dense<0.000000e+00> : vector<2x128xf32>
    %1076 = tpu.matmul %1075, %1074, %cst_230 {dimension_numbers = #tpu.dot_dimension_numbers<[1], [0], [0], [1], [0, 0, 1, 1], [], []>} : vector<2x128xbf16>, vector<128x128xbf16>, vector<2x128xf32> -> vector<2x128xf32>
    %c1_231 = arith.constant 1 : index
    %c0_232 = arith.constant 0 : index
    %c0_233 = arith.constant 0 : index
    %1077 = vector.load %arg12[%c1_231, %c0_232, %c0_233] : memref<2x1x128xf32, #tpu.memory_space<vmem>>, vector<1x1x128xf32>
    %1078 = vector.shape_cast %1077 : vector<1x1x128xf32> to vector<1x128xf32>
    %1079 = vector.broadcast %1078 : vector<1x128xf32> to vector<2x128xf32>
    %1080 = arith.addf %1076, %1079 : vector<2x128xf32>
    %cst_234 = arith.constant 0.000000e+00 : f32
    %1081 = vector.broadcast %cst_234 : f32 to vector<2x128xf32>
    %1082 = arith.maximumf %1080, %1081 : vector<2x128xf32>
    %c0_235 = arith.constant 0 : index
    %c0_236 = arith.constant 0 : index
    %1083 = vector.load %arg13[%c0_235, %c0_236] : memref<128x128xbf16, #tpu.memory_space<vmem>>, vector<128x128xbf16>
    %1084 = arith.truncf %1082 : vector<2x128xf32> to vector<2x128xbf16>
    %cst_237 = arith.constant dense<0.000000e+00> : vector<2x128xf32>
    %1085 = tpu.matmul %1084, %1083, %cst_237 {dimension_numbers = #tpu.dot_dimension_numbers<[1], [0], [0], [1], [0, 0, 1, 1], [], []>} : vector<2x128xbf16>, vector<128x128xbf16>, vector<2x128xf32> -> vector<2x128xf32>
    %c0_238 = arith.constant 0 : index
    %c0_239 = arith.constant 0 : index
    %1086 = vector.load %arg14[%c0_238, %c0_239] : memref<1x128xf32, #tpu.memory_space<vmem>>, vector<1x128xf32>
    %1087 = vector.broadcast %1086 : vector<1x128xf32> to vector<2x128xf32>
    %1088 = arith.addf %1085, %1087 : vector<2x128xf32>
    %c0_240 = arith.constant 0 : index
    %c0_241 = arith.constant 0 : index
    %1089 = vector.load %arg15[%c0_240, %c0_241] : memref<2x128xf32, #tpu.memory_space<vmem>>, vector<2x128xf32>
    tpu.vector_store %arg15[%c0_240, %c0_241], %1088 {strides = array<i32>} : memref<2x128xf32, #tpu.memory_space<vmem>>, vector<2x128xf32>,
    return
  }
  func.func @transform_0(%arg0: i32) -> (i32, i32) {
    %c0_i32 = arith.constant 0 : i32
    %c0_i32_0 = arith.constant 0 : i32
    %c0_i32_1 = arith.constant 0 : i32
    return %c0_i32, %c0_i32_0 : i32, i32
  }
  func.func @transform_1(%arg0: i32) -> (i32, i32) {
    %c0_i32 = arith.constant 0 : i32
    %c0_i32_0 = arith.constant 0 : i32
    %c0_i32_1 = arith.constant 0 : i32
    return %c0_i32, %c0_i32_0 : i32, i32
  }
  func.func @transform_2(%arg0: i32) -> (i32, i32) {
    %c0_i32 = arith.constant 0 : i32
    %c0_i32_0 = arith.constant 0 : i32
    %c0_i32_1 = arith.constant 0 : i32
    return %c0_i32, %c0_i32_0 : i32, i32
  }
  func.func @transform_3(%arg0: i32) -> (i32, i32) {
    %c0_i32 = arith.constant 0 : i32
    %c0_i32_0 = arith.constant 0 : i32
    %c0_i32_1 = arith.constant 0 : i32
    return %c0_i32, %c0_i32_0 : i32, i32
  }
  func.func @transform_4(%arg0: i32) -> (i32, i32) {
    %c0_i32 = arith.constant 0 : i32
    %c0_i32_0 = arith.constant 0 : i32
    %c0_i32_1 = arith.constant 0 : i32
    return %c0_i32, %c0_i32_0 : i32, i32
  }
  func.func @transform_5(%arg0: i32) -> (i32, i32) {
    %c0_i32 = arith.constant 0 : i32
    %c0_i32_0 = arith.constant 0 : i32
    %c0_i32_1 = arith.constant 0 : i32
    return %c0_i32, %c0_i32_0 : i32, i32
  }
  func.func @transform_6(%arg0: i32) -> (i32, i32) {
    %c0_i32 = arith.constant 0 : i32
    %c0_i32_0 = arith.constant 0 : i32
    %c0_i32_1 = arith.constant 0 : i32
    return %c0_i32, %c0_i32_0 : i32, i32
  }
  func.func @transform_7(%arg0: i32) -> (i32, i32) {
    %c0_i32 = arith.constant 0 : i32
    %c0_i32_0 = arith.constant 0 : i32
    %c0_i32_1 = arith.constant 0 : i32
    return %c0_i32, %c0_i32_0 : i32, i32
  }
  func.func @transform_8(%arg0: i32) -> (i32, i32) {
    %c0_i32 = arith.constant 0 : i32
    %c0_i32_0 = arith.constant 0 : i32
    %c0_i32_1 = arith.constant 0 : i32
    return %c0_i32, %c0_i32_0 : i32, i32
  }
  func.func @transform_9(%arg0: i32) -> (i32, i32) {
    %c0_i32 = arith.constant 0 : i32
    %c0_i32_0 = arith.constant 0 : i32
    %c0_i32_1 = arith.constant 0 : i32
    return %c0_i32, %c0_i32_0 : i32, i32
  }
  func.func @transform_10(%arg0: i32) -> (i32, i32, i32) {
    %c0_i32 = arith.constant 0 : i32
    %c0_i32_0 = arith.constant 0 : i32
    %c0_i32_1 = arith.constant 0 : i32
    %c0_i32_2 = arith.constant 0 : i32
    return %c0_i32, %c0_i32_0, %c0_i32_1 : i32, i32, i32
  }
  func.func @transform_11(%arg0: i32) -> (i32, i32, i32) {
    %c0_i32 = arith.constant 0 : i32
    %c0_i32_0 = arith.constant 0 : i32
    %c0_i32_1 = arith.constant 0 : i32
    %c0_i32_2 = arith.constant 0 : i32
    return %c0_i32, %c0_i32_0, %c0_i32_1 : i32, i32, i32
  }
  func.func @transform_12(%arg0: i32) -> (i32, i32) {
    %c0_i32 = arith.constant 0 : i32
    %c0_i32_0 = arith.constant 0 : i32
    %c0_i32_1 = arith.constant 0 : i32
    return %c0_i32, %c0_i32_0 : i32, i32
  }
  func.func @transform_13(%arg0: i32) -> (i32, i32) {
    %c0_i32 = arith.constant 0 : i32
    %c0_i32_0 = arith.constant 0 : i32
    %c0_i32_1 = arith.constant 0 : i32
    return %c0_i32, %c0_i32_0 : i32, i32
  }
  func.func @transform_14(%arg0: i32) -> (i32, i32) {
    %c0_i32 = arith.constant 0 : i32
    %c0_i32_0 = arith.constant 0 : i32
    %c0_i32_1 = arith.constant 0 : i32
    return %c0_i32, %c0_i32_0 : i32, i32
  }
}

</mosaic_0001>

<llo_original>
// kernel: nli_bilstm_forward.1
$region0: #{nli_bilstm_forward.1}
  #allocation0 [shape = 'u32[]', space=smem, size = 0x4, offset = 0x4, fixed_abs, tag = 'smem constant byte address 0x4 - core index']
  #allocation1 [shape = 'u32[144,128]{1,0:T(1,128)}', space=vmem, size = 0x12000, scoped, tag = 'internal scratch']
  #allocation2 [shape = 'f32[64,256]{1,0:T(8,128)}', space=vmem, size = 0x10000, scoped, tag = 'scratch operand']
  #allocation3 [shape = 'f32[64,32]{1,0:T(8,128)}', space=vmem, size = 0x8000, scoped, tag = 'scratch operand']
  #allocation4 [shape = 'f32[64,32]{1,0:T(8,128)}', space=vmem, size = 0x8000, scoped, tag = 'scratch operand']
  %s0 = inlined_call_operand.vmem [shape: bf16[64,16], index: 0, kind: input, shape index: {}]
  %s1 = inlined_call_operand.vmem [shape: s32[8,1], index: 1, kind: input, shape index: {}]
  %s2 = inlined_call_operand.vmem [shape: bf16[16,32], index: 2, kind: input, shape index: {}]
  %s3 = inlined_call_operand.vmem [shape: f32[1,32], index: 3, kind: input, shape index: {}]
  %s4 = inlined_call_operand.vmem [shape: bf16[32,256], index: 4, kind: input, shape index: {}]
  %s5 = inlined_call_operand.vmem [shape: f32[32,256], index: 5, kind: input, shape index: {}]
  %s6 = inlined_call_operand.vmem [shape: f32[1,256], index: 6, kind: input, shape index: {}]
  %s7 = inlined_call_operand.vmem [shape: bf16[64,256], index: 7, kind: input, shape index: {}]
  %s8 = inlined_call_operand.vmem [shape: f32[32,256], index: 8, kind: input, shape index: {}]
  %s9 = inlined_call_operand.vmem [shape: f32[1,256], index: 9, kind: input, shape index: {}]
  %s10 = inlined_call_operand.vmem [shape: bf16[2,128,128], index: 10, kind: input, shape index: {}]
  %s11 = inlined_call_operand.vmem [shape: f32[2,1,128], index: 11, kind: input, shape index: {}]
  %s12 = inlined_call_operand.vmem [shape: bf16[128,128], index: 12, kind: input, shape index: {}]
  %s13 = inlined_call_operand.vmem [shape: f32[1,128], index: 13, kind: input, shape index: {}]
  %s14 = inlined_call_operand.hbm [shape: f32[2,128], index: 14, kind: output, shape index: {}]
  %s15 = sld [smem:[#allocation0]]
  $region66: #{nli_bilstm_forward.1} parent=0
    _
  %s17 = ssub.s32 1, %s15
  %s18 = scalar_select 0, %s17, %s15
  $region1: #{nli_bilstm_forward.1} parent=0
    #allocation5 [shape = 'u8[1024]{0}', space=vmem, size = 0x400, scoped, tag = 'output window, operand 0, single buffered']
    #allocation6 [shape = 's32[1]{0}', space=sflag, size = 0x4, scoped, tag = 'scoped memory for nli_bilstm_forward.1']
    %19 = vsyncpa [#allocation6], 0
    // Predicated region
    $region2: #{nli_bilstm_forward.1} parent=1 // pred_check
      _
    $region3: #{nli_bilstm_forward.1} parent=1 // pred_check_branch
      %21 = sbr.rel (0) target = $region5
    $region4: #{nli_bilstm_forward.1} parent=1 // pred_region
      _
    $region5: #{nli_bilstm_forward.1} parent=1 // pred_fallthru
      _
    // Predicated region
    $region6: #{nli_bilstm_forward.1} parent=1 // pred_check
      _
    $region7: #{nli_bilstm_forward.1} parent=1 // pred_check_branch
      %23 = sbr.rel (0) target = $region9
    $region8: #{nli_bilstm_forward.1} parent=1 // pred_region
      _
    $region9: #{nli_bilstm_forward.1} parent=1 // pred_fallthru
      _
    // Predicated region
    $region10: #{nli_bilstm_forward.1} parent=1 // pred_check
      _
    $region11: #{nli_bilstm_forward.1} parent=1 // pred_check_branch
      %25 = sbr.rel (0) target = $region13
    $region12: #{nli_bilstm_forward.1} parent=1 // pred_region
      _
    $region13: #{nli_bilstm_forward.1} parent=1 // pred_fallthru
      _
    // Predicated region
    $region14: #{nli_bilstm_forward.1} parent=1 // pred_check
      _
    $region15: #{nli_bilstm_forward.1} parent=1 // pred_check_branch
      %27 = sbr.rel (0) target = $region17
    $region16: #{nli_bilstm_forward.1} parent=1 // pred_region
      _
    $region17: #{nli_bilstm_forward.1} parent=1 // pred_fallthru
      _
    // Predicated region
    $region18: #{nli_bilstm_forward.1} parent=1 // pred_check
      _
    $region19: #{nli_bilstm_forward.1} parent=1 // pred_check_branch
      %29 = sbr.rel (0) target = $region21
    $region20: #{nli_bilstm_forward.1} parent=1 // pred_region
      _
    $region21: #{nli_bilstm_forward.1} parent=1 // pred_fallthru
      _
    // Predicated region
    $region22: #{nli_bilstm_forward.1} parent=1 // pred_check
      _
    $region23: #{nli_bilstm_forward.1} parent=1 // pred_check_branch
      %31 = sbr.rel (0) target = $region25
    $region24: #{nli_bilstm_forward.1} parent=1 // pred_region
      _
    $region25: #{nli_bilstm_forward.1} parent=1 // pred_fallthru
      _
    // Predicated region
    $region26: #{nli_bilstm_forward.1} parent=1 // pred_check
      _
    $region27: #{nli_bilstm_forward.1} parent=1 // pred_check_branch
      %33 = sbr.rel (0) target = $region29
    $region28: #{nli_bilstm_forward.1} parent=1 // pred_region
      _
    $region29: #{nli_bilstm_forward.1} parent=1 // pred_fallthru
      _
    // Predicated region
    $region30: #{nli_bilstm_forward.1} parent=1 // pred_check
      _
    $region31: #{nli_bilstm_forward.1} parent=1 // pred_check_branch
      %35 = sbr.rel (0) target = $region33
    $region32: #{nli_bilstm_forward.1} parent=1 // pred_region
      _
    $region33: #{nli_bilstm_forward.1} parent=1 // pred_fallthru
      _
    // Predicated region
    $region34: #{nli_bilstm_forward.1} parent=1 // pred_check
      _
    $region35: #{nli_bilstm_forward.1} parent=1 // pred_check_branch
      %37 = sbr.rel (0) target = $region37
    $region36: #{nli_bilstm_forward.1} parent=1 // pred_region
      _
    $region37: #{nli_bilstm_forward.1} parent=1 // pred_fallthru
      _
    // Predicated region
    $region38: #{nli_bilstm_forward.1} parent=1 // pred_check
      _
    $region39: #{nli_bilstm_forward.1} parent=1 // pred_check_branch
      %39 = sbr.rel (0) target = $region41
    $region40: #{nli_bilstm_forward.1} parent=1 // pred_region
      _
    $region41: #{nli_bilstm_forward.1} parent=1 // pred_fallthru
      _
    // Predicated region
    $region42: #{nli_bilstm_forward.1} parent=1 // pred_check
      _
    $region43: #{nli_bilstm_forward.1} parent=1 // pred_check_branch
      %41 = sbr.rel (0) target = $region45
    $region44: #{nli_bilstm_forward.1} parent=1 // pred_region
      _
    $region45: #{nli_bilstm_forward.1} parent=1 // pred_fallthru
      _
    // Predicated region
    $region46: #{nli_bilstm_forward.1} parent=1 // pred_check
      _
    $region47: #{nli_bilstm_forward.1} parent=1 // pred_check_branch
      %43 = sbr.rel (0) target = $region49
    $region48: #{nli_bilstm_forward.1} parent=1 // pred_region
      _
    $region49: #{nli_bilstm_forward.1} parent=1 // pred_fallthru
      _
    // Predicated region
    $region50: #{nli_bilstm_forward.1} parent=1 // pred_check
      _
    $region51: #{nli_bilstm_forward.1} parent=1 // pred_check_branch
      %45 = sbr.rel (0) target = $region53
    $region52: #{nli_bilstm_forward.1} parent=1 // pred_region
      _
    $region53: #{nli_bilstm_forward.1} parent=1 // pred_fallthru
      _
    // Predicated region
    $region54: #{nli_bilstm_forward.1} parent=1 // pred_check
      _
    $region55: #{nli_bilstm_forward.1} parent=1 // pred_check_branch
      %47 = sbr.rel (0) target = $region57
    $region56: #{nli_bilstm_forward.1} parent=1 // pred_region
      _
    $region57: #{nli_bilstm_forward.1} parent=1 // pred_fallthru
      _
    %v49 = vld [vmem:[%s1] sm:$0xff]
    %v50 = vld [vmem:[%s0] sm:$0xf]
    %v51 = vld [vmem:[%s0 + $0x4] sm:$0xf]
    %v52 = vld [vmem:[%s0 + $0x8] sm:$0xf]
    %v53 = vld [vmem:[%s0 + $0xc] sm:$0xf]
    %v54 = vld [vmem:[%s0 + $0x10] sm:$0xf]
    %v55 = vld [vmem:[%s0 + $0x14] sm:$0xf]
    %v56 = vld [vmem:[%s0 + $0x18] sm:$0xf]
    %v57 = vld [vmem:[%s0 + $0x1c] sm:$0xf]
    %v58 = vld [vmem:[%s2] sm:$0xf]
    %v59 = vld [vmem:[%s2 + $0x4] sm:$0xf]
    %v60 = vld [vmem:[%s3] sm:$0x1]
    %v62 = vlaneseq
    %v63 = vshrl.u32 %v62, 7
    %v64 = vsub.s32 0, %v63
    %v65 = vrot.slane %v60, %v64
    %v75 = vunpack.c.l.b16 %v50
    %v76 = vunpack.c.l.b16 %v51
    %v77 = vunpack.c.l.b16 %v52
    %v78 = vunpack.c.l.b16 %v53
    %v79 = vunpack.c.l.b16 %v54
    %v80 = vunpack.c.l.b16 %v55
    %v81 = vunpack.c.l.b16 %v56
    %v82 = vunpack.c.l.b16 %v57
    %v83 = vpack.c.b16 %v76, %v75
    %v84 = vpack.c.b16 %v78, %v77
    %v85 = vpack.c.b16 %v80, %v79
    %v86 = vpack.c.b16 %v82, %v81
    %v89 = vunpack.c.l.b16 %v58
    %v90 = vunpack.c.l.b16 %v59
    %v91 = vpack.c.b16 %v90, %v89
    %vm93 = vcmask 130048
    %v95 = vsel %vm93, %v83, 0
    %v98 = vsel %vm93, %v84, 0
    %v101 = vsel %vm93, %v85, 0
    %v104 = vsel %vm93, %v86, 0
    %106 = vmatprep.subr.bf16.mxu0 0
    %107 = vmatpush1.bf16.msra.mxu0 %v91
    %108 = vmatprep.subr.bf16.mxu0 0
    %109 = vmatpush1.bf16.msra.mxu0 0
    %110 = vmatprep.subr.bf16.mxu0 0
    %111 = vmatpush1.bf16.msra.mxu0 0
    %112 = vmatprep.subr.bf16.mxu0 0
    %113 = vmatpush1.bf16.msra.mxu0 0
    %114 = vmatprep.subr.bf16.mxu0 0
    %115 = vmatpush1.bf16.msra.mxu0 0
    %116 = vmatprep.subr.bf16.mxu0 0
    %117 = vmatpush1.bf16.msra.mxu0 0
    %118 = vmatprep.subr.bf16.mxu0 0
    %119 = vmatpush1.bf16.msra.mxu0 0
    %120 = vmatprep.subr.bf16.mxu0 0
    %121 = vmatpush1.bf16.msra.mxu0 0
    %122 = vmatprep.subr.bf16.mxu0 0
    %123 = vmatpush1.bf16.msra.mxu0 0
    %124 = vmatprep.subr.bf16.mxu0 0
    %125 = vmatpush1.bf16.msra.mxu0 0
    %126 = vmatprep.subr.bf16.mxu0 0
    %127 = vmatpush1.bf16.msra.mxu0 0
    %128 = vmatprep.subr.bf16.mxu0 0
    %129 = vmatpush1.bf16.msra.mxu0 0
    %130 = vmatprep.subr.bf16.mxu0 0
    %131 = vmatpush1.bf16.msra.mxu0 0
    %132 = vmatprep.subr.bf16.mxu0 0
    %133 = vmatpush1.bf16.msra.mxu0 0
    %134 = vmatprep.subr.bf16.mxu0 0
    %135 = vmatpush1.bf16.msra.mxu0 0
    %136 = vmatprep.subr.bf16.mxu0 0
    %137 = vmatpush1.bf16.msra.mxu0 0
    %138 = vmatprep.mubr.bf16.mxu0 0
    %139 = vmatmul.mubr.bf16.gmra.mrb[0].mxu0 %v95
    %v140 = vpop.f32.mrb[0].mxu0
    %v141 = vadd.f32 %v65, %v140
    %v142 = vpop.f32.mrb[0].mxu0
    %v143 = vpop.f32.mrb[0].mxu0
    %v144 = vadd.f32 %v65, %v143
    %v145 = vpop.f32.mrb[0].mxu0
    %146 = vmatprep.mubr.bf16.mxu0 0
    %147 = vmatmul.mubr.bf16.gmra.mrb[0].mxu0 %v98
    %v148 = vpop.f32.mrb[0].mxu0
    %v149 = vadd.f32 %v65, %v148
    %v150 = vpop.f32.mrb[0].mxu0
    %v151 = vpop.f32.mrb[0].mxu0
    %v152 = vadd.f32 %v65, %v151
    %v153 = vpop.f32.mrb[0].mxu0
    %154 = vmatprep.mubr.bf16.mxu0 0
    %155 = vmatmul.mubr.bf16.gmra.mrb[0].mxu0 %v101
    %v156 = vpop.f32.mrb[0].mxu0
    %v157 = vadd.f32 %v65, %v156
    %v158 = vpop.f32.mrb[0].mxu0
    %v159 = vpop.f32.mrb[0].mxu0
    %v160 = vadd.f32 %v65, %v159
    %v161 = vpop.f32.mrb[0].mxu0
    %162 = vmatprep.mubr.bf16.mxu0 0
    %163 = vmatmul.mubr.bf16.gmra.mrb[0].mxu0 %v104
    %v164 = vpop.f32.mrb[0].mxu0
    %v165 = vadd.f32 %v65, %v164
    %v166 = vpop.f32.mrb[0].mxu0
    %v167 = vpop.f32.mrb[0].mxu0
    %v168 = vadd.f32 %v65, %v167
    %v169 = vpop.f32.mrb[0].mxu0
    %170 = vdwg.mxu0
    %v171 = vmax.f32 %v141, 0.0
    %v172 = vmax.f32 %v144, 0.0
    %v173 = vmax.f32 %v149, 0.0
    %v174 = vmax.f32 %v152, 0.0
    %v175 = vmax.f32 %v157, 0.0
    %v176 = vmax.f32 %v160, 0.0
    %v177 = vmax.f32 %v165, 0.0
    %v178 = vmax.f32 %v168, 0.0
    %v179 = vld [vmem:[%s4] sm:$0xff]
    %v180 = vld [vmem:[%s4 + $0x8] sm:$0xff]
    %v181 = vld [vmem:[%s4 + $0x10] sm:$0xff]
    %v182 = vld [vmem:[%s4 + $0x18] sm:$0xff]
    %v183 = vpack.c.bf16 %v172, %v171
    %v184 = vpack.c.bf16 %v174, %v173
    %v185 = vpack.c.bf16 %v176, %v175
    %v186 = vpack.c.bf16 %v178, %v177
    %v187 = vld [vmem:[%s6] sm:$0x3]
    %v189 = vlaneseq
    %v190 = vshrl.u32 %v189, 7
    %v191 = vsub.s32 0, %v190
    %v192 = vrot.slane %v187, %v191
    %v193 = vlaneseq
    %v194 = vshrl.u32 %v193, 7
    %v195 = vsub.s32 1, %v194
    %v196 = vrot.slane %v187, %v195
    %v203 = vunpack.c.l.b16 %v179
    %v204 = vunpack.c.h.b16 %v179
    %v205 = vunpack.c.l.b16 %v180
    %v206 = vunpack.c.h.b16 %v180
    %v207 = vunpack.c.l.b16 %v181
    %v208 = vunpack.c.h.b16 %v181
    %v209 = vunpack.c.l.b16 %v182
    %v210 = vunpack.c.h.b16 %v182
    %v211 = vpack.c.b16 %v205, %v203
    %v212 = vpack.c.b16 %v206, %v204
    %v213 = vpack.c.b16 %v209, %v207
    %v214 = vpack.c.b16 %v210, %v208
    %vm219 = vcmask 261120
    %v221 = vsel %vm219, %v183, 0
    %v224 = vsel %vm219, %v184, 0
    %v227 = vsel %vm219, %v185, 0
    %v230 = vsel %vm219, %v186, 0
    %232 = vmatprep.subr.bf16.mxu0 %v212
    %233 = vmatpush1.bf16.msra.mxu0 %v211
    %234 = vmatprep.subr.bf16.mxu0 %v214
    %235 = vmatpush1.bf16.msra.mxu0 %v213
    %236 = vmatprep.subr.bf16.mxu0 0
    %237 = vmatpush1.bf16.msra.mxu0 0
    %238 = vmatprep.subr.bf16.mxu0 0
    %239 = vmatpush1.bf16.msra.mxu0 0
    %240 = vmatprep.subr.bf16.mxu0 0
    %241 = vmatpush1.bf16.msra.mxu0 0
    %242 = vmatprep.subr.bf16.mxu0 0
    %243 = vmatpush1.bf16.msra.mxu0 0
    %244 = vmatprep.subr.bf16.mxu0 0
    %245 = vmatpush1.bf16.msra.mxu0 0
    %246 = vmatprep.subr.bf16.mxu0 0
    %247 = vmatpush1.bf16.msra.mxu0 0
    %248 = vmatprep.subr.bf16.mxu0 0
    %249 = vmatpush1.bf16.msra.mxu0 0
    %250 = vmatprep.subr.bf16.mxu0 0
    %251 = vmatpush1.bf16.msra.mxu0 0
    %252 = vmatprep.subr.bf16.mxu0 0
    %253 = vmatpush1.bf16.msra.mxu0 0
    %254 = vmatprep.subr.bf16.mxu0 0
    %255 = vmatpush1.bf16.msra.mxu0 0
    %256 = vmatprep.subr.bf16.mxu0 0
    %257 = vmatpush1.bf16.msra.mxu0 0
    %258 = vmatprep.subr.bf16.mxu0 0
    %259 = vmatpush1.bf16.msra.mxu0 0
    %260 = vmatprep.subr.bf16.mxu0 0
    %261 = vmatpush1.bf16.msra.mxu0 0
    %262 = vmatprep.subr.bf16.mxu0 0
    %263 = vmatpush1.bf16.msra.mxu0 0
    %264 = vmatprep.mubr.bf16.mxu0 0
    %265 = vmatmul.mubr.bf16.gmra.mrb[0].mxu0 %v221
    %v266 = vpop.f32.mrb[0].mxu0
    %v267 = vadd.f32 %v192, %v266
    %v268 = vpop.f32.mrb[0].mxu0
    %v269 = vadd.f32 %v196, %v268
    %v270 = vpop.f32.mrb[0].mxu0
    %v271 = vadd.f32 %v192, %v270
    %v272 = vpop.f32.mrb[0].mxu0
    %v273 = vadd.f32 %v196, %v272
    %274 = vmatprep.mubr.bf16.mxu0 0
    %275 = vmatmul.mubr.bf16.gmra.mrb[0].mxu0 %v224
    %v276 = vpop.f32.mrb[0].mxu0
    %v277 = vadd.f32 %v192, %v276
    %v278 = vpop.f32.mrb[0].mxu0
    %v279 = vadd.f32 %v196, %v278
    %v280 = vpop.f32.mrb[0].mxu0
    %v281 = vadd.f32 %v192, %v280
    %v282 = vpop.f32.mrb[0].mxu0
    %v283 = vadd.f32 %v196, %v282
    %284 = vmatprep.mubr.bf16.mxu0 0
    %285 = vmatmul.mubr.bf16.gmra.mrb[0].mxu0 %v227
    %v286 = vpop.f32.mrb[0].mxu0
    %v287 = vadd.f32 %v192, %v286
    %v288 = vpop.f32.mrb[0].mxu0
    %v289 = vadd.f32 %v196, %v288
    %v290 = vpop.f32.mrb[0].mxu0
    %v291 = vadd.f32 %v192, %v290
    %v292 = vpop.f32.mrb[0].mxu0
    %v293 = vadd.f32 %v196, %v292
    %294 = vmatprep.mubr.bf16.mxu0 0
    %295 = vmatmul.mubr.bf16.gmra.mrb[0].mxu0 %v230
    %v296 = vpop.f32.mrb[0].mxu0
    %v297 = vadd.f32 %v192, %v296
    %v298 = vpop.f32.mrb[0].mxu0
    %v299 = vadd.f32 %v196, %v298
    %v300 = vpop.f32.mrb[0].mxu0
    %v301 = vadd.f32 %v192, %v300
    %v302 = vpop.f32.mrb[0].mxu0
    %v303 = vadd.f32 %v196, %v302
    %304 = vdwg.mxu0
    %305 = vst [vmem:[#allocation2] sm:$0xff] %v267
    %306 = vst [vmem:[#allocation2 + $0x8] sm:$0xff] %v269
    %307 = vst [vmem:[#allocation2 + $0x10] sm:$0xff] %v271
    %308 = vst [vmem:[#allocation2 + $0x18] sm:$0xff] %v273
    %309 = vst [vmem:[#allocation2 + $0x20] sm:$0xff] %v277
    %310 = vst [vmem:[#allocation2 + $0x28] sm:$0xff] %v279
    %311 = vst [vmem:[#allocation2 + $0x30] sm:$0xff] %v281
    %312 = vst [vmem:[#allocation2 + $0x38] sm:$0xff] %v283
    %313 = vst [vmem:[#allocation2 + $0x40] sm:$0xff] %v287
    %314 = vst [vmem:[#allocation2 + $0x48] sm:$0xff] %v289
    %315 = vst [vmem:[#allocation2 + $0x50] sm:$0xff] %v291
    %316 = vst [vmem:[#allocation2 + $0x58] sm:$0xff] %v293
    %317 = vst [vmem:[#allocation2 + $0x60] sm:$0xff] %v297
    %318 = vst [vmem:[#allocation2 + $0x68] sm:$0xff] %v299
    %319 = vst [vmem:[#allocation2 + $0x70] sm:$0xff] %v301
    %320 = vst [vmem:[#allocation2 + $0x78] sm:$0xff] %v303
    %v321 = vld [vmem:[%s5] sm:$0xff]
    %v322 = vld [vmem:[%s5 + $0x8] sm:$0xff]
    %v323 = vld [vmem:[%s5 + $0x10] sm:$0xff]
    %v324 = vld [vmem:[%s5 + $0x18] sm:$0xff]
    %v325 = vld [vmem:[%s5 + $0x20] sm:$0xff]
    %v326 = vld [vmem:[%s5 + $0x28] sm:$0xff]
    %v327 = vld [vmem:[%s5 + $0x30] sm:$0xff]
    %v328 = vld [vmem:[%s5 + $0x38] sm:$0xff]
    %vm329 = vcmp.gt.s32.totalorder %v49, 0
    %vm330 = vcmp.gt.s32.totalorder %v49, 7
    %s331 = smul.u32 0, 2
    %s332 = smul.addr %s331, 8
    %s333 = scalar_lea.vmem [#allocation2], %s332
    %v334 = vld [vmem:[%s333] sm:$0xff]
    %v336 = vsel %vm219, 0.0, 0
    %338 = vmatprep.subr.mxu0 0.0
    %339 = vmatpush1.msra.mxu0 %v321
    %340 = vmatprep.subr.mxu0 0.0
    %341 = vmatpush1.msra.mxu0 %v323
    %342 = vmatprep.subr.mxu0 0.0
    %343 = vmatpush1.msra.mxu0 %v325
    %344 = vmatprep.subr.mxu0 0.0
    %345 = vmatpush1.msra.mxu0 %v327
    %346 = vmatprep.subr.mxu0 0.0
    %347 = vmatpush1.msra.mxu0 0.0
    %348 = vmatprep.subr.mxu0 0.0
    %349 = vmatpush1.msra.mxu0 0.0
    %350 = vmatprep.subr.mxu0 0.0
    %351 = vmatpush1.msra.mxu0 0.0
    %352 = vmatprep.subr.mxu0 0.0
    %353 = vmatpush1.msra.mxu0 0.0
    %354 = vmatprep.subr.mxu0 0.0
    %355 = vmatpush1.msra.mxu0 0.0
    %356 = vmatprep.subr.mxu0 0.0
    %357 = vmatpush1.msra.mxu0 0.0
    %358 = vmatprep.subr.mxu0 0.0
    %359 = vmatpush1.msra.mxu0 0.0
    %360 = vmatprep.subr.mxu0 0.0
    %361 = vmatpush1.msra.mxu0 0.0
    %362 = vmatprep.subr.mxu0 0.0
    %363 = vmatpush1.msra.mxu0 0.0
    %364 = vmatprep.subr.mxu0 0.0
    %365 = vmatpush1.msra.mxu0 0.0
    %366 = vmatprep.subr.mxu0 0.0
    %367 = vmatpush1.msra.mxu0 0.0
    %368 = vmatprep.subr.mxu0 0.0
    %369 = vmatpush1.msra.mxu0 0.0
    %370 = vmatprep.subr.mxu0 0.0
    %371 = vmatpush1.msra.mxu0 0.0
    %372 = vmatprep.subr.mxu0 0.0
    %373 = vmatpush1.msra.mxu0 0.0
    %374 = vmatprep.subr.mxu0 0.0
    %375 = vmatpush1.msra.mxu0 0.0
    %376 = vmatprep.subr.mxu0 0.0
    %377 = vmatpush1.msra.mxu0 0.0
    %378 = vmatprep.subr.mxu0 0.0
    %379 = vmatpush1.msra.mxu0 0.0
    %380 = vmatprep.subr.mxu0 0.0
    %381 = vmatpush1.msra.mxu0 0.0
    %382 = vmatprep.subr.mxu0 0.0
    %383 = vmatpush1.msra.mxu0 0.0
    %384 = vmatprep.subr.mxu0 0.0
    %385 = vmatpush1.msra.mxu0 0.0
    %386 = vmatprep.subr.mxu0 0.0
    %387 = vmatpush1.msra.mxu0 0.0
    %388 = vmatprep.subr.mxu0 0.0
    %389 = vmatpush1.msra.mxu0 0.0
    %390 = vmatprep.subr.mxu0 0.0
    %391 = vmatpush1.msra.mxu0 0.0
    %392 = vmatprep.subr.mxu0 0.0
    %393 = vmatpush1.msra.mxu0 0.0
    %394 = vmatprep.subr.mxu0 0.0
    %395 = vmatpush1.msra.mxu0 0.0
    %396 = vmatprep.subr.mxu0 0.0
    %397 = vmatpush1.msra.mxu0 0.0
    %398 = vmatprep.subr.mxu0 0.0
    %399 = vmatpush1.msra.mxu0 0.0
    %400 = vmatprep.subr.mxu0 0.0
    %401 = vmatpush1.msra.mxu0 0.0
    %402 = vmatprep.mubr.f32.mxu0 0.0
    %403 = vmatmul.mubr.f32.gmra.mrb[0].mxu0 %v336
    %v404 = vpop.f32.mrb[0].mxu0
    %v405 = vadd.f32 0.0, %v404
    %v406 = vpop.f32.mrb[0].mxu0
    %407 = vdwg.mxu0
    %v408 = vadd.f32 %v334, %v405
    %s409 = smul.u32 7, 2
    %s410 = smul.addr %s409, 8
    %s411 = scalar_lea.vmem [#allocation2], %s410
    %v412 = vld [vmem:[%s411 + $0x8] sm:$0xff]
    %413 = vmatprep.subr.mxu0 0.0
    %414 = vmatpush1.msra.mxu0 %v322
    %415 = vmatprep.subr.mxu0 0.0
    %416 = vmatpush1.msra.mxu0 %v324
    %417 = vmatprep.subr.mxu0 0.0
    %418 = vmatpush1.msra.mxu0 %v326
    %419 = vmatprep.subr.mxu0 0.0
    %420 = vmatpush1.msra.mxu0 %v328
    %421 = vmatprep.subr.mxu0 0.0
    %422 = vmatpush1.msra.mxu0 0.0
    %423 = vmatprep.subr.mxu0 0.0
    %424 = vmatpush1.msra.mxu0 0.0
    %425 = vmatprep.subr.mxu0 0.0
    %426 = vmatpush1.msra.mxu0 0.0
    %427 = vmatprep.subr.mxu0 0.0
    %428 = vmatpush1.msra.mxu0 0.0
    %429 = vmatprep.subr.mxu0 0.0
    %430 = vmatpush1.msra.mxu0 0.0
    %431 = vmatprep.subr.mxu0 0.0
    %432 = vmatpush1.msra.mxu0 0.0
    %433 = vmatprep.subr.mxu0 0.0
    %434 = vmatpush1.msra.mxu0 0.0
    %435 = vmatprep.subr.mxu0 0.0
    %436 = vmatpush1.msra.mxu0 0.0
    %437 = vmatprep.subr.mxu0 0.0
    %438 = vmatpush1.msra.mxu0 0.0
    %439 = vmatprep.subr.mxu0 0.0
    %440 = vmatpush1.msra.mxu0 0.0
    %441 = vmatprep.subr.mxu0 0.0
    %442 = vmatpush1.msra.mxu0 0.0
    %443 = vmatprep.subr.mxu0 0.0
    %444 = vmatpush1.msra.mxu0 0.0
    %445 = vmatprep.subr.mxu0 0.0
    %446 = vmatpush1.msra.mxu0 0.0
    %447 = vmatprep.subr.mxu0 0.0
    %448 = vmatpush1.msra.mxu0 0.0
    %449 = vmatprep.subr.mxu0 0.0
    %450 = vmatpush1.msra.mxu0 0.0
    %451 = vmatprep.subr.mxu0 0.0
    %452 = vmatpush1.msra.mxu0 0.0
    %453 = vmatprep.subr.mxu0 0.0
    %454 = vmatpush1.msra.mxu0 0.0
    %455 = vmatprep.subr.mxu0 0.0
    %456 = vmatpush1.msra.mxu0 0.0
    %457 = vmatprep.subr.mxu0 0.0
    %458 = vmatpush1.msra.mxu0 0.0
    %459 = vmatprep.subr.mxu0 0.0
    %460 = vmatpush1.msra.mxu0 0.0
    %461 = vmatprep.subr.mxu0 0.0
    %462 = vmatpush1.msra.mxu0 0.0
    %463 = vmatprep.subr.mxu0 0.0
    %464 = vmatpush1.msra.mxu0 0.0
    %465 = vmatprep.subr.mxu0 0.0
    %466 = vmatpush1.msra.mxu0 0.0
    %467 = vmatprep.subr.mxu0 0.0
    %468 = vmatpush1.msra.mxu0 0.0
    %469 = vmatprep.subr.mxu0 0.0
    %470 = vmatpush1.msra.mxu0 0.0
    %471 = vmatprep.subr.mxu0 0.0
    %472 = vmatpush1.msra.mxu0 0.0
    %473 = vmatprep.subr.mxu0 0.0
    %474 = vmatpush1.msra.mxu0 0.0
    %475 = vmatprep.subr.mxu0 0.0
    %476 = vmatpush1.msra.mxu0 0.0
    %477 = vmatprep.mubr.f32.mxu0 0.0
    %478 = vmatmul.mubr.f32.gmra.mrb[0].mxu0 %v336
    %v479 = vpop.f32.mrb[0].mxu0
    %v480 = vadd.f32 0.0, %v479
    %v481 = vpop.f32.mrb[0].mxu0
    %482 = vdwg.mxu0
    %v483 = vadd.f32 %v412, %v480
    %v484 = vxor.u32 %v408, 2147483648
    %v485 = vmul.f32 %v484, 1.442695
    %v486 = vpow.pop %v485
    %v487 = vadd.f32 %v486, 1.0
    %v488 = vrcp.pop %v487
    %v489 = vmul.f32 1.0, %v488
    %v490 = vtanh.pop %v408
    %v491 = vmul.f32 %v489, 0.0
    %493 = vrot.lane.b32.xlu0 %v490, 64
    %v494 = vpop.permute.xlu0 %493
    %v496 = vmul.f32 %v489, %v494
    %498 = vrot.lane.b32.xlu0 %v496, 32
    %v499 = vpop.permute.xlu0 %498
    %v501 = vadd.f32 %v491, %v499
    %v502 = vtanh.pop %v501
    %504 = vrot.lane.b32.xlu0 %v502, 64
    %v505 = vpop.permute.xlu0 %504
    %v507 = vmul.f32 %v489, %v505
    %v508 = vxor.u32 %v483, 2147483648
    %v509 = vmul.f32 %v508, 1.442695
    %v510 = vpow.pop %v509
    %v511 = vadd.f32 %v510, 1.0
    %v512 = vrcp.pop %v511
    %v513 = vmul.f32 1.0, %v512
    %v514 = vtanh.pop %v483
    %v515 = vmul.f32 %v513, 0.0
    %517 = vrot.lane.b32.xlu0 %v514, 64
    %v518 = vpop.permute.xlu0 %517
    %v520 = vmul.f32 %v513, %v518
    %522 = vrot.lane.b32.xlu0 %v520, 32
    %v523 = vpop.permute.xlu0 %522
    %v525 = vadd.f32 %v515, %v523
    %v526 = vtanh.pop %v525
    %528 = vrot.lane.b32.xlu0 %v526, 64
    %v529 = vpop.permute.xlu0 %528
    %v531 = vmul.f32 %v513, %v529
    %v532 = vsel %vm329, 1, 0
    %533 = vset.pattern.permute.xlu0 0
    %534 = vperm.xlu0 %533, %v532
    %v535 = vpop.permute.xlu0 %534
    %vm536 = vcmp.eq.s32.totalorder %v535, 1
    %v537 = vsel %vm536, %v507, 0.0
    %v538 = vsel %vm536, %v501, 0.0
    %v539 = vsel %vm330, 1, 0
    %540 = vset.pattern.permute.xlu0 0
    %541 = vperm.xlu0 %540, %v539
    %v542 = vpop.permute.xlu0 %541
    %vm543 = vcmp.eq.s32.totalorder %v542, 1
    %v544 = vsel %vm543, %v531, 0.0
    %v545 = vsel %vm543, %v525, 0.0
    %547 = vrot.lane.b32.xlu0 %v537, 32
    %v548 = vpop.permute.xlu0 %547
    %550 = vst.msk [vmem:[#allocation3] sm:$0xff] %vm219, %v548
    %552 = vrot.lane.b32.xlu0 %v544, 32
    %v553 = vpop.permute.xlu0 %552
    %s555 = scalar_lea.vmem [#allocation4], 56
    %556 = vst.msk [vmem:[%s555] sm:$0xff] %vm219, %v553
    %vm557 = vcmp.gt.s32.totalorder %v49, 1
    %vm558 = vcmp.gt.s32.totalorder %v49, 6
    %s559 = smul.u32 1, 2
    %s560 = smul.addr %s559, 8
    %s561 = scalar_lea.vmem [#allocation2], %s560
    %v562 = vld [vmem:[%s561] sm:$0xff]
    %v563 = vsel %vm219, %v548, 0
    %565 = vmatprep.subr.mxu0 0.0
    %566 = vmatpush1.msra.mxu0 %v321
    %567 = vmatprep.subr.mxu0 0.0
    %568 = vmatpush1.msra.mxu0 %v323
    %569 = vmatprep.subr.mxu0 0.0
    %570 = vmatpush1.msra.mxu0 %v325
    %571 = vmatprep.subr.mxu0 0.0
    %572 = vmatpush1.msra.mxu0 %v327
    %573 = vmatprep.subr.mxu0 0.0
    %574 = vmatpush1.msra.mxu0 0.0
    %575 = vmatprep.subr.mxu0 0.0
    %576 = vmatpush1.msra.mxu0 0.0
    %577 = vmatprep.subr.mxu0 0.0
    %578 = vmatpush1.msra.mxu0 0.0
    %579 = vmatprep.subr.mxu0 0.0
    %580 = vmatpush1.msra.mxu0 0.0
    %581 = vmatprep.subr.mxu0 0.0
    %582 = vmatpush1.msra.mxu0 0.0
    %583 = vmatprep.subr.mxu0 0.0
    %584 = vmatpush1.msra.mxu0 0.0
    %585 = vmatprep.subr.mxu0 0.0
    %586 = vmatpush1.msra.mxu0 0.0
    %587 = vmatprep.subr.mxu0 0.0
    %588 = vmatpush1.msra.mxu0 0.0
    %589 = vmatprep.subr.mxu0 0.0
    %590 = vmatpush1.msra.mxu0 0.0
    %591 = vmatprep.subr.mxu0 0.0
    %592 = vmatpush1.msra.mxu0 0.0
    %593 = vmatprep.subr.mxu0 0.0
    %594 = vmatpush1.msra.mxu0 0.0
    %595 = vmatprep.subr.mxu0 0.0
    %596 = vmatpush1.msra.mxu0 0.0
    %597 = vmatprep.subr.mxu0 0.0
    %598 = vmatpush1.msra.mxu0 0.0
    %599 = vmatprep.subr.mxu0 0.0
    %600 = vmatpush1.msra.mxu0 0.0
    %601 = vmatprep.subr.mxu0 0.0
    %602 = vmatpush1.msra.mxu0 0.0
    %603 = vmatprep.subr.mxu0 0.0
    %604 = vmatpush1.msra.mxu0 0.0
    %605 = vmatprep.subr.mxu0 0.0
    %606 = vmatpush1.msra.mxu0 0.0
    %607 = vmatprep.subr.mxu0 0.0
    %608 = vmatpush1.msra.mxu0 0.0
    %609 = vmatprep.subr.mxu0 0.0
    %610 = vmatpush1.msra.mxu0 0.0
    %611 = vmatprep.subr.mxu0 0.0
    %612 = vmatpush1.msra.mxu0 0.0
    %613 = vmatprep.subr.mxu0 0.0
    %614 = vmatpush1.msra.mxu0 0.0
    %615 = vmatprep.subr.mxu0 0.0
    %616 = vmatpush1.msra.mxu0 0.0
    %617 = vmatprep.subr.mxu0 0.0
    %618 = vmatpush1.msra.mxu0 0.0
    %619 = vmatprep.subr.mxu0 0.0
    %620 = vmatpush1.msra.mxu0 0.0
    %621 = vmatprep.subr.mxu0 0.0
    %622 = vmatpush1.msra.mxu0 0.0
    %623 = vmatprep.subr.mxu0 0.0
    %624 = vmatpush1.msra.mxu0 0.0
    %625 = vmatprep.subr.mxu0 0.0
    %626 = vmatpush1.msra.mxu0 0.0
    %627 = vmatprep.subr.mxu0 0.0
    %628 = vmatpush1.msra.mxu0 0.0
    %629 = vmatprep.mubr.f32.mxu0 0.0
    %630 = vmatmul.mubr.f32.gmra.mrb[0].mxu0 %v563
    %v631 = vpop.f32.mrb[0].mxu0
    %v632 = vadd.f32 0.0, %v631
    %v633 = vpop.f32.mrb[0].mxu0
    %634 = vdwg.mxu0
    %v635 = vadd.f32 %v562, %v632
    %s636 = smul.u32 6, 2
    %s637 = smul.addr %s636, 8
    %s638 = scalar_lea.vmem [#allocation2], %s637
    %v639 = vld [vmem:[%s638 + $0x8] sm:$0xff]
    %v640 = vsel %vm219, %v553, 0
    %642 = vmatprep.subr.mxu0 0.0
    %643 = vmatpush1.msra.mxu0 %v322
    %644 = vmatprep.subr.mxu0 0.0
    %645 = vmatpush1.msra.mxu0 %v324
    %646 = vmatprep.subr.mxu0 0.0
    %647 = vmatpush1.msra.mxu0 %v326
    %648 = vmatprep.subr.mxu0 0.0
    %649 = vmatpush1.msra.mxu0 %v328
    %650 = vmatprep.subr.mxu0 0.0
    %651 = vmatpush1.msra.mxu0 0.0
    %652 = vmatprep.subr.mxu0 0.0
    %653 = vmatpush1.msra.mxu0 0.0
    %654 = vmatprep.subr.mxu0 0.0
    %655 = vmatpush1.msra.mxu0 0.0
    %656 = vmatprep.subr.mxu0 0.0
    %657 = vmatpush1.msra.mxu0 0.0
    %658 = vmatprep.subr.mxu0 0.0
    %659 = vmatpush1.msra.mxu0 0.0
    %660 = vmatprep.subr.mxu0 0.0
    %661 = vmatpush1.msra.mxu0 0.0
    %662 = vmatprep.subr.mxu0 0.0
    %663 = vmatpush1.msra.mxu0 0.0
    %664 = vmatprep.subr.mxu0 0.0
    %665 = vmatpush1.msra.mxu0 0.0
    %666 = vmatprep.subr.mxu0 0.0
    %667 = vmatpush1.msra.mxu0 0.0
    %668 = vmatprep.subr.mxu0 0.0
    %669 = vmatpush1.msra.mxu0 0.0
    %670 = vmatprep.subr.mxu0 0.0
    %671 = vmatpush1.msra.mxu0 0.0
    %672 = vmatprep.subr.mxu0 0.0
    %673 = vmatpush1.msra.mxu0 0.0
    %674 = vmatprep.subr.mxu0 0.0
    %675 = vmatpush1.msra.mxu0 0.0
    %676 = vmatprep.subr.mxu0 0.0
    %677 = vmatpush1.msra.mxu0 0.0
    %678 = vmatprep.subr.mxu0 0.0
    %679 = vmatpush1.msra.mxu0 0.0
    %680 = vmatprep.subr.mxu0 0.0
    %681 = vmatpush1.msra.mxu0 0.0
    %682 = vmatprep.subr.mxu0 0.0
    %683 = vmatpush1.msra.mxu0 0.0
    %684 = vmatprep.subr.mxu0 0.0
    %685 = vmatpush1.msra.mxu0 0.0
    %686 = vmatprep.subr.mxu0 0.0
    %687 = vmatpush1.msra.mxu0 0.0
    %688 = vmatprep.subr.mxu0 0.0
    %689 = vmatpush1.msra.mxu0 0.0
    %690 = vmatprep.subr.mxu0 0.0
    %691 = vmatpush1.msra.mxu0 0.0
    %692 = vmatprep.subr.mxu0 0.0
    %693 = vmatpush1.msra.mxu0 0.0
    %694 = vmatprep.subr.mxu0 0.0
    %695 = vmatpush1.msra.mxu0 0.0
    %696 = vmatprep.subr.mxu0 0.0
    %697 = vmatpush1.msra.mxu0 0.0
    %698 = vmatprep.subr.mxu0 0.0
    %699 = vmatpush1.msra.mxu0 0.0
    %700 = vmatprep.subr.mxu0 0.0
    %701 = vmatpush1.msra.mxu0 0.0
    %702 = vmatprep.subr.mxu0 0.0
    %703 = vmatpush1.msra.mxu0 0.0
    %704 = vmatprep.subr.mxu0 0.0
    %705 = vmatpush1.msra.mxu0 0.0
    %706 = vmatprep.mubr.f32.mxu0 0.0
    %707 = vmatmul.mubr.f32.gmra.mrb[0].mxu0 %v640
    %v708 = vpop.f32.mrb[0].mxu0
    %v709 = vadd.f32 0.0, %v708
    %v710 = vpop.f32.mrb[0].mxu0
    %711 = vdwg.mxu0
    %v712 = vadd.f32 %v639, %v709
    %v713 = vxor.u32 %v635, 2147483648
    %v714 = vmul.f32 %v713, 1.442695
    %v715 = vpow.pop %v714
    %v716 = vadd.f32 %v715, 1.0
    %v717 = vrcp.pop %v716
    %v718 = vmul.f32 1.0, %v717
    %v719 = vtanh.pop %v635
    %v720 = vmul.f32 %v718, %v538
    %722 = vrot.lane.b32.xlu0 %v719, 64
    %v723 = vpop.permute.xlu0 %722
    %v725 = vmul.f32 %v718, %v723
    %727 = vrot.lane.b32.xlu0 %v725, 32
    %v728 = vpop.permute.xlu0 %727
    %v730 = vadd.f32 %v720, %v728
    %v731 = vtanh.pop %v730
    %733 = vrot.lane.b32.xlu0 %v731, 64
    %v734 = vpop.permute.xlu0 %733
    %v736 = vmul.f32 %v718, %v734
    %v737 = vxor.u32 %v712, 2147483648
    %v738 = vmul.f32 %v737, 1.442695
    %v739 = vpow.pop %v738
    %v740 = vadd.f32 %v739, 1.0
    %v741 = vrcp.pop %v740
    %v742 = vmul.f32 1.0, %v741
    %v743 = vtanh.pop %v712
    %v744 = vmul.f32 %v742, %v545
    %746 = vrot.lane.b32.xlu0 %v743, 64
    %v747 = vpop.permute.xlu0 %746
    %v749 = vmul.f32 %v742, %v747
    %751 = vrot.lane.b32.xlu0 %v749, 32
    %v752 = vpop.permute.xlu0 %751
    %v754 = vadd.f32 %v744, %v752
    %v755 = vtanh.pop %v754
    %757 = vrot.lane.b32.xlu0 %v755, 64
    %v758 = vpop.permute.xlu0 %757
    %v760 = vmul.f32 %v742, %v758
    %v761 = vsel %vm557, 1, 0
    %762 = vset.pattern.permute.xlu0 0
    %763 = vperm.xlu0 %762, %v761
    %v764 = vpop.permute.xlu0 %763
    %vm765 = vcmp.eq.s32.totalorder %v764, 1
    %v766 = vsel %vm765, %v736, %v537
    %v767 = vsel %vm765, %v730, %v538
    %v768 = vsel %vm558, 1, 0
    %769 = vset.pattern.permute.xlu0 0
    %770 = vperm.xlu0 %769, %v768
    %v771 = vpop.permute.xlu0 %770
    %vm772 = vcmp.eq.s32.totalorder %v771, 1
    %v773 = vsel %vm772, %v760, %v544
    %v774 = vsel %vm772, %v754, %v545
    %776 = vrot.lane.b32.xlu0 %v766, 32
    %v777 = vpop.permute.xlu0 %776
    %s779 = scalar_lea.vmem [#allocation3], 8
    %780 = vst.msk [vmem:[%s779] sm:$0xff] %vm219, %v777
    %782 = vrot.lane.b32.xlu0 %v773, 32
    %v783 = vpop.permute.xlu0 %782
    %s785 = scalar_lea.vmem [#allocation4], 48
    %786 = vst.msk [vmem:[%s785] sm:$0xff] %vm219, %v783
    %vm787 = vcmp.gt.s32.totalorder %v49, 2
    %vm788 = vcmp.gt.s32.totalorder %v49, 5
    %s789 = smul.u32 2, 2
    %s790 = smul.addr %s789, 8
    %s791 = scalar_lea.vmem [#allocation2], %s790
    %v792 = vld [vmem:[%s791] sm:$0xff]
    %v793 = vsel %vm219, %v777, 0
    %795 = vmatprep.subr.mxu0 0.0
    %796 = vmatpush1.msra.mxu0 %v321
    %797 = vmatprep.subr.mxu0 0.0
    %798 = vmatpush1.msra.mxu0 %v323
    %799 = vmatprep.subr.mxu0 0.0
    %800 = vmatpush1.msra.mxu0 %v325
    %801 = vmatprep.subr.mxu0 0.0
    %802 = vmatpush1.msra.mxu0 %v327
    %803 = vmatprep.subr.mxu0 0.0
    %804 = vmatpush1.msra.mxu0 0.0
    %805 = vmatprep.subr.mxu0 0.0
    %806 = vmatpush1.msra.mxu0 0.0
    %807 = vmatprep.subr.mxu0 0.0
    %808 = vmatpush1.msra.mxu0 0.0
    %809 = vmatprep.subr.mxu0 0.0
    %810 = vmatpush1.msra.mxu0 0.0
    %811 = vmatprep.subr.mxu0 0.0
    %812 = vmatpush1.msra.mxu0 0.0
    %813 = vmatprep.subr.mxu0 0.0
    %814 = vmatpush1.msra.mxu0 0.0
    %815 = vmatprep.subr.mxu0 0.0
    %816 = vmatpush1.msra.mxu0 0.0
    %817 = vmatprep.subr.mxu0 0.0
    %818 = vmatpush1.msra.mxu0 0.0
    %819 = vmatprep.subr.mxu0 0.0
    %820 = vmatpush1.msra.mxu0 0.0
    %821 = vmatprep.subr.mxu0 0.0
    %822 = vmatpush1.msra.mxu0 0.0
    %823 = vmatprep.subr.mxu0 0.0
    %824 = vmatpush1.msra.mxu0 0.0
    %825 = vmatprep.subr.mxu0 0.0
    %826 = vmatpush1.msra.mxu0 0.0
    %827 = vmatprep.subr.mxu0 0.0
    %828 = vmatpush1.msra.mxu0 0.0
    %829 = vmatprep.subr.mxu0 0.0
    %830 = vmatpush1.msra.mxu0 0.0
    %831 = vmatprep.subr.mxu0 0.0
    %832 = vmatpush1.msra.mxu0 0.0
    %833 = vmatprep.subr.mxu0 0.0
    %834 = vmatpush1.msra.mxu0 0.0
    %835 = vmatprep.subr.mxu0 0.0
    %836 = vmatpush1.msra.mxu0 0.0
    %837 = vmatprep.subr.mxu0 0.0
    %838 = vmatpush1.msra.mxu0 0.0
    %839 = vmatprep.subr.mxu0 0.0
    %840 = vmatpush1.msra.mxu0 0.0
    %841 = vmatprep.subr.mxu0 0.0
    %842 = vmatpush1.msra.mxu0 0.0
    %843 = vmatprep.subr.mxu0 0.0
    %844 = vmatpush1.msra.mxu0 0.0
    %845 = vmatprep.subr.mxu0 0.0
    %846 = vmatpush1.msra.mxu0 0.0
    %847 = vmatprep.subr.mxu0 0.0
    %848 = vmatpush1.msra.mxu0 0.0
    %849 = vmatprep.subr.mxu0 0.0
    %850 = vmatpush1.msra.mxu0 0.0
    %851 = vmatprep.subr.mxu0 0.0
    %852 = vmatpush1.msra.mxu0 0.0
    %853 = vmatprep.subr.mxu0 0.0
    %854 = vmatpush1.msra.mxu0 0.0
    %855 = vmatprep.subr.mxu0 0.0
    %856 = vmatpush1.msra.mxu0 0.0
    %857 = vmatprep.subr.mxu0 0.0
    %858 = vmatpush1.msra.mxu0 0.0
    %859 = vmatprep.mubr.f32.mxu0 0.0
    %860 = vmatmul.mubr.f32.gmra.mrb[0].mxu0 %v793
    %v861 = vpop.f32.mrb[0].mxu0
    %v862 = vadd.f32 0.0, %v861
    %v863 = vpop.f32.mrb[0].mxu0
    %864 = vdwg.mxu0
    %v865 = vadd.f32 %v792, %v862
    %s866 = smul.u32 5, 2
    %s867 = smul.addr %s866, 8
    %s868 = scalar_lea.vmem [#allocation2], %s867
    %v869 = vld [vmem:[%s868 + $0x8] sm:$0xff]
    %v870 = vsel %vm219, %v783, 0
    %872 = vmatprep.subr.mxu0 0.0
    %873 = vmatpush1.msra.mxu0 %v322
    %874 = vmatprep.subr.mxu0 0.0
    %875 = vmatpush1.msra.mxu0 %v324
    %876 = vmatprep.subr.mxu0 0.0
    %877 = vmatpush1.msra.mxu0 %v326
    %878 = vmatprep.subr.mxu0 0.0
    %879 = vmatpush1.msra.mxu0 %v328
    %880 = vmatprep.subr.mxu0 0.0
    %881 = vmatpush1.msra.mxu0 0.0
    %882 = vmatprep.subr.mxu0 0.0
    %883 = vmatpush1.msra.mxu0 0.0
    %884 = vmatprep.subr.mxu0 0.0
    %885 = vmatpush1.msra.mxu0 0.0
    %886 = vmatprep.subr.mxu0 0.0
    %887 = vmatpush1.msra.mxu0 0.0
    %888 = vmatprep.subr.mxu0 0.0
    %889 = vmatpush1.msra.mxu0 0.0
    %890 = vmatprep.subr.mxu0 0.0
    %891 = vmatpush1.msra.mxu0 0.0
    %892 = vmatprep.subr.mxu0 0.0
    %893 = vmatpush1.msra.mxu0 0.0
    %894 = vmatprep.subr.mxu0 0.0
    %895 = vmatpush1.msra.mxu0 0.0
    %896 = vmatprep.subr.mxu0 0.0
    %897 = vmatpush1.msra.mxu0 0.0
    %898 = vmatprep.subr.mxu0 0.0
    %899 = vmatpush1.msra.mxu0 0.0
    %900 = vmatprep.subr.mxu0 0.0
    %901 = vmatpush1.msra.mxu0 0.0
    %902 = vmatprep.subr.mxu0 0.0
    %903 = vmatpush1.msra.mxu0 0.0
    %904 = vmatprep.subr.mxu0 0.0
    %905 = vmatpush1.msra.mxu0 0.0
    %906 = vmatprep.subr.mxu0 0.0
    %907 = vmatpush1.msra.mxu0 0.0
    %908 = vmatprep.subr.mxu0 0.0
    %909 = vmatpush1.msra.mxu0 0.0
    %910 = vmatprep.subr.mxu0 0.0
    %911 = vmatpush1.msra.mxu0 0.0
    %912 = vmatprep.subr.mxu0 0.0
    %913 = vmatpush1.msra.mxu0 0.0
    %914 = vmatprep.subr.mxu0 0.0
    %915 = vmatpush1.msra.mxu0 0.0
    %916 = vmatprep.subr.mxu0 0.0
    %917 = vmatpush1.msra.mxu0 0.0
    %918 = vmatprep.subr.mxu0 0.0
    %919 = vmatpush1.msra.mxu0 0.0
    %920 = vmatprep.subr.mxu0 0.0
    %921 = vmatpush1.msra.mxu0 0.0
    %922 = vmatprep.subr.mxu0 0.0
    %923 = vmatpush1.msra.mxu0 0.0
    %924 = vmatprep.subr.mxu0 0.0
    %925 = vmatpush1.msra.mxu0 0.0
    %926 = vmatprep.subr.mxu0 0.0
    %927 = vmatpush1.msra.mxu0 0.0
    %928 = vmatprep.subr.mxu0 0.0
    %929 = vmatpush1.msra.mxu0 0.0
    %930 = vmatprep.subr.mxu0 0.0
    %931 = vmatpush1.msra.mxu0 0.0
    %932 = vmatprep.subr.mxu0 0.0
    %933 = vmatpush1.msra.mxu0 0.0
    %934 = vmatprep.subr.mxu0 0.0
    %935 = vmatpush1.msra.mxu0 0.0
    %936 = vmatprep.mubr.f32.mxu0 0.0
    %937 = vmatmul.mubr.f32.gmra.mrb[0].mxu0 %v870
    %v938 = vpop.f32.mrb[0].mxu0
    %v939 = vadd.f32 0.0, %v938
    %v940 = vpop.f32.mrb[0].mxu0
    %941 = vdwg.mxu0
    %v942 = vadd.f32 %v869, %v939
    %v943 = vxor.u32 %v865, 2147483648
    %v944 = vmul.f32 %v943, 1.442695
    %v945 = vpow.pop %v944
    %v946 = vadd.f32 %v945, 1.0
    %v947 = vrcp.pop %v946
    %v948 = vmul.f32 1.0, %v947
    %v949 = vtanh.pop %v865
    %v950 = vmul.f32 %v948, %v767
    %952 = vrot.lane.b32.xlu0 %v949, 64
    %v953 = vpop.permute.xlu0 %952
    %v955 = vmul.f32 %v948, %v953
    %957 = vrot.lane.b32.xlu0 %v955, 32
    %v958 = vpop.permute.xlu0 %957
    %v960 = vadd.f32 %v950, %v958
    %v961 = vtanh.pop %v960
    %963 = vrot.lane.b32.xlu0 %v961, 64
    %v964 = vpop.permute.xlu0 %963
    %v966 = vmul.f32 %v948, %v964
    %v967 = vxor.u32 %v942, 2147483648
    %v968 = vmul.f32 %v967, 1.442695
    %v969 = vpow.pop %v968
    %v970 = vadd.f32 %v969, 1.0
    %v971 = vrcp.pop %v970
    %v972 = vmul.f32 1.0, %v971
    %v973 = vtanh.pop %v942
    %v974 = vmul.f32 %v972, %v774
    %976 = vrot.lane.b32.xlu0 %v973, 64
    %v977 = vpop.permute.xlu0 %976
    %v979 = vmul.f32 %v972, %v977
    %981 = vrot.lane.b32.xlu0 %v979, 32
    %v982 = vpop.permute.xlu0 %981
    %v984 = vadd.f32 %v974, %v982
    %v985 = vtanh.pop %v984
    %987 = vrot.lane.b32.xlu0 %v985, 64
    %v988 = vpop.permute.xlu0 %987
    %v990 = vmul.f32 %v972, %v988
    %v991 = vsel %vm787, 1, 0
    %992 = vset.pattern.permute.xlu0 0
    %993 = vperm.xlu0 %992, %v991
    %v994 = vpop.permute.xlu0 %993
    %vm995 = vcmp.eq.s32.totalorder %v994, 1
    %v996 = vsel %vm995, %v966, %v766
    %v997 = vsel %vm995, %v960, %v767
    %v998 = vsel %vm788, 1, 0
    %999 = vset.pattern.permute.xlu0 0
    %1000 = vperm.xlu0 %999, %v998
    %v1001 = vpop.permute.xlu0 %1000
    %vm1002 = vcmp.eq.s32.totalorder %v1001, 1
    %v1003 = vsel %vm1002, %v990, %v773
    %v1004 = vsel %vm1002, %v984, %v774
    %1006 = vrot.lane.b32.xlu0 %v996, 32
    %v1007 = vpop.permute.xlu0 %1006
    %s1009 = scalar_lea.vmem [#allocation3], 16
    %1010 = vst.msk [vmem:[%s1009] sm:$0xff] %vm219, %v1007
    %1012 = vrot.lane.b32.xlu0 %v1003, 32
    %v1013 = vpop.permute.xlu0 %1012
    %s1015 = scalar_lea.vmem [#allocation4], 40
    %1016 = vst.msk [vmem:[%s1015] sm:$0xff] %vm219, %v1013
    %vm1017 = vcmp.gt.s32.totalorder %v49, 3
    %vm1018 = vcmp.gt.s32.totalorder %v49, 4
    %s1019 = smul.u32 3, 2
    %s1020 = smul.addr %s1019, 8
    %s1021 = scalar_lea.vmem [#allocation2], %s1020
    %v1022 = vld [vmem:[%s1021] sm:$0xff]
    %v1023 = vsel %vm219, %v1007, 0
    %1025 = vmatprep.subr.mxu0 0.0
    %1026 = vmatpush1.msra.mxu0 %v321
    %1027 = vmatprep.subr.mxu0 0.0
    %1028 = vmatpush1.msra.mxu0 %v323
    %1029 = vmatprep.subr.mxu0 0.0
    %1030 = vmatpush1.msra.mxu0 %v325
    %1031 = vmatprep.subr.mxu0 0.0
    %1032 = vmatpush1.msra.mxu0 %v327
    %1033 = vmatprep.subr.mxu0 0.0
    %1034 = vmatpush1.msra.mxu0 0.0
    %1035 = vmatprep.subr.mxu0 0.0
    %1036 = vmatpush1.msra.mxu0 0.0
    %1037 = vmatprep.subr.mxu0 0.0
    %1038 = vmatpush1.msra.mxu0 0.0
    %1039 = vmatprep.subr.mxu0 0.0
    %1040 = vmatpush1.msra.mxu0 0.0
    %1041 = vmatprep.subr.mxu0 0.0
    %1042 = vmatpush1.msra.mxu0 0.0
    %1043 = vmatprep.subr.mxu0 0.0
    %1044 = vmatpush1.msra.mxu0 0.0
    %1045 = vmatprep.subr.mxu0 0.0
    %1046 = vmatpush1.msra.mxu0 0.0
    %1047 = vmatprep.subr.mxu0 0.0
    %1048 = vmatpush1.msra.mxu0 0.0
    %1049 = vmatprep.subr.mxu0 0.0
    %1050 = vmatpush1.msra.mxu0 0.0
    %1051 = vmatprep.subr.mxu0 0.0
    %1052 = vmatpush1.msra.mxu0 0.0
    %1053 = vmatprep.subr.mxu0 0.0
    %1054 = vmatpush1.msra.mxu0 0.0
    %1055 = vmatprep.subr.mxu0 0.0
    %1056 = vmatpush1.msra.mxu0 0.0
    %1057 = vmatprep.subr.mxu0 0.0
    %1058 = vmatpush1.msra.mxu0 0.0
    %1059 = vmatprep.subr.mxu0 0.0
    %1060 = vmatpush1.msra.mxu0 0.0
    %1061 = vmatprep.subr.mxu0 0.0
    %1062 = vmatpush1.msra.mxu0 0.0
    %1063 = vmatprep.subr.mxu0 0.0
    %1064 = vmatpush1.msra.mxu0 0.0
    %1065 = vmatprep.subr.mxu0 0.0
    %1066 = vmatpush1.msra.mxu0 0.0
    %1067 = vmatprep.subr.mxu0 0.0
    %1068 = vmatpush1.msra.mxu0 0.0
    %1069 = vmatprep.subr.mxu0 0.0
    %1070 = vmatpush1.msra.mxu0 0.0
    %1071 = vmatprep.subr.mxu0 0.0
    %1072 = vmatpush1.msra.mxu0 0.0
    %1073 = vmatprep.subr.mxu0 0.0
    %1074 = vmatpush1.msra.mxu0 0.0
    %1075 = vmatprep.subr.mxu0 0.0
    %1076 = vmatpush1.msra.mxu0 0.0
    %1077 = vmatprep.subr.mxu0 0.0
    %1078 = vmatpush1.msra.mxu0 0.0
    %1079 = vmatprep.subr.mxu0 0.0
    %1080 = vmatpush1.msra.mxu0 0.0
    %1081 = vmatprep.subr.mxu0 0.0
    %1082 = vmatpush1.msra.mxu0 0.0
    %1083 = vmatprep.subr.mxu0 0.0
    %1084 = vmatpush1.msra.mxu0 0.0
    %1085 = vmatprep.subr.mxu0 0.0
    %1086 = vmatpush1.msra.mxu0 0.0
    %1087 = vmatprep.subr.mxu0 0.0
    %1088 = vmatpush1.msra.mxu0 0.0
    %1089 = vmatprep.mubr.f32.mxu0 0.0
    %1090 = vmatmul.mubr.f32.gmra.mrb[0].mxu0 %v1023
    %v1091 = vpop.f32.mrb[0].mxu0
    %v1092 = vadd.f32 0.0, %v1091
    %v1093 = vpop.f32.mrb[0].mxu0
    %1094 = vdwg.mxu0
    %v1095 = vadd.f32 %v1022, %v1092
    %s1096 = smul.u32 4, 2
    %s1097 = smul.addr %s1096, 8
    %s1098 = scalar_lea.vmem [#allocation2], %s1097
    %v1099 = vld [vmem:[%s1098 + $0x8] sm:$0xff]
    %v1100 = vsel %vm219, %v1013, 0
    %1102 = vmatprep.subr.mxu0 0.0
    %1103 = vmatpush1.msra.mxu0 %v322
    %1104 = vmatprep.subr.mxu0 0.0
    %1105 = vmatpush1.msra.mxu0 %v324
    %1106 = vmatprep.subr.mxu0 0.0
    %1107 = vmatpush1.msra.mxu0 %v326
    %1108 = vmatprep.subr.mxu0 0.0
    %1109 = vmatpush1.msra.mxu0 %v328
    %1110 = vmatprep.subr.mxu0 0.0
    %1111 = vmatpush1.msra.mxu0 0.0
    %1112 = vmatprep.subr.mxu0 0.0
    %1113 = vmatpush1.msra.mxu0 0.0
    %1114 = vmatprep.subr.mxu0 0.0
    %1115 = vmatpush1.msra.mxu0 0.0
    %1116 = vmatprep.subr.mxu0 0.0
    %1117 = vmatpush1.msra.mxu0 0.0
    %1118 = vmatprep.subr.mxu0 0.0
    %1119 = vmatpush1.msra.mxu0 0.0
    %1120 = vmatprep.subr.mxu0 0.0
    %1121 = vmatpush1.msra.mxu0 0.0
    %1122 = vmatprep.subr.mxu0 0.0
    %1123 = vmatpush1.msra.mxu0 0.0
    %1124 = vmatprep.subr.mxu0 0.0
    %1125 = vmatpush1.msra.mxu0 0.0
    %1126 = vmatprep.subr.mxu0 0.0
    %1127 = vmatpush1.msra.mxu0 0.0
    %1128 = vmatprep.subr.mxu0 0.0
    %1129 = vmatpush1.msra.mxu0 0.0
    %1130 = vmatprep.subr.mxu0 0.0
    %1131 = vmatpush1.msra.mxu0 0.0
    %1132 = vmatprep.subr.mxu0 0.0
    %1133 = vmatpush1.msra.mxu0 0.0
    %1134 = vmatprep.subr.mxu0 0.0
    %1135 = vmatpush1.msra.mxu0 0.0
    %1136 = vmatprep.subr.mxu0 0.0
    %1137 = vmatpush1.msra.mxu0 0.0
    %1138 = vmatprep.subr.mxu0 0.0
    %1139 = vmatpush1.msra.mxu0 0.0
    %1140 = vmatprep.subr.mxu0 0.0
    %1141 = vmatpush1.msra.mxu0 0.0
    %1142 = vmatprep.subr.mxu0 0.0
    %1143 = vmatpush1.msra.mxu0 0.0
    %1144 = vmatprep.subr.mxu0 0.0
    %1145 = vmatpush1.msra.mxu0 0.0
    %1146 = vmatprep.subr.mxu0 0.0
    %1147 = vmatpush1.msra.mxu0 0.0
    %1148 = vmatprep.subr.mxu0 0.0
    %1149 = vmatpush1.msra.mxu0 0.0
    %1150 = vmatprep.subr.mxu0 0.0
    %1151 = vmatpush1.msra.mxu0 0.0
    %1152 = vmatprep.subr.mxu0 0.0
    %1153 = vmatpush1.msra.mxu0 0.0
    %1154 = vmatprep.subr.mxu0 0.0
    %1155 = vmatpush1.msra.mxu0 0.0
    %1156 = vmatprep.subr.mxu0 0.0
    %1157 = vmatpush1.msra.mxu0 0.0
    %1158 = vmatprep.subr.mxu0 0.0
    %1159 = vmatpush1.msra.mxu0 0.0
    %1160 = vmatprep.subr.mxu0 0.0
    %1161 = vmatpush1.msra.mxu0 0.0
    %1162 = vmatprep.subr.mxu0 0.0
    %1163 = vmatpush1.msra.mxu0 0.0
    %1164 = vmatprep.subr.mxu0 0.0
    %1165 = vmatpush1.msra.mxu0 0.0
    %1166 = vmatprep.mubr.f32.mxu0 0.0
    %1167 = vmatmul.mubr.f32.gmra.mrb[0].mxu0 %v1100
    %v1168 = vpop.f32.mrb[0].mxu0
    %v1169 = vadd.f32 0.0, %v1168
    %v1170 = vpop.f32.mrb[0].mxu0
    %1171 = vdwg.mxu0
    %v1172 = vadd.f32 %v1099, %v1169
    %v1173 = vxor.u32 %v1095, 2147483648
    %v1174 = vmul.f32 %v1173, 1.442695
    %v1175 = vpow.pop %v1174
    %v1176 = vadd.f32 %v1175, 1.0
    %v1177 = vrcp.pop %v1176
    %v1178 = vmul.f32 1.0, %v1177
    %v1179 = vtanh.pop %v1095
    %v1180 = vmul.f32 %v1178, %v997
    %1182 = vrot.lane.b32.xlu0 %v1179, 64
    %v1183 = vpop.permute.xlu0 %1182
    %v1185 = vmul.f32 %v1178, %v1183
    %1187 = vrot.lane.b32.xlu0 %v1185, 32
    %v1188 = vpop.permute.xlu0 %1187
    %v1190 = vadd.f32 %v1180, %v1188
    %v1191 = vtanh.pop %v1190
    %1193 = vrot.lane.b32.xlu0 %v1191, 64
    %v1194 = vpop.permute.xlu0 %1193
    %v1196 = vmul.f32 %v1178, %v1194
    %v1197 = vxor.u32 %v1172, 2147483648
    %v1198 = vmul.f32 %v1197, 1.442695
    %v1199 = vpow.pop %v1198
    %v1200 = vadd.f32 %v1199, 1.0
    %v1201 = vrcp.pop %v1200
    %v1202 = vmul.f32 1.0, %v1201
    %v1203 = vtanh.pop %v1172
    %v1204 = vmul.f32 %v1202, %v1004
    %1206 = vrot.lane.b32.xlu0 %v1203, 64
    %v1207 = vpop.permute.xlu0 %1206
    %v1209 = vmul.f32 %v1202, %v1207
    %1211 = vrot.lane.b32.xlu0 %v1209, 32
    %v1212 = vpop.permute.xlu0 %1211
    %v1214 = vadd.f32 %v1204, %v1212
    %v1215 = vtanh.pop %v1214
    %1217 = vrot.lane.b32.xlu0 %v1215, 64
    %v1218 = vpop.permute.xlu0 %1217
    %v1220 = vmul.f32 %v1202, %v1218
    %v1221 = vsel %vm1017, 1, 0
    %1222 = vset.pattern.permute.xlu0 0
    %1223 = vperm.xlu0 %1222, %v1221
    %v1224 = vpop.permute.xlu0 %1223
    %vm1225 = vcmp.eq.s32.totalorder %v1224, 1
    %v1226 = vsel %vm1225, %v1196, %v996
    %v1227 = vsel %vm1225, %v1190, %v997
    %v1228 = vsel %vm1018, 1, 0
    %1229 = vset.pattern.permute.xlu0 0
    %1230 = vperm.xlu0 %1229, %v1228
    %v1231 = vpop.permute.xlu0 %1230
    %vm1232 = vcmp.eq.s32.totalorder %v1231, 1
    %v1233 = vsel %vm1232, %v1220, %v1003
    %v1234 = vsel %vm1232, %v1214, %v1004
    %1236 = vrot.lane.b32.xlu0 %v1226, 32
    %v1237 = vpop.permute.xlu0 %1236
    %s1239 = scalar_lea.vmem [#allocation3], 24
    %1240 = vst.msk [vmem:[%s1239] sm:$0xff] %vm219, %v1237
    %1242 = vrot.lane.b32.xlu0 %v1233, 32
    %v1243 = vpop.permute.xlu0 %1242
    %s1245 = scalar_lea.vmem [#allocation4], 32
    %1246 = vst.msk [vmem:[%s1245] sm:$0xff] %vm219, %v1243
    %v1247 = vld [vmem:[%s1098] sm:$0xff]
    %v1248 = vsel %vm219, %v1237, 0
    %1250 = vmatprep.subr.mxu0 0.0
    %1251 = vmatpush1.msra.mxu0 %v321
    %1252 = vmatprep.subr.mxu0 0.0
    %1253 = vmatpush1.msra.mxu0 %v323
    %1254 = vmatprep.subr.mxu0 0.0
    %1255 = vmatpush1.msra.mxu0 %v325
    %1256 = vmatprep.subr.mxu0 0.0
    %1257 = vmatpush1.msra.mxu0 %v327
    %1258 = vmatprep.subr.mxu0 0.0
    %1259 = vmatpush1.msra.mxu0 0.0
    %1260 = vmatprep.subr.mxu0 0.0
    %1261 = vmatpush1.msra.mxu0 0.0
    %1262 = vmatprep.subr.mxu0 0.0
    %1263 = vmatpush1.msra.mxu0 0.0
    %1264 = vmatprep.subr.mxu0 0.0
    %1265 = vmatpush1.msra.mxu0 0.0
    %1266 = vmatprep.subr.mxu0 0.0
    %1267 = vmatpush1.msra.mxu0 0.0
    %1268 = vmatprep.subr.mxu0 0.0
    %1269 = vmatpush1.msra.mxu0 0.0
    %1270 = vmatprep.subr.mxu0 0.0
    %1271 = vmatpush1.msra.mxu0 0.0
    %1272 = vmatprep.subr.mxu0 0.0
    %1273 = vmatpush1.msra.mxu0 0.0
    %1274 = vmatprep.subr.mxu0 0.0
    %1275 = vmatpush1.msra.mxu0 0.0
    %1276 = vmatprep.subr.mxu0 0.0
    %1277 = vmatpush1.msra.mxu0 0.0
    %1278 = vmatprep.subr.mxu0 0.0
    %1279 = vmatpush1.msra.mxu0 0.0
    %1280 = vmatprep.subr.mxu0 0.0
    %1281 = vmatpush1.msra.mxu0 0.0
    %1282 = vmatprep.subr.mxu0 0.0
    %1283 = vmatpush1.msra.mxu0 0.0
    %1284 = vmatprep.subr.mxu0 0.0
    %1285 = vmatpush1.msra.mxu0 0.0
    %1286 = vmatprep.subr.mxu0 0.0
    %1287 = vmatpush1.msra.mxu0 0.0
    %1288 = vmatprep.subr.mxu0 0.0
    %1289 = vmatpush1.msra.mxu0 0.0
    %1290 = vmatprep.subr.mxu0 0.0
    %1291 = vmatpush1.msra.mxu0 0.0
    %1292 = vmatprep.subr.mxu0 0.0
    %1293 = vmatpush1.msra.mxu0 0.0
    %1294 = vmatprep.subr.mxu0 0.0
    %1295 = vmatpush1.msra.mxu0 0.0
    %1296 = vmatprep.subr.mxu0 0.0
    %1297 = vmatpush1.msra.mxu0 0.0
    %1298 = vmatprep.subr.mxu0 0.0
    %1299 = vmatpush1.msra.mxu0 0.0
    %1300 = vmatprep.subr.mxu0 0.0
    %1301 = vmatpush1.msra.mxu0 0.0
    %1302 = vmatprep.subr.mxu0 0.0
    %1303 = vmatpush1.msra.mxu0 0.0
    %1304 = vmatprep.subr.mxu0 0.0
    %1305 = vmatpush1.msra.mxu0 0.0
    %1306 = vmatprep.subr.mxu0 0.0
    %1307 = vmatpush1.msra.mxu0 0.0
    %1308 = vmatprep.subr.mxu0 0.0
    %1309 = vmatpush1.msra.mxu0 0.0
    %1310 = vmatprep.subr.mxu0 0.0
    %1311 = vmatpush1.msra.mxu0 0.0
    %1312 = vmatprep.subr.mxu0 0.0
    %1313 = vmatpush1.msra.mxu0 0.0
    %1314 = vmatprep.mubr.f32.mxu0 0.0
    %1315 = vmatmul.mubr.f32.gmra.mrb[0].mxu0 %v1248
    %v1316 = vpop.f32.mrb[0].mxu0
    %v1317 = vadd.f32 0.0, %v1316
    %v1318 = vpop.f32.mrb[0].mxu0
    %1319 = vdwg.mxu0
    %v1320 = vadd.f32 %v1247, %v1317
    %v1321 = vld [vmem:[%s1021 + $0x8] sm:$0xff]
    %v1322 = vsel %vm219, %v1243, 0
    %1324 = vmatprep.subr.mxu0 0.0
    %1325 = vmatpush1.msra.mxu0 %v322
    %1326 = vmatprep.subr.mxu0 0.0
    %1327 = vmatpush1.msra.mxu0 %v324
    %1328 = vmatprep.subr.mxu0 0.0
    %1329 = vmatpush1.msra.mxu0 %v326
    %1330 = vmatprep.subr.mxu0 0.0
    %1331 = vmatpush1.msra.mxu0 %v328
    %1332 = vmatprep.subr.mxu0 0.0
    %1333 = vmatpush1.msra.mxu0 0.0
    %1334 = vmatprep.subr.mxu0 0.0
    %1335 = vmatpush1.msra.mxu0 0.0
    %1336 = vmatprep.subr.mxu0 0.0
    %1337 = vmatpush1.msra.mxu0 0.0
    %1338 = vmatprep.subr.mxu0 0.0
    %1339 = vmatpush1.msra.mxu0 0.0
    %1340 = vmatprep.subr.mxu0 0.0
    %1341 = vmatpush1.msra.mxu0 0.0
    %1342 = vmatprep.subr.mxu0 0.0
    %1343 = vmatpush1.msra.mxu0 0.0
    %1344 = vmatprep.subr.mxu0 0.0
    %1345 = vmatpush1.msra.mxu0 0.0
    %1346 = vmatprep.subr.mxu0 0.0
    %1347 = vmatpush1.msra.mxu0 0.0
    %1348 = vmatprep.subr.mxu0 0.0
    %1349 = vmatpush1.msra.mxu0 0.0
    %1350 = vmatprep.subr.mxu0 0.0
    %1351 = vmatpush1.msra.mxu0 0.0
    %1352 = vmatprep.subr.mxu0 0.0
    %1353 = vmatpush1.msra.mxu0 0.0
    %1354 = vmatprep.subr.mxu0 0.0
    %1355 = vmatpush1.msra.mxu0 0.0
    %1356 = vmatprep.subr.mxu0 0.0
    %1357 = vmatpush1.msra.mxu0 0.0
    %1358 = vmatprep.subr.mxu0 0.0
    %1359 = vmatpush1.msra.mxu0 0.0
    %1360 = vmatprep.subr.mxu0 0.0
    %1361 = vmatpush1.msra.mxu0 0.0
    %1362 = vmatprep.subr.mxu0 0.0
    %1363 = vmatpush1.msra.mxu0 0.0
    %1364 = vmatprep.subr.mxu0 0.0
    %1365 = vmatpush1.msra.mxu0 0.0
    %1366 = vmatprep.subr.mxu0 0.0
    %1367 = vmatpush1.msra.mxu0 0.0
    %1368 = vmatprep.subr.mxu0 0.0
    %1369 = vmatpush1.msra.mxu0 0.0
    %1370 = vmatprep.subr.mxu0 0.0
    %1371 = vmatpush1.msra.mxu0 0.0
    %1372 = vmatprep.subr.mxu0 0.0
    %1373 = vmatpush1.msra.mxu0 0.0
    %1374 = vmatprep.subr.mxu0 0.0
    %1375 = vmatpush1.msra.mxu0 0.0
    %1376 = vmatprep.subr.mxu0 0.0
    %1377 = vmatpush1.msra.mxu0 0.0
    %1378 = vmatprep.subr.mxu0 0.0
    %1379 = vmatpush1.msra.mxu0 0.0
    %1380 = vmatprep.subr.mxu0 0.0
    %1381 = vmatpush1.msra.mxu0 0.0
    %1382 = vmatprep.subr.mxu0 0.0
    %1383 = vmatpush1.msra.mxu0 0.0
    %1384 = vmatprep.subr.mxu0 0.0
    %1385 = vmatpush1.msra.mxu0 0.0
    %1386 = vmatprep.subr.mxu0 0.0
    %1387 = vmatpush1.msra.mxu0 0.0
    %1388 = vmatprep.mubr.f32.mxu0 0.0
    %1389 = vmatmul.mubr.f32.gmra.mrb[0].mxu0 %v1322
    %v1390 = vpop.f32.mrb[0].mxu0
    %v1391 = vadd.f32 0.0, %v1390
    %v1392 = vpop.f32.mrb[0].mxu0
    %1393 = vdwg.mxu0
    %v1394 = vadd.f32 %v1321, %v1391
    %v1395 = vxor.u32 %v1320, 2147483648
    %v1396 = vmul.f32 %v1395, 1.442695
    %v1397 = vpow.pop %v1396
    %v1398 = vadd.f32 %v1397, 1.0
    %v1399 = vrcp.pop %v1398
    %v1400 = vmul.f32 1.0, %v1399
    %v1401 = vtanh.pop %v1320
    %v1402 = vmul.f32 %v1400, %v1227
    %1404 = vrot.lane.b32.xlu0 %v1401, 64
    %v1405 = vpop.permute.xlu0 %1404
    %v1407 = vmul.f32 %v1400, %v1405
    %1409 = vrot.lane.b32.xlu0 %v1407, 32
    %v1410 = vpop.permute.xlu0 %1409
    %v1412 = vadd.f32 %v1402, %v1410
    %v1413 = vtanh.pop %v1412
    %1415 = vrot.lane.b32.xlu0 %v1413, 64
    %v1416 = vpop.permute.xlu0 %1415
    %v1418 = vmul.f32 %v1400, %v1416
    %v1419 = vxor.u32 %v1394, 2147483648
    %v1420 = vmul.f32 %v1419, 1.442695
    %v1421 = vpow.pop %v1420
    %v1422 = vadd.f32 %v1421, 1.0
    %v1423 = vrcp.pop %v1422
    %v1424 = vmul.f32 1.0, %v1423
    %v1425 = vtanh.pop %v1394
    %v1426 = vmul.f32 %v1424, %v1234
    %1428 = vrot.lane.b32.xlu0 %v1425, 64
    %v1429 = vpop.permute.xlu0 %1428
    %v1431 = vmul.f32 %v1424, %v1429
    %1433 = vrot.lane.b32.xlu0 %v1431, 32
    %v1434 = vpop.permute.xlu0 %1433
    %v1436 = vadd.f32 %v1426, %v1434
    %v1437 = vtanh.pop %v1436
    %1439 = vrot.lane.b32.xlu0 %v1437, 64
    %v1440 = vpop.permute.xlu0 %1439
    %v1442 = vmul.f32 %v1424, %v1440
    %v1443 = vsel %vm1232, %v1418, %v1226
    %v1444 = vsel %vm1232, %v1412, %v1227
    %v1445 = vsel %vm1225, %v1442, %v1233
    %v1446 = vsel %vm1225, %v1436, %v1234
    %1448 = vrot.lane.b32.xlu0 %v1443, 32
    %v1449 = vpop.permute.xlu0 %1448
    %s1451 = scalar_lea.vmem [#allocation3], 32
    %1452 = vst.msk [vmem:[%s1451] sm:$0xff] %vm219, %v1449
    %1454 = vrot.lane.b32.xlu0 %v1445, 32
    %v1455 = vpop.permute.xlu0 %1454
    %s1457 = scalar_lea.vmem [#allocation4], 24
    %1458 = vst.msk [vmem:[%s1457] sm:$0xff] %vm219, %v1455
    %v1459 = vld [vmem:[%s868] sm:$0xff]
    %v1460 = vsel %vm219, %v1449, 0
    %1462 = vmatprep.subr.mxu0 0.0
    %1463 = vmatpush1.msra.mxu0 %v321
    %1464 = vmatprep.subr.mxu0 0.0
    %1465 = vmatpush1.msra.mxu0 %v323
    %1466 = vmatprep.subr.mxu0 0.0
    %1467 = vmatpush1.msra.mxu0 %v325
    %1468 = vmatprep.subr.mxu0 0.0
    %1469 = vmatpush1.msra.mxu0 %v327
    %1470 = vmatprep.subr.mxu0 0.0
    %1471 = vmatpush1.msra.mxu0 0.0
    %1472 = vmatprep.subr.mxu0 0.0
    %1473 = vmatpush1.msra.mxu0 0.0
    %1474 = vmatprep.subr.mxu0 0.0
    %1475 = vmatpush1.msra.mxu0 0.0
    %1476 = vmatprep.subr.mxu0 0.0
    %1477 = vmatpush1.msra.mxu0 0.0
    %1478 = vmatprep.subr.mxu0 0.0
    %1479 = vmatpush1.msra.mxu0 0.0
    %1480 = vmatprep.subr.mxu0 0.0
    %1481 = vmatpush1.msra.mxu0 0.0
    %1482 = vmatprep.subr.mxu0 0.0
    %1483 = vmatpush1.msra.mxu0 0.0
    %1484 = vmatprep.subr.mxu0 0.0
    %1485 = vmatpush1.msra.mxu0 0.0
    %1486 = vmatprep.subr.mxu0 0.0
    %1487 = vmatpush1.msra.mxu0 0.0
    %1488 = vmatprep.subr.mxu0 0.0
    %1489 = vmatpush1.msra.mxu0 0.0
    %1490 = vmatprep.subr.mxu0 0.0
    %1491 = vmatpush1.msra.mxu0 0.0
    %1492 = vmatprep.subr.mxu0 0.0
    %1493 = vmatpush1.msra.mxu0 0.0
    %1494 = vmatprep.subr.mxu0 0.0
    %1495 = vmatpush1.msra.mxu0 0.0
    %1496 = vmatprep.subr.mxu0 0.0
    %1497 = vmatpush1.msra.mxu0 0.0
    %1498 = vmatprep.subr.mxu0 0.0
    %1499 = vmatpush1.msra.mxu0 0.0
    %1500 = vmatprep.subr.mxu0 0.0
    %1501 = vmatpush1.msra.mxu0 0.0
    %1502 = vmatprep.subr.mxu0 0.0
    %1503 = vmatpush1.msra.mxu0 0.0
    %1504 = vmatprep.subr.mxu0 0.0
    %1505 = vmatpush1.msra.mxu0 0.0
    %1506 = vmatprep.subr.mxu0 0.0
    %1507 = vmatpush1.msra.mxu0 0.0
    %1508 = vmatprep.subr.mxu0 0.0
    %1509 = vmatpush1.msra.mxu0 0.0
    %1510 = vmatprep.subr.mxu0 0.0
    %1511 = vmatpush1.msra.mxu0 0.0
    %1512 = vmatprep.subr.mxu0 0.0
    %1513 = vmatpush1.msra.mxu0 0.0
    %1514 = vmatprep.subr.mxu0 0.0
    %1515 = vmatpush1.msra.mxu0 0.0
    %1516 = vmatprep.subr.mxu0 0.0
    %1517 = vmatpush1.msra.mxu0 0.0
    %1518 = vmatprep.subr.mxu0 0.0
    %1519 = vmatpush1.msra.mxu0 0.0
    %1520 = vmatprep.subr.mxu0 0.0
    %1521 = vmatpush1.msra.mxu0 0.0
    %1522 = vmatprep.subr.mxu0 0.0
    %1523 = vmatpush1.msra.mxu0 0.0
    %1524 = vmatprep.subr.mxu0 0.0
    %1525 = vmatpush1.msra.mxu0 0.0
    %1526 = vmatprep.mubr.f32.mxu0 0.0
    %1527 = vmatmul.mubr.f32.gmra.mrb[0].mxu0 %v1460
    %v1528 = vpop.f32.mrb[0].mxu0
    %v1529 = vadd.f32 0.0, %v1528
    %v1530 = vpop.f32.mrb[0].mxu0
    %1531 = vdwg.mxu0
    %v1532 = vadd.f32 %v1459, %v1529
    %v1533 = vld [vmem:[%s791 + $0x8] sm:$0xff]
    %v1534 = vsel %vm219, %v1455, 0
    %1536 = vmatprep.subr.mxu0 0.0
    %1537 = vmatpush1.msra.mxu0 %v322
    %1538 = vmatprep.subr.mxu0 0.0
    %1539 = vmatpush1.msra.mxu0 %v324
    %1540 = vmatprep.subr.mxu0 0.0
    %1541 = vmatpush1.msra.mxu0 %v326
    %1542 = vmatprep.subr.mxu0 0.0
    %1543 = vmatpush1.msra.mxu0 %v328
    %1544 = vmatprep.subr.mxu0 0.0
    %1545 = vmatpush1.msra.mxu0 0.0
    %1546 = vmatprep.subr.mxu0 0.0
    %1547 = vmatpush1.msra.mxu0 0.0
    %1548 = vmatprep.subr.mxu0 0.0
    %1549 = vmatpush1.msra.mxu0 0.0
    %1550 = vmatprep.subr.mxu0 0.0
    %1551 = vmatpush1.msra.mxu0 0.0
    %1552 = vmatprep.subr.mxu0 0.0
    %1553 = vmatpush1.msra.mxu0 0.0
    %1554 = vmatprep.subr.mxu0 0.0
    %1555 = vmatpush1.msra.mxu0 0.0
    %1556 = vmatprep.subr.mxu0 0.0
    %1557 = vmatpush1.msra.mxu0 0.0
    %1558 = vmatprep.subr.mxu0 0.0
    %1559 = vmatpush1.msra.mxu0 0.0
    %1560 = vmatprep.subr.mxu0 0.0
    %1561 = vmatpush1.msra.mxu0 0.0
    %1562 = vmatprep.subr.mxu0 0.0
    %1563 = vmatpush1.msra.mxu0 0.0
    %1564 = vmatprep.subr.mxu0 0.0
    %1565 = vmatpush1.msra.mxu0 0.0
    %1566 = vmatprep.subr.mxu0 0.0
    %1567 = vmatpush1.msra.mxu0 0.0
    %1568 = vmatprep.subr.mxu0 0.0
    %1569 = vmatpush1.msra.mxu0 0.0
    %1570 = vmatprep.subr.mxu0 0.0
    %1571 = vmatpush1.msra.mxu0 0.0
    %1572 = vmatprep.subr.mxu0 0.0
    %1573 = vmatpush1.msra.mxu0 0.0
    %1574 = vmatprep.subr.mxu0 0.0
    %1575 = vmatpush1.msra.mxu0 0.0
    %1576 = vmatprep.subr.mxu0 0.0
    %1577 = vmatpush1.msra.mxu0 0.0
    %1578 = vmatprep.subr.mxu0 0.0
    %1579 = vmatpush1.msra.mxu0 0.0
    %1580 = vmatprep.subr.mxu0 0.0
    %1581 = vmatpush1.msra.mxu0 0.0
    %1582 = vmatprep.subr.mxu0 0.0
    %1583 = vmatpush1.msra.mxu0 0.0
    %1584 = vmatprep.subr.mxu0 0.0
    %1585 = vmatpush1.msra.mxu0 0.0
    %1586 = vmatprep.subr.mxu0 0.0
    %1587 = vmatpush1.msra.mxu0 0.0
    %1588 = vmatprep.subr.mxu0 0.0
    %1589 = vmatpush1.msra.mxu0 0.0
    %1590 = vmatprep.subr.mxu0 0.0
    %1591 = vmatpush1.msra.mxu0 0.0
    %1592 = vmatprep.subr.mxu0 0.0
    %1593 = vmatpush1.msra.mxu0 0.0
    %1594 = vmatprep.subr.mxu0 0.0
    %1595 = vmatpush1.msra.mxu0 0.0
    %1596 = vmatprep.subr.mxu0 0.0
    %1597 = vmatpush1.msra.mxu0 0.0
    %1598 = vmatprep.subr.mxu0 0.0
    %1599 = vmatpush1.msra.mxu0 0.0
    %1600 = vmatprep.mubr.f32.mxu0 0.0
    %1601 = vmatmul.mubr.f32.gmra.mrb[0].mxu0 %v1534
    %v1602 = vpop.f32.mrb[0].mxu0
    %v1603 = vadd.f32 0.0, %v1602
    %v1604 = vpop.f32.mrb[0].mxu0
    %1605 = vdwg.mxu0
    %v1606 = vadd.f32 %v1533, %v1603
    %v1607 = vxor.u32 %v1532, 2147483648
    %v1608 = vmul.f32 %v1607, 1.442695
    %v1609 = vpow.pop %v1608
    %v1610 = vadd.f32 %v1609, 1.0
    %v1611 = vrcp.pop %v1610
    %v1612 = vmul.f32 1.0, %v1611
    %v1613 = vtanh.pop %v1532
    %v1614 = vmul.f32 %v1612, %v1444
    %1616 = vrot.lane.b32.xlu0 %v1613, 64
    %v1617 = vpop.permute.xlu0 %1616
    %v1619 = vmul.f32 %v1612, %v1617
    %1621 = vrot.lane.b32.xlu0 %v1619, 32
    %v1622 = vpop.permute.xlu0 %1621
    %v1624 = vadd.f32 %v1614, %v1622
    %v1625 = vtanh.pop %v1624
    %1627 = vrot.lane.b32.xlu0 %v1625, 64
    %v1628 = vpop.permute.xlu0 %1627
    %v1630 = vmul.f32 %v1612, %v1628
    %v1631 = vxor.u32 %v1606, 2147483648
    %v1632 = vmul.f32 %v1631, 1.442695
    %v1633 = vpow.pop %v1632
    %v1634 = vadd.f32 %v1633, 1.0
    %v1635 = vrcp.pop %v1634
    %v1636 = vmul.f32 1.0, %v1635
    %v1637 = vtanh.pop %v1606
    %v1638 = vmul.f32 %v1636, %v1446
    %1640 = vrot.lane.b32.xlu0 %v1637, 64
    %v1641 = vpop.permute.xlu0 %1640
    %v1643 = vmul.f32 %v1636, %v1641
    %1645 = vrot.lane.b32.xlu0 %v1643, 32
    %v1646 = vpop.permute.xlu0 %1645
    %v1648 = vadd.f32 %v1638, %v1646
    %v1649 = vtanh.pop %v1648
    %1651 = vrot.lane.b32.xlu0 %v1649, 64
    %v1652 = vpop.permute.xlu0 %1651
    %v1654 = vmul.f32 %v1636, %v1652
    %v1655 = vsel %vm1002, %v1630, %v1443
    %v1656 = vsel %vm1002, %v1624, %v1444
    %v1657 = vsel %vm995, %v1654, %v1445
    %v1658 = vsel %vm995, %v1648, %v1446
    %1660 = vrot.lane.b32.xlu0 %v1655, 32
    %v1661 = vpop.permute.xlu0 %1660
    %s1663 = scalar_lea.vmem [#allocation3], 40
    %1664 = vst.msk [vmem:[%s1663] sm:$0xff] %vm219, %v1661
    %1666 = vrot.lane.b32.xlu0 %v1657, 32
    %v1667 = vpop.permute.xlu0 %1666
    %s1669 = scalar_lea.vmem [#allocation4], 16
    %1670 = vst.msk [vmem:[%s1669] sm:$0xff] %vm219, %v1667
    %v1671 = vld [vmem:[%s638] sm:$0xff]
    %v1672 = vsel %vm219, %v1661, 0
    %1674 = vmatprep.subr.mxu0 0.0
    %1675 = vmatpush1.msra.mxu0 %v321
    %1676 = vmatprep.subr.mxu0 0.0
    %1677 = vmatpush1.msra.mxu0 %v323
    %1678 = vmatprep.subr.mxu0 0.0
    %1679 = vmatpush1.msra.mxu0 %v325
    %1680 = vmatprep.subr.mxu0 0.0
    %1681 = vmatpush1.msra.mxu0 %v327
    %1682 = vmatprep.subr.mxu0 0.0
    %1683 = vmatpush1.msra.mxu0 0.0
    %1684 = vmatprep.subr.mxu0 0.0
    %1685 = vmatpush1.msra.mxu0 0.0
    %1686 = vmatprep.subr.mxu0 0.0
    %1687 = vmatpush1.msra.mxu0 0.0
    %1688 = vmatprep.subr.mxu0 0.0
    %1689 = vmatpush1.msra.mxu0 0.0
    %1690 = vmatprep.subr.mxu0 0.0
    %1691 = vmatpush1.msra.mxu0 0.0
    %1692 = vmatprep.subr.mxu0 0.0
    %1693 = vmatpush1.msra.mxu0 0.0
    %1694 = vmatprep.subr.mxu0 0.0
    %1695 = vmatpush1.msra.mxu0 0.0
    %1696 = vmatprep.subr.mxu0 0.0
    %1697 = vmatpush1.msra.mxu0 0.0
    %1698 = vmatprep.subr.mxu0 0.0
    %1699 = vmatpush1.msra.mxu0 0.0
    %1700 = vmatprep.subr.mxu0 0.0
    %1701 = vmatpush1.msra.mxu0 0.0
    %1702 = vmatprep.subr.mxu0 0.0
    %1703 = vmatpush1.msra.mxu0 0.0
    %1704 = vmatprep.subr.mxu0 0.0
    %1705 = vmatpush1.msra.mxu0 0.0
    %1706 = vmatprep.subr.mxu0 0.0
    %1707 = vmatpush1.msra.mxu0 0.0
    %1708 = vmatprep.subr.mxu0 0.0
    %1709 = vmatpush1.msra.mxu0 0.0
    %1710 = vmatprep.subr.mxu0 0.0
    %1711 = vmatpush1.msra.mxu0 0.0
    %1712 = vmatprep.subr.mxu0 0.0
    %1713 = vmatpush1.msra.mxu0 0.0
    %1714 = vmatprep.subr.mxu0 0.0
    %1715 = vmatpush1.msra.mxu0 0.0
    %1716 = vmatprep.subr.mxu0 0.0
    %1717 = vmatpush1.msra.mxu0 0.0
    %1718 = vmatprep.subr.mxu0 0.0
    %1719 = vmatpush1.msra.mxu0 0.0
    %1720 = vmatprep.subr.mxu0 0.0
    %1721 = vmatpush1.msra.mxu0 0.0
    %1722 = vmatprep.subr.mxu0 0.0
    %1723 = vmatpush1.msra.mxu0 0.0
    %1724 = vmatprep.subr.mxu0 0.0
    %1725 = vmatpush1.msra.mxu0 0.0
    %1726 = vmatprep.subr.mxu0 0.0
    %1727 = vmatpush1.msra.mxu0 0.0
    %1728 = vmatprep.subr.mxu0 0.0
    %1729 = vmatpush1.msra.mxu0 0.0
    %1730 = vmatprep.subr.mxu0 0.0
    %1731 = vmatpush1.msra.mxu0 0.0
    %1732 = vmatprep.subr.mxu0 0.0
    %1733 = vmatpush1.msra.mxu0 0.0
    %1734 = vmatprep.subr.mxu0 0.0
    %1735 = vmatpush1.msra.mxu0 0.0
    %1736 = vmatprep.subr.mxu0 0.0
    %1737 = vmatpush1.msra.mxu0 0.0
    %1738 = vmatprep.mubr.f32.mxu0 0.0
    %1739 = vmatmul.mubr.f32.gmra.mrb[0].mxu0 %v1672
    %v1740 = vpop.f32.mrb[0].mxu0
    %v1741 = vadd.f32 0.0, %v1740
    %v1742 = vpop.f32.mrb[0].mxu0
    %1743 = vdwg.mxu0
    %v1744 = vadd.f32 %v1671, %v1741
    %v1745 = vld [vmem:[%s561 + $0x8] sm:$0xff]
    %v1746 = vsel %vm219, %v1667, 0
    %1748 = vmatprep.subr.mxu0 0.0
    %1749 = vmatpush1.msra.mxu0 %v322
    %1750 = vmatprep.subr.mxu0 0.0
    %1751 = vmatpush1.msra.mxu0 %v324
    %1752 = vmatprep.subr.mxu0 0.0
    %1753 = vmatpush1.msra.mxu0 %v326
    %1754 = vmatprep.subr.mxu0 0.0
    %1755 = vmatpush1.msra.mxu0 %v328
    %1756 = vmatprep.subr.mxu0 0.0
    %1757 = vmatpush1.msra.mxu0 0.0
    %1758 = vmatprep.subr.mxu0 0.0
    %1759 = vmatpush1.msra.mxu0 0.0
    %1760 = vmatprep.subr.mxu0 0.0
    %1761 = vmatpush1.msra.mxu0 0.0
    %1762 = vmatprep.subr.mxu0 0.0
    %1763 = vmatpush1.msra.mxu0 0.0
    %1764 = vmatprep.subr.mxu0 0.0
    %1765 = vmatpush1.msra.mxu0 0.0
    %1766 = vmatprep.subr.mxu0 0.0
    %1767 = vmatpush1.msra.mxu0 0.0
    %1768 = vmatprep.subr.mxu0 0.0
    %1769 = vmatpush1.msra.mxu0 0.0
    %1770 = vmatprep.subr.mxu0 0.0
    %1771 = vmatpush1.msra.mxu0 0.0
    %1772 = vmatprep.subr.mxu0 0.0
    %1773 = vmatpush1.msra.mxu0 0.0
    %1774 = vmatprep.subr.mxu0 0.0
    %1775 = vmatpush1.msra.mxu0 0.0
    %1776 = vmatprep.subr.mxu0 0.0
    %1777 = vmatpush1.msra.mxu0 0.0
    %1778 = vmatprep.subr.mxu0 0.0
    %1779 = vmatpush1.msra.mxu0 0.0
    %1780 = vmatprep.subr.mxu0 0.0
    %1781 = vmatpush1.msra.mxu0 0.0
    %1782 = vmatprep.subr.mxu0 0.0
    %1783 = vmatpush1.msra.mxu0 0.0
    %1784 = vmatprep.subr.mxu0 0.0
    %1785 = vmatpush1.msra.mxu0 0.0
    %1786 = vmatprep.subr.mxu0 0.0
    %1787 = vmatpush1.msra.mxu0 0.0
    %1788 = vmatprep.subr.mxu0 0.0
    %1789 = vmatpush1.msra.mxu0 0.0
    %1790 = vmatprep.subr.mxu0 0.0
    %1791 = vmatpush1.msra.mxu0 0.0
    %1792 = vmatprep.subr.mxu0 0.0
    %1793 = vmatpush1.msra.mxu0 0.0
    %1794 = vmatprep.subr.mxu0 0.0
    %1795 = vmatpush1.msra.mxu0 0.0
    %1796 = vmatprep.subr.mxu0 0.0
    %1797 = vmatpush1.msra.mxu0 0.0
    %1798 = vmatprep.subr.mxu0 0.0
    %1799 = vmatpush1.msra.mxu0 0.0
    %1800 = vmatprep.subr.mxu0 0.0
    %1801 = vmatpush1.msra.mxu0 0.0
    %1802 = vmatprep.subr.mxu0 0.0
    %1803 = vmatpush1.msra.mxu0 0.0
    %1804 = vmatprep.subr.mxu0 0.0
    %1805 = vmatpush1.msra.mxu0 0.0
    %1806 = vmatprep.subr.mxu0 0.0
    %1807 = vmatpush1.msra.mxu0 0.0
    %1808 = vmatprep.subr.mxu0 0.0
    %1809 = vmatpush1.msra.mxu0 0.0
    %1810 = vmatprep.subr.mxu0 0.0
    %1811 = vmatpush1.msra.mxu0 0.0
    %1812 = vmatprep.mubr.f32.mxu0 0.0
    %1813 = vmatmul.mubr.f32.gmra.mrb[0].mxu0 %v1746
    %v1814 = vpop.f32.mrb[0].mxu0
    %v1815 = vadd.f32 0.0, %v1814
    %v1816 = vpop.f32.mrb[0].mxu0
    %1817 = vdwg.mxu0
    %v1818 = vadd.f32 %v1745, %v1815
    %v1819 = vxor.u32 %v1744, 2147483648
    %v1820 = vmul.f32 %v1819, 1.442695
    %v1821 = vpow.pop %v1820
    %v1822 = vadd.f32 %v1821, 1.0
    %v1823 = vrcp.pop %v1822
    %v1824 = vmul.f32 1.0, %v1823
    %v1825 = vtanh.pop %v1744
    %v1826 = vmul.f32 %v1824, %v1656
    %1828 = vrot.lane.b32.xlu0 %v1825, 64
    %v1829 = vpop.permute.xlu0 %1828
    %v1831 = vmul.f32 %v1824, %v1829
    %1833 = vrot.lane.b32.xlu0 %v1831, 32
    %v1834 = vpop.permute.xlu0 %1833
    %v1836 = vadd.f32 %v1826, %v1834
    %v1837 = vtanh.pop %v1836
    %1839 = vrot.lane.b32.xlu0 %v1837, 64
    %v1840 = vpop.permute.xlu0 %1839
    %v1842 = vmul.f32 %v1824, %v1840
    %v1843 = vxor.u32 %v1818, 2147483648
    %v1844 = vmul.f32 %v1843, 1.442695
    %v1845 = vpow.pop %v1844
    %v1846 = vadd.f32 %v1845, 1.0
    %v1847 = vrcp.pop %v1846
    %v1848 = vmul.f32 1.0, %v1847
    %v1849 = vtanh.pop %v1818
    %v1850 = vmul.f32 %v1848, %v1658
    %1852 = vrot.lane.b32.xlu0 %v1849, 64
    %v1853 = vpop.permute.xlu0 %1852
    %v1855 = vmul.f32 %v1848, %v1853
    %1857 = vrot.lane.b32.xlu0 %v1855, 32
    %v1858 = vpop.permute.xlu0 %1857
    %v1860 = vadd.f32 %v1850, %v1858
    %v1861 = vtanh.pop %v1860
    %1863 = vrot.lane.b32.xlu0 %v1861, 64
    %v1864 = vpop.permute.xlu0 %1863
    %v1866 = vmul.f32 %v1848, %v1864
    %v1867 = vsel %vm772, %v1842, %v1655
    %v1868 = vsel %vm772, %v1836, %v1656
    %v1869 = vsel %vm765, %v1866, %v1657
    %v1870 = vsel %vm765, %v1860, %v1658
    %1872 = vrot.lane.b32.xlu0 %v1867, 32
    %v1873 = vpop.permute.xlu0 %1872
    %s1875 = scalar_lea.vmem [#allocation3], 48
    %1876 = vst.msk [vmem:[%s1875] sm:$0xff] %vm219, %v1873
    %1878 = vrot.lane.b32.xlu0 %v1869, 32
    %v1879 = vpop.permute.xlu0 %1878
    %s1881 = scalar_lea.vmem [#allocation4], 8
    %1882 = vst.msk [vmem:[%s1881] sm:$0xff] %vm219, %v1879
    %v1883 = vld [vmem:[%s411] sm:$0xff]
    %v1884 = vsel %vm219, %v1873, 0
    %1886 = vmatprep.subr.mxu0 0.0
    %1887 = vmatpush1.msra.mxu0 %v321
    %1888 = vmatprep.subr.mxu0 0.0
    %1889 = vmatpush1.msra.mxu0 %v323
    %1890 = vmatprep.subr.mxu0 0.0
    %1891 = vmatpush1.msra.mxu0 %v325
    %1892 = vmatprep.subr.mxu0 0.0
    %1893 = vmatpush1.msra.mxu0 %v327
    %1894 = vmatprep.subr.mxu0 0.0
    %1895 = vmatpush1.msra.mxu0 0.0
    %1896 = vmatprep.subr.mxu0 0.0
    %1897 = vmatpush1.msra.mxu0 0.0
    %1898 = vmatprep.subr.mxu0 0.0
    %1899 = vmatpush1.msra.mxu0 0.0
    %1900 = vmatprep.subr.mxu0 0.0
    %1901 = vmatpush1.msra.mxu0 0.0
    %1902 = vmatprep.subr.mxu0 0.0
    %1903 = vmatpush1.msra.mxu0 0.0
    %1904 = vmatprep.subr.mxu0 0.0
    %1905 = vmatpush1.msra.mxu0 0.0
    %1906 = vmatprep.subr.mxu0 0.0
    %1907 = vmatpush1.msra.mxu0 0.0
    %1908 = vmatprep.subr.mxu0 0.0
    %1909 = vmatpush1.msra.mxu0 0.0
    %1910 = vmatprep.subr.mxu0 0.0
    %1911 = vmatpush1.msra.mxu0 0.0
    %1912 = vmatprep.subr.mxu0 0.0
    %1913 = vmatpush1.msra.mxu0 0.0
    %1914 = vmatprep.subr.mxu0 0.0
    %1915 = vmatpush1.msra.mxu0 0.0
    %1916 = vmatprep.subr.mxu0 0.0
    %1917 = vmatpush1.msra.mxu0 0.0
    %1918 = vmatprep.subr.mxu0 0.0
    %1919 = vmatpush1.msra.mxu0 0.0
    %1920 = vmatprep.subr.mxu0 0.0
    %1921 = vmatpush1.msra.mxu0 0.0
    %1922 = vmatprep.subr.mxu0 0.0
    %1923 = vmatpush1.msra.mxu0 0.0
    %1924 = vmatprep.subr.mxu0 0.0
    %1925 = vmatpush1.msra.mxu0 0.0
    %1926 = vmatprep.subr.mxu0 0.0
    %1927 = vmatpush1.msra.mxu0 0.0
    %1928 = vmatprep.subr.mxu0 0.0
    %1929 = vmatpush1.msra.mxu0 0.0
    %1930 = vmatprep.subr.mxu0 0.0
    %1931 = vmatpush1.msra.mxu0 0.0
    %1932 = vmatprep.subr.mxu0 0.0
    %1933 = vmatpush1.msra.mxu0 0.0
    %1934 = vmatprep.subr.mxu0 0.0
    %1935 = vmatpush1.msra.mxu0 0.0
    %1936 = vmatprep.subr.mxu0 0.0
    %1937 = vmatpush1.msra.mxu0 0.0
    %1938 = vmatprep.subr.mxu0 0.0
    %1939 = vmatpush1.msra.mxu0 0.0
    %1940 = vmatprep.subr.mxu0 0.0
    %1941 = vmatpush1.msra.mxu0 0.0
    %1942 = vmatprep.subr.mxu0 0.0
    %1943 = vmatpush1.msra.mxu0 0.0
    %1944 = vmatprep.subr.mxu0 0.0
    %1945 = vmatpush1.msra.mxu0 0.0
    %1946 = vmatprep.subr.mxu0 0.0
    %1947 = vmatpush1.msra.mxu0 0.0
    %1948 = vmatprep.subr.mxu0 0.0
    %1949 = vmatpush1.msra.mxu0 0.0
    %1950 = vmatprep.mubr.f32.mxu0 0.0
    %1951 = vmatmul.mubr.f32.gmra.mrb[0].mxu0 %v1884
    %v1952 = vpop.f32.mrb[0].mxu0
    %v1953 = vadd.f32 0.0, %v1952
    %v1954 = vpop.f32.mrb[0].mxu0
    %1955 = vdwg.mxu0
    %v1956 = vadd.f32 %v1883, %v1953
    %v1957 = vld [vmem:[%s333 + $0x8] sm:$0xff]
    %v1958 = vsel %vm219, %v1879, 0
    %1960 = vmatprep.subr.mxu0 0.0
    %1961 = vmatpush1.msra.mxu0 %v322
    %1962 = vmatprep.subr.mxu0 0.0
    %1963 = vmatpush1.msra.mxu0 %v324
    %1964 = vmatprep.subr.mxu0 0.0
    %1965 = vmatpush1.msra.mxu0 %v326
    %1966 = vmatprep.subr.mxu0 0.0
    %1967 = vmatpush1.msra.mxu0 %v328
    %1968 = vmatprep.subr.mxu0 0.0
    %1969 = vmatpush1.msra.mxu0 0.0
    %1970 = vmatprep.subr.mxu0 0.0
    %1971 = vmatpush1.msra.mxu0 0.0
    %1972 = vmatprep.subr.mxu0 0.0
    %1973 = vmatpush1.msra.mxu0 0.0
    %1974 = vmatprep.subr.mxu0 0.0
    %1975 = vmatpush1.msra.mxu0 0.0
    %1976 = vmatprep.subr.mxu0 0.0
    %1977 = vmatpush1.msra.mxu0 0.0
    %1978 = vmatprep.subr.mxu0 0.0
    %1979 = vmatpush1.msra.mxu0 0.0
    %1980 = vmatprep.subr.mxu0 0.0
    %1981 = vmatpush1.msra.mxu0 0.0
    %1982 = vmatprep.subr.mxu0 0.0
    %1983 = vmatpush1.msra.mxu0 0.0
    %1984 = vmatprep.subr.mxu0 0.0
    %1985 = vmatpush1.msra.mxu0 0.0
    %1986 = vmatprep.subr.mxu0 0.0
    %1987 = vmatpush1.msra.mxu0 0.0
    %1988 = vmatprep.subr.mxu0 0.0
    %1989 = vmatpush1.msra.mxu0 0.0
    %1990 = vmatprep.subr.mxu0 0.0
    %1991 = vmatpush1.msra.mxu0 0.0
    %1992 = vmatprep.subr.mxu0 0.0
    %1993 = vmatpush1.msra.mxu0 0.0
    %1994 = vmatprep.subr.mxu0 0.0
    %1995 = vmatpush1.msra.mxu0 0.0
    %1996 = vmatprep.subr.mxu0 0.0
    %1997 = vmatpush1.msra.mxu0 0.0
    %1998 = vmatprep.subr.mxu0 0.0
    %1999 = vmatpush1.msra.mxu0 0.0
    %2000 = vmatprep.subr.mxu0 0.0
    %2001 = vmatpush1.msra.mxu0 0.0
    %2002 = vmatprep.subr.mxu0 0.0
    %2003 = vmatpush1.msra.mxu0 0.0
    %2004 = vmatprep.subr.mxu0 0.0
    %2005 = vmatpush1.msra.mxu0 0.0
    %2006 = vmatprep.subr.mxu0 0.0
    %2007 = vmatpush1.msra.mxu0 0.0
    %2008 = vmatprep.subr.mxu0 0.0
    %2009 = vmatpush1.msra.mxu0 0.0
    %2010 = vmatprep.subr.mxu0 0.0
    %2011 = vmatpush1.msra.mxu0 0.0
    %2012 = vmatprep.subr.mxu0 0.0
    %2013 = vmatpush1.msra.mxu0 0.0
    %2014 = vmatprep.subr.mxu0 0.0
    %2015 = vmatpush1.msra.mxu0 0.0
    %2016 = vmatprep.subr.mxu0 0.0
    %2017 = vmatpush1.msra.mxu0 0.0
    %2018 = vmatprep.subr.mxu0 0.0
    %2019 = vmatpush1.msra.mxu0 0.0
    %2020 = vmatprep.subr.mxu0 0.0
    %2021 = vmatpush1.msra.mxu0 0.0
    %2022 = vmatprep.subr.mxu0 0.0
    %2023 = vmatpush1.msra.mxu0 0.0
    %2024 = vmatprep.mubr.f32.mxu0 0.0
    %2025 = vmatmul.mubr.f32.gmra.mrb[0].mxu0 %v1958
    %v2026 = vpop.f32.mrb[0].mxu0
    %v2027 = vadd.f32 0.0, %v2026
    %v2028 = vpop.f32.mrb[0].mxu0
    %2029 = vdwg.mxu0
    %v2030 = vadd.f32 %v1957, %v2027
    %v2031 = vxor.u32 %v1956, 2147483648
    %v2032 = vmul.f32 %v2031, 1.442695
    %v2033 = vpow.pop %v2032
    %v2034 = vadd.f32 %v2033, 1.0
    %v2035 = vrcp.pop %v2034
    %v2036 = vmul.f32 1.0, %v2035
    %v2037 = vtanh.pop %v1956
    %v2038 = vmul.f32 %v2036, %v1868
    %2040 = vrot.lane.b32.xlu0 %v2037, 64
    %v2041 = vpop.permute.xlu0 %2040
    %v2043 = vmul.f32 %v2036, %v2041
    %2045 = vrot.lane.b32.xlu0 %v2043, 32
    %v2046 = vpop.permute.xlu0 %2045
    %v2048 = vadd.f32 %v2038, %v2046
    %v2049 = vtanh.pop %v2048
    %2051 = vrot.lane.b32.xlu0 %v2049, 64
    %v2052 = vpop.permute.xlu0 %2051
    %v2054 = vmul.f32 %v2036, %v2052
    %v2055 = vxor.u32 %v2030, 2147483648
    %v2056 = vmul.f32 %v2055, 1.442695
    %v2057 = vpow.pop %v2056
    %v2058 = vadd.f32 %v2057, 1.0
    %v2059 = vrcp.pop %v2058
    %v2060 = vmul.f32 1.0, %v2059
    %v2061 = vtanh.pop %v2030
    %v2062 = vmul.f32 %v2060, %v1870
    %2064 = vrot.lane.b32.xlu0 %v2061, 64
    %v2065 = vpop.permute.xlu0 %2064
    %v2067 = vmul.f32 %v2060, %v2065
    %2069 = vrot.lane.b32.xlu0 %v2067, 32
    %v2070 = vpop.permute.xlu0 %2069
    %v2072 = vadd.f32 %v2062, %v2070
    %v2073 = vtanh.pop %v2072
    %2075 = vrot.lane.b32.xlu0 %v2073, 64
    %v2076 = vpop.permute.xlu0 %2075
    %v2078 = vmul.f32 %v2060, %v2076
    %v2079 = vsel %vm543, %v2054, %v1867
    %v2080 = vsel %vm536, %v2078, %v1869
    %2082 = vrot.lane.b32.xlu0 %v2079, 32
    %v2083 = vpop.permute.xlu0 %2082
    %s2085 = scalar_lea.vmem [#allocation3], 56
    %2086 = vst.msk [vmem:[%s2085] sm:$0xff] %vm219, %v2083
    %2088 = vrot.lane.b32.xlu0 %v2080, 32
    %v2089 = vpop.permute.xlu0 %2088
    %2091 = vst.msk [vmem:[#allocation4] sm:$0xff] %vm219, %v2089
    %v2092 = vld [vmem:[%s7] sm:$0xff]
    %v2093 = vld [vmem:[%s7 + $0x8] sm:$0xff]
    %v2094 = vld [vmem:[%s7 + $0x10] sm:$0xff]
    %v2095 = vld [vmem:[%s7 + $0x18] sm:$0xff]
    %v2096 = vld [vmem:[%s7 + $0x20] sm:$0xff]
    %v2097 = vld [vmem:[%s7 + $0x28] sm:$0xff]
    %v2098 = vld [vmem:[%s7 + $0x30] sm:$0xff]
    %v2099 = vld [vmem:[%s7 + $0x38] sm:$0xff]
    %v2100 = vld [vmem:[#allocation3] sm:$0xff]
    %v2101 = vld [vmem:[#allocation3 + $0x8] sm:$0xff]
    %v2102 = vld [vmem:[#allocation3 + $0x10] sm:$0xff]
    %v2103 = vld [vmem:[#allocation3 + $0x18] sm:$0xff]
    %v2104 = vld [vmem:[#allocation3 + $0x20] sm:$0xff]
    %v2105 = vld [vmem:[#allocation3 + $0x28] sm:$0xff]
    %v2106 = vld [vmem:[#allocation3 + $0x30] sm:$0xff]
    %v2107 = vld [vmem:[#allocation3 + $0x38] sm:$0xff]
    %v2108 = vpack.c.bf16 %v2101, %v2100
    %v2109 = vpack.c.bf16 %v2103, %v2102
    %v2110 = vpack.c.bf16 %v2105, %v2104
    %v2111 = vpack.c.bf16 %v2107, %v2106
    %v2112 = vld [vmem:[#allocation4] sm:$0xff]
    %v2113 = vld [vmem:[#allocation4 + $0x8] sm:$0xff]
    %v2114 = vld [vmem:[#allocation4 + $0x10] sm:$0xff]
    %v2115 = vld [vmem:[#allocation4 + $0x18] sm:$0xff]
    %v2116 = vld [vmem:[#allocation4 + $0x20] sm:$0xff]
    %v2117 = vld [vmem:[#allocation4 + $0x28] sm:$0xff]
    %v2118 = vld [vmem:[#allocation4 + $0x30] sm:$0xff]
    %v2119 = vld [vmem:[#allocation4 + $0x38] sm:$0xff]
    %v2120 = vpack.c.bf16 %v2113, %v2112
    %v2121 = vpack.c.bf16 %v2115, %v2114
    %v2122 = vpack.c.bf16 %v2117, %v2116
    %v2123 = vpack.c.bf16 %v2119, %v2118
    %v2128 = vunpack.c.l.b16 %v2096
    %v2129 = vunpack.c.h.b16 %v2096
    %v2130 = vunpack.c.l.b16 %v2097
    %v2131 = vunpack.c.h.b16 %v2097
    %v2132 = vunpack.c.l.b16 %v2098
    %v2133 = vunpack.c.h.b16 %v2098
    %v2134 = vunpack.c.l.b16 %v2099
    %v2135 = vunpack.c.h.b16 %v2099
    %v2136 = vpack.c.b16 %v2130, %v2128
    %v2137 = vpack.c.b16 %v2131, %v2129
    %v2138 = vpack.c.b16 %v2134, %v2132
    %v2139 = vpack.c.b16 %v2135, %v2133
    %v2145 = vsel %vm219, %v2120, 0
    %v2148 = vsel %vm219, %v2121, 0
    %v2151 = vsel %vm219, %v2122, 0
    %v2154 = vsel %vm219, %v2123, 0
    %2156 = vmatprep.subr.bf16.mxu0 %v2137
    %2157 = vmatpush1.bf16.msra.mxu0 %v2136
    %2158 = vmatprep.subr.bf16.mxu0 %v2139
    %2159 = vmatpush1.bf16.msra.mxu0 %v2138
    %2160 = vmatprep.subr.bf16.mxu0 0
    %2161 = vmatpush1.bf16.msra.mxu0 0
    %2162 = vmatprep.subr.bf16.mxu0 0
    %2163 = vmatpush1.bf16.msra.mxu0 0
    %2164 = vmatprep.subr.bf16.mxu0 0
    %2165 = vmatpush1.bf16.msra.mxu0 0
    %2166 = vmatprep.subr.bf16.mxu0 0
    %2167 = vmatpush1.bf16.msra.mxu0 0
    %2168 = vmatprep.subr.bf16.mxu0 0
    %2169 = vmatpush1.bf16.msra.mxu0 0
    %2170 = vmatprep.subr.bf16.mxu0 0
    %2171 = vmatpush1.bf16.msra.mxu0 0
    %2172 = vmatprep.subr.bf16.mxu0 0
    %2173 = vmatpush1.bf16.msra.mxu0 0
    %2174 = vmatprep.subr.bf16.mxu0 0
    %2175 = vmatpush1.bf16.msra.mxu0 0
    %2176 = vmatprep.subr.bf16.mxu0 0
    %2177 = vmatpush1.bf16.msra.mxu0 0
    %2178 = vmatprep.subr.bf16.mxu0 0
    %2179 = vmatpush1.bf16.msra.mxu0 0
    %2180 = vmatprep.subr.bf16.mxu0 0
    %2181 = vmatpush1.bf16.msra.mxu0 0
    %2182 = vmatprep.subr.bf16.mxu0 0
    %2183 = vmatpush1.bf16.msra.mxu0 0
    %2184 = vmatprep.subr.bf16.mxu0 0
    %2185 = vmatpush1.bf16.msra.mxu0 0
    %2186 = vmatprep.subr.bf16.mxu0 0
    %2187 = vmatpush1.bf16.msra.mxu0 0
    %2188 = vmatprep.mubr.bf16.mxu0 0
    %2189 = vmatmul.mubr.bf16.gmra.mrb[0].mxu0 %v2145
    %v2190 = vpop.f32.mrb[0].mxu0
    %v2191 = vadd.f32 0.0, %v2190
    %v2192 = vpop.f32.mrb[0].mxu0
    %v2193 = vadd.f32 0.0, %v2192
    %v2194 = vpop.f32.mrb[0].mxu0
    %v2195 = vadd.f32 0.0, %v2194
    %v2196 = vpop.f32.mrb[0].mxu0
    %v2197 = vadd.f32 0.0, %v2196
    %2198 = vmatprep.mubr.bf16.mxu0 0
    %2199 = vmatmul.mubr.bf16.gmra.mrb[0].mxu0 %v2148
    %v2200 = vpop.f32.mrb[0].mxu0
    %v2201 = vadd.f32 0.0, %v2200
    %v2202 = vpop.f32.mrb[0].mxu0
    %v2203 = vadd.f32 0.0, %v2202
    %v2204 = vpop.f32.mrb[0].mxu0
    %v2205 = vadd.f32 0.0, %v2204
    %v2206 = vpop.f32.mrb[0].mxu0
    %v2207 = vadd.f32 0.0, %v2206
    %2208 = vmatprep.mubr.bf16.mxu0 0
    %2209 = vmatmul.mubr.bf16.gmra.mrb[0].mxu0 %v2151
    %v2210 = vpop.f32.mrb[0].mxu0
    %v2211 = vadd.f32 0.0, %v2210
    %v2212 = vpop.f32.mrb[0].mxu0
    %v2213 = vadd.f32 0.0, %v2212
    %v2214 = vpop.f32.mrb[0].mxu0
    %v2215 = vadd.f32 0.0, %v2214
    %v2216 = vpop.f32.mrb[0].mxu0
    %v2217 = vadd.f32 0.0, %v2216
    %2218 = vmatprep.mubr.bf16.mxu0 0
    %2219 = vmatmul.mubr.bf16.gmra.mrb[0].mxu0 %v2154
    %v2220 = vpop.f32.mrb[0].mxu0
    %v2221 = vadd.f32 0.0, %v2220
    %v2222 = vpop.f32.mrb[0].mxu0
    %v2223 = vadd.f32 0.0, %v2222
    %v2224 = vpop.f32.mrb[0].mxu0
    %v2225 = vadd.f32 0.0, %v2224
    %v2226 = vpop.f32.mrb[0].mxu0
    %v2227 = vadd.f32 0.0, %v2226
    %2228 = vdwg.mxu0
    %v2233 = vunpack.c.l.b16 %v2092
    %v2234 = vunpack.c.h.b16 %v2092
    %v2235 = vunpack.c.l.b16 %v2093
    %v2236 = vunpack.c.h.b16 %v2093
    %v2237 = vunpack.c.l.b16 %v2094
    %v2238 = vunpack.c.h.b16 %v2094
    %v2239 = vunpack.c.l.b16 %v2095
    %v2240 = vunpack.c.h.b16 %v2095
    %v2241 = vpack.c.b16 %v2235, %v2233
    %v2242 = vpack.c.b16 %v2236, %v2234
    %v2243 = vpack.c.b16 %v2239, %v2237
    %v2244 = vpack.c.b16 %v2240, %v2238
    %v2250 = vsel %vm219, %v2108, 0
    %v2253 = vsel %vm219, %v2109, 0
    %v2256 = vsel %vm219, %v2110, 0
    %v2259 = vsel %vm219, %v2111, 0
    %2261 = vmatprep.subr.bf16.mxu0 %v2242
    %2262 = vmatpush1.bf16.msra.mxu0 %v2241
    %2263 = vmatprep.subr.bf16.mxu0 %v2244
    %2264 = vmatpush1.bf16.msra.mxu0 %v2243
    %2265 = vmatprep.subr.bf16.mxu0 0
    %2266 = vmatpush1.bf16.msra.mxu0 0
    %2267 = vmatprep.subr.bf16.mxu0 0
    %2268 = vmatpush1.bf16.msra.mxu0 0
    %2269 = vmatprep.subr.bf16.mxu0 0
    %2270 = vmatpush1.bf16.msra.mxu0 0
    %2271 = vmatprep.subr.bf16.mxu0 0
    %2272 = vmatpush1.bf16.msra.mxu0 0
    %2273 = vmatprep.subr.bf16.mxu0 0
    %2274 = vmatpush1.bf16.msra.mxu0 0
    %2275 = vmatprep.subr.bf16.mxu0 0
    %2276 = vmatpush1.bf16.msra.mxu0 0
    %2277 = vmatprep.subr.bf16.mxu0 0
    %2278 = vmatpush1.bf16.msra.mxu0 0
    %2279 = vmatprep.subr.bf16.mxu0 0
    %2280 = vmatpush1.bf16.msra.mxu0 0
    %2281 = vmatprep.subr.bf16.mxu0 0
    %2282 = vmatpush1.bf16.msra.mxu0 0
    %2283 = vmatprep.subr.bf16.mxu0 0
    %2284 = vmatpush1.bf16.msra.mxu0 0
    %2285 = vmatprep.subr.bf16.mxu0 0
    %2286 = vmatpush1.bf16.msra.mxu0 0
    %2287 = vmatprep.subr.bf16.mxu0 0
    %2288 = vmatpush1.bf16.msra.mxu0 0
    %2289 = vmatprep.subr.bf16.mxu0 0
    %2290 = vmatpush1.bf16.msra.mxu0 0
    %2291 = vmatprep.subr.bf16.mxu0 0
    %2292 = vmatpush1.bf16.msra.mxu0 0
    %2293 = vmatprep.mubr.bf16.mxu0 0
    %2294 = vmatmul.mubr.bf16.gmra.mrb[0].mxu0 %v2250
    %v2295 = vpop.f32.mrb[0].mxu0
    %v2296 = vadd.f32 %v2191, %v2295
    %v2297 = vpop.f32.mrb[0].mxu0
    %v2298 = vadd.f32 %v2193, %v2297
    %v2299 = vpop.f32.mrb[0].mxu0
    %v2300 = vadd.f32 %v2195, %v2299
    %v2301 = vpop.f32.mrb[0].mxu0
    %v2302 = vadd.f32 %v2197, %v2301
    %2303 = vmatprep.mubr.bf16.mxu0 0
    %2304 = vmatmul.mubr.bf16.gmra.mrb[0].mxu0 %v2253
    %v2305 = vpop.f32.mrb[0].mxu0
    %v2306 = vadd.f32 %v2201, %v2305
    %v2307 = vpop.f32.mrb[0].mxu0
    %v2308 = vadd.f32 %v2203, %v2307
    %v2309 = vpop.f32.mrb[0].mxu0
    %v2310 = vadd.f32 %v2205, %v2309
    %v2311 = vpop.f32.mrb[0].mxu0
    %v2312 = vadd.f32 %v2207, %v2311
    %2313 = vmatprep.mubr.bf16.mxu0 0
    %2314 = vmatmul.mubr.bf16.gmra.mrb[0].mxu0 %v2256
    %v2315 = vpop.f32.mrb[0].mxu0
    %v2316 = vadd.f32 %v2211, %v2315
    %v2317 = vpop.f32.mrb[0].mxu0
    %v2318 = vadd.f32 %v2213, %v2317
    %v2319 = vpop.f32.mrb[0].mxu0
    %v2320 = vadd.f32 %v2215, %v2319
    %v2321 = vpop.f32.mrb[0].mxu0
    %v2322 = vadd.f32 %v2217, %v2321
    %2323 = vmatprep.mubr.bf16.mxu0 0
    %2324 = vmatmul.mubr.bf16.gmra.mrb[0].mxu0 %v2259
    %v2325 = vpop.f32.mrb[0].mxu0
    %v2326 = vadd.f32 %v2221, %v2325
    %v2327 = vpop.f32.mrb[0].mxu0
    %v2328 = vadd.f32 %v2223, %v2327
    %v2329 = vpop.f32.mrb[0].mxu0
    %v2330 = vadd.f32 %v2225, %v2329
    %v2331 = vpop.f32.mrb[0].mxu0
    %v2332 = vadd.f32 %v2227, %v2331
    %2333 = vdwg.mxu0
    %v2334 = vld [vmem:[%s9] sm:$0x3]
    %v2336 = vlaneseq
    %v2337 = vshrl.u32 %v2336, 7
    %v2338 = vsub.s32 0, %v2337
    %v2339 = vrot.slane %v2334, %v2338
    %v2340 = vlaneseq
    %v2341 = vshrl.u32 %v2340, 7
    %v2342 = vsub.s32 1, %v2341
    %v2343 = vrot.slane %v2334, %v2342
    %v2346 = vadd.f32 %v2296, %v2339
    %v2347 = vadd.f32 %v2298, %v2343
    %v2348 = vadd.f32 %v2300, %v2339
    %v2349 = vadd.f32 %v2302, %v2343
    %v2350 = vadd.f32 %v2306, %v2339
    %v2351 = vadd.f32 %v2308, %v2343
    %v2352 = vadd.f32 %v2310, %v2339
    %v2353 = vadd.f32 %v2312, %v2343
    %v2354 = vadd.f32 %v2316, %v2339
    %v2355 = vadd.f32 %v2318, %v2343
    %v2356 = vadd.f32 %v2320, %v2339
    %v2357 = vadd.f32 %v2322, %v2343
    %v2358 = vadd.f32 %v2326, %v2339
    %v2359 = vadd.f32 %v2328, %v2343
    %v2360 = vadd.f32 %v2330, %v2339
    %v2361 = vadd.f32 %v2332, %v2343
    %2362 = vst [vmem:[#allocation2] sm:$0xff] %v2346
    %2363 = vst [vmem:[#allocation2 + $0x8] sm:$0xff] %v2347
    %2364 = vst [vmem:[#allocation2 + $0x10] sm:$0xff] %v2348
    %2365 = vst [vmem:[#allocation2 + $0x18] sm:$0xff] %v2349
    %2366 = vst [vmem:[#allocation2 + $0x20] sm:$0xff] %v2350
    %2367 = vst [vmem:[#allocation2 + $0x28] sm:$0xff] %v2351
    %2368 = vst [vmem:[#allocation2 + $0x30] sm:$0xff] %v2352
    %2369 = vst [vmem:[#allocation2 + $0x38] sm:$0xff] %v2353
    %2370 = vst [vmem:[#allocation2 + $0x40] sm:$0xff] %v2354
    %2371 = vst [vmem:[#allocation2 + $0x48] sm:$0xff] %v2355
    %2372 = vst [vmem:[#allocation2 + $0x50] sm:$0xff] %v2356
    %2373 = vst [vmem:[#allocation2 + $0x58] sm:$0xff] %v2357
    %2374 = vst [vmem:[#allocation2 + $0x60] sm:$0xff] %v2358
    %2375 = vst [vmem:[#allocation2 + $0x68] sm:$0xff] %v2359
    %2376 = vst [vmem:[#allocation2 + $0x70] sm:$0xff] %v2360
    %2377 = vst [vmem:[#allocation2 + $0x78] sm:$0xff] %v2361
    %v2378 = vld [vmem:[%s8] sm:$0xff]
    %v2379 = vld [vmem:[%s8 + $0x8] sm:$0xff]
    %v2380 = vld [vmem:[%s8 + $0x10] sm:$0xff]
    %v2381 = vld [vmem:[%s8 + $0x18] sm:$0xff]
    %v2382 = vld [vmem:[%s8 + $0x20] sm:$0xff]
    %v2383 = vld [vmem:[%s8 + $0x28] sm:$0xff]
    %v2384 = vld [vmem:[%s8 + $0x30] sm:$0xff]
    %v2385 = vld [vmem:[%s8 + $0x38] sm:$0xff]
    %v2386 = vld [vmem:[%s333] sm:$0xff]
    %2387 = vmatprep.subr.mxu0 0.0
    %2388 = vmatpush1.msra.mxu0 %v2378
    %2389 = vmatprep.subr.mxu0 0.0
    %2390 = vmatpush1.msra.mxu0 %v2380
    %2391 = vmatprep.subr.mxu0 0.0
    %2392 = vmatpush1.msra.mxu0 %v2382
    %2393 = vmatprep.subr.mxu0 0.0
    %2394 = vmatpush1.msra.mxu0 %v2384
    %2395 = vmatprep.subr.mxu0 0.0
    %2396 = vmatpush1.msra.mxu0 0.0
    %2397 = vmatprep.subr.mxu0 0.0
    %2398 = vmatpush1.msra.mxu0 0.0
    %2399 = vmatprep.subr.mxu0 0.0
    %2400 = vmatpush1.msra.mxu0 0.0
    %2401 = vmatprep.subr.mxu0 0.0
    %2402 = vmatpush1.msra.mxu0 0.0
    %2403 = vmatprep.subr.mxu0 0.0
    %2404 = vmatpush1.msra.mxu0 0.0
    %2405 = vmatprep.subr.mxu0 0.0
    %2406 = vmatpush1.msra.mxu0 0.0
    %2407 = vmatprep.subr.mxu0 0.0
    %2408 = vmatpush1.msra.mxu0 0.0
    %2409 = vmatprep.subr.mxu0 0.0
    %2410 = vmatpush1.msra.mxu0 0.0
    %2411 = vmatprep.subr.mxu0 0.0
    %2412 = vmatpush1.msra.mxu0 0.0
    %2413 = vmatprep.subr.mxu0 0.0
    %2414 = vmatpush1.msra.mxu0 0.0
    %2415 = vmatprep.subr.mxu0 0.0
    %2416 = vmatpush1.msra.mxu0 0.0
    %2417 = vmatprep.subr.mxu0 0.0
    %2418 = vmatpush1.msra.mxu0 0.0
    %2419 = vmatprep.subr.mxu0 0.0
    %2420 = vmatpush1.msra.mxu0 0.0
    %2421 = vmatprep.subr.mxu0 0.0
    %2422 = vmatpush1.msra.mxu0 0.0
    %2423 = vmatprep.subr.mxu0 0.0
    %2424 = vmatpush1.msra.mxu0 0.0
    %2425 = vmatprep.subr.mxu0 0.0
    %2426 = vmatpush1.msra.mxu0 0.0
    %2427 = vmatprep.subr.mxu0 0.0
    %2428 = vmatpush1.msra.mxu0 0.0
    %2429 = vmatprep.subr.mxu0 0.0
    %2430 = vmatpush1.msra.mxu0 0.0
    %2431 = vmatprep.subr.mxu0 0.0
    %2432 = vmatpush1.msra.mxu0 0.0
    %2433 = vmatprep.subr.mxu0 0.0
    %2434 = vmatpush1.msra.mxu0 0.0
    %2435 = vmatprep.subr.mxu0 0.0
    %2436 = vmatpush1.msra.mxu0 0.0
    %2437 = vmatprep.subr.mxu0 0.0
    %2438 = vmatpush1.msra.mxu0 0.0
    %2439 = vmatprep.subr.mxu0 0.0
    %2440 = vmatpush1.msra.mxu0 0.0
    %2441 = vmatprep.subr.mxu0 0.0
    %2442 = vmatpush1.msra.mxu0 0.0
    %2443 = vmatprep.subr.mxu0 0.0
    %2444 = vmatpush1.msra.mxu0 0.0
    %2445 = vmatprep.subr.mxu0 0.0
    %2446 = vmatpush1.msra.mxu0 0.0
    %2447 = vmatprep.subr.mxu0 0.0
    %2448 = vmatpush1.msra.mxu0 0.0
    %2449 = vmatprep.subr.mxu0 0.0
    %2450 = vmatpush1.msra.mxu0 0.0
    %2451 = vmatprep.mubr.f32.mxu0 0.0
    %2452 = vmatmul.mubr.f32.gmra.mrb[0].mxu0 %v336
    %v2453 = vpop.f32.mrb[0].mxu0
    %v2454 = vadd.f32 0.0, %v2453
    %v2455 = vpop.f32.mrb[0].mxu0
    %2456 = vdwg.mxu0
    %v2457 = vadd.f32 %v2386, %v2454
    %v2458 = vld [vmem:[%s411 + $0x8] sm:$0xff]
    %2459 = vmatprep.subr.mxu0 0.0
    %2460 = vmatpush1.msra.mxu0 %v2379
    %2461 = vmatprep.subr.mxu0 0.0
    %2462 = vmatpush1.msra.mxu0 %v2381
    %2463 = vmatprep.subr.mxu0 0.0
    %2464 = vmatpush1.msra.mxu0 %v2383
    %2465 = vmatprep.subr.mxu0 0.0
    %2466 = vmatpush1.msra.mxu0 %v2385
    %2467 = vmatprep.subr.mxu0 0.0
    %2468 = vmatpush1.msra.mxu0 0.0
    %2469 = vmatprep.subr.mxu0 0.0
    %2470 = vmatpush1.msra.mxu0 0.0
    %2471 = vmatprep.subr.mxu0 0.0
    %2472 = vmatpush1.msra.mxu0 0.0
    %2473 = vmatprep.subr.mxu0 0.0
    %2474 = vmatpush1.msra.mxu0 0.0
    %2475 = vmatprep.subr.mxu0 0.0
    %2476 = vmatpush1.msra.mxu0 0.0
    %2477 = vmatprep.subr.mxu0 0.0
    %2478 = vmatpush1.msra.mxu0 0.0
    %2479 = vmatprep.subr.mxu0 0.0
    %2480 = vmatpush1.msra.mxu0 0.0
    %2481 = vmatprep.subr.mxu0 0.0
    %2482 = vmatpush1.msra.mxu0 0.0
    %2483 = vmatprep.subr.mxu0 0.0
    %2484 = vmatpush1.msra.mxu0 0.0
    %2485 = vmatprep.subr.mxu0 0.0
    %2486 = vmatpush1.msra.mxu0 0.0
    %2487 = vmatprep.subr.mxu0 0.0
    %2488 = vmatpush1.msra.mxu0 0.0
    %2489 = vmatprep.subr.mxu0 0.0
    %2490 = vmatpush1.msra.mxu0 0.0
    %2491 = vmatprep.subr.mxu0 0.0
    %2492 = vmatpush1.msra.mxu0 0.0
    %2493 = vmatprep.subr.mxu0 0.0
    %2494 = vmatpush1.msra.mxu0 0.0
    %2495 = vmatprep.subr.mxu0 0.0
    %2496 = vmatpush1.msra.mxu0 0.0
    %2497 = vmatprep.subr.mxu0 0.0
    %2498 = vmatpush1.msra.mxu0 0.0
    %2499 = vmatprep.subr.mxu0 0.0
    %2500 = vmatpush1.msra.mxu0 0.0
    %2501 = vmatprep.subr.mxu0 0.0
    %2502 = vmatpush1.msra.mxu0 0.0
    %2503 = vmatprep.subr.mxu0 0.0
    %2504 = vmatpush1.msra.mxu0 0.0
    %2505 = vmatprep.subr.mxu0 0.0
    %2506 = vmatpush1.msra.mxu0 0.0
    %2507 = vmatprep.subr.mxu0 0.0
    %2508 = vmatpush1.msra.mxu0 0.0
    %2509 = vmatprep.subr.mxu0 0.0
    %2510 = vmatpush1.msra.mxu0 0.0
    %2511 = vmatprep.subr.mxu0 0.0
    %2512 = vmatpush1.msra.mxu0 0.0
    %2513 = vmatprep.subr.mxu0 0.0
    %2514 = vmatpush1.msra.mxu0 0.0
    %2515 = vmatprep.subr.mxu0 0.0
    %2516 = vmatpush1.msra.mxu0 0.0
    %2517 = vmatprep.subr.mxu0 0.0
    %2518 = vmatpush1.msra.mxu0 0.0
    %2519 = vmatprep.subr.mxu0 0.0
    %2520 = vmatpush1.msra.mxu0 0.0
    %2521 = vmatprep.subr.mxu0 0.0
    %2522 = vmatpush1.msra.mxu0 0.0
    %2523 = vmatprep.mubr.f32.mxu0 0.0
    %2524 = vmatmul.mubr.f32.gmra.mrb[0].mxu0 %v336
    %v2525 = vpop.f32.mrb[0].mxu0
    %v2526 = vadd.f32 0.0, %v2525
    %v2527 = vpop.f32.mrb[0].mxu0
    %2528 = vdwg.mxu0
    %v2529 = vadd.f32 %v2458, %v2526
    %v2530 = vxor.u32 %v2457, 2147483648
    %v2531 = vmul.f32 %v2530, 1.442695
    %v2532 = vpow.pop %v2531
    %v2533 = vadd.f32 %v2532, 1.0
    %v2534 = vrcp.pop %v2533
    %v2535 = vmul.f32 1.0, %v2534
    %v2536 = vtanh.pop %v2457
    %v2537 = vmul.f32 %v2535, 0.0
    %2539 = vrot.lane.b32.xlu0 %v2536, 64
    %v2540 = vpop.permute.xlu0 %2539
    %v2542 = vmul.f32 %v2535, %v2540
    %2544 = vrot.lane.b32.xlu0 %v2542, 32
    %v2545 = vpop.permute.xlu0 %2544
    %v2547 = vadd.f32 %v2537, %v2545
    %v2548 = vtanh.pop %v2547
    %2550 = vrot.lane.b32.xlu0 %v2548, 64
    %v2551 = vpop.permute.xlu0 %2550
    %v2553 = vmul.f32 %v2535, %v2551
    %v2554 = vxor.u32 %v2529, 2147483648
    %v2555 = vmul.f32 %v2554, 1.442695
    %v2556 = vpow.pop %v2555
    %v2557 = vadd.f32 %v2556, 1.0
    %v2558 = vrcp.pop %v2557
    %v2559 = vmul.f32 1.0, %v2558
    %v2560 = vtanh.pop %v2529
    %v2561 = vmul.f32 %v2559, 0.0
    %2563 = vrot.lane.b32.xlu0 %v2560, 64
    %v2564 = vpop.permute.xlu0 %2563
    %v2566 = vmul.f32 %v2559, %v2564
    %2568 = vrot.lane.b32.xlu0 %v2566, 32
    %v2569 = vpop.permute.xlu0 %2568
    %v2571 = vadd.f32 %v2561, %v2569
    %v2572 = vtanh.pop %v2571
    %2574 = vrot.lane.b32.xlu0 %v2572, 64
    %v2575 = vpop.permute.xlu0 %2574
    %v2577 = vmul.f32 %v2559, %v2575
    %v2578 = vsel %vm536, %v2553, 0.0
    %v2579 = vsel %vm536, %v2547, 0.0
    %v2580 = vsel %vm543, %v2577, 0.0
    %v2581 = vsel %vm543, %v2571, 0.0
    %2583 = vrot.lane.b32.xlu0 %v2578, 32
    %v2584 = vpop.permute.xlu0 %2583
    %2586 = vst.msk [vmem:[#allocation3] sm:$0xff] %vm219, %v2584
    %2588 = vrot.lane.b32.xlu0 %v2580, 32
    %v2589 = vpop.permute.xlu0 %2588
    %2591 = vst.msk [vmem:[%s555] sm:$0xff] %vm219, %v2589
    %v2592 = vld [vmem:[%s561] sm:$0xff]
    %v2593 = vsel %vm219, %v2584, 0
    %2595 = vmatprep.subr.mxu0 0.0
    %2596 = vmatpush1.msra.mxu0 %v2378
    %2597 = vmatprep.subr.mxu0 0.0
    %2598 = vmatpush1.msra.mxu0 %v2380
    %2599 = vmatprep.subr.mxu0 0.0
    %2600 = vmatpush1.msra.mxu0 %v2382
    %2601 = vmatprep.subr.mxu0 0.0
    %2602 = vmatpush1.msra.mxu0 %v2384
    %2603 = vmatprep.subr.mxu0 0.0
    %2604 = vmatpush1.msra.mxu0 0.0
    %2605 = vmatprep.subr.mxu0 0.0
    %2606 = vmatpush1.msra.mxu0 0.0
    %2607 = vmatprep.subr.mxu0 0.0
    %2608 = vmatpush1.msra.mxu0 0.0
    %2609 = vmatprep.subr.mxu0 0.0
    %2610 = vmatpush1.msra.mxu0 0.0
    %2611 = vmatprep.subr.mxu0 0.0
    %2612 = vmatpush1.msra.mxu0 0.0
    %2613 = vmatprep.subr.mxu0 0.0
    %2614 = vmatpush1.msra.mxu0 0.0
    %2615 = vmatprep.subr.mxu0 0.0
    %2616 = vmatpush1.msra.mxu0 0.0
    %2617 = vmatprep.subr.mxu0 0.0
    %2618 = vmatpush1.msra.mxu0 0.0
    %2619 = vmatprep.subr.mxu0 0.0
    %2620 = vmatpush1.msra.mxu0 0.0
    %2621 = vmatprep.subr.mxu0 0.0
    %2622 = vmatpush1.msra.mxu0 0.0
    %2623 = vmatprep.subr.mxu0 0.0
    %2624 = vmatpush1.msra.mxu0 0.0
    %2625 = vmatprep.subr.mxu0 0.0
    %2626 = vmatpush1.msra.mxu0 0.0
    %2627 = vmatprep.subr.mxu0 0.0
    %2628 = vmatpush1.msra.mxu0 0.0
    %2629 = vmatprep.subr.mxu0 0.0
    %2630 = vmatpush1.msra.mxu0 0.0
    %2631 = vmatprep.subr.mxu0 0.0
    %2632 = vmatpush1.msra.mxu0 0.0
    %2633 = vmatprep.subr.mxu0 0.0
    %2634 = vmatpush1.msra.mxu0 0.0
    %2635 = vmatprep.subr.mxu0 0.0
    %2636 = vmatpush1.msra.mxu0 0.0
    %2637 = vmatprep.subr.mxu0 0.0
    %2638 = vmatpush1.msra.mxu0 0.0
    %2639 = vmatprep.subr.mxu0 0.0
    %2640 = vmatpush1.msra.mxu0 0.0
    %2641 = vmatprep.subr.mxu0 0.0
    %2642 = vmatpush1.msra.mxu0 0.0
    %2643 = vmatprep.subr.mxu0 0.0
    %2644 = vmatpush1.msra.mxu0 0.0
    %2645 = vmatprep.subr.mxu0 0.0
    %2646 = vmatpush1.msra.mxu0 0.0
    %2647 = vmatprep.subr.mxu0 0.0
    %2648 = vmatpush1.msra.mxu0 0.0
    %2649 = vmatprep.subr.mxu0 0.0
    %2650 = vmatpush1.msra.mxu0 0.0
    %2651 = vmatprep.subr.mxu0 0.0
    %2652 = vmatpush1.msra.mxu0 0.0
    %2653 = vmatprep.subr.mxu0 0.0
    %2654 = vmatpush1.msra.mxu0 0.0
    %2655 = vmatprep.subr.mxu0 0.0
    %2656 = vmatpush1.msra.mxu0 0.0
    %2657 = vmatprep.subr.mxu0 0.0
    %2658 = vmatpush1.msra.mxu0 0.0
    %2659 = vmatprep.mubr.f32.mxu0 0.0
    %2660 = vmatmul.mubr.f32.gmra.mrb[0].mxu0 %v2593
    %v2661 = vpop.f32.mrb[0].mxu0
    %v2662 = vadd.f32 0.0, %v2661
    %v2663 = vpop.f32.mrb[0].mxu0
    %2664 = vdwg.mxu0
    %v2665 = vadd.f32 %v2592, %v2662
    %v2666 = vld [vmem:[%s638 + $0x8] sm:$0xff]
    %v2667 = vsel %vm219, %v2589, 0
    %2669 = vmatprep.subr.mxu0 0.0
    %2670 = vmatpush1.msra.mxu0 %v2379
    %2671 = vmatprep.subr.mxu0 0.0
    %2672 = vmatpush1.msra.mxu0 %v2381
    %2673 = vmatprep.subr.mxu0 0.0
    %2674 = vmatpush1.msra.mxu0 %v2383
    %2675 = vmatprep.subr.mxu0 0.0
    %2676 = vmatpush1.msra.mxu0 %v2385
    %2677 = vmatprep.subr.mxu0 0.0
    %2678 = vmatpush1.msra.mxu0 0.0
    %2679 = vmatprep.subr.mxu0 0.0
    %2680 = vmatpush1.msra.mxu0 0.0
    %2681 = vmatprep.subr.mxu0 0.0
    %2682 = vmatpush1.msra.mxu0 0.0
    %2683 = vmatprep.subr.mxu0 0.0
    %2684 = vmatpush1.msra.mxu0 0.0
    %2685 = vmatprep.subr.mxu0 0.0
    %2686 = vmatpush1.msra.mxu0 0.0
    %2687 = vmatprep.subr.mxu0 0.0
    %2688 = vmatpush1.msra.mxu0 0.0
    %2689 = vmatprep.subr.mxu0 0.0
    %2690 = vmatpush1.msra.mxu0 0.0
    %2691 = vmatprep.subr.mxu0 0.0
    %2692 = vmatpush1.msra.mxu0 0.0
    %2693 = vmatprep.subr.mxu0 0.0
    %2694 = vmatpush1.msra.mxu0 0.0
    %2695 = vmatprep.subr.mxu0 0.0
    %2696 = vmatpush1.msra.mxu0 0.0
    %2697 = vmatprep.subr.mxu0 0.0
    %2698 = vmatpush1.msra.mxu0 0.0
    %2699 = vmatprep.subr.mxu0 0.0
    %2700 = vmatpush1.msra.mxu0 0.0
    %2701 = vmatprep.subr.mxu0 0.0
    %2702 = vmatpush1.msra.mxu0 0.0
    %2703 = vmatprep.subr.mxu0 0.0
    %2704 = vmatpush1.msra.mxu0 0.0
    %2705 = vmatprep.subr.mxu0 0.0
    %2706 = vmatpush1.msra.mxu0 0.0
    %2707 = vmatprep.subr.mxu0 0.0
    %2708 = vmatpush1.msra.mxu0 0.0
    %2709 = vmatprep.subr.mxu0 0.0
    %2710 = vmatpush1.msra.mxu0 0.0
    %2711 = vmatprep.subr.mxu0 0.0
    %2712 = vmatpush1.msra.mxu0 0.0
    %2713 = vmatprep.subr.mxu0 0.0
    %2714 = vmatpush1.msra.mxu0 0.0
    %2715 = vmatprep.subr.mxu0 0.0
    %2716 = vmatpush1.msra.mxu0 0.0
    %2717 = vmatprep.subr.mxu0 0.0
    %2718 = vmatpush1.msra.mxu0 0.0
    %2719 = vmatprep.subr.mxu0 0.0
    %2720 = vmatpush1.msra.mxu0 0.0
    %2721 = vmatprep.subr.mxu0 0.0
    %2722 = vmatpush1.msra.mxu0 0.0
    %2723 = vmatprep.subr.mxu0 0.0
    %2724 = vmatpush1.msra.mxu0 0.0
    %2725 = vmatprep.subr.mxu0 0.0
    %2726 = vmatpush1.msra.mxu0 0.0
    %2727 = vmatprep.subr.mxu0 0.0
    %2728 = vmatpush1.msra.mxu0 0.0
    %2729 = vmatprep.subr.mxu0 0.0
    %2730 = vmatpush1.msra.mxu0 0.0
    %2731 = vmatprep.subr.mxu0 0.0
    %2732 = vmatpush1.msra.mxu0 0.0
    %2733 = vmatprep.mubr.f32.mxu0 0.0
    %2734 = vmatmul.mubr.f32.gmra.mrb[0].mxu0 %v2667
    %v2735 = vpop.f32.mrb[0].mxu0
    %v2736 = vadd.f32 0.0, %v2735
    %v2737 = vpop.f32.mrb[0].mxu0
    %2738 = vdwg.mxu0
    %v2739 = vadd.f32 %v2666, %v2736
    %v2740 = vxor.u32 %v2665, 2147483648
    %v2741 = vmul.f32 %v2740, 1.442695
    %v2742 = vpow.pop %v2741
    %v2743 = vadd.f32 %v2742, 1.0
    %v2744 = vrcp.pop %v2743
    %v2745 = vmul.f32 1.0, %v2744
    %v2746 = vtanh.pop %v2665
    %v2747 = vmul.f32 %v2745, %v2579
    %2749 = vrot.lane.b32.xlu0 %v2746, 64
    %v2750 = vpop.permute.xlu0 %2749
    %v2752 = vmul.f32 %v2745, %v2750
    %2754 = vrot.lane.b32.xlu0 %v2752, 32
    %v2755 = vpop.permute.xlu0 %2754
    %v2757 = vadd.f32 %v2747, %v2755
    %v2758 = vtanh.pop %v2757
    %2760 = vrot.lane.b32.xlu0 %v2758, 64
    %v2761 = vpop.permute.xlu0 %2760
    %v2763 = vmul.f32 %v2745, %v2761
    %v2764 = vxor.u32 %v2739, 2147483648
    %v2765 = vmul.f32 %v2764, 1.442695
    %v2766 = vpow.pop %v2765
    %v2767 = vadd.f32 %v2766, 1.0
    %v2768 = vrcp.pop %v2767
    %v2769 = vmul.f32 1.0, %v2768
    %v2770 = vtanh.pop %v2739
    %v2771 = vmul.f32 %v2769, %v2581
    %2773 = vrot.lane.b32.xlu0 %v2770, 64
    %v2774 = vpop.permute.xlu0 %2773
    %v2776 = vmul.f32 %v2769, %v2774
    %2778 = vrot.lane.b32.xlu0 %v2776, 32
    %v2779 = vpop.permute.xlu0 %2778
    %v2781 = vadd.f32 %v2771, %v2779
    %v2782 = vtanh.pop %v2781
    %2784 = vrot.lane.b32.xlu0 %v2782, 64
    %v2785 = vpop.permute.xlu0 %2784
    %v2787 = vmul.f32 %v2769, %v2785
    %v2788 = vsel %vm765, %v2763, %v2578
    %v2789 = vsel %vm765, %v2757, %v2579
    %v2790 = vsel %vm772, %v2787, %v2580
    %v2791 = vsel %vm772, %v2781, %v2581
    %2793 = vrot.lane.b32.xlu0 %v2788, 32
    %v2794 = vpop.permute.xlu0 %2793
    %2796 = vst.msk [vmem:[%s779] sm:$0xff] %vm219, %v2794
    %2798 = vrot.lane.b32.xlu0 %v2790, 32
    %v2799 = vpop.permute.xlu0 %2798
    %2801 = vst.msk [vmem:[%s785] sm:$0xff] %vm219, %v2799
    %v2802 = vld [vmem:[%s791] sm:$0xff]
    %v2803 = vsel %vm219, %v2794, 0
    %2805 = vmatprep.subr.mxu0 0.0
    %2806 = vmatpush1.msra.mxu0 %v2378
    %2807 = vmatprep.subr.mxu0 0.0
    %2808 = vmatpush1.msra.mxu0 %v2380
    %2809 = vmatprep.subr.mxu0 0.0
    %2810 = vmatpush1.msra.mxu0 %v2382
    %2811 = vmatprep.subr.mxu0 0.0
    %2812 = vmatpush1.msra.mxu0 %v2384
    %2813 = vmatprep.subr.mxu0 0.0
    %2814 = vmatpush1.msra.mxu0 0.0
    %2815 = vmatprep.subr.mxu0 0.0
    %2816 = vmatpush1.msra.mxu0 0.0
    %2817 = vmatprep.subr.mxu0 0.0
    %2818 = vmatpush1.msra.mxu0 0.0
    %2819 = vmatprep.subr.mxu0 0.0
    %2820 = vmatpush1.msra.mxu0 0.0
    %2821 = vmatprep.subr.mxu0 0.0
    %2822 = vmatpush1.msra.mxu0 0.0
    %2823 = vmatprep.subr.mxu0 0.0
    %2824 = vmatpush1.msra.mxu0 0.0
    %2825 = vmatprep.subr.mxu0 0.0
    %2826 = vmatpush1.msra.mxu0 0.0
    %2827 = vmatprep.subr.mxu0 0.0
    %2828 = vmatpush1.msra.mxu0 0.0
    %2829 = vmatprep.subr.mxu0 0.0
    %2830 = vmatpush1.msra.mxu0 0.0
    %2831 = vmatprep.subr.mxu0 0.0
    %2832 = vmatpush1.msra.mxu0 0.0
    %2833 = vmatprep.subr.mxu0 0.0
    %2834 = vmatpush1.msra.mxu0 0.0
    %2835 = vmatprep.subr.mxu0 0.0
    %2836 = vmatpush1.msra.mxu0 0.0
    %2837 = vmatprep.subr.mxu0 0.0
    %2838 = vmatpush1.msra.mxu0 0.0
    %2839 = vmatprep.subr.mxu0 0.0
    %2840 = vmatpush1.msra.mxu0 0.0
    %2841 = vmatprep.subr.mxu0 0.0
    %2842 = vmatpush1.msra.mxu0 0.0
    %2843 = vmatprep.subr.mxu0 0.0
    %2844 = vmatpush1.msra.mxu0 0.0
    %2845 = vmatprep.subr.mxu0 0.0
    %2846 = vmatpush1.msra.mxu0 0.0
    %2847 = vmatprep.subr.mxu0 0.0
    %2848 = vmatpush1.msra.mxu0 0.0
    %2849 = vmatprep.subr.mxu0 0.0
    %2850 = vmatpush1.msra.mxu0 0.0
    %2851 = vmatprep.subr.mxu0 0.0
    %2852 = vmatpush1.msra.mxu0 0.0
    %2853 = vmatprep.subr.mxu0 0.0
    %2854 = vmatpush1.msra.mxu0 0.0
    %2855 = vmatprep.subr.mxu0 0.0
    %2856 = vmatpush1.msra.mxu0 0.0
    %2857 = vmatprep.subr.mxu0 0.0
    %2858 = vmatpush1.msra.mxu0 0.0
    %2859 = vmatprep.subr.mxu0 0.0
    %2860 = vmatpush1.msra.mxu0 0.0
    %2861 = vmatprep.subr.mxu0 0.0
    %2862 = vmatpush1.msra.mxu0 0.0
    %2863 = vmatprep.subr.mxu0 0.0
    %2864 = vmatpush1.msra.mxu0 0.0
    %2865 = vmatprep.subr.mxu0 0.0
    %2866 = vmatpush1.msra.mxu0 0.0
    %2867 = vmatprep.subr.mxu0 0.0
    %2868 = vmatpush1.msra.mxu0 0.0
    %2869 = vmatprep.mubr.f32.mxu0 0.0
    %2870 = vmatmul.mubr.f32.gmra.mrb[0].mxu0 %v2803
    %v2871 = vpop.f32.mrb[0].mxu0
    %v2872 = vadd.f32 0.0, %v2871
    %v2873 = vpop.f32.mrb[0].mxu0
    %2874 = vdwg.mxu0
    %v2875 = vadd.f32 %v2802, %v2872
    %v2876 = vld [vmem:[%s868 + $0x8] sm:$0xff]
    %v2877 = vsel %vm219, %v2799, 0
    %2879 = vmatprep.subr.mxu0 0.0
    %2880 = vmatpush1.msra.mxu0 %v2379
    %2881 = vmatprep.subr.mxu0 0.0
    %2882 = vmatpush1.msra.mxu0 %v2381
    %2883 = vmatprep.subr.mxu0 0.0
    %2884 = vmatpush1.msra.mxu0 %v2383
    %2885 = vmatprep.subr.mxu0 0.0
    %2886 = vmatpush1.msra.mxu0 %v2385
    %2887 = vmatprep.subr.mxu0 0.0
    %2888 = vmatpush1.msra.mxu0 0.0
    %2889 = vmatprep.subr.mxu0 0.0
    %2890 = vmatpush1.msra.mxu0 0.0
    %2891 = vmatprep.subr.mxu0 0.0
    %2892 = vmatpush1.msra.mxu0 0.0
    %2893 = vmatprep.subr.mxu0 0.0
    %2894 = vmatpush1.msra.mxu0 0.0
    %2895 = vmatprep.subr.mxu0 0.0
    %2896 = vmatpush1.msra.mxu0 0.0
    %2897 = vmatprep.subr.mxu0 0.0
    %2898 = vmatpush1.msra.mxu0 0.0
    %2899 = vmatprep.subr.mxu0 0.0
    %2900 = vmatpush1.msra.mxu0 0.0
    %2901 = vmatprep.subr.mxu0 0.0
    %2902 = vmatpush1.msra.mxu0 0.0
    %2903 = vmatprep.subr.mxu0 0.0
    %2904 = vmatpush1.msra.mxu0 0.0
    %2905 = vmatprep.subr.mxu0 0.0
    %2906 = vmatpush1.msra.mxu0 0.0
    %2907 = vmatprep.subr.mxu0 0.0
    %2908 = vmatpush1.msra.mxu0 0.0
    %2909 = vmatprep.subr.mxu0 0.0
    %2910 = vmatpush1.msra.mxu0 0.0
    %2911 = vmatprep.subr.mxu0 0.0
    %2912 = vmatpush1.msra.mxu0 0.0
    %2913 = vmatprep.subr.mxu0 0.0
    %2914 = vmatpush1.msra.mxu0 0.0
    %2915 = vmatprep.subr.mxu0 0.0
    %2916 = vmatpush1.msra.mxu0 0.0
    %2917 = vmatprep.subr.mxu0 0.0
    %2918 = vmatpush1.msra.mxu0 0.0
    %2919 = vmatprep.subr.mxu0 0.0
    %2920 = vmatpush1.msra.mxu0 0.0
    %2921 = vmatprep.subr.mxu0 0.0
    %2922 = vmatpush1.msra.mxu0 0.0
    %2923 = vmatprep.subr.mxu0 0.0
    %2924 = vmatpush1.msra.mxu0 0.0
    %2925 = vmatprep.subr.mxu0 0.0
    %2926 = vmatpush1.msra.mxu0 0.0
    %2927 = vmatprep.subr.mxu0 0.0
    %2928 = vmatpush1.msra.mxu0 0.0
    %2929 = vmatprep.subr.mxu0 0.0
    %2930 = vmatpush1.msra.mxu0 0.0
    %2931 = vmatprep.subr.mxu0 0.0
    %2932 = vmatpush1.msra.mxu0 0.0
    %2933 = vmatprep.subr.mxu0 0.0
    %2934 = vmatpush1.msra.mxu0 0.0
    %2935 = vmatprep.subr.mxu0 0.0
    %2936 = vmatpush1.msra.mxu0 0.0
    %2937 = vmatprep.subr.mxu0 0.0
    %2938 = vmatpush1.msra.mxu0 0.0
    %2939 = vmatprep.subr.mxu0 0.0
    %2940 = vmatpush1.msra.mxu0 0.0
    %2941 = vmatprep.subr.mxu0 0.0
    %2942 = vmatpush1.msra.mxu0 0.0
    %2943 = vmatprep.mubr.f32.mxu0 0.0
    %2944 = vmatmul.mubr.f32.gmra.mrb[0].mxu0 %v2877
    %v2945 = vpop.f32.mrb[0].mxu0
    %v2946 = vadd.f32 0.0, %v2945
    %v2947 = vpop.f32.mrb[0].mxu0
    %2948 = vdwg.mxu0
    %v2949 = vadd.f32 %v2876, %v2946
    %v2950 = vxor.u32 %v2875, 2147483648
    %v2951 = vmul.f32 %v2950, 1.442695
    %v2952 = vpow.pop %v2951
    %v2953 = vadd.f32 %v2952, 1.0
    %v2954 = vrcp.pop %v2953
    %v2955 = vmul.f32 1.0, %v2954
    %v2956 = vtanh.pop %v2875
    %v2957 = vmul.f32 %v2955, %v2789
    %2959 = vrot.lane.b32.xlu0 %v2956, 64
    %v2960 = vpop.permute.xlu0 %2959
    %v2962 = vmul.f32 %v2955, %v2960
    %2964 = vrot.lane.b32.xlu0 %v2962, 32
    %v2965 = vpop.permute.xlu0 %2964
    %v2967 = vadd.f32 %v2957, %v2965
    %v2968 = vtanh.pop %v2967
    %2970 = vrot.lane.b32.xlu0 %v2968, 64
    %v2971 = vpop.permute.xlu0 %2970
    %v2973 = vmul.f32 %v2955, %v2971
    %v2974 = vxor.u32 %v2949, 2147483648
    %v2975 = vmul.f32 %v2974, 1.442695
    %v2976 = vpow.pop %v2975
    %v2977 = vadd.f32 %v2976, 1.0
    %v2978 = vrcp.pop %v2977
    %v2979 = vmul.f32 1.0, %v2978
    %v2980 = vtanh.pop %v2949
    %v2981 = vmul.f32 %v2979, %v2791
    %2983 = vrot.lane.b32.xlu0 %v2980, 64
    %v2984 = vpop.permute.xlu0 %2983
    %v2986 = vmul.f32 %v2979, %v2984
    %2988 = vrot.lane.b32.xlu0 %v2986, 32
    %v2989 = vpop.permute.xlu0 %2988
    %v2991 = vadd.f32 %v2981, %v2989
    %v2992 = vtanh.pop %v2991
    %2994 = vrot.lane.b32.xlu0 %v2992, 64
    %v2995 = vpop.permute.xlu0 %2994
    %v2997 = vmul.f32 %v2979, %v2995
    %v2998 = vsel %vm995, %v2973, %v2788
    %v2999 = vsel %vm995, %v2967, %v2789
    %v3000 = vsel %vm1002, %v2997, %v2790
    %v3001 = vsel %vm1002, %v2991, %v2791
    %3003 = vrot.lane.b32.xlu0 %v2998, 32
    %v3004 = vpop.permute.xlu0 %3003
    %3006 = vst.msk [vmem:[%s1009] sm:$0xff] %vm219, %v3004
    %3008 = vrot.lane.b32.xlu0 %v3000, 32
    %v3009 = vpop.permute.xlu0 %3008
    %3011 = vst.msk [vmem:[%s1015] sm:$0xff] %vm219, %v3009
    %v3012 = vld [vmem:[%s1021] sm:$0xff]
    %v3013 = vsel %vm219, %v3004, 0
    %3015 = vmatprep.subr.mxu0 0.0
    %3016 = vmatpush1.msra.mxu0 %v2378
    %3017 = vmatprep.subr.mxu0 0.0
    %3018 = vmatpush1.msra.mxu0 %v2380
    %3019 = vmatprep.subr.mxu0 0.0
    %3020 = vmatpush1.msra.mxu0 %v2382
    %3021 = vmatprep.subr.mxu0 0.0
    %3022 = vmatpush1.msra.mxu0 %v2384
    %3023 = vmatprep.subr.mxu0 0.0
    %3024 = vmatpush1.msra.mxu0 0.0
    %3025 = vmatprep.subr.mxu0 0.0
    %3026 = vmatpush1.msra.mxu0 0.0
    %3027 = vmatprep.subr.mxu0 0.0
    %3028 = vmatpush1.msra.mxu0 0.0
    %3029 = vmatprep.subr.mxu0 0.0
    %3030 = vmatpush1.msra.mxu0 0.0
    %3031 = vmatprep.subr.mxu0 0.0
    %3032 = vmatpush1.msra.mxu0 0.0
    %3033 = vmatprep.subr.mxu0 0.0
    %3034 = vmatpush1.msra.mxu0 0.0
    %3035 = vmatprep.subr.mxu0 0.0
    %3036 = vmatpush1.msra.mxu0 0.0
    %3037 = vmatprep.subr.mxu0 0.0
    %3038 = vmatpush1.msra.mxu0 0.0
    %3039 = vmatprep.subr.mxu0 0.0
    %3040 = vmatpush1.msra.mxu0 0.0
    %3041 = vmatprep.subr.mxu0 0.0
    %3042 = vmatpush1.msra.mxu0 0.0
    %3043 = vmatprep.subr.mxu0 0.0
    %3044 = vmatpush1.msra.mxu0 0.0
    %3045 = vmatprep.subr.mxu0 0.0
    %3046 = vmatpush1.msra.mxu0 0.0
    %3047 = vmatprep.subr.mxu0 0.0
    %3048 = vmatpush1.msra.mxu0 0.0
    %3049 = vmatprep.subr.mxu0 0.0
    %3050 = vmatpush1.msra.mxu0 0.0
    %3051 = vmatprep.subr.mxu0 0.0
    %3052 = vmatpush1.msra.mxu0 0.0
    %3053 = vmatprep.subr.mxu0 0.0
    %3054 = vmatpush1.msra.mxu0 0.0
    %3055 = vmatprep.subr.mxu0 0.0
    %3056 = vmatpush1.msra.mxu0 0.0
    %3057 = vmatprep.subr.mxu0 0.0
    %3058 = vmatpush1.msra.mxu0 0.0
    %3059 = vmatprep.subr.mxu0 0.0
    %3060 = vmatpush1.msra.mxu0 0.0
    %3061 = vmatprep.subr.mxu0 0.0
    %3062 = vmatpush1.msra.mxu0 0.0
    %3063 = vmatprep.subr.mxu0 0.0
    %3064 = vmatpush1.msra.mxu0 0.0
    %3065 = vmatprep.subr.mxu0 0.0
    %3066 = vmatpush1.msra.mxu0 0.0
    %3067 = vmatprep.subr.mxu0 0.0
    %3068 = vmatpush1.msra.mxu0 0.0
    %3069 = vmatprep.subr.mxu0 0.0
    %3070 = vmatpush1.msra.mxu0 0.0
    %3071 = vmatprep.subr.mxu0 0.0
    %3072 = vmatpush1.msra.mxu0 0.0
    %3073 = vmatprep.subr.mxu0 0.0
    %3074 = vmatpush1.msra.mxu0 0.0
    %3075 = vmatprep.subr.mxu0 0.0
    %3076 = vmatpush1.msra.mxu0 0.0
    %3077 = vmatprep.subr.mxu0 0.0
    %3078 = vmatpush1.msra.mxu0 0.0
    %3079 = vmatprep.mubr.f32.mxu0 0.0
    %3080 = vmatmul.mubr.f32.gmra.mrb[0].mxu0 %v3013
    %v3081 = vpop.f32.mrb[0].mxu0
    %v3082 = vadd.f32 0.0, %v3081
    %v3083 = vpop.f32.mrb[0].mxu0
    %3084 = vdwg.mxu0
    %v3085 = vadd.f32 %v3012, %v3082
    %v3086 = vld [vmem:[%s1098 + $0x8] sm:$0xff]
    %v3087 = vsel %vm219, %v3009, 0
    %3089 = vmatprep.subr.mxu0 0.0
    %3090 = vmatpush1.msra.mxu0 %v2379
    %3091 = vmatprep.subr.mxu0 0.0
    %3092 = vmatpush1.msra.mxu0 %v2381
    %3093 = vmatprep.subr.mxu0 0.0
    %3094 = vmatpush1.msra.mxu0 %v2383
    %3095 = vmatprep.subr.mxu0 0.0
    %3096 = vmatpush1.msra.mxu0 %v2385
    %3097 = vmatprep.subr.mxu0 0.0
    %3098 = vmatpush1.msra.mxu0 0.0
    %3099 = vmatprep.subr.mxu0 0.0
    %3100 = vmatpush1.msra.mxu0 0.0
    %3101 = vmatprep.subr.mxu0 0.0
    %3102 = vmatpush1.msra.mxu0 0.0
    %3103 = vmatprep.subr.mxu0 0.0
    %3104 = vmatpush1.msra.mxu0 0.0
    %3105 = vmatprep.subr.mxu0 0.0
    %3106 = vmatpush1.msra.mxu0 0.0
    %3107 = vmatprep.subr.mxu0 0.0
    %3108 = vmatpush1.msra.mxu0 0.0
    %3109 = vmatprep.subr.mxu0 0.0
    %3110 = vmatpush1.msra.mxu0 0.0
    %3111 = vmatprep.subr.mxu0 0.0
    %3112 = vmatpush1.msra.mxu0 0.0
    %3113 = vmatprep.subr.mxu0 0.0
    %3114 = vmatpush1.msra.mxu0 0.0
    %3115 = vmatprep.subr.mxu0 0.0
    %3116 = vmatpush1.msra.mxu0 0.0
    %3117 = vmatprep.subr.mxu0 0.0
    %3118 = vmatpush1.msra.mxu0 0.0
    %3119 = vmatprep.subr.mxu0 0.0
    %3120 = vmatpush1.msra.mxu0 0.0
    %3121 = vmatprep.subr.mxu0 0.0
    %3122 = vmatpush1.msra.mxu0 0.0
    %3123 = vmatprep.subr.mxu0 0.0
    %3124 = vmatpush1.msra.mxu0 0.0
    %3125 = vmatprep.subr.mxu0 0.0
    %3126 = vmatpush1.msra.mxu0 0.0
    %3127 = vmatprep.subr.mxu0 0.0
    %3128 = vmatpush1.msra.mxu0 0.0
    %3129 = vmatprep.subr.mxu0 0.0
    %3130 = vmatpush1.msra.mxu0 0.0
    %3131 = vmatprep.subr.mxu0 0.0
    %3132 = vmatpush1.msra.mxu0 0.0
    %3133 = vmatprep.subr.mxu0 0.0
    %3134 = vmatpush1.msra.mxu0 0.0
    %3135 = vmatprep.subr.mxu0 0.0
    %3136 = vmatpush1.msra.mxu0 0.0
    %3137 = vmatprep.subr.mxu0 0.0
    %3138 = vmatpush1.msra.mxu0 0.0
    %3139 = vmatprep.subr.mxu0 0.0
    %3140 = vmatpush1.msra.mxu0 0.0
    %3141 = vmatprep.subr.mxu0 0.0
    %3142 = vmatpush1.msra.mxu0 0.0
    %3143 = vmatprep.subr.mxu0 0.0
    %3144 = vmatpush1.msra.mxu0 0.0
    %3145 = vmatprep.subr.mxu0 0.0
    %3146 = vmatpush1.msra.mxu0 0.0
    %3147 = vmatprep.subr.mxu0 0.0
    %3148 = vmatpush1.msra.mxu0 0.0
    %3149 = vmatprep.subr.mxu0 0.0
    %3150 = vmatpush1.msra.mxu0 0.0
    %3151 = vmatprep.subr.mxu0 0.0
    %3152 = vmatpush1.msra.mxu0 0.0
    %3153 = vmatprep.mubr.f32.mxu0 0.0
    %3154 = vmatmul.mubr.f32.gmra.mrb[0].mxu0 %v3087
    %v3155 = vpop.f32.mrb[0].mxu0
    %v3156 = vadd.f32 0.0, %v3155
    %v3157 = vpop.f32.mrb[0].mxu0
    %3158 = vdwg.mxu0
    %v3159 = vadd.f32 %v3086, %v3156
    %v3160 = vxor.u32 %v3085, 2147483648
    %v3161 = vmul.f32 %v3160, 1.442695
    %v3162 = vpow.pop %v3161
    %v3163 = vadd.f32 %v3162, 1.0
    %v3164 = vrcp.pop %v3163
    %v3165 = vmul.f32 1.0, %v3164
    %v3166 = vtanh.pop %v3085
    %v3167 = vmul.f32 %v3165, %v2999
    %3169 = vrot.lane.b32.xlu0 %v3166, 64
    %v3170 = vpop.permute.xlu0 %3169
    %v3172 = vmul.f32 %v3165, %v3170
    %3174 = vrot.lane.b32.xlu0 %v3172, 32
    %v3175 = vpop.permute.xlu0 %3174
    %v3177 = vadd.f32 %v3167, %v3175
    %v3178 = vtanh.pop %v3177
    %3180 = vrot.lane.b32.xlu0 %v3178, 64
    %v3181 = vpop.permute.xlu0 %3180
    %v3183 = vmul.f32 %v3165, %v3181
    %v3184 = vxor.u32 %v3159, 2147483648
    %v3185 = vmul.f32 %v3184, 1.442695
    %v3186 = vpow.pop %v3185
    %v3187 = vadd.f32 %v3186, 1.0
    %v3188 = vrcp.pop %v3187
    %v3189 = vmul.f32 1.0, %v3188
    %v3190 = vtanh.pop %v3159
    %v3191 = vmul.f32 %v3189, %v3001
    %3193 = vrot.lane.b32.xlu0 %v3190, 64
    %v3194 = vpop.permute.xlu0 %3193
    %v3196 = vmul.f32 %v3189, %v3194
    %3198 = vrot.lane.b32.xlu0 %v3196, 32
    %v3199 = vpop.permute.xlu0 %3198
    %v3201 = vadd.f32 %v3191, %v3199
    %v3202 = vtanh.pop %v3201
    %3204 = vrot.lane.b32.xlu0 %v3202, 64
    %v3205 = vpop.permute.xlu0 %3204
    %v3207 = vmul.f32 %v3189, %v3205
    %v3208 = vsel %vm1225, %v3183, %v2998
    %v3209 = vsel %vm1225, %v3177, %v2999
    %v3210 = vsel %vm1232, %v3207, %v3000
    %v3211 = vsel %vm1232, %v3201, %v3001
    %3213 = vrot.lane.b32.xlu0 %v3208, 32
    %v3214 = vpop.permute.xlu0 %3213
    %3216 = vst.msk [vmem:[%s1239] sm:$0xff] %vm219, %v3214
    %3218 = vrot.lane.b32.xlu0 %v3210, 32
    %v3219 = vpop.permute.xlu0 %3218
    %3221 = vst.msk [vmem:[%s1245] sm:$0xff] %vm219, %v3219
    %v3222 = vld [vmem:[%s1098] sm:$0xff]
    %v3223 = vsel %vm219, %v3214, 0
    %3225 = vmatprep.subr.mxu0 0.0
    %3226 = vmatpush1.msra.mxu0 %v2378
    %3227 = vmatprep.subr.mxu0 0.0
    %3228 = vmatpush1.msra.mxu0 %v2380
    %3229 = vmatprep.subr.mxu0 0.0
    %3230 = vmatpush1.msra.mxu0 %v2382
    %3231 = vmatprep.subr.mxu0 0.0
    %3232 = vmatpush1.msra.mxu0 %v2384
    %3233 = vmatprep.subr.mxu0 0.0
    %3234 = vmatpush1.msra.mxu0 0.0
    %3235 = vmatprep.subr.mxu0 0.0
    %3236 = vmatpush1.msra.mxu0 0.0
    %3237 = vmatprep.subr.mxu0 0.0
    %3238 = vmatpush1.msra.mxu0 0.0
    %3239 = vmatprep.subr.mxu0 0.0
    %3240 = vmatpush1.msra.mxu0 0.0
    %3241 = vmatprep.subr.mxu0 0.0
    %3242 = vmatpush1.msra.mxu0 0.0
    %3243 = vmatprep.subr.mxu0 0.0
    %3244 = vmatpush1.msra.mxu0 0.0
    %3245 = vmatprep.subr.mxu0 0.0
    %3246 = vmatpush1.msra.mxu0 0.0
    %3247 = vmatprep.subr.mxu0 0.0
    %3248 = vmatpush1.msra.mxu0 0.0
    %3249 = vmatprep.subr.mxu0 0.0
    %3250 = vmatpush1.msra.mxu0 0.0
    %3251 = vmatprep.subr.mxu0 0.0
    %3252 = vmatpush1.msra.mxu0 0.0
    %3253 = vmatprep.subr.mxu0 0.0
    %3254 = vmatpush1.msra.mxu0 0.0
    %3255 = vmatprep.subr.mxu0 0.0
    %3256 = vmatpush1.msra.mxu0 0.0
    %3257 = vmatprep.subr.mxu0 0.0
    %3258 = vmatpush1.msra.mxu0 0.0
    %3259 = vmatprep.subr.mxu0 0.0
    %3260 = vmatpush1.msra.mxu0 0.0
    %3261 = vmatprep.subr.mxu0 0.0
    %3262 = vmatpush1.msra.mxu0 0.0
    %3263 = vmatprep.subr.mxu0 0.0
    %3264 = vmatpush1.msra.mxu0 0.0
    %3265 = vmatprep.subr.mxu0 0.0
    %3266 = vmatpush1.msra.mxu0 0.0
    %3267 = vmatprep.subr.mxu0 0.0
    %3268 = vmatpush1.msra.mxu0 0.0
    %3269 = vmatprep.subr.mxu0 0.0
    %3270 = vmatpush1.msra.mxu0 0.0
    %3271 = vmatprep.subr.mxu0 0.0
    %3272 = vmatpush1.msra.mxu0 0.0
    %3273 = vmatprep.subr.mxu0 0.0
    %3274 = vmatpush1.msra.mxu0 0.0
    %3275 = vmatprep.subr.mxu0 0.0
    %3276 = vmatpush1.msra.mxu0 0.0
    %3277 = vmatprep.subr.mxu0 0.0
    %3278 = vmatpush1.msra.mxu0 0.0
    %3279 = vmatprep.subr.mxu0 0.0
    %3280 = vmatpush1.msra.mxu0 0.0
    %3281 = vmatprep.subr.mxu0 0.0
    %3282 = vmatpush1.msra.mxu0 0.0
    %3283 = vmatprep.subr.mxu0 0.0
    %3284 = vmatpush1.msra.mxu0 0.0
    %3285 = vmatprep.subr.mxu0 0.0
    %3286 = vmatpush1.msra.mxu0 0.0
    %3287 = vmatprep.subr.mxu0 0.0
    %3288 = vmatpush1.msra.mxu0 0.0
    %3289 = vmatprep.mubr.f32.mxu0 0.0
    %3290 = vmatmul.mubr.f32.gmra.mrb[0].mxu0 %v3223
    %v3291 = vpop.f32.mrb[0].mxu0
    %v3292 = vadd.f32 0.0, %v3291
    %v3293 = vpop.f32.mrb[0].mxu0
    %3294 = vdwg.mxu0
    %v3295 = vadd.f32 %v3222, %v3292
    %v3296 = vld [vmem:[%s1021 + $0x8] sm:$0xff]
    %v3297 = vsel %vm219, %v3219, 0
    %3299 = vmatprep.subr.mxu0 0.0
    %3300 = vmatpush1.msra.mxu0 %v2379
    %3301 = vmatprep.subr.mxu0 0.0
    %3302 = vmatpush1.msra.mxu0 %v2381
    %3303 = vmatprep.subr.mxu0 0.0
    %3304 = vmatpush1.msra.mxu0 %v2383
    %3305 = vmatprep.subr.mxu0 0.0
    %3306 = vmatpush1.msra.mxu0 %v2385
    %3307 = vmatprep.subr.mxu0 0.0
    %3308 = vmatpush1.msra.mxu0 0.0
    %3309 = vmatprep.subr.mxu0 0.0
    %3310 = vmatpush1.msra.mxu0 0.0
    %3311 = vmatprep.subr.mxu0 0.0
    %3312 = vmatpush1.msra.mxu0 0.0
    %3313 = vmatprep.subr.mxu0 0.0
    %3314 = vmatpush1.msra.mxu0 0.0
    %3315 = vmatprep.subr.mxu0 0.0
    %3316 = vmatpush1.msra.mxu0 0.0
    %3317 = vmatprep.subr.mxu0 0.0
    %3318 = vmatpush1.msra.mxu0 0.0
    %3319 = vmatprep.subr.mxu0 0.0
    %3320 = vmatpush1.msra.mxu0 0.0
    %3321 = vmatprep.subr.mxu0 0.0
    %3322 = vmatpush1.msra.mxu0 0.0
    %3323 = vmatprep.subr.mxu0 0.0
    %3324 = vmatpush1.msra.mxu0 0.0
    %3325 = vmatprep.subr.mxu0 0.0
    %3326 = vmatpush1.msra.mxu0 0.0
    %3327 = vmatprep.subr.mxu0 0.0
    %3328 = vmatpush1.msra.mxu0 0.0
    %3329 = vmatprep.subr.mxu0 0.0
    %3330 = vmatpush1.msra.mxu0 0.0
    %3331 = vmatprep.subr.mxu0 0.0
    %3332 = vmatpush1.msra.mxu0 0.0
    %3333 = vmatprep.subr.mxu0 0.0
    %3334 = vmatpush1.msra.mxu0 0.0
    %3335 = vmatprep.subr.mxu0 0.0
    %3336 = vmatpush1.msra.mxu0 0.0
    %3337 = vmatprep.subr.mxu0 0.0
    %3338 = vmatpush1.msra.mxu0 0.0
    %3339 = vmatprep.subr.mxu0 0.0
    %3340 = vmatpush1.msra.mxu0 0.0
    %3341 = vmatprep.subr.mxu0 0.0
    %3342 = vmatpush1.msra.mxu0 0.0
    %3343 = vmatprep.subr.mxu0 0.0
    %3344 = vmatpush1.msra.mxu0 0.0
    %3345 = vmatprep.subr.mxu0 0.0
    %3346 = vmatpush1.msra.mxu0 0.0
    %3347 = vmatprep.subr.mxu0 0.0
    %3348 = vmatpush1.msra.mxu0 0.0
    %3349 = vmatprep.subr.mxu0 0.0
    %3350 = vmatpush1.msra.mxu0 0.0
    %3351 = vmatprep.subr.mxu0 0.0
    %3352 = vmatpush1.msra.mxu0 0.0
    %3353 = vmatprep.subr.mxu0 0.0
    %3354 = vmatpush1.msra.mxu0 0.0
    %3355 = vmatprep.subr.mxu0 0.0
    %3356 = vmatpush1.msra.mxu0 0.0
    %3357 = vmatprep.subr.mxu0 0.0
    %3358 = vmatpush1.msra.mxu0 0.0
    %3359 = vmatprep.subr.mxu0 0.0
    %3360 = vmatpush1.msra.mxu0 0.0
    %3361 = vmatprep.subr.mxu0 0.0
    %3362 = vmatpush1.msra.mxu0 0.0
    %3363 = vmatprep.mubr.f32.mxu0 0.0
    %3364 = vmatmul.mubr.f32.gmra.mrb[0].mxu0 %v3297
    %v3365 = vpop.f32.mrb[0].mxu0
    %v3366 = vadd.f32 0.0, %v3365
    %v3367 = vpop.f32.mrb[0].mxu0
    %3368 = vdwg.mxu0
    %v3369 = vadd.f32 %v3296, %v3366
    %v3370 = vxor.u32 %v3295, 2147483648
    %v3371 = vmul.f32 %v3370, 1.442695
    %v3372 = vpow.pop %v3371
    %v3373 = vadd.f32 %v3372, 1.0
    %v3374 = vrcp.pop %v3373
    %v3375 = vmul.f32 1.0, %v3374
    %v3376 = vtanh.pop %v3295
    %v3377 = vmul.f32 %v3375, %v3209
    %3379 = vrot.lane.b32.xlu0 %v3376, 64
    %v3380 = vpop.permute.xlu0 %3379
    %v3382 = vmul.f32 %v3375, %v3380
    %3384 = vrot.lane.b32.xlu0 %v3382, 32
    %v3385 = vpop.permute.xlu0 %3384
    %v3387 = vadd.f32 %v3377, %v3385
    %v3388 = vtanh.pop %v3387
    %3390 = vrot.lane.b32.xlu0 %v3388, 64
    %v3391 = vpop.permute.xlu0 %3390
    %v3393 = vmul.f32 %v3375, %v3391
    %v3394 = vxor.u32 %v3369, 2147483648
    %v3395 = vmul.f32 %v3394, 1.442695
    %v3396 = vpow.pop %v3395
    %v3397 = vadd.f32 %v3396, 1.0
    %v3398 = vrcp.pop %v3397
    %v3399 = vmul.f32 1.0, %v3398
    %v3400 = vtanh.pop %v3369
    %v3401 = vmul.f32 %v3399, %v3211
    %3403 = vrot.lane.b32.xlu0 %v3400, 64
    %v3404 = vpop.permute.xlu0 %3403
    %v3406 = vmul.f32 %v3399, %v3404
    %3408 = vrot.lane.b32.xlu0 %v3406, 32
    %v3409 = vpop.permute.xlu0 %3408
    %v3411 = vadd.f32 %v3401, %v3409
    %v3412 = vtanh.pop %v3411
    %3414 = vrot.lane.b32.xlu0 %v3412, 64
    %v3415 = vpop.permute.xlu0 %3414
    %v3417 = vmul.f32 %v3399, %v3415
    %v3418 = vsel %vm1232, %v3393, %v3208
    %v3419 = vsel %vm1232, %v3387, %v3209
    %v3420 = vsel %vm1225, %v3417, %v3210
    %v3421 = vsel %vm1225, %v3411, %v3211
    %3423 = vrot.lane.b32.xlu0 %v3418, 32
    %v3424 = vpop.permute.xlu0 %3423
    %3426 = vst.msk [vmem:[%s1451] sm:$0xff] %vm219, %v3424
    %3428 = vrot.lane.b32.xlu0 %v3420, 32
    %v3429 = vpop.permute.xlu0 %3428
    %3431 = vst.msk [vmem:[%s1457] sm:$0xff] %vm219, %v3429
    %v3432 = vld [vmem:[%s868] sm:$0xff]
    %v3433 = vsel %vm219, %v3424, 0
    %3435 = vmatprep.subr.mxu0 0.0
    %3436 = vmatpush1.msra.mxu0 %v2378
    %3437 = vmatprep.subr.mxu0 0.0
    %3438 = vmatpush1.msra.mxu0 %v2380
    %3439 = vmatprep.subr.mxu0 0.0
    %3440 = vmatpush1.msra.mxu0 %v2382
    %3441 = vmatprep.subr.mxu0 0.0
    %3442 = vmatpush1.msra.mxu0 %v2384
    %3443 = vmatprep.subr.mxu0 0.0
    %3444 = vmatpush1.msra.mxu0 0.0
    %3445 = vmatprep.subr.mxu0 0.0
    %3446 = vmatpush1.msra.mxu0 0.0
    %3447 = vmatprep.subr.mxu0 0.0
    %3448 = vmatpush1.msra.mxu0 0.0
    %3449 = vmatprep.subr.mxu0 0.0
    %3450 = vmatpush1.msra.mxu0 0.0
    %3451 = vmatprep.subr.mxu0 0.0
    %3452 = vmatpush1.msra.mxu0 0.0
    %3453 = vmatprep.subr.mxu0 0.0
    %3454 = vmatpush1.msra.mxu0 0.0
    %3455 = vmatprep.subr.mxu0 0.0
    %3456 = vmatpush1.msra.mxu0 0.0
    %3457 = vmatprep.subr.mxu0 0.0
    %3458 = vmatpush1.msra.mxu0 0.0
    %3459 = vmatprep.subr.mxu0 0.0
    %3460 = vmatpush1.msra.mxu0 0.0
    %3461 = vmatprep.subr.mxu0 0.0
    %3462 = vmatpush1.msra.mxu0 0.0
    %3463 = vmatprep.subr.mxu0 0.0
    %3464 = vmatpush1.msra.mxu0 0.0
    %3465 = vmatprep.subr.mxu0 0.0
    %3466 = vmatpush1.msra.mxu0 0.0
    %3467 = vmatprep.subr.mxu0 0.0
    %3468 = vmatpush1.msra.mxu0 0.0
    %3469 = vmatprep.subr.mxu0 0.0
    %3470 = vmatpush1.msra.mxu0 0.0
    %3471 = vmatprep.subr.mxu0 0.0
    %3472 = vmatpush1.msra.mxu0 0.0
    %3473 = vmatprep.subr.mxu0 0.0
    %3474 = vmatpush1.msra.mxu0 0.0
    %3475 = vmatprep.subr.mxu0 0.0
    %3476 = vmatpush1.msra.mxu0 0.0
    %3477 = vmatprep.subr.mxu0 0.0
    %3478 = vmatpush1.msra.mxu0 0.0
    %3479 = vmatprep.subr.mxu0 0.0
    %3480 = vmatpush1.msra.mxu0 0.0
    %3481 = vmatprep.subr.mxu0 0.0
    %3482 = vmatpush1.msra.mxu0 0.0
    %3483 = vmatprep.subr.mxu0 0.0
    %3484 = vmatpush1.msra.mxu0 0.0
    %3485 = vmatprep.subr.mxu0 0.0
    %3486 = vmatpush1.msra.mxu0 0.0
    %3487 = vmatprep.subr.mxu0 0.0
    %3488 = vmatpush1.msra.mxu0 0.0
    %3489 = vmatprep.subr.mxu0 0.0
    %3490 = vmatpush1.msra.mxu0 0.0
    %3491 = vmatprep.subr.mxu0 0.0
    %3492 = vmatpush1.msra.mxu0 0.0
    %3493 = vmatprep.subr.mxu0 0.0
    %3494 = vmatpush1.msra.mxu0 0.0
    %3495 = vmatprep.subr.mxu0 0.0
    %3496 = vmatpush1.msra.mxu0 0.0
    %3497 = vmatprep.subr.mxu0 0.0
    %3498 = vmatpush1.msra.mxu0 0.0
    %3499 = vmatprep.mubr.f32.mxu0 0.0
    %3500 = vmatmul.mubr.f32.gmra.mrb[0].mxu0 %v3433
    %v3501 = vpop.f32.mrb[0].mxu0
    %v3502 = vadd.f32 0.0, %v3501
    %v3503 = vpop.f32.mrb[0].mxu0
    %3504 = vdwg.mxu0
    %v3505 = vadd.f32 %v3432, %v3502
    %v3506 = vld [vmem:[%s791 + $0x8] sm:$0xff]
    %v3507 = vsel %vm219, %v3429, 0
    %3509 = vmatprep.subr.mxu0 0.0
    %3510 = vmatpush1.msra.mxu0 %v2379
    %3511 = vmatprep.subr.mxu0 0.0
    %3512 = vmatpush1.msra.mxu0 %v2381
    %3513 = vmatprep.subr.mxu0 0.0
    %3514 = vmatpush1.msra.mxu0 %v2383
    %3515 = vmatprep.subr.mxu0 0.0
    %3516 = vmatpush1.msra.mxu0 %v2385
    %3517 = vmatprep.subr.mxu0 0.0
    %3518 = vmatpush1.msra.mxu0 0.0
    %3519 = vmatprep.subr.mxu0 0.0
    %3520 = vmatpush1.msra.mxu0 0.0
    %3521 = vmatprep.subr.mxu0 0.0
    %3522 = vmatpush1.msra.mxu0 0.0
    %3523 = vmatprep.subr.mxu0 0.0
    %3524 = vmatpush1.msra.mxu0 0.0
    %3525 = vmatprep.subr.mxu0 0.0
    %3526 = vmatpush1.msra.mxu0 0.0
    %3527 = vmatprep.subr.mxu0 0.0
    %3528 = vmatpush1.msra.mxu0 0.0
    %3529 = vmatprep.subr.mxu0 0.0
    %3530 = vmatpush1.msra.mxu0 0.0
    %3531 = vmatprep.subr.mxu0 0.0
    %3532 = vmatpush1.msra.mxu0 0.0
    %3533 = vmatprep.subr.mxu0 0.0
    %3534 = vmatpush1.msra.mxu0 0.0
    %3535 = vmatprep.subr.mxu0 0.0
    %3536 = vmatpush1.msra.mxu0 0.0
    %3537 = vmatprep.subr.mxu0 0.0
    %3538 = vmatpush1.msra.mxu0 0.0
    %3539 = vmatprep.subr.mxu0 0.0
    %3540 = vmatpush1.msra.mxu0 0.0
    %3541 = vmatprep.subr.mxu0 0.0
    %3542 = vmatpush1.msra.mxu0 0.0
    %3543 = vmatprep.subr.mxu0 0.0
    %3544 = vmatpush1.msra.mxu0 0.0
    %3545 = vmatprep.subr.mxu0 0.0
    %3546 = vmatpush1.msra.mxu0 0.0
    %3547 = vmatprep.subr.mxu0 0.0
    %3548 = vmatpush1.msra.mxu0 0.0
    %3549 = vmatprep.subr.mxu0 0.0
    %3550 = vmatpush1.msra.mxu0 0.0
    %3551 = vmatprep.subr.mxu0 0.0
    %3552 = vmatpush1.msra.mxu0 0.0
    %3553 = vmatprep.subr.mxu0 0.0
    %3554 = vmatpush1.msra.mxu0 0.0
    %3555 = vmatprep.subr.mxu0 0.0
    %3556 = vmatpush1.msra.mxu0 0.0
    %3557 = vmatprep.subr.mxu0 0.0
    %3558 = vmatpush1.msra.mxu0 0.0
    %3559 = vmatprep.subr.mxu0 0.0
    %3560 = vmatpush1.msra.mxu0 0.0
    %3561 = vmatprep.subr.mxu0 0.0
    %3562 = vmatpush1.msra.mxu0 0.0
    %3563 = vmatprep.subr.mxu0 0.0
    %3564 = vmatpush1.msra.mxu0 0.0
    %3565 = vmatprep.subr.mxu0 0.0
    %3566 = vmatpush1.msra.mxu0 0.0
    %3567 = vmatprep.subr.mxu0 0.0
    %3568 = vmatpush1.msra.mxu0 0.0
    %3569 = vmatprep.subr.mxu0 0.0
    %3570 = vmatpush1.msra.mxu0 0.0
    %3571 = vmatprep.subr.mxu0 0.0
    %3572 = vmatpush1.msra.mxu0 0.0
    %3573 = vmatprep.mubr.f32.mxu0 0.0
    %3574 = vmatmul.mubr.f32.gmra.mrb[0].mxu0 %v3507
    %v3575 = vpop.f32.mrb[0].mxu0
    %v3576 = vadd.f32 0.0, %v3575
    %v3577 = vpop.f32.mrb[0].mxu0
    %3578 = vdwg.mxu0
    %v3579 = vadd.f32 %v3506, %v3576
    %v3580 = vxor.u32 %v3505, 2147483648
    %v3581 = vmul.f32 %v3580, 1.442695
    %v3582 = vpow.pop %v3581
    %v3583 = vadd.f32 %v3582, 1.0
    %v3584 = vrcp.pop %v3583
    %v3585 = vmul.f32 1.0, %v3584
    %v3586 = vtanh.pop %v3505
    %v3587 = vmul.f32 %v3585, %v3419
    %3589 = vrot.lane.b32.xlu0 %v3586, 64
    %v3590 = vpop.permute.xlu0 %3589
    %v3592 = vmul.f32 %v3585, %v3590
    %3594 = vrot.lane.b32.xlu0 %v3592, 32
    %v3595 = vpop.permute.xlu0 %3594
    %v3597 = vadd.f32 %v3587, %v3595
    %v3598 = vtanh.pop %v3597
    %3600 = vrot.lane.b32.xlu0 %v3598, 64
    %v3601 = vpop.permute.xlu0 %3600
    %v3603 = vmul.f32 %v3585, %v3601
    %v3604 = vxor.u32 %v3579, 2147483648
    %v3605 = vmul.f32 %v3604, 1.442695
    %v3606 = vpow.pop %v3605
    %v3607 = vadd.f32 %v3606, 1.0
    %v3608 = vrcp.pop %v3607
    %v3609 = vmul.f32 1.0, %v3608
    %v3610 = vtanh.pop %v3579
    %v3611 = vmul.f32 %v3609, %v3421
    %3613 = vrot.lane.b32.xlu0 %v3610, 64
    %v3614 = vpop.permute.xlu0 %3613
    %v3616 = vmul.f32 %v3609, %v3614
    %3618 = vrot.lane.b32.xlu0 %v3616, 32
    %v3619 = vpop.permute.xlu0 %3618
    %v3621 = vadd.f32 %v3611, %v3619
    %v3622 = vtanh.pop %v3621
    %3624 = vrot.lane.b32.xlu0 %v3622, 64
    %v3625 = vpop.permute.xlu0 %3624
    %v3627 = vmul.f32 %v3609, %v3625
    %v3628 = vsel %vm1002, %v3603, %v3418
    %v3629 = vsel %vm1002, %v3597, %v3419
    %v3630 = vsel %vm995, %v3627, %v3420
    %v3631 = vsel %vm995, %v3621, %v3421
    %3633 = vrot.lane.b32.xlu0 %v3628, 32
    %v3634 = vpop.permute.xlu0 %3633
    %3636 = vst.msk [vmem:[%s1663] sm:$0xff] %vm219, %v3634
    %3638 = vrot.lane.b32.xlu0 %v3630, 32
    %v3639 = vpop.permute.xlu0 %3638
    %3641 = vst.msk [vmem:[%s1669] sm:$0xff] %vm219, %v3639
    %v3642 = vld [vmem:[%s638] sm:$0xff]
    %v3643 = vsel %vm219, %v3634, 0
    %3645 = vmatprep.subr.mxu0 0.0
    %3646 = vmatpush1.msra.mxu0 %v2378
    %3647 = vmatprep.subr.mxu0 0.0
    %3648 = vmatpush1.msra.mxu0 %v2380
    %3649 = vmatprep.subr.mxu0 0.0
    %3650 = vmatpush1.msra.mxu0 %v2382
    %3651 = vmatprep.subr.mxu0 0.0
    %3652 = vmatpush1.msra.mxu0 %v2384
    %3653 = vmatprep.subr.mxu0 0.0
    %3654 = vmatpush1.msra.mxu0 0.0
    %3655 = vmatprep.subr.mxu0 0.0
    %3656 = vmatpush1.msra.mxu0 0.0
    %3657 = vmatprep.subr.mxu0 0.0
    %3658 = vmatpush1.msra.mxu0 0.0
    %3659 = vmatprep.subr.mxu0 0.0
    %3660 = vmatpush1.msra.mxu0 0.0
    %3661 = vmatprep.subr.mxu0 0.0
    %3662 = vmatpush1.msra.mxu0 0.0
    %3663 = vmatprep.subr.mxu0 0.0
    %3664 = vmatpush1.msra.mxu0 0.0
    %3665 = vmatprep.subr.mxu0 0.0
    %3666 = vmatpush1.msra.mxu0 0.0
    %3667 = vmatprep.subr.mxu0 0.0
    %3668 = vmatpush1.msra.mxu0 0.0
    %3669 = vmatprep.subr.mxu0 0.0
    %3670 = vmatpush1.msra.mxu0 0.0
    %3671 = vmatprep.subr.mxu0 0.0
    %3672 = vmatpush1.msra.mxu0 0.0
    %3673 = vmatprep.subr.mxu0 0.0
    %3674 = vmatpush1.msra.mxu0 0.0
    %3675 = vmatprep.subr.mxu0 0.0
    %3676 = vmatpush1.msra.mxu0 0.0
    %3677 = vmatprep.subr.mxu0 0.0
    %3678 = vmatpush1.msra.mxu0 0.0
    %3679 = vmatprep.subr.mxu0 0.0
    %3680 = vmatpush1.msra.mxu0 0.0
    %3681 = vmatprep.subr.mxu0 0.0
    %3682 = vmatpush1.msra.mxu0 0.0
    %3683 = vmatprep.subr.mxu0 0.0
    %3684 = vmatpush1.msra.mxu0 0.0
    %3685 = vmatprep.subr.mxu0 0.0
    %3686 = vmatpush1.msra.mxu0 0.0
    %3687 = vmatprep.subr.mxu0 0.0
    %3688 = vmatpush1.msra.mxu0 0.0
    %3689 = vmatprep.subr.mxu0 0.0
    %3690 = vmatpush1.msra.mxu0 0.0
    %3691 = vmatprep.subr.mxu0 0.0
    %3692 = vmatpush1.msra.mxu0 0.0
    %3693 = vmatprep.subr.mxu0 0.0
    %3694 = vmatpush1.msra.mxu0 0.0
    %3695 = vmatprep.subr.mxu0 0.0
    %3696 = vmatpush1.msra.mxu0 0.0
    %3697 = vmatprep.subr.mxu0 0.0
    %3698 = vmatpush1.msra.mxu0 0.0
    %3699 = vmatprep.subr.mxu0 0.0
    %3700 = vmatpush1.msra.mxu0 0.0
    %3701 = vmatprep.subr.mxu0 0.0
    %3702 = vmatpush1.msra.mxu0 0.0
    %3703 = vmatprep.subr.mxu0 0.0
    %3704 = vmatpush1.msra.mxu0 0.0
    %3705 = vmatprep.subr.mxu0 0.0
    %3706 = vmatpush1.msra.mxu0 0.0
    %3707 = vmatprep.subr.mxu0 0.0
    %3708 = vmatpush1.msra.mxu0 0.0
    %3709 = vmatprep.mubr.f32.mxu0 0.0
    %3710 = vmatmul.mubr.f32.gmra.mrb[0].mxu0 %v3643
    %v3711 = vpop.f32.mrb[0].mxu0
    %v3712 = vadd.f32 0.0, %v3711
    %v3713 = vpop.f32.mrb[0].mxu0
    %3714 = vdwg.mxu0
    %v3715 = vadd.f32 %v3642, %v3712
    %v3716 = vld [vmem:[%s561 + $0x8] sm:$0xff]
    %v3717 = vsel %vm219, %v3639, 0
    %3719 = vmatprep.subr.mxu0 0.0
    %3720 = vmatpush1.msra.mxu0 %v2379
    %3721 = vmatprep.subr.mxu0 0.0
    %3722 = vmatpush1.msra.mxu0 %v2381
    %3723 = vmatprep.subr.mxu0 0.0
    %3724 = vmatpush1.msra.mxu0 %v2383
    %3725 = vmatprep.subr.mxu0 0.0
    %3726 = vmatpush1.msra.mxu0 %v2385
    %3727 = vmatprep.subr.mxu0 0.0
    %3728 = vmatpush1.msra.mxu0 0.0
    %3729 = vmatprep.subr.mxu0 0.0
    %3730 = vmatpush1.msra.mxu0 0.0
    %3731 = vmatprep.subr.mxu0 0.0
    %3732 = vmatpush1.msra.mxu0 0.0
    %3733 = vmatprep.subr.mxu0 0.0
    %3734 = vmatpush1.msra.mxu0 0.0
    %3735 = vmatprep.subr.mxu0 0.0
    %3736 = vmatpush1.msra.mxu0 0.0
    %3737 = vmatprep.subr.mxu0 0.0
    %3738 = vmatpush1.msra.mxu0 0.0
    %3739 = vmatprep.subr.mxu0 0.0
    %3740 = vmatpush1.msra.mxu0 0.0
    %3741 = vmatprep.subr.mxu0 0.0
    %3742 = vmatpush1.msra.mxu0 0.0
    %3743 = vmatprep.subr.mxu0 0.0
    %3744 = vmatpush1.msra.mxu0 0.0
    %3745 = vmatprep.subr.mxu0 0.0
    %3746 = vmatpush1.msra.mxu0 0.0
    %3747 = vmatprep.subr.mxu0 0.0
    %3748 = vmatpush1.msra.mxu0 0.0
    %3749 = vmatprep.subr.mxu0 0.0
    %3750 = vmatpush1.msra.mxu0 0.0
    %3751 = vmatprep.subr.mxu0 0.0
    %3752 = vmatpush1.msra.mxu0 0.0
    %3753 = vmatprep.subr.mxu0 0.0
    %3754 = vmatpush1.msra.mxu0 0.0
    %3755 = vmatprep.subr.mxu0 0.0
    %3756 = vmatpush1.msra.mxu0 0.0
    %3757 = vmatprep.subr.mxu0 0.0
    %3758 = vmatpush1.msra.mxu0 0.0
    %3759 = vmatprep.subr.mxu0 0.0
    %3760 = vmatpush1.msra.mxu0 0.0
    %3761 = vmatprep.subr.mxu0 0.0
    %3762 = vmatpush1.msra.mxu0 0.0
    %3763 = vmatprep.subr.mxu0 0.0
    %3764 = vmatpush1.msra.mxu0 0.0
    %3765 = vmatprep.subr.mxu0 0.0
    %3766 = vmatpush1.msra.mxu0 0.0
    %3767 = vmatprep.subr.mxu0 0.0
    %3768 = vmatpush1.msra.mxu0 0.0
    %3769 = vmatprep.subr.mxu0 0.0
    %3770 = vmatpush1.msra.mxu0 0.0
    %3771 = vmatprep.subr.mxu0 0.0
    %3772 = vmatpush1.msra.mxu0 0.0
    %3773 = vmatprep.subr.mxu0 0.0
    %3774 = vmatpush1.msra.mxu0 0.0
    %3775 = vmatprep.subr.mxu0 0.0
    %3776 = vmatpush1.msra.mxu0 0.0
    %3777 = vmatprep.subr.mxu0 0.0
    %3778 = vmatpush1.msra.mxu0 0.0
    %3779 = vmatprep.subr.mxu0 0.0
    %3780 = vmatpush1.msra.mxu0 0.0
    %3781 = vmatprep.subr.mxu0 0.0
    %3782 = vmatpush1.msra.mxu0 0.0
    %3783 = vmatprep.mubr.f32.mxu0 0.0
    %3784 = vmatmul.mubr.f32.gmra.mrb[0].mxu0 %v3717
    %v3785 = vpop.f32.mrb[0].mxu0
    %v3786 = vadd.f32 0.0, %v3785
    %v3787 = vpop.f32.mrb[0].mxu0
    %3788 = vdwg.mxu0
    %v3789 = vadd.f32 %v3716, %v3786
    %v3790 = vxor.u32 %v3715, 2147483648
    %v3791 = vmul.f32 %v3790, 1.442695
    %v3792 = vpow.pop %v3791
    %v3793 = vadd.f32 %v3792, 1.0
    %v3794 = vrcp.pop %v3793
    %v3795 = vmul.f32 1.0, %v3794
    %v3796 = vtanh.pop %v3715
    %v3797 = vmul.f32 %v3795, %v3629
    %3799 = vrot.lane.b32.xlu0 %v3796, 64
    %v3800 = vpop.permute.xlu0 %3799
    %v3802 = vmul.f32 %v3795, %v3800
    %3804 = vrot.lane.b32.xlu0 %v3802, 32
    %v3805 = vpop.permute.xlu0 %3804
    %v3807 = vadd.f32 %v3797, %v3805
    %v3808 = vtanh.pop %v3807
    %3810 = vrot.lane.b32.xlu0 %v3808, 64
    %v3811 = vpop.permute.xlu0 %3810
    %v3813 = vmul.f32 %v3795, %v3811
    %v3814 = vxor.u32 %v3789, 2147483648
    %v3815 = vmul.f32 %v3814, 1.442695
    %v3816 = vpow.pop %v3815
    %v3817 = vadd.f32 %v3816, 1.0
    %v3818 = vrcp.pop %v3817
    %v3819 = vmul.f32 1.0, %v3818
    %v3820 = vtanh.pop %v3789
    %v3821 = vmul.f32 %v3819, %v3631
    %3823 = vrot.lane.b32.xlu0 %v3820, 64
    %v3824 = vpop.permute.xlu0 %3823
    %v3826 = vmul.f32 %v3819, %v3824
    %3828 = vrot.lane.b32.xlu0 %v3826, 32
    %v3829 = vpop.permute.xlu0 %3828
    %v3831 = vadd.f32 %v3821, %v3829
    %v3832 = vtanh.pop %v3831
    %3834 = vrot.lane.b32.xlu0 %v3832, 64
    %v3835 = vpop.permute.xlu0 %3834
    %v3837 = vmul.f32 %v3819, %v3835
    %v3838 = vsel %vm772, %v3813, %v3628
    %v3839 = vsel %vm772, %v3807, %v3629
    %v3840 = vsel %vm765, %v3837, %v3630
    %v3841 = vsel %vm765, %v3831, %v3631
    %3843 = vrot.lane.b32.xlu0 %v3838, 32
    %v3844 = vpop.permute.xlu0 %3843
    %3846 = vst.msk [vmem:[%s1875] sm:$0xff] %vm219, %v3844
    %3848 = vrot.lane.b32.xlu0 %v3840, 32
    %v3849 = vpop.permute.xlu0 %3848
    %3851 = vst.msk [vmem:[%s1881] sm:$0xff] %vm219, %v3849
    %v3852 = vld [vmem:[%s411] sm:$0xff]
    %v3853 = vsel %vm219, %v3844, 0
    %3855 = vmatprep.subr.mxu0 0.0
    %3856 = vmatpush1.msra.mxu0 %v2378
    %3857 = vmatprep.subr.mxu0 0.0
    %3858 = vmatpush1.msra.mxu0 %v2380
    %3859 = vmatprep.subr.mxu0 0.0
    %3860 = vmatpush1.msra.mxu0 %v2382
    %3861 = vmatprep.subr.mxu0 0.0
    %3862 = vmatpush1.msra.mxu0 %v2384
    %3863 = vmatprep.subr.mxu0 0.0
    %3864 = vmatpush1.msra.mxu0 0.0
    %3865 = vmatprep.subr.mxu0 0.0
    %3866 = vmatpush1.msra.mxu0 0.0
    %3867 = vmatprep.subr.mxu0 0.0
    %3868 = vmatpush1.msra.mxu0 0.0
    %3869 = vmatprep.subr.mxu0 0.0
    %3870 = vmatpush1.msra.mxu0 0.0
    %3871 = vmatprep.subr.mxu0 0.0
    %3872 = vmatpush1.msra.mxu0 0.0
    %3873 = vmatprep.subr.mxu0 0.0
    %3874 = vmatpush1.msra.mxu0 0.0
    %3875 = vmatprep.subr.mxu0 0.0
    %3876 = vmatpush1.msra.mxu0 0.0
    %3877 = vmatprep.subr.mxu0 0.0
    %3878 = vmatpush1.msra.mxu0 0.0
    %3879 = vmatprep.subr.mxu0 0.0
    %3880 = vmatpush1.msra.mxu0 0.0
    %3881 = vmatprep.subr.mxu0 0.0
    %3882 = vmatpush1.msra.mxu0 0.0
    %3883 = vmatprep.subr.mxu0 0.0
    %3884 = vmatpush1.msra.mxu0 0.0
    %3885 = vmatprep.subr.mxu0 0.0
    %3886 = vmatpush1.msra.mxu0 0.0
    %3887 = vmatprep.subr.mxu0 0.0
    %3888 = vmatpush1.msra.mxu0 0.0
    %3889 = vmatprep.subr.mxu0 0.0
    %3890 = vmatpush1.msra.mxu0 0.0
    %3891 = vmatprep.subr.mxu0 0.0
    %3892 = vmatpush1.msra.mxu0 0.0
    %3893 = vmatprep.subr.mxu0 0.0
    %3894 = vmatpush1.msra.mxu0 0.0
    %3895 = vmatprep.subr.mxu0 0.0
    %3896 = vmatpush1.msra.mxu0 0.0
    %3897 = vmatprep.subr.mxu0 0.0
    %3898 = vmatpush1.msra.mxu0 0.0
    %3899 = vmatprep.subr.mxu0 0.0
    %3900 = vmatpush1.msra.mxu0 0.0
    %3901 = vmatprep.subr.mxu0 0.0
    %3902 = vmatpush1.msra.mxu0 0.0
    %3903 = vmatprep.subr.mxu0 0.0
    %3904 = vmatpush1.msra.mxu0 0.0
    %3905 = vmatprep.subr.mxu0 0.0
    %3906 = vmatpush1.msra.mxu0 0.0
    %3907 = vmatprep.subr.mxu0 0.0
    %3908 = vmatpush1.msra.mxu0 0.0
    %3909 = vmatprep.subr.mxu0 0.0
    %3910 = vmatpush1.msra.mxu0 0.0
    %3911 = vmatprep.subr.mxu0 0.0
    %3912 = vmatpush1.msra.mxu0 0.0
    %3913 = vmatprep.subr.mxu0 0.0
    %3914 = vmatpush1.msra.mxu0 0.0
    %3915 = vmatprep.subr.mxu0 0.0
    %3916 = vmatpush1.msra.mxu0 0.0
    %3917 = vmatprep.subr.mxu0 0.0
    %3918 = vmatpush1.msra.mxu0 0.0
    %3919 = vmatprep.mubr.f32.mxu0 0.0
    %3920 = vmatmul.mubr.f32.gmra.mrb[0].mxu0 %v3853
    %v3921 = vpop.f32.mrb[0].mxu0
    %v3922 = vadd.f32 0.0, %v3921
    %v3923 = vpop.f32.mrb[0].mxu0
    %3924 = vdwg.mxu0
    %v3925 = vadd.f32 %v3852, %v3922
    %v3926 = vld [vmem:[%s333 + $0x8] sm:$0xff]
    %v3927 = vsel %vm219, %v3849, 0
    %3929 = vmatprep.subr.mxu0 0.0
    %3930 = vmatpush1.msra.mxu0 %v2379
    %3931 = vmatprep.subr.mxu0 0.0
    %3932 = vmatpush1.msra.mxu0 %v2381
    %3933 = vmatprep.subr.mxu0 0.0
    %3934 = vmatpush1.msra.mxu0 %v2383
    %3935 = vmatprep.subr.mxu0 0.0
    %3936 = vmatpush1.msra.mxu0 %v2385
    %3937 = vmatprep.subr.mxu0 0.0
    %3938 = vmatpush1.msra.mxu0 0.0
    %3939 = vmatprep.subr.mxu0 0.0
    %3940 = vmatpush1.msra.mxu0 0.0
    %3941 = vmatprep.subr.mxu0 0.0
    %3942 = vmatpush1.msra.mxu0 0.0
    %3943 = vmatprep.subr.mxu0 0.0
    %3944 = vmatpush1.msra.mxu0 0.0
    %3945 = vmatprep.subr.mxu0 0.0
    %3946 = vmatpush1.msra.mxu0 0.0
    %3947 = vmatprep.subr.mxu0 0.0
    %3948 = vmatpush1.msra.mxu0 0.0
    %3949 = vmatprep.subr.mxu0 0.0
    %3950 = vmatpush1.msra.mxu0 0.0
    %3951 = vmatprep.subr.mxu0 0.0
    %3952 = vmatpush1.msra.mxu0 0.0
    %3953 = vmatprep.subr.mxu0 0.0
    %3954 = vmatpush1.msra.mxu0 0.0
    %3955 = vmatprep.subr.mxu0 0.0
    %3956 = vmatpush1.msra.mxu0 0.0
    %3957 = vmatprep.subr.mxu0 0.0
    %3958 = vmatpush1.msra.mxu0 0.0
    %3959 = vmatprep.subr.mxu0 0.0
    %3960 = vmatpush1.msra.mxu0 0.0
    %3961 = vmatprep.subr.mxu0 0.0
    %3962 = vmatpush1.msra.mxu0 0.0
    %3963 = vmatprep.subr.mxu0 0.0
    %3964 = vmatpush1.msra.mxu0 0.0
    %3965 = vmatprep.subr.mxu0 0.0
    %3966 = vmatpush1.msra.mxu0 0.0
    %3967 = vmatprep.subr.mxu0 0.0
    %3968 = vmatpush1.msra.mxu0 0.0
    %3969 = vmatprep.subr.mxu0 0.0
    %3970 = vmatpush1.msra.mxu0 0.0
    %3971 = vmatprep.subr.mxu0 0.0
    %3972 = vmatpush1.msra.mxu0 0.0
    %3973 = vmatprep.subr.mxu0 0.0
    %3974 = vmatpush1.msra.mxu0 0.0
    %3975 = vmatprep.subr.mxu0 0.0
    %3976 = vmatpush1.msra.mxu0 0.0
    %3977 = vmatprep.subr.mxu0 0.0
    %3978 = vmatpush1.msra.mxu0 0.0
    %3979 = vmatprep.subr.mxu0 0.0
    %3980 = vmatpush1.msra.mxu0 0.0
    %3981 = vmatprep.subr.mxu0 0.0
    %3982 = vmatpush1.msra.mxu0 0.0
    %3983 = vmatprep.subr.mxu0 0.0
    %3984 = vmatpush1.msra.mxu0 0.0
    %3985 = vmatprep.subr.mxu0 0.0
    %3986 = vmatpush1.msra.mxu0 0.0
    %3987 = vmatprep.subr.mxu0 0.0
    %3988 = vmatpush1.msra.mxu0 0.0
    %3989 = vmatprep.subr.mxu0 0.0
    %3990 = vmatpush1.msra.mxu0 0.0
    %3991 = vmatprep.subr.mxu0 0.0
    %3992 = vmatpush1.msra.mxu0 0.0
    %3993 = vmatprep.mubr.f32.mxu0 0.0
    %3994 = vmatmul.mubr.f32.gmra.mrb[0].mxu0 %v3927
    %v3995 = vpop.f32.mrb[0].mxu0
    %v3996 = vadd.f32 0.0, %v3995
    %v3997 = vpop.f32.mrb[0].mxu0
    %3998 = vdwg.mxu0
    %v3999 = vadd.f32 %v3926, %v3996
    %v4000 = vxor.u32 %v3925, 2147483648
    %v4001 = vmul.f32 %v4000, 1.442695
    %v4002 = vpow.pop %v4001
    %v4003 = vadd.f32 %v4002, 1.0
    %v4004 = vrcp.pop %v4003
    %v4005 = vmul.f32 1.0, %v4004
    %v4006 = vtanh.pop %v3925
    %v4007 = vmul.f32 %v4005, %v3839
    %4009 = vrot.lane.b32.xlu0 %v4006, 64
    %v4010 = vpop.permute.xlu0 %4009
    %v4012 = vmul.f32 %v4005, %v4010
    %4014 = vrot.lane.b32.xlu0 %v4012, 32
    %v4015 = vpop.permute.xlu0 %4014
    %v4017 = vadd.f32 %v4007, %v4015
    %v4018 = vtanh.pop %v4017
    %4020 = vrot.lane.b32.xlu0 %v4018, 64
    %v4021 = vpop.permute.xlu0 %4020
    %v4023 = vmul.f32 %v4005, %v4021
    %v4024 = vxor.u32 %v3999, 2147483648
    %v4025 = vmul.f32 %v4024, 1.442695
    %v4026 = vpow.pop %v4025
    %v4027 = vadd.f32 %v4026, 1.0
    %v4028 = vrcp.pop %v4027
    %v4029 = vmul.f32 1.0, %v4028
    %v4030 = vtanh.pop %v3999
    %v4031 = vmul.f32 %v4029, %v3841
    %4033 = vrot.lane.b32.xlu0 %v4030, 64
    %v4034 = vpop.permute.xlu0 %4033
    %v4036 = vmul.f32 %v4029, %v4034
    %4038 = vrot.lane.b32.xlu0 %v4036, 32
    %v4039 = vpop.permute.xlu0 %4038
    %v4041 = vadd.f32 %v4031, %v4039
    %v4042 = vtanh.pop %v4041
    %4044 = vrot.lane.b32.xlu0 %v4042, 64
    %v4045 = vpop.permute.xlu0 %4044
    %v4047 = vmul.f32 %v4029, %v4045
    %v4048 = vsel %vm543, %v4023, %v3838
    %v4049 = vsel %vm536, %v4047, %v3840
    %4051 = vrot.lane.b32.xlu0 %v4048, 32
    %v4052 = vpop.permute.xlu0 %4051
    %4054 = vst.msk [vmem:[%s2085] sm:$0xff] %vm219, %v4052
    %4056 = vrot.lane.b32.xlu0 %v4049, 32
    %v4057 = vpop.permute.xlu0 %4056
    %4059 = vst.msk [vmem:[#allocation4] sm:$0xff] %vm219, %v4057
    %v4060 = vld [vmem:[%s10] sm:$0xf]
    %v4061 = vld [vmem:[%s10 + $0x4] sm:$0xf]
    %v4062 = vld [vmem:[%s10 + $0x8] sm:$0xf]
    %v4063 = vld [vmem:[%s10 + $0xc] sm:$0xf]
    %v4064 = vld [vmem:[%s10 + $0x10] sm:$0xf]
    %v4065 = vld [vmem:[%s10 + $0x14] sm:$0xf]
    %v4066 = vld [vmem:[%s10 + $0x18] sm:$0xf]
    %v4067 = vld [vmem:[%s10 + $0x1c] sm:$0xf]
    %v4068 = vld [vmem:[%s10 + $0x20] sm:$0xf]
    %v4069 = vld [vmem:[%s10 + $0x24] sm:$0xf]
    %v4070 = vld [vmem:[%s10 + $0x28] sm:$0xf]
    %v4071 = vld [vmem:[%s10 + $0x2c] sm:$0xf]
    %v4072 = vld [vmem:[%s10 + $0x30] sm:$0xf]
    %v4073 = vld [vmem:[%s10 + $0x34] sm:$0xf]
    %v4074 = vld [vmem:[%s10 + $0x38] sm:$0xf]
    %v4075 = vld [vmem:[%s10 + $0x3c] sm:$0xf]
    %v4076 = vld [vmem:[%s11] sm:$0x1]
    %v4077 = vpack.c.bf16 %v4049, %v4049
    %4079 = vrot.lane.b32.xlu0 %v4077, 32
    %v4080 = vpop.permute.xlu0 %4079
    %v4085 = vunpack.c.l.b16 %v4060
    %v4086 = vunpack.c.l.b16 %v4061
    %v4087 = vunpack.c.l.b16 %v4062
    %v4088 = vunpack.c.l.b16 %v4063
    %v4089 = vpack.c.b16 %v4086, %v4085
    %v4090 = vpack.c.b16 %v4088, %v4087
    %v4094 = vsel %vm219, %v4080, 0
    %4096 = vmatprep.subr.bf16.mxu0 0
    %4097 = vmatpush1.bf16.msra.mxu0 %v4089
    %4098 = vmatprep.subr.bf16.mxu0 0
    %4099 = vmatpush1.bf16.msra.mxu0 %v4090
    %4100 = vmatprep.subr.bf16.mxu0 0
    %4101 = vmatpush1.bf16.msra.mxu0 0
    %4102 = vmatprep.subr.bf16.mxu0 0
    %4103 = vmatpush1.bf16.msra.mxu0 0
    %4104 = vmatprep.subr.bf16.mxu0 0
    %4105 = vmatpush1.bf16.msra.mxu0 0
    %4106 = vmatprep.subr.bf16.mxu0 0
    %4107 = vmatpush1.bf16.msra.mxu0 0
    %4108 = vmatprep.subr.bf16.mxu0 0
    %4109 = vmatpush1.bf16.msra.mxu0 0
    %4110 = vmatprep.subr.bf16.mxu0 0
    %4111 = vmatpush1.bf16.msra.mxu0 0
    %4112 = vmatprep.subr.bf16.mxu0 0
    %4113 = vmatpush1.bf16.msra.mxu0 0
    %4114 = vmatprep.subr.bf16.mxu0 0
    %4115 = vmatpush1.bf16.msra.mxu0 0
    %4116 = vmatprep.subr.bf16.mxu0 0
    %4117 = vmatpush1.bf16.msra.mxu0 0
    %4118 = vmatprep.subr.bf16.mxu0 0
    %4119 = vmatpush1.bf16.msra.mxu0 0
    %4120 = vmatprep.subr.bf16.mxu0 0
    %4121 = vmatpush1.bf16.msra.mxu0 0
    %4122 = vmatprep.subr.bf16.mxu0 0
    %4123 = vmatpush1.bf16.msra.mxu0 0
    %4124 = vmatprep.subr.bf16.mxu0 0
    %4125 = vmatpush1.bf16.msra.mxu0 0
    %4126 = vmatprep.subr.bf16.mxu0 0
    %4127 = vmatpush1.bf16.msra.mxu0 0
    %4128 = vmatprep.mubr.bf16.mxu0 0
    %4129 = vmatmul.mubr.bf16.gmra.mrb[0].mxu0 %v4094
    %v4130 = vpop.f32.mrb[0].mxu0
    %v4131 = vadd.f32 0.0, %v4130
    %v4132 = vpop.f32.mrb[0].mxu0
    %v4133 = vpop.f32.mrb[0].mxu0
    %v4134 = vpop.f32.mrb[0].mxu0
    %4135 = vdwg.mxu0
    %v4137 = vlaneseq
    %v4138 = vshrl.u32 %v4137, 7
    %v4139 = vsub.s32 0, %v4138
    %v4140 = vrot.slane %v4076, %v4139
    %v4142 = vadd.f32 %v4140, %v4131
    %v4143 = vpack.c.bf16 %v4048, %v4048
    %4145 = vrot.lane.b32.xlu0 %v4143, 32
    %v4146 = vpop.permute.xlu0 %4145
    %v4151 = vunpack.c.l.b16 %v4064
    %v4152 = vunpack.c.l.b16 %v4065
    %v4153 = vunpack.c.l.b16 %v4066
    %v4154 = vunpack.c.l.b16 %v4067
    %v4155 = vpack.c.b16 %v4152, %v4151
    %v4156 = vpack.c.b16 %v4154, %v4153
    %v4160 = vsel %vm219, %v4146, 0
    %4162 = vmatprep.subr.bf16.mxu0 0
    %4163 = vmatpush1.bf16.msra.mxu0 %v4155
    %4164 = vmatprep.subr.bf16.mxu0 0
    %4165 = vmatpush1.bf16.msra.mxu0 %v4156
    %4166 = vmatprep.subr.bf16.mxu0 0
    %4167 = vmatpush1.bf16.msra.mxu0 0
    %4168 = vmatprep.subr.bf16.mxu0 0
    %4169 = vmatpush1.bf16.msra.mxu0 0
    %4170 = vmatprep.subr.bf16.mxu0 0
    %4171 = vmatpush1.bf16.msra.mxu0 0
    %4172 = vmatprep.subr.bf16.mxu0 0
    %4173 = vmatpush1.bf16.msra.mxu0 0
    %4174 = vmatprep.subr.bf16.mxu0 0
    %4175 = vmatpush1.bf16.msra.mxu0 0
    %4176 = vmatprep.subr.bf16.mxu0 0
    %4177 = vmatpush1.bf16.msra.mxu0 0
    %4178 = vmatprep.subr.bf16.mxu0 0
    %4179 = vmatpush1.bf16.msra.mxu0 0
    %4180 = vmatprep.subr.bf16.mxu0 0
    %4181 = vmatpush1.bf16.msra.mxu0 0
    %4182 = vmatprep.subr.bf16.mxu0 0
    %4183 = vmatpush1.bf16.msra.mxu0 0
    %4184 = vmatprep.subr.bf16.mxu0 0
    %4185 = vmatpush1.bf16.msra.mxu0 0
    %4186 = vmatprep.subr.bf16.mxu0 0
    %4187 = vmatpush1.bf16.msra.mxu0 0
    %4188 = vmatprep.subr.bf16.mxu0 0
    %4189 = vmatpush1.bf16.msra.mxu0 0
    %4190 = vmatprep.subr.bf16.mxu0 0
    %4191 = vmatpush1.bf16.msra.mxu0 0
    %4192 = vmatprep.subr.bf16.mxu0 0
    %4193 = vmatpush1.bf16.msra.mxu0 0
    %4194 = vmatprep.mubr.bf16.mxu0 0
    %4195 = vmatmul.mubr.bf16.gmra.mrb[0].mxu0 %v4160
    %v4196 = vpop.f32.mrb[0].mxu0
    %v4197 = vadd.f32 0.0, %v4196
    %v4198 = vpop.f32.mrb[0].mxu0
    %v4199 = vpop.f32.mrb[0].mxu0
    %v4200 = vpop.f32.mrb[0].mxu0
    %4201 = vdwg.mxu0
    %v4202 = vadd.f32 %v4142, %v4197
    %v4203 = vrot.slane %v4077, 1
    %4204 = vrot.lane.b32.xlu0 %v4203, 32
    %v4205 = vpop.permute.xlu0 %4204
    %v4210 = vunpack.c.l.b16 %v4068
    %v4211 = vunpack.c.l.b16 %v4069
    %v4212 = vunpack.c.l.b16 %v4070
    %v4213 = vunpack.c.l.b16 %v4071
    %v4214 = vpack.c.b16 %v4211, %v4210
    %v4215 = vpack.c.b16 %v4213, %v4212
    %v4219 = vsel %vm219, %v4205, 0
    %4221 = vmatprep.subr.bf16.mxu0 0
    %4222 = vmatpush1.bf16.msra.mxu0 %v4214
    %4223 = vmatprep.subr.bf16.mxu0 0
    %4224 = vmatpush1.bf16.msra.mxu0 %v4215
    %4225 = vmatprep.subr.bf16.mxu0 0
    %4226 = vmatpush1.bf16.msra.mxu0 0
    %4227 = vmatprep.subr.bf16.mxu0 0
    %4228 = vmatpush1.bf16.msra.mxu0 0
    %4229 = vmatprep.subr.bf16.mxu0 0
    %4230 = vmatpush1.bf16.msra.mxu0 0
    %4231 = vmatprep.subr.bf16.mxu0 0
    %4232 = vmatpush1.bf16.msra.mxu0 0
    %4233 = vmatprep.subr.bf16.mxu0 0
    %4234 = vmatpush1.bf16.msra.mxu0 0
    %4235 = vmatprep.subr.bf16.mxu0 0
    %4236 = vmatpush1.bf16.msra.mxu0 0
    %4237 = vmatprep.subr.bf16.mxu0 0
    %4238 = vmatpush1.bf16.msra.mxu0 0
    %4239 = vmatprep.subr.bf16.mxu0 0
    %4240 = vmatpush1.bf16.msra.mxu0 0
    %4241 = vmatprep.subr.bf16.mxu0 0
    %4242 = vmatpush1.bf16.msra.mxu0 0
    %4243 = vmatprep.subr.bf16.mxu0 0
    %4244 = vmatpush1.bf16.msra.mxu0 0
    %4245 = vmatprep.subr.bf16.mxu0 0
    %4246 = vmatpush1.bf16.msra.mxu0 0
    %4247 = vmatprep.subr.bf16.mxu0 0
    %4248 = vmatpush1.bf16.msra.mxu0 0
    %4249 = vmatprep.subr.bf16.mxu0 0
    %4250 = vmatpush1.bf16.msra.mxu0 0
    %4251 = vmatprep.subr.bf16.mxu0 0
    %4252 = vmatpush1.bf16.msra.mxu0 0
    %4253 = vmatprep.mubr.bf16.mxu0 0
    %4254 = vmatmul.mubr.bf16.gmra.mrb[0].mxu0 %v4219
    %v4255 = vpop.f32.mrb[0].mxu0
    %v4256 = vadd.f32 0.0, %v4255
    %v4257 = vpop.f32.mrb[0].mxu0
    %v4258 = vpop.f32.mrb[0].mxu0
    %v4259 = vpop.f32.mrb[0].mxu0
    %4260 = vdwg.mxu0
    %v4261 = vadd.f32 %v4202, %v4256
    %v4262 = vrot.slane %v4143, 1
    %4263 = vrot.lane.b32.xlu0 %v4262, 32
    %v4264 = vpop.permute.xlu0 %4263
    %v4269 = vunpack.c.l.b16 %v4072
    %v4270 = vunpack.c.l.b16 %v4073
    %v4271 = vunpack.c.l.b16 %v4074
    %v4272 = vunpack.c.l.b16 %v4075
    %v4273 = vpack.c.b16 %v4270, %v4269
    %v4274 = vpack.c.b16 %v4272, %v4271
    %v4278 = vsel %vm219, %v4264, 0
    %4280 = vmatprep.subr.bf16.mxu0 0
    %4281 = vmatpush1.bf16.msra.mxu0 %v4273
    %4282 = vmatprep.subr.bf16.mxu0 0
    %4283 = vmatpush1.bf16.msra.mxu0 %v4274
    %4284 = vmatprep.subr.bf16.mxu0 0
    %4285 = vmatpush1.bf16.msra.mxu0 0
    %4286 = vmatprep.subr.bf16.mxu0 0
    %4287 = vmatpush1.bf16.msra.mxu0 0
    %4288 = vmatprep.subr.bf16.mxu0 0
    %4289 = vmatpush1.bf16.msra.mxu0 0
    %4290 = vmatprep.subr.bf16.mxu0 0
    %4291 = vmatpush1.bf16.msra.mxu0 0
    %4292 = vmatprep.subr.bf16.mxu0 0
    %4293 = vmatpush1.bf16.msra.mxu0 0
    %4294 = vmatprep.subr.bf16.mxu0 0
    %4295 = vmatpush1.bf16.msra.mxu0 0
    %4296 = vmatprep.subr.bf16.mxu0 0
    %4297 = vmatpush1.bf16.msra.mxu0 0
    %4298 = vmatprep.subr.bf16.mxu0 0
    %4299 = vmatpush1.bf16.msra.mxu0 0
    %4300 = vmatprep.subr.bf16.mxu0 0
    %4301 = vmatpush1.bf16.msra.mxu0 0
    %4302 = vmatprep.subr.bf16.mxu0 0
    %4303 = vmatpush1.bf16.msra.mxu0 0
    %4304 = vmatprep.subr.bf16.mxu0 0
    %4305 = vmatpush1.bf16.msra.mxu0 0
    %4306 = vmatprep.subr.bf16.mxu0 0
    %4307 = vmatpush1.bf16.msra.mxu0 0
    %4308 = vmatprep.subr.bf16.mxu0 0
    %4309 = vmatpush1.bf16.msra.mxu0 0
    %4310 = vmatprep.subr.bf16.mxu0 0
    %4311 = vmatpush1.bf16.msra.mxu0 0
    %4312 = vmatprep.mubr.bf16.mxu0 0
    %4313 = vmatmul.mubr.bf16.gmra.mrb[0].mxu0 %v4278
    %v4314 = vpop.f32.mrb[0].mxu0
    %v4315 = vadd.f32 0.0, %v4314
    %v4316 = vpop.f32.mrb[0].mxu0
    %v4317 = vpop.f32.mrb[0].mxu0
    %v4318 = vpop.f32.mrb[0].mxu0
    %4319 = vdwg.mxu0
    %v4320 = vadd.f32 %v4261, %v4315
    %v4321 = vmax.f32 %v4320, 0.0
    %s4322 = scalar_lea.vmem %s10, 64
    %v4323 = vld [vmem:[%s4322] sm:$0xf]
    %v4324 = vld [vmem:[%s4322 + $0x4] sm:$0xf]
    %v4325 = vld [vmem:[%s4322 + $0x8] sm:$0xf]
    %v4326 = vld [vmem:[%s4322 + $0xc] sm:$0xf]
    %v4327 = vld [vmem:[%s4322 + $0x10] sm:$0xf]
    %v4328 = vld [vmem:[%s4322 + $0x14] sm:$0xf]
    %v4329 = vld [vmem:[%s4322 + $0x18] sm:$0xf]
    %v4330 = vld [vmem:[%s4322 + $0x1c] sm:$0xf]
    %v4331 = vld [vmem:[%s4322 + $0x20] sm:$0xf]
    %v4332 = vld [vmem:[%s4322 + $0x24] sm:$0xf]
    %v4333 = vld [vmem:[%s4322 + $0x28] sm:$0xf]
    %v4334 = vld [vmem:[%s4322 + $0x2c] sm:$0xf]
    %v4335 = vld [vmem:[%s4322 + $0x30] sm:$0xf]
    %v4336 = vld [vmem:[%s4322 + $0x34] sm:$0xf]
    %v4337 = vld [vmem:[%s4322 + $0x38] sm:$0xf]
    %v4338 = vld [vmem:[%s4322 + $0x3c] sm:$0xf]
    %v4339 = vpack.c.bf16 %v4321, %v4321
    %s4340 = scalar_lea.vmem %s11, 1
    %v4341 = vld [vmem:[%s4340] sm:$0x1]
    %v4343 = vlaneseq
    %v4344 = vshrl.u32 %v4343, 7
    %v4345 = vsub.s32 0, %v4344
    %v4346 = vrot.slane %v4341, %v4345
    %v4364 = vunpack.c.l.b16 %v4323
    %v4365 = vunpack.c.l.b16 %v4324
    %v4366 = vunpack.c.l.b16 %v4325
    %v4367 = vunpack.c.l.b16 %v4326
    %v4368 = vunpack.c.l.b16 %v4327
    %v4369 = vunpack.c.l.b16 %v4328
    %v4370 = vunpack.c.l.b16 %v4329
    %v4371 = vunpack.c.l.b16 %v4330
    %v4372 = vunpack.c.l.b16 %v4331
    %v4373 = vunpack.c.l.b16 %v4332
    %v4374 = vunpack.c.l.b16 %v4333
    %v4375 = vunpack.c.l.b16 %v4334
    %v4376 = vunpack.c.l.b16 %v4335
    %v4377 = vunpack.c.l.b16 %v4336
    %v4378 = vunpack.c.l.b16 %v4337
    %v4379 = vunpack.c.l.b16 %v4338
    %v4380 = vpack.c.b16 %v4365, %v4364
    %v4381 = vpack.c.b16 %v4367, %v4366
    %v4382 = vpack.c.b16 %v4369, %v4368
    %v4383 = vpack.c.b16 %v4371, %v4370
    %v4384 = vpack.c.b16 %v4373, %v4372
    %v4385 = vpack.c.b16 %v4375, %v4374
    %v4386 = vpack.c.b16 %v4377, %v4376
    %v4387 = vpack.c.b16 %v4379, %v4378
    %4396 = vmatprep.subr.bf16.mxu0 0
    %4397 = vmatpush1.bf16.msra.mxu0 %v4380
    %4398 = vmatprep.subr.bf16.mxu0 0
    %4399 = vmatpush1.bf16.msra.mxu0 %v4381
    %4400 = vmatprep.subr.bf16.mxu0 0
    %4401 = vmatpush1.bf16.msra.mxu0 %v4382
    %4402 = vmatprep.subr.bf16.mxu0 0
    %4403 = vmatpush1.bf16.msra.mxu0 %v4383
    %4404 = vmatprep.subr.bf16.mxu0 0
    %4405 = vmatpush1.bf16.msra.mxu0 %v4384
    %4406 = vmatprep.subr.bf16.mxu0 0
    %4407 = vmatpush1.bf16.msra.mxu0 %v4385
    %4408 = vmatprep.subr.bf16.mxu0 0
    %4409 = vmatpush1.bf16.msra.mxu0 %v4386
    %4410 = vmatprep.subr.bf16.mxu0 0
    %4411 = vmatpush1.bf16.msra.mxu0 %v4387
    %4412 = vmatprep.subr.bf16.mxu0 0
    %4413 = vmatpush1.bf16.msra.mxu0 0
    %4414 = vmatprep.subr.bf16.mxu0 0
    %4415 = vmatpush1.bf16.msra.mxu0 0
    %4416 = vmatprep.subr.bf16.mxu0 0
    %4417 = vmatpush1.bf16.msra.mxu0 0
    %4418 = vmatprep.subr.bf16.mxu0 0
    %4419 = vmatpush1.bf16.msra.mxu0 0
    %4420 = vmatprep.subr.bf16.mxu0 0
    %4421 = vmatpush1.bf16.msra.mxu0 0
    %4422 = vmatprep.subr.bf16.mxu0 0
    %4423 = vmatpush1.bf16.msra.mxu0 0
    %4424 = vmatprep.subr.bf16.mxu0 0
    %4425 = vmatpush1.bf16.msra.mxu0 0
    %4426 = vmatprep.subr.bf16.mxu0 0
    %4427 = vmatpush1.bf16.msra.mxu0 0
    %4428 = vmatprep.mubr.bf16.mxu0 0
    %4429 = vmatmul.mubr.bf16.gmra.mrb[0].mxu0 %v4339
    %v4430 = vpop.f32.mrb[0].mxu0
    %v4431 = vadd.f32 %v4346, %v4430
    %v4432 = vpop.f32.mrb[0].mxu0
    %v4433 = vpop.f32.mrb[0].mxu0
    %v4434 = vpop.f32.mrb[0].mxu0
    %4435 = vdwg.mxu0
    %v4436 = vmax.f32 %v4431, 0.0
    %v4437 = vld [vmem:[%s12] sm:$0xf]
    %v4438 = vld [vmem:[%s12 + $0x4] sm:$0xf]
    %v4439 = vld [vmem:[%s12 + $0x8] sm:$0xf]
    %v4440 = vld [vmem:[%s12 + $0xc] sm:$0xf]
    %v4441 = vld [vmem:[%s12 + $0x10] sm:$0xf]
    %v4442 = vld [vmem:[%s12 + $0x14] sm:$0xf]
    %v4443 = vld [vmem:[%s12 + $0x18] sm:$0xf]
    %v4444 = vld [vmem:[%s12 + $0x1c] sm:$0xf]
    %v4445 = vld [vmem:[%s12 + $0x20] sm:$0xf]
    %v4446 = vld [vmem:[%s12 + $0x24] sm:$0xf]
    %v4447 = vld [vmem:[%s12 + $0x28] sm:$0xf]
    %v4448 = vld [vmem:[%s12 + $0x2c] sm:$0xf]
    %v4449 = vld [vmem:[%s12 + $0x30] sm:$0xf]
    %v4450 = vld [vmem:[%s12 + $0x34] sm:$0xf]
    %v4451 = vld [vmem:[%s12 + $0x38] sm:$0xf]
    %v4452 = vld [vmem:[%s12 + $0x3c] sm:$0xf]
    %v4453 = vpack.c.bf16 %v4436, %v4436
    %v4454 = vld [vmem:[%s13] sm:$0x1]
    %v4456 = vlaneseq
    %v4457 = vshrl.u32 %v4456, 7
    %v4458 = vsub.s32 0, %v4457
    %v4459 = vrot.slane %v4454, %v4458
    %v4477 = vunpack.c.l.b16 %v4437
    %v4478 = vunpack.c.l.b16 %v4438
    %v4479 = vunpack.c.l.b16 %v4439
    %v4480 = vunpack.c.l.b16 %v4440
    %v4481 = vunpack.c.l.b16 %v4441
    %v4482 = vunpack.c.l.b16 %v4442
    %v4483 = vunpack.c.l.b16 %v4443
    %v4484 = vunpack.c.l.b16 %v4444
    %v4485 = vunpack.c.l.b16 %v4445
    %v4486 = vunpack.c.l.b16 %v4446
    %v4487 = vunpack.c.l.b16 %v4447
    %v4488 = vunpack.c.l.b16 %v4448
    %v4489 = vunpack.c.l.b16 %v4449
    %v4490 = vunpack.c.l.b16 %v4450
    %v4491 = vunpack.c.l.b16 %v4451
    %v4492 = vunpack.c.l.b16 %v4452
    %v4493 = vpack.c.b16 %v4478, %v4477
    %v4494 = vpack.c.b16 %v4480, %v4479
    %v4495 = vpack.c.b16 %v4482, %v4481
    %v4496 = vpack.c.b16 %v4484, %v4483
    %v4497 = vpack.c.b16 %v4486, %v4485
    %v4498 = vpack.c.b16 %v4488, %v4487
    %v4499 = vpack.c.b16 %v4490, %v4489
    %v4500 = vpack.c.b16 %v4492, %v4491
    %4509 = vmatprep.subr.bf16.mxu0 0
    %4510 = vmatpush1.bf16.msra.mxu0 %v4493
    %4511 = vmatprep.subr.bf16.mxu0 0
    %4512 = vmatpush1.bf16.msra.mxu0 %v4494
    %4513 = vmatprep.subr.bf16.mxu0 0
    %4514 = vmatpush1.bf16.msra.mxu0 %v4495
    %4515 = vmatprep.subr.bf16.mxu0 0
    %4516 = vmatpush1.bf16.msra.mxu0 %v4496
    %4517 = vmatprep.subr.bf16.mxu0 0
    %4518 = vmatpush1.bf16.msra.mxu0 %v4497
    %4519 = vmatprep.subr.bf16.mxu0 0
    %4520 = vmatpush1.bf16.msra.mxu0 %v4498
    %4521 = vmatprep.subr.bf16.mxu0 0
    %4522 = vmatpush1.bf16.msra.mxu0 %v4499
    %4523 = vmatprep.subr.bf16.mxu0 0
    %4524 = vmatpush1.bf16.msra.mxu0 %v4500
    %4525 = vmatprep.subr.bf16.mxu0 0
    %4526 = vmatpush1.bf16.msra.mxu0 0
    %4527 = vmatprep.subr.bf16.mxu0 0
    %4528 = vmatpush1.bf16.msra.mxu0 0
    %4529 = vmatprep.subr.bf16.mxu0 0
    %4530 = vmatpush1.bf16.msra.mxu0 0
    %4531 = vmatprep.subr.bf16.mxu0 0
    %4532 = vmatpush1.bf16.msra.mxu0 0
    %4533 = vmatprep.subr.bf16.mxu0 0
    %4534 = vmatpush1.bf16.msra.mxu0 0
    %4535 = vmatprep.subr.bf16.mxu0 0
    %4536 = vmatpush1.bf16.msra.mxu0 0
    %4537 = vmatprep.subr.bf16.mxu0 0
    %4538 = vmatpush1.bf16.msra.mxu0 0
    %4539 = vmatprep.subr.bf16.mxu0 0
    %4540 = vmatpush1.bf16.msra.mxu0 0
    %4541 = vmatprep.mubr.bf16.mxu0 0
    %4542 = vmatmul.mubr.bf16.gmra.mrb[0].mxu0 %v4453
    %v4543 = vpop.f32.mrb[0].mxu0
    %v4544 = vadd.f32 %v4459, %v4543
    %v4545 = vpop.f32.mrb[0].mxu0
    %v4546 = vpop.f32.mrb[0].mxu0
    %v4547 = vpop.f32.mrb[0].mxu0
    %4548 = vdwg.mxu0
    %4549 = vst [vmem:[#allocation5] sm:$0x3] %v4544
    // Predicated region
    $region58: #{nli_bilstm_forward.1} parent=1 // pred_check
      _
    $region59: #{nli_bilstm_forward.1} parent=1 // pred_check_branch
      %4551 = sbr.rel (0) target = $region61
    $region60: #{nli_bilstm_forward.1} parent=1 // pred_region
      %s4553 = ssub.s32 32, 32
      %4554 = vsyncadd [#allocation6], %s4553
      %s4556 = sshll.u32 [#allocation5], 4
      %s4557 = int_to_ptr.vmem [resolvable:$true] %s4556
      %4559 = dma.vmem_to_hbm [thread:$0]  %s4557, 32, %s14, [#allocation6]
    $region61: #{nli_bilstm_forward.1} parent=1 // pred_fallthru
      _
    // Predicated region
    $region62: #{nli_bilstm_forward.1} parent=1 // pred_check
      _
    $region63: #{nli_bilstm_forward.1} parent=1 // pred_check_branch
      %4561 = sbr.rel (0) target = $region65
    $region64: #{nli_bilstm_forward.1} parent=1 // pred_region
      %4562 = dma.done [#allocation6], 32
    $region65: #{nli_bilstm_forward.1} parent=1 // pred_fallthru
      _
    %4563 = vsyncpa [#allocation6], 1

</llo_original>
